<compile_context>
chip_gen: v7x
topology: tpu7x:2x2x1
jax: 0.10.0
libtpu: 0.0.40
codegen_flags: <defaults>
</compile_context>

<pallas_src>
import numpy as np
import jax
import jax.numpy as jnp
from jax.experimental import pallas as pl
from jax.experimental.pallas import tpu as pltpu

# ---------------- configuration ----------------
OBS = 16         # input_shape (observation dim)
EM = 8           # em_input_shape (task-embedding dim)
D = 32           # base output == em_base output == module_hidden == gating_hidden
L = 4            # num_layers
M = 4            # num_modules
OUT = 6          # output_shape
LANES = 128      # slab lane width (= M * D)
XE_W = 32        # packed input: lanes 0:16 = obs, 16:24 = embedding, rest zero
TILE_B = 128     # rows per grid step (>=128 keeps MXU rows + stores dense)

# ---------------- static slab layout (row offsets are multiples of 8) ----------------
def _ceil8(n):
    return ((n + 7) // 8) * 8


_LAYOUT = {}


def _build_layout():
    rows = 0

    def alloc(name, k, n, bias=True):
        nonlocal rows
        _LAYOUT[name] = (rows, k, n, bias)
        rows += _ceil8(k + (1 if bias else 0))

    # linear layers: K weight rows + 1 bias row
    alloc("wb0", OBS, 32)              # base fc0
    alloc("wb1", 32, D)                # base fc1 (null last activation)
    alloc("we0", EM, D)                # em_base fc0
    alloc("wg0", D, D)                 # gating fc 0
    alloc("wg1", D, D)                 # gating fc 1
    alloc("wgw0", D, M * M)            # gating_weight_fc_0
    alloc("wc1", 1 * M * M, D)         # gating_weight_cond_fc_1
    alloc("ww1", D, M * M)             # gating_weight_fc_1
    alloc("wc2", 2 * M * M, D)         # gating_weight_cond_fc_2
    alloc("ww2", D, M * M)             # gating_weight_fc_2
    alloc("wcl", (L - 1) * M * M, D)   # gating_weight_cond_last
    alloc("wwl", D, M)                 # gating_weight_last
    alloc("wlast", D, OUT)             # final linear (read back 128-wide; pad lanes are zero)
    alloc("wmod0", D, M * D)           # layer-0 modules, packed side by side (D, 128)
    for i in range(L - 1):
        alloc(f"wmodbd{i}", M * D, M * D)   # layers 1..L-1, block-diagonal (128,128)
    # static 0/1 routing matrices (no bias) — keep everything lane-dense in-kernel
    alloc("ssum", M * M, M * M, bias=False)         # per-group softmax sums, replicated
    for k in range(M):
        alloc(f"gexp{k}", M * M, M * D, bias=False)  # gate[:, j*M+k] -> lanes j*D:(j+1)*D
    for k in range(M):
        alloc(f"mrep{k}", M * D, M * D, bias=False)  # mod lanes k*D:(k+1)*D -> every j block
    alloc("lexp", M, M * D, bias=False)              # last_w[:, j] -> lanes j*D:(j+1)*D
    alloc("rsum", M * D, D, bias=False)              # sum the M D-blocks -> (.., D)
    return rows


P_ROWS = _build_layout()


# ---------------- kernel ----------------
def soft_module_kernel(xe_ref, p_ref, o_ref):
    def mat(name, k0=None, k1=None):
        r0, k, n, _ = _LAYOUT[name]
        if k0 is None:
            k0, k1 = 0, k
        return p_ref[r0 + k0:r0 + k1, 0:n]

    def bias(name):
        r0, k, n, _ = _LAYOUT[name]
        return p_ref[r0 + k:r0 + k + 1, 0:n]

    def dot(a, b):
        return jnp.dot(a, b, preferred_element_type=jnp.float32)

    def lin(v, name):
        return dot(v, mat(name)) + bias(name)

    def relu(v):
        return jnp.maximum(v, 0.0)

    def group_softmax(raw):                       # raw: (TB, M*M), stays lane-dense
        rowmax = jnp.max(raw, axis=-1, keepdims=True)   # per-group constant shift -> valid
        e = jnp.exp(raw - rowmax)
        gsum = dot(e, mat("ssum"))                # block-diag ones: group sums, replicated
        return e * pl.reciprocal(gsum)            # exact recip (approx=True loosens 1e-3 tol)

    xe = xe_ref[...]
    x = xe[:, 0:OBS]
    e = xe[:, OBS:OBS + EM]

    # ---- base MLP (relu hidden, null last activation) + em_base ----
    base_out = lin(relu(lin(x, "wb0")), "wb1")
    emb = lin(e, "we0")
    emb = emb * base_out                          # cond_ob = True
    out = relu(base_out)

    # ---- gating fcs (num_gating_layers = 2) ----
    emb = relu(emb)
    emb = relu(lin(emb, "wg0"))
    emb = lin(emb, "wg1")

    # ---- gating weight 0 ----
    sw0 = group_softmax(lin(relu(emb), "wgw0"))   # (TB, 16)

    # ---- cascaded gating weights (concat-free partial dots) ----
    cond = relu((dot(sw0, mat("wc1")) + bias("wc1")) * emb)
    sw1 = group_softmax(lin(cond, "ww1"))

    cond = relu((dot(sw0, mat("wc2", 0, M * M))
                 + dot(sw1, mat("wc2", M * M, 2 * M * M))
                 + bias("wc2")) * emb)
    sw2 = group_softmax(lin(cond, "ww2"))

    cond = relu((dot(sw0, mat("wcl", 0, M * M))
                 + dot(sw1, mat("wcl", M * M, 2 * M * M))
                 + dot(sw2, mat("wcl", 2 * M * M, 3 * M * M))
                 + bias("wcl")) * emb)
    raw_last = lin(cond, "wwl")                   # (TB, M)
    el = jnp.exp(raw_last - jnp.max(raw_last, axis=-1, keepdims=True))
    last_w = el * pl.reciprocal(jnp.sum(el, axis=-1, keepdims=True))

    # ---- module cascade: stays (TB, 128) lane-dense, no (B,M,D) reshapes ----
    mod = lin(out, "wmod0")                       # (TB, 128)
    for i, sw in enumerate((sw0, sw1, sw2)):
        mixed = None
        for k in range(M):
            ge = dot(sw, mat(f"gexp{k}"))         # gate[:, j, k] broadcast over D-block j
            mr = dot(mod, mat(f"mrep{k}"))        # mod D-block k replicated to every j block
            term = ge * mr                        # one VPU FMA per k on (TB,128)
            mixed = term if mixed is None else mixed + term
        mod = lin(relu(mixed), f"wmodbd{i}")      # block-diagonal (128,128) module matmul

    # ---- final gated sum + last linear, lane-dense 128-wide output store ----
    prod = dot(last_w, mat("lexp")) * mod         # (TB, 128)
    final = relu(dot(prod, mat("rsum")))          # (TB, D): sums the M D-blocks
    r0, k, _, _ = _LAYOUT["wlast"]
    w_last = p_ref[r0:r0 + k, 0:LANES]            # zero beyond lane OUT
    b_last = p_ref[r0 + k:r0 + k + 1, 0:LANES]
    o_ref[...] = dot(final, w_last) + b_last      # full 128-lane unmasked store


# ---------------- wrapper ----------------
@jax.jit
def _soft_module_call(xe, slab):
    n_tiles = xe.shape[0] // TILE_B
    return pl.pallas_call(
        soft_module_kernel,
        out_shape=jax.ShapeDtypeStruct((xe.shape[0], LANES), jnp.float32),
        grid=(n_tiles,),
        in_specs=[
            pl.BlockSpec((TILE_B, XE_W), lambda i: (i, 0)),
            pl.BlockSpec((P_ROWS, LANES), lambda i: (0, 0)),   # slab stays VMEM-resident
        ],
        out_specs=pl.BlockSpec((TILE_B, LANES), lambda i: (i, 0)),
        compiler_params=pltpu.CompilerParams(
            dimension_semantics=("parallel",)),                # shards tiles across TCs on v7x
    )(xe, slab)


def soft_module_forward(x, e, slab):
    """x: (B, OBS), e: (B, EM) -> (B, OUT). Pads rows to a multiple of TILE_B."""
    b = x.shape[0]
    b_pad = ((b + TILE_B - 1) // TILE_B) * TILE_B
    xe = jnp.zeros((b_pad, XE_W), jnp.float32)
    xe = xe.at[:b, 0:OBS].set(x.astype(jnp.float32))
    xe = xe.at[:b, OBS:OBS + EM].set(e.astype(jnp.float32))
    y = _soft_module_call(xe, slab)
    return y[:b, :OUT]


# ---------------- deterministic parameter construction (logical params) ----------------
def make_params(key):
    def lin_p(k, fan_in, fan_out):
        k1, k2 = jax.random.split(k)
        w = jax.random.normal(k1, (fan_in, fan_out), jnp.float32) / jnp.sqrt(float(fan_in))
        b = 0.01 * jax.random.normal(k2, (1, fan_out), jnp.float32)
        return w, b

    keys = iter(jax.random.split(key, 64))
    wb0, bb0 = lin_p(next(keys), OBS, 32)
    wb1, bb1 = lin_p(next(keys), 32, D)
    we0, be0 = lin_p(next(keys), EM, D)
    wg0, bg0 = lin_p(next(keys), D, D)
    wg1, bg1 = lin_p(next(keys), D, D)
    wgw0, bgw0 = lin_p(next(keys), D, M * M)
    wc1, bc1 = lin_p(next(keys), 1 * M * M, D)
    ww1, bw1 = lin_p(next(keys), D, M * M)
    wc2, bc2 = lin_p(next(keys), 2 * M * M, D)
    ww2, bw2 = lin_p(next(keys), D, M * M)
    wcl, bcl = lin_p(next(keys), (L - 1) * M * M, D)
    wwl, bwl = lin_p(next(keys), D, M)
    wmods, bmods = [], []
    for _ in range(L):
        wl_, bl_ = [], []
        for _ in range(M):
            w, b = lin_p(next(keys), D, D)
            wl_.append(w)
            bl_.append(b[None])                      # (1, 1, D)
        wmods.append(jnp.stack(wl_))                 # (M, D, D)
        bmods.append(jnp.concatenate(bl_, axis=0))   # (M, 1, D)
    wmod = jnp.stack(wmods)                          # (L, M, D, D)
    bmod = jnp.stack(bmods)                          # (L, M, 1, D)
    wlast, blast = lin_p(next(keys), D, OUT)
    return (wb0, bb0, wb1, bb1, we0, be0, wg0, bg0, wg1, bg1,
            wgw0, bgw0, wc1, bc1, ww1, bw1, wc2, bc2, ww2, bw2,
            wcl, bcl, wwl, bwl, wmod, bmod, wlast, blast)


# ---------------- host-side packing into the single (P_ROWS, 128) slab ----------------
def pack_params(params):
    (wb0, bb0, wb1, bb1, we0, be0, wg0, bg0, wg1, bg1,
     wgw0, bgw0, wc1, bc1, ww1, bw1, wc2, bc2, ww2, bw2,
     wcl, bcl, wwl, bwl, wmod, bmod, wlast, blast) = params
    slab = np.zeros((P_ROWS, LANES), np.float32)

    def put(name, w, b=None):
        r0, k, n, has_bias = _LAYOUT[name]
        w = np.asarray(w, np.float32)
        assert w.shape == (k, n), (name, w.shape, (k, n))
        slab[r0:r0 + k, :n] = w
        if has_bias:
            slab[r0 + k, :n] = np.asarray(b, np.float32).reshape(n)

    put("wb0", wb0, bb0)
    put("wb1", wb1, bb1)
    put("we0", we0, be0)
    put("wg0", wg0, bg0)
    put("wg1", wg1, bg1)
    put("wgw0", wgw0, bgw0)
    put("wc1", wc1, bc1)
    put("ww1", ww1, bw1)
    put("wc2", wc2, bc2)
    put("ww2", ww2, bw2)
    put("wcl", wcl, bcl)
    put("wwl", wwl, bwl)
    put("wlast", wlast, blast)

    wmod_np = np.asarray(wmod, np.float32)           # (L, M, D, D)
    bmod_np = np.asarray(bmod, np.float32)           # (L, M, 1, D)
    # layer-0 modules packed side by side: (D, M*D)
    put("wmod0",
        np.concatenate([wmod_np[0, j] for j in range(M)], axis=1),
        np.concatenate([bmod_np[0, j].reshape(1, D) for j in range(M)], axis=1))
    # layers 1..L-1 as block-diagonal (M*D, M*D)
    for i in range(L - 1):
        bd = np.zeros((M * D, M * D), np.float32)
        bb = np.zeros((M * D,), np.float32)
        for j in range(M):
            bd[j * D:(j + 1) * D, j * D:(j + 1) * D] = wmod_np[i + 1, j]
            bb[j * D:(j + 1) * D] = bmod_np[i + 1, j].reshape(D)
        put(f"wmodbd{i}", bd, bb)

    # static 0/1 routing matrices
    ssum = np.zeros((M * M, M * M), np.float32)
    for j in range(M):
        ssum[j * M:(j + 1) * M, j * M:(j + 1) * M] = 1.0
    put("ssum", ssum)
    eye = np.eye(D, dtype=np.float32)
    for k in range(M):
        ge = np.zeros((M * M, M * D), np.float32)
        mr = np.zeros((M * D, M * D), np.float32)
        for j in range(M):
            ge[j * M + k, j * D:(j + 1) * D] = 1.0
            mr[k * D:(k + 1) * D, j * D:(j + 1) * D] = eye
        put(f"gexp{k}", ge)
        put(f"mrep{k}", mr)
    le = np.zeros((M, M * D), np.float32)
    rs = np.zeros((M * D, D), np.float32)
    for j in range(M):
        le[j, j * D:(j + 1) * D] = 1.0
        rs[j * D:(j + 1) * D, :] = eye
    put("lexp", le)
    put("rsum", rs)

    return jnp.asarray(slab)


# ---------------- pure-JAX reference (mirrors the PyTorch forward) ----------------
def reference_forward(x, e, params):
    (wb0, bb0, wb1, bb1, we0, be0, wg0, bg0, wg1, bg1,
     wgw0, bgw0, wc1, bc1, ww1, bw1, wc2, bc2, ww2, bw2,
     wcl, bcl, wwl, bwl, wmod, bmod, wlast, blast) = params
    relu = jax.nn.relu
    b = x.shape[0]
    base_out = relu(x @ wb0 + bb0) @ wb1 + bb1
    emb = e @ we0 + be0
    emb = emb * base_out
    out = relu(base_out)
    emb = relu(emb)
    emb = relu(emb @ wg0 + bg0)
    emb = emb @ wg1 + bg1
    raw = relu(emb) @ wgw0 + bgw0
    sw = jax.nn.softmax(raw.reshape(b, M, M), axis=-1)
    weights = [sw]
    flatten = [sw.reshape(b, M * M)]
    for (wc, bc, ww, bw) in ((wc1, bc1, ww1, bw1), (wc2, bc2, ww2, bw2)):
        cond = jnp.concatenate(flatten, axis=-1)
        cond = cond @ wc + bc
        cond = relu(cond * emb)
        raw = cond @ ww + bw
        sw = jax.nn.softmax(raw.reshape(b, M, M), axis=-1)
        weights.append(sw)
        flatten.append(sw.reshape(b, M * M))
    cond = jnp.concatenate(flatten, axis=-1) @ wcl + bcl
    cond = relu(cond * emb)
    last_w = jax.nn.softmax(cond @ wwl + bwl, axis=-1)
    mod = jnp.einsum('bd,jdk->bjk', out, wmod[0]) + bmod[0][:, 0, :]
    for i in range(L - 1):
        minp = relu(jnp.einsum('bjk,bkd->bjd', weights[i], mod))
        mod = jnp.einsum('bjd,jdk->bjk', minp, wmod[i + 1]) + bmod[i + 1][:, 0, :]
    final = relu(jnp.einsum('bj,bjd->bd', last_w, mod))
    return final @ wlast + blast


if __name__ == "__main__":
    key = jax.random.PRNGKey(0)
    kx, ke, kp = jax.random.split(key, 3)
    B = 200      # folded rollout rows; padded to 256 -> grid of 2 x 128-row tiles
    x = jax.random.normal(kx, (B, OBS), jnp.float32)
    emb_in = jax.random.normal(ke, (B, EM), jnp.float32)
    params = make_params(kp)
    slab = pack_params(params)

    y = soft_module_forward(x, emb_in, slab)
    y = jax.block_until_ready(y)

    y_ref = reference_forward(x, emb_in, params)
    assert y.shape == (B, OUT)
    err = jnp.max(jnp.abs(y - y_ref))
    assert jnp.allclose(y, y_ref, atol=1e-3, rtol=1e-3), f"mismatch: max abs err {err}"
    print("KERNEL_OK")
</pallas_src>

<mosaic_0001>
module attributes {stable_mosaic.version = 11 : i64} {
  func.func @soft_module_kernel(%arg0: i32, %arg1: memref<128x32xf32, #tpu.memory_space<vmem>>, %arg2: memref<1656x128xf32, #tpu.memory_space<vmem>>, %arg3: memref<128x128xf32, #tpu.memory_space<vmem>>) attributes {dimension_semantics = [#tpu.dimension_semantics<parallel>], iteration_bounds = array<i64: 2>, scalar_prefetch = 0 : i64, scratch_operands = 0 : i64, tpu.core_type = #tpu.core_type<tc>, window_params = [{transform_indices = @transform_0, window_bounds = array<i64: 128, 32>}, {pipeline_mode = #tpu.pipeline_mode<synchronous>, transform_indices = @transform_1, window_bounds = array<i64: 1656, 128>}, {transform_indices = @transform_2, window_bounds = array<i64: 128, 128>}]} {
    %c0 = arith.constant 0 : index
    %c0_0 = arith.constant 0 : index
    %0 = vector.load %arg1[%c0, %c0_0] : memref<128x32xf32, #tpu.memory_space<vmem>>, vector<128x32xf32>
    %1 = vector.extract_strided_slice %0 {offsets = [0, 0], sizes = [128, 16], strides = [1, 1]} : vector<128x32xf32> to vector<128x16xf32>
    %2 = vector.extract_strided_slice %0 {offsets = [0, 16], sizes = [128, 8], strides = [1, 1]} : vector<128x32xf32> to vector<128x8xf32>
    %c0_1 = arith.constant 0 : index
    %c0_2 = arith.constant 0 : index
    %3 = vector.load %arg2[%c0_1, %c0_2] : memref<1656x128xf32, #tpu.memory_space<vmem>>, vector<16x32xf32>
    %cst = arith.constant dense<0.000000e+00> : vector<128x32xf32>
    %4 = tpu.matmul %1, %3, %cst {dimension_numbers = #tpu.dot_dimension_numbers<[1], [0], [0], [1], [0, 0, 1, 1], [], []>} : vector<128x16xf32>, vector<16x32xf32>, vector<128x32xf32> -> vector<128x32xf32>
    %c16 = arith.constant 16 : index
    %c0_3 = arith.constant 0 : index
    %5 = vector.load %arg2[%c16, %c0_3] : memref<1656x128xf32, #tpu.memory_space<vmem>>, vector<1x32xf32>
    %6 = vector.broadcast %5 : vector<1x32xf32> to vector<128x32xf32>
    %7 = arith.addf %4, %6 : vector<128x32xf32>
    %cst_4 = arith.constant 0.000000e+00 : f32
    %8 = vector.broadcast %cst_4 : f32 to vector<128x32xf32>
    %9 = arith.maximumf %7, %8 : vector<128x32xf32>
    %c24 = arith.constant 24 : index
    %c0_5 = arith.constant 0 : index
    %10 = vector.load %arg2[%c24, %c0_5] : memref<1656x128xf32, #tpu.memory_space<vmem>>, vector<32x32xf32>
    %cst_6 = arith.constant dense<0.000000e+00> : vector<128x32xf32>
    %11 = tpu.matmul %9, %10, %cst_6 {dimension_numbers = #tpu.dot_dimension_numbers<[1], [0], [0], [1], [0, 0, 1, 1], [], []>} : vector<128x32xf32>, vector<32x32xf32>, vector<128x32xf32> -> vector<128x32xf32>
    %c56 = arith.constant 56 : index
    %c0_7 = arith.constant 0 : index
    %12 = vector.load %arg2[%c56, %c0_7] : memref<1656x128xf32, #tpu.memory_space<vmem>>, vector<1x32xf32>
    %13 = vector.broadcast %12 : vector<1x32xf32> to vector<128x32xf32>
    %14 = arith.addf %11, %13 : vector<128x32xf32>
    %c64 = arith.constant 64 : index
    %c0_8 = arith.constant 0 : index
    %15 = vector.load %arg2[%c64, %c0_8] : memref<1656x128xf32, #tpu.memory_space<vmem>>, vector<8x32xf32>
    %cst_9 = arith.constant dense<0.000000e+00> : vector<128x32xf32>
    %16 = tpu.matmul %2, %15, %cst_9 {dimension_numbers = #tpu.dot_dimension_numbers<[1], [0], [0], [1], [0, 0, 1, 1], [], []>} : vector<128x8xf32>, vector<8x32xf32>, vector<128x32xf32> -> vector<128x32xf32>
    %c72 = arith.constant 72 : index
    %c0_10 = arith.constant 0 : index
    %17 = vector.load %arg2[%c72, %c0_10] : memref<1656x128xf32, #tpu.memory_space<vmem>>, vector<1x32xf32>
    %18 = vector.broadcast %17 : vector<1x32xf32> to vector<128x32xf32>
    %19 = arith.addf %16, %18 : vector<128x32xf32>
    %20 = arith.mulf %19, %14 : vector<128x32xf32>
    %cst_11 = arith.constant 0.000000e+00 : f32
    %21 = vector.broadcast %cst_11 : f32 to vector<128x32xf32>
    %22 = arith.maximumf %14, %21 : vector<128x32xf32>
    %cst_12 = arith.constant 0.000000e+00 : f32
    %23 = vector.broadcast %cst_12 : f32 to vector<128x32xf32>
    %24 = arith.maximumf %20, %23 : vector<128x32xf32>
    %c80 = arith.constant 80 : index
    %c0_13 = arith.constant 0 : index
    %25 = vector.load %arg2[%c80, %c0_13] : memref<1656x128xf32, #tpu.memory_space<vmem>>, vector<32x32xf32>
    %cst_14 = arith.constant dense<0.000000e+00> : vector<128x32xf32>
    %26 = tpu.matmul %24, %25, %cst_14 {dimension_numbers = #tpu.dot_dimension_numbers<[1], [0], [0], [1], [0, 0, 1, 1], [], []>} : vector<128x32xf32>, vector<32x32xf32>, vector<128x32xf32> -> vector<128x32xf32>
    %c112 = arith.constant 112 : index
    %c0_15 = arith.constant 0 : index
    %27 = vector.load %arg2[%c112, %c0_15] : memref<1656x128xf32, #tpu.memory_space<vmem>>, vector<1x32xf32>
    %28 = vector.broadcast %27 : vector<1x32xf32> to vector<128x32xf32>
    %29 = arith.addf %26, %28 : vector<128x32xf32>
    %cst_16 = arith.constant 0.000000e+00 : f32
    %30 = vector.broadcast %cst_16 : f32 to vector<128x32xf32>
    %31 = arith.maximumf %29, %30 : vector<128x32xf32>
    %c120 = arith.constant 120 : index
    %c0_17 = arith.constant 0 : index
    %32 = vector.load %arg2[%c120, %c0_17] : memref<1656x128xf32, #tpu.memory_space<vmem>>, vector<32x32xf32>
    %cst_18 = arith.constant dense<0.000000e+00> : vector<128x32xf32>
    %33 = tpu.matmul %31, %32, %cst_18 {dimension_numbers = #tpu.dot_dimension_numbers<[1], [0], [0], [1], [0, 0, 1, 1], [], []>} : vector<128x32xf32>, vector<32x32xf32>, vector<128x32xf32> -> vector<128x32xf32>
    %c152 = arith.constant 152 : index
    %c0_19 = arith.constant 0 : index
    %34 = vector.load %arg2[%c152, %c0_19] : memref<1656x128xf32, #tpu.memory_space<vmem>>, vector<1x32xf32>
    %35 = vector.broadcast %34 : vector<1x32xf32> to vector<128x32xf32>
    %36 = arith.addf %33, %35 : vector<128x32xf32>
    %cst_20 = arith.constant 0.000000e+00 : f32
    %37 = vector.broadcast %cst_20 : f32 to vector<128x32xf32>
    %38 = arith.maximumf %36, %37 : vector<128x32xf32>
    %c160 = arith.constant 160 : index
    %c0_21 = arith.constant 0 : index
    %39 = vector.load %arg2[%c160, %c0_21] : memref<1656x128xf32, #tpu.memory_space<vmem>>, vector<32x16xf32>
    %cst_22 = arith.constant dense<0.000000e+00> : vector<128x16xf32>
    %40 = tpu.matmul %38, %39, %cst_22 {dimension_numbers = #tpu.dot_dimension_numbers<[1], [0], [0], [1], [0, 0, 1, 1], [], []>} : vector<128x32xf32>, vector<32x16xf32>, vector<128x16xf32> -> vector<128x16xf32>
    %c192 = arith.constant 192 : index
    %c0_23 = arith.constant 0 : index
    %41 = vector.load %arg2[%c192, %c0_23] : memref<1656x128xf32, #tpu.memory_space<vmem>>, vector<1x16xf32>
    %42 = vector.broadcast %41 : vector<1x16xf32> to vector<128x16xf32>
    %43 = arith.addf %40, %42 : vector<128x16xf32>
    %cst_24 = arith.constant dense<0xFF800000> : vector<128xf32>
    %44 = vector.multi_reduction <maximumf>, %43, %cst_24 [1] : vector<128x16xf32> to vector<128xf32>
    %45 = vector.shape_cast %44 : vector<128xf32> to vector<128x1xf32>
    %46 = vector.broadcast %45 : vector<128x1xf32> to vector<128x16xf32>
    %47 = arith.subf %43, %46 : vector<128x16xf32>
    %48 = math.exp %47 : vector<128x16xf32>
    %c928 = arith.constant 928 : index
    %c0_25 = arith.constant 0 : index
    %49 = vector.load %arg2[%c928, %c0_25] : memref<1656x128xf32, #tpu.memory_space<vmem>>, vector<16x16xf32>
    %cst_26 = arith.constant dense<0.000000e+00> : vector<128x16xf32>
    %50 = tpu.matmul %48, %49, %cst_26 {dimension_numbers = #tpu.dot_dimension_numbers<[1], [0], [0], [1], [0, 0, 1, 1], [], []>} : vector<128x16xf32>, vector<16x16xf32>, vector<128x16xf32> -> vector<128x16xf32>
    %51 = tpu.reciprocal %50 : vector<128x16xf32> -> vector<128x16xf32>
    %52 = arith.mulf %48, %51 : vector<128x16xf32>
    %c200 = arith.constant 200 : index
    %c0_27 = arith.constant 0 : index
    %53 = vector.load %arg2[%c200, %c0_27] : memref<1656x128xf32, #tpu.memory_space<vmem>>, vector<16x32xf32>
    %cst_28 = arith.constant dense<0.000000e+00> : vector<128x32xf32>
    %54 = tpu.matmul %52, %53, %cst_28 {dimension_numbers = #tpu.dot_dimension_numbers<[1], [0], [0], [1], [0, 0, 1, 1], [], []>} : vector<128x16xf32>, vector<16x32xf32>, vector<128x32xf32> -> vector<128x32xf32>
    %c216 = arith.constant 216 : index
    %c0_29 = arith.constant 0 : index
    %55 = vector.load %arg2[%c216, %c0_29] : memref<1656x128xf32, #tpu.memory_space<vmem>>, vector<1x32xf32>
    %56 = vector.broadcast %55 : vector<1x32xf32> to vector<128x32xf32>
    %57 = arith.addf %54, %56 : vector<128x32xf32>
    %58 = arith.mulf %57, %36 : vector<128x32xf32>
    %cst_30 = arith.constant 0.000000e+00 : f32
    %59 = vector.broadcast %cst_30 : f32 to vector<128x32xf32>
    %60 = arith.maximumf %58, %59 : vector<128x32xf32>
    %c224 = arith.constant 224 : index
    %c0_31 = arith.constant 0 : index
    %61 = vector.load %arg2[%c224, %c0_31] : memref<1656x128xf32, #tpu.memory_space<vmem>>, vector<32x16xf32>
    %cst_32 = arith.constant dense<0.000000e+00> : vector<128x16xf32>
    %62 = tpu.matmul %60, %61, %cst_32 {dimension_numbers = #tpu.dot_dimension_numbers<[1], [0], [0], [1], [0, 0, 1, 1], [], []>} : vector<128x32xf32>, vector<32x16xf32>, vector<128x16xf32> -> vector<128x16xf32>
    %c256 = arith.constant 256 : index
    %c0_33 = arith.constant 0 : index
    %63 = vector.load %arg2[%c256, %c0_33] : memref<1656x128xf32, #tpu.memory_space<vmem>>, vector<1x16xf32>
    %64 = vector.broadcast %63 : vector<1x16xf32> to vector<128x16xf32>
    %65 = arith.addf %62, %64 : vector<128x16xf32>
    %cst_34 = arith.constant dense<0xFF800000> : vector<128xf32>
    %66 = vector.multi_reduction <maximumf>, %65, %cst_34 [1] : vector<128x16xf32> to vector<128xf32>
    %67 = vector.shape_cast %66 : vector<128xf32> to vector<128x1xf32>
    %68 = vector.broadcast %67 : vector<128x1xf32> to vector<128x16xf32>
    %69 = arith.subf %65, %68 : vector<128x16xf32>
    %70 = math.exp %69 : vector<128x16xf32>
    %c928_35 = arith.constant 928 : index
    %c0_36 = arith.constant 0 : index
    %71 = vector.load %arg2[%c928_35, %c0_36] : memref<1656x128xf32, #tpu.memory_space<vmem>>, vector<16x16xf32>
    %cst_37 = arith.constant dense<0.000000e+00> : vector<128x16xf32>
    %72 = tpu.matmul %70, %71, %cst_37 {dimension_numbers = #tpu.dot_dimension_numbers<[1], [0], [0], [1], [0, 0, 1, 1], [], []>} : vector<128x16xf32>, vector<16x16xf32>, vector<128x16xf32> -> vector<128x16xf32>
    %73 = tpu.reciprocal %72 : vector<128x16xf32> -> vector<128x16xf32>
    %74 = arith.mulf %70, %73 : vector<128x16xf32>
    %c264 = arith.constant 264 : index
    %c0_38 = arith.constant 0 : index
    %75 = vector.load %arg2[%c264, %c0_38] : memref<1656x128xf32, #tpu.memory_space<vmem>>, vector<16x32xf32>
    %cst_39 = arith.constant dense<0.000000e+00> : vector<128x32xf32>
    %76 = tpu.matmul %52, %75, %cst_39 {dimension_numbers = #tpu.dot_dimension_numbers<[1], [0], [0], [1], [0, 0, 1, 1], [], []>} : vector<128x16xf32>, vector<16x32xf32>, vector<128x32xf32> -> vector<128x32xf32>
    %c280 = arith.constant 280 : index
    %c0_40 = arith.constant 0 : index
    %77 = vector.load %arg2[%c280, %c0_40] : memref<1656x128xf32, #tpu.memory_space<vmem>>, vector<16x32xf32>
    %cst_41 = arith.constant dense<0.000000e+00> : vector<128x32xf32>
    %78 = tpu.matmul %74, %77, %cst_41 {dimension_numbers = #tpu.dot_dimension_numbers<[1], [0], [0], [1], [0, 0, 1, 1], [], []>} : vector<128x16xf32>, vector<16x32xf32>, vector<128x32xf32> -> vector<128x32xf32>
    %79 = arith.addf %76, %78 : vector<128x32xf32>
    %c296 = arith.constant 296 : index
    %c0_42 = arith.constant 0 : index
    %80 = vector.load %arg2[%c296, %c0_42] : memref<1656x128xf32, #tpu.memory_space<vmem>>, vector<1x32xf32>
    %81 = vector.broadcast %80 : vector<1x32xf32> to vector<128x32xf32>
    %82 = arith.addf %79, %81 : vector<128x32xf32>
    %83 = arith.mulf %82, %36 : vector<128x32xf32>
    %cst_43 = arith.constant 0.000000e+00 : f32
    %84 = vector.broadcast %cst_43 : f32 to vector<128x32xf32>
    %85 = arith.maximumf %83, %84 : vector<128x32xf32>
    %c304 = arith.constant 304 : index
    %c0_44 = arith.constant 0 : index
    %86 = vector.load %arg2[%c304, %c0_44] : memref<1656x128xf32, #tpu.memory_space<vmem>>, vector<32x16xf32>
    %cst_45 = arith.constant dense<0.000000e+00> : vector<128x16xf32>
    %87 = tpu.matmul %85, %86, %cst_45 {dimension_numbers = #tpu.dot_dimension_numbers<[1], [0], [0], [1], [0, 0, 1, 1], [], []>} : vector<128x32xf32>, vector<32x16xf32>, vector<128x16xf32> -> vector<128x16xf32>
    %c336 = arith.constant 336 : index
    %c0_46 = arith.constant 0 : index
    %88 = vector.load %arg2[%c336, %c0_46] : memref<1656x128xf32, #tpu.memory_space<vmem>>, vector<1x16xf32>
    %89 = vector.broadcast %88 : vector<1x16xf32> to vector<128x16xf32>
    %90 = arith.addf %87, %89 : vector<128x16xf32>
    %cst_47 = arith.constant dense<0xFF800000> : vector<128xf32>
    %91 = vector.multi_reduction <maximumf>, %90, %cst_47 [1] : vector<128x16xf32> to vector<128xf32>
    %92 = vector.shape_cast %91 : vector<128xf32> to vector<128x1xf32>
    %93 = vector.broadcast %92 : vector<128x1xf32> to vector<128x16xf32>
    %94 = arith.subf %90, %93 : vector<128x16xf32>
    %95 = math.exp %94 : vector<128x16xf32>
    %c928_48 = arith.constant 928 : index
    %c0_49 = arith.constant 0 : index
    %96 = vector.load %arg2[%c928_48, %c0_49] : memref<1656x128xf32, #tpu.memory_space<vmem>>, vector<16x16xf32>
    %cst_50 = arith.constant dense<0.000000e+00> : vector<128x16xf32>
    %97 = tpu.matmul %95, %96, %cst_50 {dimension_numbers = #tpu.dot_dimension_numbers<[1], [0], [0], [1], [0, 0, 1, 1], [], []>} : vector<128x16xf32>, vector<16x16xf32>, vector<128x16xf32> -> vector<128x16xf32>
    %98 = tpu.reciprocal %97 : vector<128x16xf32> -> vector<128x16xf32>
    %99 = arith.mulf %95, %98 : vector<128x16xf32>
    %c344 = arith.constant 344 : index
    %c0_51 = arith.constant 0 : index
    %100 = vector.load %arg2[%c344, %c0_51] : memref<1656x128xf32, #tpu.memory_space<vmem>>, vector<16x32xf32>
    %cst_52 = arith.constant dense<0.000000e+00> : vector<128x32xf32>
    %101 = tpu.matmul %52, %100, %cst_52 {dimension_numbers = #tpu.dot_dimension_numbers<[1], [0], [0], [1], [0, 0, 1, 1], [], []>} : vector<128x16xf32>, vector<16x32xf32>, vector<128x32xf32> -> vector<128x32xf32>
    %c360 = arith.constant 360 : index
    %c0_53 = arith.constant 0 : index
    %102 = vector.load %arg2[%c360, %c0_53] : memref<1656x128xf32, #tpu.memory_space<vmem>>, vector<16x32xf32>
    %cst_54 = arith.constant dense<0.000000e+00> : vector<128x32xf32>
    %103 = tpu.matmul %74, %102, %cst_54 {dimension_numbers = #tpu.dot_dimension_numbers<[1], [0], [0], [1], [0, 0, 1, 1], [], []>} : vector<128x16xf32>, vector<16x32xf32>, vector<128x32xf32> -> vector<128x32xf32>
    %104 = arith.addf %101, %103 : vector<128x32xf32>
    %c376 = arith.constant 376 : index
    %c0_55 = arith.constant 0 : index
    %105 = vector.load %arg2[%c376, %c0_55] : memref<1656x128xf32, #tpu.memory_space<vmem>>, vector<16x32xf32>
    %cst_56 = arith.constant dense<0.000000e+00> : vector<128x32xf32>
    %106 = tpu.matmul %99, %105, %cst_56 {dimension_numbers = #tpu.dot_dimension_numbers<[1], [0], [0], [1], [0, 0, 1, 1], [], []>} : vector<128x16xf32>, vector<16x32xf32>, vector<128x32xf32> -> vector<128x32xf32>
    %107 = arith.addf %104, %106 : vector<128x32xf32>
    %c392 = arith.constant 392 : index
    %c0_57 = arith.constant 0 : index
    %108 = vector.load %arg2[%c392, %c0_57] : memref<1656x128xf32, #tpu.memory_space<vmem>>, vector<1x32xf32>
    %109 = vector.broadcast %108 : vector<1x32xf32> to vector<128x32xf32>
    %110 = arith.addf %107, %109 : vector<128x32xf32>
    %111 = arith.mulf %110, %36 : vector<128x32xf32>
    %cst_58 = arith.constant 0.000000e+00 : f32
    %112 = vector.broadcast %cst_58 : f32 to vector<128x32xf32>
    %113 = arith.maximumf %111, %112 : vector<128x32xf32>
    %c400 = arith.constant 400 : index
    %c0_59 = arith.constant 0 : index
    %114 = vector.load %arg2[%c400, %c0_59] : memref<1656x128xf32, #tpu.memory_space<vmem>>, vector<32x4xf32>
    %cst_60 = arith.constant dense<0.000000e+00> : vector<128x4xf32>
    %115 = tpu.matmul %113, %114, %cst_60 {dimension_numbers = #tpu.dot_dimension_numbers<[1], [0], [0], [1], [0, 0, 1, 1], [], []>} : vector<128x32xf32>, vector<32x4xf32>, vector<128x4xf32> -> vector<128x4xf32>
    %c432 = arith.constant 432 : index
    %c0_61 = arith.constant 0 : index
    %116 = vector.load %arg2[%c432, %c0_61] : memref<1656x128xf32, #tpu.memory_space<vmem>>, vector<1x4xf32>
    %117 = vector.broadcast %116 : vector<1x4xf32> to vector<128x4xf32>
    %118 = arith.addf %115, %117 : vector<128x4xf32>
    %cst_62 = arith.constant dense<0xFF800000> : vector<128xf32>
    %119 = vector.multi_reduction <maximumf>, %118, %cst_62 [1] : vector<128x4xf32> to vector<128xf32>
    %120 = vector.shape_cast %119 : vector<128xf32> to vector<128x1xf32>
    %121 = vector.broadcast %120 : vector<128x1xf32> to vector<128x4xf32>
    %122 = arith.subf %118, %121 : vector<128x4xf32>
    %123 = math.exp %122 : vector<128x4xf32>
    %cst_63 = arith.constant dense<0.000000e+00> : vector<128xf32>
    %124 = vector.multi_reduction <add>, %123, %cst_63 [1] : vector<128x4xf32> to vector<128xf32>
    %125 = vector.shape_cast %124 : vector<128xf32> to vector<128x1xf32>
    %126 = tpu.reciprocal %125 : vector<128x1xf32> -> vector<128x1xf32>
    %127 = vector.broadcast %126 : vector<128x1xf32> to vector<128x4xf32>
    %128 = arith.mulf %123, %127 : vector<128x4xf32>
    %c480 = arith.constant 480 : index
    %c0_64 = arith.constant 0 : index
    %129 = vector.load %arg2[%c480, %c0_64] : memref<1656x128xf32, #tpu.memory_space<vmem>>, vector<32x128xf32>
    %cst_65 = arith.constant dense<0.000000e+00> : vector<128x128xf32>
    %130 = tpu.matmul %22, %129, %cst_65 {dimension_numbers = #tpu.dot_dimension_numbers<[1], [0], [0], [1], [0, 0, 1, 1], [], []>} : vector<128x32xf32>, vector<32x128xf32>, vector<128x128xf32> -> vector<128x128xf32>
    %c512 = arith.constant 512 : index
    %c0_66 = arith.constant 0 : index
    %131 = vector.load %arg2[%c512, %c0_66] : memref<1656x128xf32, #tpu.memory_space<vmem>>, vector<1x128xf32>
    %132 = vector.broadcast %131 : vector<1x128xf32> to vector<128x128xf32>
    %133 = arith.addf %130, %132 : vector<128x128xf32>
    %c944 = arith.constant 944 : index
    %c0_67 = arith.constant 0 : index
    %134 = vector.load %arg2[%c944, %c0_67] : memref<1656x128xf32, #tpu.memory_space<vmem>>, vector<16x128xf32>
    %cst_68 = arith.constant dense<0.000000e+00> : vector<128x128xf32>
    %135 = tpu.matmul %52, %134, %cst_68 {dimension_numbers = #tpu.dot_dimension_numbers<[1], [0], [0], [1], [0, 0, 1, 1], [], []>} : vector<128x16xf32>, vector<16x128xf32>, vector<128x128xf32> -> vector<128x128xf32>
    %c1008 = arith.constant 1008 : index
    %c0_69 = arith.constant 0 : index
    %136 = vector.load %arg2[%c1008, %c0_69] : memref<1656x128xf32, #tpu.memory_space<vmem>>, vector<128x128xf32>
    %cst_70 = arith.constant dense<0.000000e+00> : vector<128x128xf32>
    %137 = tpu.matmul %133, %136, %cst_70 {dimension_numbers = #tpu.dot_dimension_numbers<[1], [0], [0], [1], [0, 0, 1, 1], [], []>} : vector<128x128xf32>, vector<128x128xf32>, vector<128x128xf32> -> vector<128x128xf32>
    %138 = arith.mulf %135, %137 : vector<128x128xf32>
    %c960 = arith.constant 960 : index
    %c0_71 = arith.constant 0 : index
    %139 = vector.load %arg2[%c960, %c0_71] : memref<1656x128xf32, #tpu.memory_space<vmem>>, vector<16x128xf32>
    %cst_72 = arith.constant dense<0.000000e+00> : vector<128x128xf32>
    %140 = tpu.matmul %52, %139, %cst_72 {dimension_numbers = #tpu.dot_dimension_numbers<[1], [0], [0], [1], [0, 0, 1, 1], [], []>} : vector<128x16xf32>, vector<16x128xf32>, vector<128x128xf32> -> vector<128x128xf32>
    %c1136 = arith.constant 1136 : index
    %c0_73 = arith.constant 0 : index
    %141 = vector.load %arg2[%c1136, %c0_73] : memref<1656x128xf32, #tpu.memory_space<vmem>>, vector<128x128xf32>
    %cst_74 = arith.constant dense<0.000000e+00> : vector<128x128xf32>
    %142 = tpu.matmul %133, %141, %cst_74 {dimension_numbers = #tpu.dot_dimension_numbers<[1], [0], [0], [1], [0, 0, 1, 1], [], []>} : vector<128x128xf32>, vector<128x128xf32>, vector<128x128xf32> -> vector<128x128xf32>
    %143 = arith.mulf %140, %142 : vector<128x128xf32>
    %144 = arith.addf %138, %143 : vector<128x128xf32>
    %c976 = arith.constant 976 : index
    %c0_75 = arith.constant 0 : index
    %145 = vector.load %arg2[%c976, %c0_75] : memref<1656x128xf32, #tpu.memory_space<vmem>>, vector<16x128xf32>
    %cst_76 = arith.constant dense<0.000000e+00> : vector<128x128xf32>
    %146 = tpu.matmul %52, %145, %cst_76 {dimension_numbers = #tpu.dot_dimension_numbers<[1], [0], [0], [1], [0, 0, 1, 1], [], []>} : vector<128x16xf32>, vector<16x128xf32>, vector<128x128xf32> -> vector<128x128xf32>
    %c1264 = arith.constant 1264 : index
    %c0_77 = arith.constant 0 : index
    %147 = vector.load %arg2[%c1264, %c0_77] : memref<1656x128xf32, #tpu.memory_space<vmem>>, vector<128x128xf32>
    %cst_78 = arith.constant dense<0.000000e+00> : vector<128x128xf32>
    %148 = tpu.matmul %133, %147, %cst_78 {dimension_numbers = #tpu.dot_dimension_numbers<[1], [0], [0], [1], [0, 0, 1, 1], [], []>} : vector<128x128xf32>, vector<128x128xf32>, vector<128x128xf32> -> vector<128x128xf32>
    %149 = arith.mulf %146, %148 : vector<128x128xf32>
    %150 = arith.addf %144, %149 : vector<128x128xf32>
    %c992 = arith.constant 992 : index
    %c0_79 = arith.constant 0 : index
    %151 = vector.load %arg2[%c992, %c0_79] : memref<1656x128xf32, #tpu.memory_space<vmem>>, vector<16x128xf32>
    %cst_80 = arith.constant dense<0.000000e+00> : vector<128x128xf32>
    %152 = tpu.matmul %52, %151, %cst_80 {dimension_numbers = #tpu.dot_dimension_numbers<[1], [0], [0], [1], [0, 0, 1, 1], [], []>} : vector<128x16xf32>, vector<16x128xf32>, vector<128x128xf32> -> vector<128x128xf32>
    %c1392 = arith.constant 1392 : index
    %c0_81 = arith.constant 0 : index
    %153 = vector.load %arg2[%c1392, %c0_81] : memref<1656x128xf32, #tpu.memory_space<vmem>>, vector<128x128xf32>
    %cst_82 = arith.constant dense<0.000000e+00> : vector<128x128xf32>
    %154 = tpu.matmul %133, %153, %cst_82 {dimension_numbers = #tpu.dot_dimension_numbers<[1], [0], [0], [1], [0, 0, 1, 1], [], []>} : vector<128x128xf32>, vector<128x128xf32>, vector<128x128xf32> -> vector<128x128xf32>
    %155 = arith.mulf %152, %154 : vector<128x128xf32>
    %156 = arith.addf %150, %155 : vector<128x128xf32>
    %cst_83 = arith.constant 0.000000e+00 : f32
    %157 = vector.broadcast %cst_83 : f32 to vector<128x128xf32>
    %158 = arith.maximumf %156, %157 : vector<128x128xf32>
    %c520 = arith.constant 520 : index
    %c0_84 = arith.constant 0 : index
    %159 = vector.load %arg2[%c520, %c0_84] : memref<1656x128xf32, #tpu.memory_space<vmem>>, vector<128x128xf32>
    %cst_85 = arith.constant dense<0.000000e+00> : vector<128x128xf32>
    %160 = tpu.matmul %158, %159, %cst_85 {dimension_numbers = #tpu.dot_dimension_numbers<[1], [0], [0], [1], [0, 0, 1, 1], [], []>} : vector<128x128xf32>, vector<128x128xf32>, vector<128x128xf32> -> vector<128x128xf32>
    %c648 = arith.constant 648 : index
    %c0_86 = arith.constant 0 : index
    %161 = vector.load %arg2[%c648, %c0_86] : memref<1656x128xf32, #tpu.memory_space<vmem>>, vector<1x128xf32>
    %162 = vector.broadcast %161 : vector<1x128xf32> to vector<128x128xf32>
    %163 = arith.addf %160, %162 : vector<128x128xf32>
    %c944_87 = arith.constant 944 : index
    %c0_88 = arith.constant 0 : index
    %164 = vector.load %arg2[%c944_87, %c0_88] : memref<1656x128xf32, #tpu.memory_space<vmem>>, vector<16x128xf32>
    %cst_89 = arith.constant dense<0.000000e+00> : vector<128x128xf32>
    %165 = tpu.matmul %74, %164, %cst_89 {dimension_numbers = #tpu.dot_dimension_numbers<[1], [0], [0], [1], [0, 0, 1, 1], [], []>} : vector<128x16xf32>, vector<16x128xf32>, vector<128x128xf32> -> vector<128x128xf32>
    %c1008_90 = arith.constant 1008 : index
    %c0_91 = arith.constant 0 : index
    %166 = vector.load %arg2[%c1008_90, %c0_91] : memref<1656x128xf32, #tpu.memory_space<vmem>>, vector<128x128xf32>
    %cst_92 = arith.constant dense<0.000000e+00> : vector<128x128xf32>
    %167 = tpu.matmul %163, %166, %cst_92 {dimension_numbers = #tpu.dot_dimension_numbers<[1], [0], [0], [1], [0, 0, 1, 1], [], []>} : vector<128x128xf32>, vector<128x128xf32>, vector<128x128xf32> -> vector<128x128xf32>
    %168 = arith.mulf %165, %167 : vector<128x128xf32>
    %c960_93 = arith.constant 960 : index
    %c0_94 = arith.constant 0 : index
    %169 = vector.load %arg2[%c960_93, %c0_94] : memref<1656x128xf32, #tpu.memory_space<vmem>>, vector<16x128xf32>
    %cst_95 = arith.constant dense<0.000000e+00> : vector<128x128xf32>
    %170 = tpu.matmul %74, %169, %cst_95 {dimension_numbers = #tpu.dot_dimension_numbers<[1], [0], [0], [1], [0, 0, 1, 1], [], []>} : vector<128x16xf32>, vector<16x128xf32>, vector<128x128xf32> -> vector<128x128xf32>
    %c1136_96 = arith.constant 1136 : index
    %c0_97 = arith.constant 0 : index
    %171 = vector.load %arg2[%c1136_96, %c0_97] : memref<1656x128xf32, #tpu.memory_space<vmem>>, vector<128x128xf32>
    %cst_98 = arith.constant dense<0.000000e+00> : vector<128x128xf32>
    %172 = tpu.matmul %163, %171, %cst_98 {dimension_numbers = #tpu.dot_dimension_numbers<[1], [0], [0], [1], [0, 0, 1, 1], [], []>} : vector<128x128xf32>, vector<128x128xf32>, vector<128x128xf32> -> vector<128x128xf32>
    %173 = arith.mulf %170, %172 : vector<128x128xf32>
    %174 = arith.addf %168, %173 : vector<128x128xf32>
    %c976_99 = arith.constant 976 : index
    %c0_100 = arith.constant 0 : index
    %175 = vector.load %arg2[%c976_99, %c0_100] : memref<1656x128xf32, #tpu.memory_space<vmem>>, vector<16x128xf32>
    %cst_101 = arith.constant dense<0.000000e+00> : vector<128x128xf32>
    %176 = tpu.matmul %74, %175, %cst_101 {dimension_numbers = #tpu.dot_dimension_numbers<[1], [0], [0], [1], [0, 0, 1, 1], [], []>} : vector<128x16xf32>, vector<16x128xf32>, vector<128x128xf32> -> vector<128x128xf32>
    %c1264_102 = arith.constant 1264 : index
    %c0_103 = arith.constant 0 : index
    %177 = vector.load %arg2[%c1264_102, %c0_103] : memref<1656x128xf32, #tpu.memory_space<vmem>>, vector<128x128xf32>
    %cst_104 = arith.constant dense<0.000000e+00> : vector<128x128xf32>
    %178 = tpu.matmul %163, %177, %cst_104 {dimension_numbers = #tpu.dot_dimension_numbers<[1], [0], [0], [1], [0, 0, 1, 1], [], []>} : vector<128x128xf32>, vector<128x128xf32>, vector<128x128xf32> -> vector<128x128xf32>
    %179 = arith.mulf %176, %178 : vector<128x128xf32>
    %180 = arith.addf %174, %179 : vector<128x128xf32>
    %c992_105 = arith.constant 992 : index
    %c0_106 = arith.constant 0 : index
    %181 = vector.load %arg2[%c992_105, %c0_106] : memref<1656x128xf32, #tpu.memory_space<vmem>>, vector<16x128xf32>
    %cst_107 = arith.constant dense<0.000000e+00> : vector<128x128xf32>
    %182 = tpu.matmul %74, %181, %cst_107 {dimension_numbers = #tpu.dot_dimension_numbers<[1], [0], [0], [1], [0, 0, 1, 1], [], []>} : vector<128x16xf32>, vector<16x128xf32>, vector<128x128xf32> -> vector<128x128xf32>
    %c1392_108 = arith.constant 1392 : index
    %c0_109 = arith.constant 0 : index
    %183 = vector.load %arg2[%c1392_108, %c0_109] : memref<1656x128xf32, #tpu.memory_space<vmem>>, vector<128x128xf32>
    %cst_110 = arith.constant dense<0.000000e+00> : vector<128x128xf32>
    %184 = tpu.matmul %163, %183, %cst_110 {dimension_numbers = #tpu.dot_dimension_numbers<[1], [0], [0], [1], [0, 0, 1, 1], [], []>} : vector<128x128xf32>, vector<128x128xf32>, vector<128x128xf32> -> vector<128x128xf32>
    %185 = arith.mulf %182, %184 : vector<128x128xf32>
    %186 = arith.addf %180, %185 : vector<128x128xf32>
    %cst_111 = arith.constant 0.000000e+00 : f32
    %187 = vector.broadcast %cst_111 : f32 to vector<128x128xf32>
    %188 = arith.maximumf %186, %187 : vector<128x128xf32>
    %c656 = arith.constant 656 : index
    %c0_112 = arith.constant 0 : index
    %189 = vector.load %arg2[%c656, %c0_112] : memref<1656x128xf32, #tpu.memory_space<vmem>>, vector<128x128xf32>
    %cst_113 = arith.constant dense<0.000000e+00> : vector<128x128xf32>
    %190 = tpu.matmul %188, %189, %cst_113 {dimension_numbers = #tpu.dot_dimension_numbers<[1], [0], [0], [1], [0, 0, 1, 1], [], []>} : vector<128x128xf32>, vector<128x128xf32>, vector<128x128xf32> -> vector<128x128xf32>
    %c784 = arith.constant 784 : index
    %c0_114 = arith.constant 0 : index
    %191 = vector.load %arg2[%c784, %c0_114] : memref<1656x128xf32, #tpu.memory_space<vmem>>, vector<1x128xf32>
    %192 = vector.broadcast %191 : vector<1x128xf32> to vector<128x128xf32>
    %193 = arith.addf %190, %192 : vector<128x128xf32>
    %c944_115 = arith.constant 944 : index
    %c0_116 = arith.constant 0 : index
    %194 = vector.load %arg2[%c944_115, %c0_116] : memref<1656x128xf32, #tpu.memory_space<vmem>>, vector<16x128xf32>
    %cst_117 = arith.constant dense<0.000000e+00> : vector<128x128xf32>
    %195 = tpu.matmul %99, %194, %cst_117 {dimension_numbers = #tpu.dot_dimension_numbers<[1], [0], [0], [1], [0, 0, 1, 1], [], []>} : vector<128x16xf32>, vector<16x128xf32>, vector<128x128xf32> -> vector<128x128xf32>
    %c1008_118 = arith.constant 1008 : index
    %c0_119 = arith.constant 0 : index
    %196 = vector.load %arg2[%c1008_118, %c0_119] : memref<1656x128xf32, #tpu.memory_space<vmem>>, vector<128x128xf32>
    %cst_120 = arith.constant dense<0.000000e+00> : vector<128x128xf32>
    %197 = tpu.matmul %193, %196, %cst_120 {dimension_numbers = #tpu.dot_dimension_numbers<[1], [0], [0], [1], [0, 0, 1, 1], [], []>} : vector<128x128xf32>, vector<128x128xf32>, vector<128x128xf32> -> vector<128x128xf32>
    %198 = arith.mulf %195, %197 : vector<128x128xf32>
    %c960_121 = arith.constant 960 : index
    %c0_122 = arith.constant 0 : index
    %199 = vector.load %arg2[%c960_121, %c0_122] : memref<1656x128xf32, #tpu.memory_space<vmem>>, vector<16x128xf32>
    %cst_123 = arith.constant dense<0.000000e+00> : vector<128x128xf32>
    %200 = tpu.matmul %99, %199, %cst_123 {dimension_numbers = #tpu.dot_dimension_numbers<[1], [0], [0], [1], [0, 0, 1, 1], [], []>} : vector<128x16xf32>, vector<16x128xf32>, vector<128x128xf32> -> vector<128x128xf32>
    %c1136_124 = arith.constant 1136 : index
    %c0_125 = arith.constant 0 : index
    %201 = vector.load %arg2[%c1136_124, %c0_125] : memref<1656x128xf32, #tpu.memory_space<vmem>>, vector<128x128xf32>
    %cst_126 = arith.constant dense<0.000000e+00> : vector<128x128xf32>
    %202 = tpu.matmul %193, %201, %cst_126 {dimension_numbers = #tpu.dot_dimension_numbers<[1], [0], [0], [1], [0, 0, 1, 1], [], []>} : vector<128x128xf32>, vector<128x128xf32>, vector<128x128xf32> -> vector<128x128xf32>
    %203 = arith.mulf %200, %202 : vector<128x128xf32>
    %204 = arith.addf %198, %203 : vector<128x128xf32>
    %c976_127 = arith.constant 976 : index
    %c0_128 = arith.constant 0 : index
    %205 = vector.load %arg2[%c976_127, %c0_128] : memref<1656x128xf32, #tpu.memory_space<vmem>>, vector<16x128xf32>
    %cst_129 = arith.constant dense<0.000000e+00> : vector<128x128xf32>
    %206 = tpu.matmul %99, %205, %cst_129 {dimension_numbers = #tpu.dot_dimension_numbers<[1], [0], [0], [1], [0, 0, 1, 1], [], []>} : vector<128x16xf32>, vector<16x128xf32>, vector<128x128xf32> -> vector<128x128xf32>
    %c1264_130 = arith.constant 1264 : index
    %c0_131 = arith.constant 0 : index
    %207 = vector.load %arg2[%c1264_130, %c0_131] : memref<1656x128xf32, #tpu.memory_space<vmem>>, vector<128x128xf32>
    %cst_132 = arith.constant dense<0.000000e+00> : vector<128x128xf32>
    %208 = tpu.matmul %193, %207, %cst_132 {dimension_numbers = #tpu.dot_dimension_numbers<[1], [0], [0], [1], [0, 0, 1, 1], [], []>} : vector<128x128xf32>, vector<128x128xf32>, vector<128x128xf32> -> vector<128x128xf32>
    %209 = arith.mulf %206, %208 : vector<128x128xf32>
    %210 = arith.addf %204, %209 : vector<128x128xf32>
    %c992_133 = arith.constant 992 : index
    %c0_134 = arith.constant 0 : index
    %211 = vector.load %arg2[%c992_133, %c0_134] : memref<1656x128xf32, #tpu.memory_space<vmem>>, vector<16x128xf32>
    %cst_135 = arith.constant dense<0.000000e+00> : vector<128x128xf32>
    %212 = tpu.matmul %99, %211, %cst_135 {dimension_numbers = #tpu.dot_dimension_numbers<[1], [0], [0], [1], [0, 0, 1, 1], [], []>} : vector<128x16xf32>, vector<16x128xf32>, vector<128x128xf32> -> vector<128x128xf32>
    %c1392_136 = arith.constant 1392 : index
    %c0_137 = arith.constant 0 : index
    %213 = vector.load %arg2[%c1392_136, %c0_137] : memref<1656x128xf32, #tpu.memory_space<vmem>>, vector<128x128xf32>
    %cst_138 = arith.constant dense<0.000000e+00> : vector<128x128xf32>
    %214 = tpu.matmul %193, %213, %cst_138 {dimension_numbers = #tpu.dot_dimension_numbers<[1], [0], [0], [1], [0, 0, 1, 1], [], []>} : vector<128x128xf32>, vector<128x128xf32>, vector<128x128xf32> -> vector<128x128xf32>
    %215 = arith.mulf %212, %214 : vector<128x128xf32>
    %216 = arith.addf %210, %215 : vector<128x128xf32>
    %cst_139 = arith.constant 0.000000e+00 : f32
    %217 = vector.broadcast %cst_139 : f32 to vector<128x128xf32>
    %218 = arith.maximumf %216, %217 : vector<128x128xf32>
    %c792 = arith.constant 792 : index
    %c0_140 = arith.constant 0 : index
    %219 = vector.load %arg2[%c792, %c0_140] : memref<1656x128xf32, #tpu.memory_space<vmem>>, vector<128x128xf32>
    %cst_141 = arith.constant dense<0.000000e+00> : vector<128x128xf32>
    %220 = tpu.matmul %218, %219, %cst_141 {dimension_numbers = #tpu.dot_dimension_numbers<[1], [0], [0], [1], [0, 0, 1, 1], [], []>} : vector<128x128xf32>, vector<128x128xf32>, vector<128x128xf32> -> vector<128x128xf32>
    %c920 = arith.constant 920 : index
    %c0_142 = arith.constant 0 : index
    %221 = vector.load %arg2[%c920, %c0_142] : memref<1656x128xf32, #tpu.memory_space<vmem>>, vector<1x128xf32>
    %222 = vector.broadcast %221 : vector<1x128xf32> to vector<128x128xf32>
    %223 = arith.addf %220, %222 : vector<128x128xf32>
    %c1520 = arith.constant 1520 : index
    %c0_143 = arith.constant 0 : index
    %224 = vector.load %arg2[%c1520, %c0_143] : memref<1656x128xf32, #tpu.memory_space<vmem>>, vector<4x128xf32>
    %cst_144 = arith.constant dense<0.000000e+00> : vector<128x128xf32>
    %225 = tpu.matmul %128, %224, %cst_144 {dimension_numbers = #tpu.dot_dimension_numbers<[1], [0], [0], [1], [0, 0, 1, 1], [], []>} : vector<128x4xf32>, vector<4x128xf32>, vector<128x128xf32> -> vector<128x128xf32>
    %226 = arith.mulf %225, %223 : vector<128x128xf32>
    %c1528 = arith.constant 1528 : index
    %c0_145 = arith.constant 0 : index
    %227 = vector.load %arg2[%c1528, %c0_145] : memref<1656x128xf32, #tpu.memory_space<vmem>>, vector<128x32xf32>
    %cst_146 = arith.constant dense<0.000000e+00> : vector<128x32xf32>
    %228 = tpu.matmul %226, %227, %cst_146 {dimension_numbers = #tpu.dot_dimension_numbers<[1], [0], [0], [1], [0, 0, 1, 1], [], []>} : vector<128x128xf32>, vector<128x32xf32>, vector<128x32xf32> -> vector<128x32xf32>
    %cst_147 = arith.constant 0.000000e+00 : f32
    %229 = vector.broadcast %cst_147 : f32 to vector<128x32xf32>
    %230 = arith.maximumf %228, %229 : vector<128x32xf32>
    %c440 = arith.constant 440 : index
    %c0_148 = arith.constant 0 : index
    %231 = vector.load %arg2[%c440, %c0_148] : memref<1656x128xf32, #tpu.memory_space<vmem>>, vector<32x128xf32>
    %c472 = arith.constant 472 : index
    %c0_149 = arith.constant 0 : index
    %232 = vector.load %arg2[%c472, %c0_149] : memref<1656x128xf32, #tpu.memory_space<vmem>>, vector<1x128xf32>
    %cst_150 = arith.constant dense<0.000000e+00> : vector<128x128xf32>
    %233 = tpu.matmul %230, %231, %cst_150 {dimension_numbers = #tpu.dot_dimension_numbers<[1], [0], [0], [1], [0, 0, 1, 1], [], []>} : vector<128x32xf32>, vector<32x128xf32>, vector<128x128xf32> -> vector<128x128xf32>
    %234 = vector.broadcast %232 : vector<1x128xf32> to vector<128x128xf32>
    %235 = arith.addf %233, %234 : vector<128x128xf32>
    %c0_151 = arith.constant 0 : index
    %c0_152 = arith.constant 0 : index
    %236 = vector.load %arg3[%c0_151, %c0_152] : memref<128x128xf32, #tpu.memory_space<vmem>>, vector<128x128xf32>
    tpu.vector_store %arg3[%c0_151, %c0_152], %235 {strides = array<i32>} : memref<128x128xf32, #tpu.memory_space<vmem>>, vector<128x128xf32>,
    return
  }
  func.func @transform_0(%arg0: i32) -> (i32, i32) {
    %c0_i32 = arith.constant 0 : i32
    %c0_i32_0 = arith.constant 0 : i32
    return %arg0, %c0_i32 : i32, i32
  }
  func.func @transform_1(%arg0: i32) -> (i32, i32) {
    %c0_i32 = arith.constant 0 : i32
    %c0_i32_0 = arith.constant 0 : i32
    %c0_i32_1 = arith.constant 0 : i32
    return %c0_i32, %c0_i32_0 : i32, i32
  }
  func.func @transform_2(%arg0: i32) -> (i32, i32) {
    %c0_i32 = arith.constant 0 : i32
    %c0_i32_0 = arith.constant 0 : i32
    return %arg0, %c0_i32 : i32, i32
  }
}

</mosaic_0001>

<llo_original>
// kernel: _soft_module_call.1
$region0: #{_soft_module_call.1}
  #allocation0 [shape = 'u32[]', space=smem, size = 0x4, offset = 0x4, fixed_abs, tag = 'smem constant byte address 0x4 - core index']
  #allocation1 [shape = 'u32[144,128]{1,0:T(1,128)}', space=vmem, size = 0x12000, scoped, tag = 'internal scratch']
  %s0 = inlined_call_operand.vmem [shape: f32[256,32], index: 0, kind: input, shape index: {}]
  %s1 = inlined_call_operand.hbm [shape: f32[1656,128], index: 1, kind: input, shape index: {}]
  %s2 = inlined_call_operand.hbm [shape: f32[256,128], index: 2, kind: output, shape index: {}]
  %s3 = sld [smem:[#allocation0]]
  $region45: #{_soft_module_call.1} parent=0
    _
  %s5 = ssub.s32 1, %s3
  %s6 = scalar_select 0, %s5, %s3
  $region1: #{_soft_module_call.1} parent=0
    #allocation2 [shape = 'u8[847872]{0}', space=vmem, size = 0xcf000, scoped, tag = 'input window, operand 1, single buffered']
    #allocation3 [shape = 's32[2]{0}', space=sflag, size = 0x8, scoped, tag = 'scoped memory for _soft_module_call.1']
    #allocation4 [shape = 's32[2]{0}', space=sflag, size = 0x8, scoped, tag = 'scoped memory for _soft_module_call.1']
    #allocation5 [shape = 'u8[131072]{0}', space=vmem, size = 0x20000, scoped, tag = 'output window, operand 0']
    %7 = vsyncpa [#allocation3], 0
    %8 = vsyncpa [#allocation4], 0
    %s9 = scalar_lea.sflag [#allocation4], 1
    %10 = vsyncpa %s9, 0
    loop: start=0, step=1, limit=4
    $region2: #{_soft_module_call.1} parent=1 // loop_pre_header
      _
    $region3: #{_soft_module_call.1} parent=1 // loop_header
      %s12 = sphi 0, %s16
      %p13 = scmp.ge.s32.totalorder %s12, 4
      %s22 = sphi 0, %s24
      %s25 = sphi 0, %s22
      %s26 = sphi 0, %s25
      %s42 = sphi 0, %s26
      %s46 = sphi 0, %s46
      %s48 = sphi 0, %s46
      %s49 = sphi 0, %s48
      %s63 = sphi 0, %s49
      %s69 = sphi 0, %s71
      %s72 = sphi 0, %s69
      %s73 = sphi 0, %s72
      %s89 = sphi 0, %s73
    $region4: #{_soft_module_call.1} parent=1 // loop_header_branch
      %15 = sbr.rel (%p13) target = $region8
    $region5: #{_soft_module_call.1} parent=1 // loop_body
      %s17 = ssub.s32 %s12, 1
      %s18 = ssub.s32 %s12, 2
      %s19 = sadd.s32 %s12, 1
      %s20 = ssub.s32 %s12, %s19
      %p21 = scmp.eq.s32.totalorder %s20, 0
      %s23 = sadd.s32 %s22, 1
      %s24 = scalar_select %p21, %s22, %s23
      %p27 = pneg %p21
      %p28 = scmp.eq.s32.totalorder %s12, 1
      %p29 = por %p27, %p28
      %p30 = scmp.ne.s32.totalorder %s22, %s25
      %p31 = scmp.eq.s32.totalorder %s12, 0
      %p32 = por %p30, %p31
      %p33 = scmp.ne.s32.totalorder %s22, %s25
      %p34 = scmp.eq.s32.totalorder %s17, 1
      %p35 = por %p33, %p34
      %p36 = scmp.ne.s32.totalorder %s25, %s26
      %p37 = scmp.eq.s32.totalorder %s17, 0
      %p38 = por %p36, %p37
      %p39 = scmp.ne.s32.totalorder %s25, %s26
      %p40 = scmp.eq.s32.totalorder %s18, 1
      %p41 = por %p39, %p40
      %p43 = scmp.ne.s32.totalorder %s26, %s42
      %p44 = scmp.eq.s32.totalorder %s18, 0
      %p45 = por %p43, %p44
      %s47 = sadd.s32 %s46, 1
      %p50 = scmp.eq.s32.totalorder %s12, 1
      %p51 = scmp.ne.s32.totalorder %s46, %s48
      %p52 = scmp.eq.s32.totalorder %s12, 0
      %p53 = por %p51, %p52
      %p54 = scmp.ne.s32.totalorder %s46, %s48
      %p55 = scmp.eq.s32.totalorder %s17, 1
      %p56 = por %p54, %p55
      %p57 = scmp.ne.s32.totalorder %s48, %s49
      %p58 = scmp.eq.s32.totalorder %s17, 0
      %p59 = por %p57, %p58
      %p60 = scmp.ne.s32.totalorder %s48, %s49
      %p61 = scmp.eq.s32.totalorder %s18, 1
      %p62 = por %p60, %p61
      %p64 = scmp.ne.s32.totalorder %s49, %s63
      %p65 = scmp.eq.s32.totalorder %s18, 0
      %p66 = por %p64, %p65
      %s67 = ssub.s32 %s12, %s19
      %p68 = scmp.eq.s32.totalorder %s67, 0
      %s70 = sadd.s32 %s69, 1
      %s71 = scalar_select %p68, %s69, %s70
      %p74 = pneg %p68
      %p75 = scmp.eq.s32.totalorder %s12, 1
      %p76 = por %p74, %p75
      %p77 = scmp.ne.s32.totalorder %s69, %s72
      %p78 = scmp.eq.s32.totalorder %s12, 0
      %p79 = por %p77, %p78
      %p80 = scmp.ne.s32.totalorder %s69, %s72
      %p81 = scmp.eq.s32.totalorder %s17, 1
      %p82 = por %p80, %p81
      %p83 = scmp.ne.s32.totalorder %s72, %s73
      %p84 = scmp.eq.s32.totalorder %s17, 0
      %p85 = por %p83, %p84
      %p86 = scmp.ne.s32.totalorder %s72, %s73
      %p87 = scmp.eq.s32.totalorder %s18, 1
      %p88 = por %p86, %p87
      %p90 = scmp.ne.s32.totalorder %s73, %s89
      %p91 = scmp.eq.s32.totalorder %s18, 0
      %p92 = por %p90, %p91
      %p93 = scmp.le.s32.totalorder 1, %s12
      %p94 = scmp.lt.s32.totalorder %s12, 3
      %p95 = pnand %p93, %p94
      %p96 = pneg %p95
      // Predicated region
      $region9: #{_soft_module_call.1} parent=5 // pred_check
        _
      $region10: #{_soft_module_call.1} parent=5 // pred_check_branch
        %98 = sbr.rel (%p95) target = $region12
      $region11: #{_soft_module_call.1} parent=5 // pred_region
        %s99 = ssub.s32 %s12, 1
        // Predicated region
        $region13: #{_soft_module_call.1} parent=11 // pred_check
          %p100 = pneg %p59
        $region14: #{_soft_module_call.1} parent=11 // pred_check_branch
          %102 = sbr.rel (%p100) target = $region16
        $region15: #{_soft_module_call.1} parent=11 // pred_region
          %s104 = ssub.s32 26496, 26496
          %105 = vsyncadd [#allocation3], %s104
          %s106 = sshll.u32 [#allocation2], 4
          %s107 = int_to_ptr.vmem [resolvable:$true] %s106
          %112 = dma.hbm_to_vmem [thread:$0]  %s1, 26496, %s107, [#allocation3], 128, 128, 8
        $region16: #{_soft_module_call.1} parent=11 // pred_fallthru
          _
      $region12: #{_soft_module_call.1} parent=5 // pred_fallthru
        _
      %p113 = scmp.lt.s32.totalorder %s12, 2
      // Predicated region
      $region17: #{_soft_module_call.1} parent=5 // pred_check
        %p114 = pneg %p113
      $region18: #{_soft_module_call.1} parent=5 // pred_check_branch
        %116 = sbr.rel (%p114) target = $region20
      $region19: #{_soft_module_call.1} parent=5 // pred_region
        // Predicated region
        $region21: #{_soft_module_call.1} parent=19 // pred_check
          %p117 = pneg %p32
        $region22: #{_soft_module_call.1} parent=19 // pred_check_branch
          %119 = sbr.rel (%p117) target = $region24
        $region23: #{_soft_module_call.1} parent=19 // pred_region
          %s120 = smul.u32 16, %s12
          %p121 = scmp.lt.s32.totalorder %s120, 31
          %s122 = scalar_select %p121, %s120, 31
          %s123 = smul.addr %s122, 8
          %s124 = scalar_lea.vmem %s0, %s123
          %s125 = smul.u32 16, %s12
        $region24: #{_soft_module_call.1} parent=19 // pred_fallthru
          _
      $region20: #{_soft_module_call.1} parent=5 // pred_fallthru
        _
      %p126 = scmp.le.s32.totalorder 1, %s12
      %p127 = scmp.lt.s32.totalorder %s12, 3
      %p128 = pnand %p126, %p127
      %p129 = pneg %p128
      // Predicated region
      $region25: #{_soft_module_call.1} parent=5 // pred_check
        _
      $region26: #{_soft_module_call.1} parent=5 // pred_check_branch
        %131 = sbr.rel (%p128) target = $region28
      $region27: #{_soft_module_call.1} parent=5 // pred_region
        %s132 = ssub.s32 %s12, 1
        // Predicated region
        $region29: #{_soft_module_call.1} parent=27 // pred_check
          %p133 = pneg %p59
        $region30: #{_soft_module_call.1} parent=27 // pred_check_branch
          %135 = sbr.rel (%p133) target = $region32
        $region31: #{_soft_module_call.1} parent=27 // pred_region
          %136 = dma.done [#allocation3], 26496
        $region32: #{_soft_module_call.1} parent=27 // pred_fallthru
          _
        %s137 = smul.u32 16, %s17
        %p138 = scmp.lt.s32.totalorder %s137, 31
        %s139 = scalar_select %p138, %s137, 31
        %s140 = smul.addr %s139, 8
        %s141 = scalar_lea.vmem %s0, %s140
        %p142 = pneg %p38
        %p143 = pneg %p35
        %p144 = pneg %p59
        %p145 = pneg %p56
        %p146 = pneg %p85
        %p147 = pneg %p82
        %s148 = sand.u32 %s72, 1
        %s149 = scalar_lea.sflag [#allocation4], %s148
        %s150 = sand.u32 %s72, 1
        %s151 = smul.addr %s150, 128
        %s152 = scalar_lea.vmem [#allocation5], %s151
        %s153 = smul.u32 16, %s17
        %p154 = scmp.lt.s32.totalorder %s153, 31
        %s155 = scalar_select %p154, %s153, 31
        %s156 = smul.addr %s155, 8
        %s157 = scalar_lea.vmem %s0, %s156
        %s158 = smul.u32 16, %s17
        %s159 = smul.u32 16, %s17
        %v160 = vld [vmem:[%s157] sm:$0xff]
        %v161 = vld [vmem:[%s157 + $0x8] sm:$0xff]
        %v162 = vld [vmem:[%s157 + $0x10] sm:$0xff]
        %v163 = vld [vmem:[%s157 + $0x18] sm:$0xff]
        %v164 = vld [vmem:[%s157 + $0x20] sm:$0xff]
        %v165 = vld [vmem:[%s157 + $0x28] sm:$0xff]
        %v166 = vld [vmem:[%s157 + $0x30] sm:$0xff]
        %v167 = vld [vmem:[%s157 + $0x38] sm:$0xff]
        %v168 = vld [vmem:[%s157 + $0x40] sm:$0xff]
        %v169 = vld [vmem:[%s157 + $0x48] sm:$0xff]
        %v170 = vld [vmem:[%s157 + $0x50] sm:$0xff]
        %v171 = vld [vmem:[%s157 + $0x58] sm:$0xff]
        %v172 = vld [vmem:[%s157 + $0x60] sm:$0xff]
        %v173 = vld [vmem:[%s157 + $0x68] sm:$0xff]
        %v174 = vld [vmem:[%s157 + $0x70] sm:$0xff]
        %v175 = vld [vmem:[%s157 + $0x78] sm:$0xff]
        %v176 = vld [vmem:[#allocation2] sm:$0xff]
        %v177 = vld [vmem:[#allocation2 + $0x8] sm:$0xff]
        %v178 = vld [vmem:[#allocation2 + $0x10] sm:$0x1]
        %v179 = vlaneseq
        %v180 = vshrl.u32 %v179, 7
        %v181 = vsub.s32 0, %v180
        %v182 = vrot.slane %v178, %v181
        %vm183 = vcmask 130048
        %v185 = vsel %vm183, %v160, 0
        %v188 = vsel %vm183, %v161, 0
        %v191 = vsel %vm183, %v162, 0
        %v194 = vsel %vm183, %v163, 0
        %v197 = vsel %vm183, %v164, 0
        %v200 = vsel %vm183, %v165, 0
        %v203 = vsel %vm183, %v166, 0
        %v206 = vsel %vm183, %v167, 0
        %v209 = vsel %vm183, %v168, 0
        %v212 = vsel %vm183, %v169, 0
        %v215 = vsel %vm183, %v170, 0
        %v218 = vsel %vm183, %v171, 0
        %v221 = vsel %vm183, %v172, 0
        %v224 = vsel %vm183, %v173, 0
        %v227 = vsel %vm183, %v174, 0
        %v230 = vsel %vm183, %v175, 0
        %232 = vmatprep.subr.mxu0 0.0
        %233 = vmatpush1.msra.mxu0 %v176
        %234 = vmatprep.subr.mxu0 0.0
        %235 = vmatpush1.msra.mxu0 %v177
        %236 = vmatprep.subr.mxu0 0.0
        %237 = vmatpush1.msra.mxu0 0.0
        %238 = vmatprep.subr.mxu0 0.0
        %239 = vmatpush1.msra.mxu0 0.0
        %240 = vmatprep.subr.mxu0 0.0
        %241 = vmatpush1.msra.mxu0 0.0
        %242 = vmatprep.subr.mxu0 0.0
        %243 = vmatpush1.msra.mxu0 0.0
        %244 = vmatprep.subr.mxu0 0.0
        %245 = vmatpush1.msra.mxu0 0.0
        %246 = vmatprep.subr.mxu0 0.0
        %247 = vmatpush1.msra.mxu0 0.0
        %248 = vmatprep.subr.mxu0 0.0
        %249 = vmatpush1.msra.mxu0 0.0
        %250 = vmatprep.subr.mxu0 0.0
        %251 = vmatpush1.msra.mxu0 0.0
        %252 = vmatprep.subr.mxu0 0.0
        %253 = vmatpush1.msra.mxu0 0.0
        %254 = vmatprep.subr.mxu0 0.0
        %255 = vmatpush1.msra.mxu0 0.0
        %256 = vmatprep.subr.mxu0 0.0
        %257 = vmatpush1.msra.mxu0 0.0
        %258 = vmatprep.subr.mxu0 0.0
        %259 = vmatpush1.msra.mxu0 0.0
        %260 = vmatprep.subr.mxu0 0.0
        %261 = vmatpush1.msra.mxu0 0.0
        %262 = vmatprep.subr.mxu0 0.0
        %263 = vmatpush1.msra.mxu0 0.0
        %264 = vmatprep.subr.mxu0 0.0
        %265 = vmatpush1.msra.mxu0 0.0
        %266 = vmatprep.subr.mxu0 0.0
        %267 = vmatpush1.msra.mxu0 0.0
        %268 = vmatprep.subr.mxu0 0.0
        %269 = vmatpush1.msra.mxu0 0.0
        %270 = vmatprep.subr.mxu0 0.0
        %271 = vmatpush1.msra.mxu0 0.0
        %272 = vmatprep.subr.mxu0 0.0
        %273 = vmatpush1.msra.mxu0 0.0
        %274 = vmatprep.subr.mxu0 0.0
        %275 = vmatpush1.msra.mxu0 0.0
        %276 = vmatprep.subr.mxu0 0.0
        %277 = vmatpush1.msra.mxu0 0.0
        %278 = vmatprep.subr.mxu0 0.0
        %279 = vmatpush1.msra.mxu0 0.0
        %280 = vmatprep.subr.mxu0 0.0
        %281 = vmatpush1.msra.mxu0 0.0
        %282 = vmatprep.subr.mxu0 0.0
        %283 = vmatpush1.msra.mxu0 0.0
        %284 = vmatprep.subr.mxu0 0.0
        %285 = vmatpush1.msra.mxu0 0.0
        %286 = vmatprep.subr.mxu0 0.0
        %287 = vmatpush1.msra.mxu0 0.0
        %288 = vmatprep.subr.mxu0 0.0
        %289 = vmatpush1.msra.mxu0 0.0
        %290 = vmatprep.subr.mxu0 0.0
        %291 = vmatpush1.msra.mxu0 0.0
        %292 = vmatprep.subr.mxu0 0.0
        %293 = vmatpush1.msra.mxu0 0.0
        %294 = vmatprep.subr.mxu0 0.0
        %295 = vmatpush1.msra.mxu0 0.0
        %296 = vmatprep.mubr.f32.mxu0 0.0
        %297 = vmatmul.mubr.f32.gmra.mrb[0].mxu0 %v185
        %v298 = vpop.f32.mrb[0].mxu0
        %v299 = vadd.f32 %v182, %v298
        %v300 = vpop.f32.mrb[0].mxu0
        %301 = vmatprep.mubr.f32.mxu0 0.0
        %302 = vmatmul.mubr.f32.gmra.mrb[0].mxu0 %v188
        %v303 = vpop.f32.mrb[0].mxu0
        %v304 = vadd.f32 %v182, %v303
        %v305 = vpop.f32.mrb[0].mxu0
        %306 = vmatprep.mubr.f32.mxu0 0.0
        %307 = vmatmul.mubr.f32.gmra.mrb[0].mxu0 %v191
        %v308 = vpop.f32.mrb[0].mxu0
        %v309 = vadd.f32 %v182, %v308
        %v310 = vpop.f32.mrb[0].mxu0
        %311 = vmatprep.mubr.f32.mxu0 0.0
        %312 = vmatmul.mubr.f32.gmra.mrb[0].mxu0 %v194
        %v313 = vpop.f32.mrb[0].mxu0
        %v314 = vadd.f32 %v182, %v313
        %v315 = vpop.f32.mrb[0].mxu0
        %316 = vmatprep.mubr.f32.mxu0 0.0
        %317 = vmatmul.mubr.f32.gmra.mrb[0].mxu0 %v197
        %v318 = vpop.f32.mrb[0].mxu0
        %v319 = vadd.f32 %v182, %v318
        %v320 = vpop.f32.mrb[0].mxu0
        %321 = vmatprep.mubr.f32.mxu0 0.0
        %322 = vmatmul.mubr.f32.gmra.mrb[0].mxu0 %v200
        %v323 = vpop.f32.mrb[0].mxu0
        %v324 = vadd.f32 %v182, %v323
        %v325 = vpop.f32.mrb[0].mxu0
        %326 = vmatprep.mubr.f32.mxu0 0.0
        %327 = vmatmul.mubr.f32.gmra.mrb[0].mxu0 %v203
        %v328 = vpop.f32.mrb[0].mxu0
        %v329 = vadd.f32 %v182, %v328
        %v330 = vpop.f32.mrb[0].mxu0
        %331 = vmatprep.mubr.f32.mxu0 0.0
        %332 = vmatmul.mubr.f32.gmra.mrb[0].mxu0 %v206
        %v333 = vpop.f32.mrb[0].mxu0
        %v334 = vadd.f32 %v182, %v333
        %v335 = vpop.f32.mrb[0].mxu0
        %336 = vmatprep.mubr.f32.mxu0 0.0
        %337 = vmatmul.mubr.f32.gmra.mrb[0].mxu0 %v209
        %v338 = vpop.f32.mrb[0].mxu0
        %v339 = vadd.f32 %v182, %v338
        %v340 = vpop.f32.mrb[0].mxu0
        %341 = vmatprep.mubr.f32.mxu0 0.0
        %342 = vmatmul.mubr.f32.gmra.mrb[0].mxu0 %v212
        %v343 = vpop.f32.mrb[0].mxu0
        %v344 = vadd.f32 %v182, %v343
        %v345 = vpop.f32.mrb[0].mxu0
        %346 = vmatprep.mubr.f32.mxu0 0.0
        %347 = vmatmul.mubr.f32.gmra.mrb[0].mxu0 %v215
        %v348 = vpop.f32.mrb[0].mxu0
        %v349 = vadd.f32 %v182, %v348
        %v350 = vpop.f32.mrb[0].mxu0
        %351 = vmatprep.mubr.f32.mxu0 0.0
        %352 = vmatmul.mubr.f32.gmra.mrb[0].mxu0 %v218
        %v353 = vpop.f32.mrb[0].mxu0
        %v354 = vadd.f32 %v182, %v353
        %v355 = vpop.f32.mrb[0].mxu0
        %356 = vmatprep.mubr.f32.mxu0 0.0
        %357 = vmatmul.mubr.f32.gmra.mrb[0].mxu0 %v221
        %v358 = vpop.f32.mrb[0].mxu0
        %v359 = vadd.f32 %v182, %v358
        %v360 = vpop.f32.mrb[0].mxu0
        %361 = vmatprep.mubr.f32.mxu0 0.0
        %362 = vmatmul.mubr.f32.gmra.mrb[0].mxu0 %v224
        %v363 = vpop.f32.mrb[0].mxu0
        %v364 = vadd.f32 %v182, %v363
        %v365 = vpop.f32.mrb[0].mxu0
        %366 = vmatprep.mubr.f32.mxu0 0.0
        %367 = vmatmul.mubr.f32.gmra.mrb[0].mxu0 %v227
        %v368 = vpop.f32.mrb[0].mxu0
        %v369 = vadd.f32 %v182, %v368
        %v370 = vpop.f32.mrb[0].mxu0
        %371 = vmatprep.mubr.f32.mxu0 0.0
        %372 = vmatmul.mubr.f32.gmra.mrb[0].mxu0 %v230
        %v373 = vpop.f32.mrb[0].mxu0
        %v374 = vadd.f32 %v182, %v373
        %v375 = vpop.f32.mrb[0].mxu0
        %376 = vdwg.mxu0
        %v377 = vmax.f32 %v299, 0.0
        %v378 = vmax.f32 %v304, 0.0
        %v379 = vmax.f32 %v309, 0.0
        %v380 = vmax.f32 %v314, 0.0
        %v381 = vmax.f32 %v319, 0.0
        %v382 = vmax.f32 %v324, 0.0
        %v383 = vmax.f32 %v329, 0.0
        %v384 = vmax.f32 %v334, 0.0
        %v385 = vmax.f32 %v339, 0.0
        %v386 = vmax.f32 %v344, 0.0
        %v387 = vmax.f32 %v349, 0.0
        %v388 = vmax.f32 %v354, 0.0
        %v389 = vmax.f32 %v359, 0.0
        %v390 = vmax.f32 %v364, 0.0
        %v391 = vmax.f32 %v369, 0.0
        %v392 = vmax.f32 %v374, 0.0
        %v393 = vld [vmem:[#allocation2 + $0x18] sm:$0xff]
        %v394 = vld [vmem:[#allocation2 + $0x20] sm:$0xff]
        %v395 = vld [vmem:[#allocation2 + $0x28] sm:$0xff]
        %v396 = vld [vmem:[#allocation2 + $0x30] sm:$0xff]
        %v397 = vld [vmem:[#allocation2 + $0x38] sm:$0x1]
        %v398 = vlaneseq
        %v399 = vshrl.u32 %v398, 7
        %v400 = vsub.s32 0, %v399
        %v401 = vrot.slane %v397, %v400
        %vm402 = vcmask 261120
        %v404 = vsel %vm402, %v377, 0
        %v407 = vsel %vm402, %v378, 0
        %v410 = vsel %vm402, %v379, 0
        %v413 = vsel %vm402, %v380, 0
        %v416 = vsel %vm402, %v381, 0
        %v419 = vsel %vm402, %v382, 0
        %v422 = vsel %vm402, %v383, 0
        %v425 = vsel %vm402, %v384, 0
        %v428 = vsel %vm402, %v385, 0
        %v431 = vsel %vm402, %v386, 0
        %v434 = vsel %vm402, %v387, 0
        %v437 = vsel %vm402, %v388, 0
        %v440 = vsel %vm402, %v389, 0
        %v443 = vsel %vm402, %v390, 0
        %v446 = vsel %vm402, %v391, 0
        %v449 = vsel %vm402, %v392, 0
        %451 = vmatprep.subr.mxu0 0.0
        %452 = vmatpush1.msra.mxu0 %v393
        %453 = vmatprep.subr.mxu0 0.0
        %454 = vmatpush1.msra.mxu0 %v394
        %455 = vmatprep.subr.mxu0 0.0
        %456 = vmatpush1.msra.mxu0 %v395
        %457 = vmatprep.subr.mxu0 0.0
        %458 = vmatpush1.msra.mxu0 %v396
        %459 = vmatprep.subr.mxu0 0.0
        %460 = vmatpush1.msra.mxu0 0.0
        %461 = vmatprep.subr.mxu0 0.0
        %462 = vmatpush1.msra.mxu0 0.0
        %463 = vmatprep.subr.mxu0 0.0
        %464 = vmatpush1.msra.mxu0 0.0
        %465 = vmatprep.subr.mxu0 0.0
        %466 = vmatpush1.msra.mxu0 0.0
        %467 = vmatprep.subr.mxu0 0.0
        %468 = vmatpush1.msra.mxu0 0.0
        %469 = vmatprep.subr.mxu0 0.0
        %470 = vmatpush1.msra.mxu0 0.0
        %471 = vmatprep.subr.mxu0 0.0
        %472 = vmatpush1.msra.mxu0 0.0
        %473 = vmatprep.subr.mxu0 0.0
        %474 = vmatpush1.msra.mxu0 0.0
        %475 = vmatprep.subr.mxu0 0.0
        %476 = vmatpush1.msra.mxu0 0.0
        %477 = vmatprep.subr.mxu0 0.0
        %478 = vmatpush1.msra.mxu0 0.0
        %479 = vmatprep.subr.mxu0 0.0
        %480 = vmatpush1.msra.mxu0 0.0
        %481 = vmatprep.subr.mxu0 0.0
        %482 = vmatpush1.msra.mxu0 0.0
        %483 = vmatprep.subr.mxu0 0.0
        %484 = vmatpush1.msra.mxu0 0.0
        %485 = vmatprep.subr.mxu0 0.0
        %486 = vmatpush1.msra.mxu0 0.0
        %487 = vmatprep.subr.mxu0 0.0
        %488 = vmatpush1.msra.mxu0 0.0
        %489 = vmatprep.subr.mxu0 0.0
        %490 = vmatpush1.msra.mxu0 0.0
        %491 = vmatprep.subr.mxu0 0.0
        %492 = vmatpush1.msra.mxu0 0.0
        %493 = vmatprep.subr.mxu0 0.0
        %494 = vmatpush1.msra.mxu0 0.0
        %495 = vmatprep.subr.mxu0 0.0
        %496 = vmatpush1.msra.mxu0 0.0
        %497 = vmatprep.subr.mxu0 0.0
        %498 = vmatpush1.msra.mxu0 0.0
        %499 = vmatprep.subr.mxu0 0.0
        %500 = vmatpush1.msra.mxu0 0.0
        %501 = vmatprep.subr.mxu0 0.0
        %502 = vmatpush1.msra.mxu0 0.0
        %503 = vmatprep.subr.mxu0 0.0
        %504 = vmatpush1.msra.mxu0 0.0
        %505 = vmatprep.subr.mxu0 0.0
        %506 = vmatpush1.msra.mxu0 0.0
        %507 = vmatprep.subr.mxu0 0.0
        %508 = vmatpush1.msra.mxu0 0.0
        %509 = vmatprep.subr.mxu0 0.0
        %510 = vmatpush1.msra.mxu0 0.0
        %511 = vmatprep.subr.mxu0 0.0
        %512 = vmatpush1.msra.mxu0 0.0
        %513 = vmatprep.subr.mxu0 0.0
        %514 = vmatpush1.msra.mxu0 0.0
        %515 = vmatprep.mubr.f32.mxu0 0.0
        %516 = vmatmul.mubr.f32.gmra.mrb[0].mxu0 %v404
        %v517 = vpop.f32.mrb[0].mxu0
        %v518 = vadd.f32 %v401, %v517
        %v519 = vpop.f32.mrb[0].mxu0
        %520 = vmatprep.mubr.f32.mxu0 0.0
        %521 = vmatmul.mubr.f32.gmra.mrb[0].mxu0 %v407
        %v522 = vpop.f32.mrb[0].mxu0
        %v523 = vadd.f32 %v401, %v522
        %v524 = vpop.f32.mrb[0].mxu0
        %525 = vmatprep.mubr.f32.mxu0 0.0
        %526 = vmatmul.mubr.f32.gmra.mrb[0].mxu0 %v410
        %v527 = vpop.f32.mrb[0].mxu0
        %v528 = vadd.f32 %v401, %v527
        %v529 = vpop.f32.mrb[0].mxu0
        %530 = vmatprep.mubr.f32.mxu0 0.0
        %531 = vmatmul.mubr.f32.gmra.mrb[0].mxu0 %v413
        %v532 = vpop.f32.mrb[0].mxu0
        %v533 = vadd.f32 %v401, %v532
        %v534 = vpop.f32.mrb[0].mxu0
        %535 = vmatprep.mubr.f32.mxu0 0.0
        %536 = vmatmul.mubr.f32.gmra.mrb[0].mxu0 %v416
        %v537 = vpop.f32.mrb[0].mxu0
        %v538 = vadd.f32 %v401, %v537
        %v539 = vpop.f32.mrb[0].mxu0
        %540 = vmatprep.mubr.f32.mxu0 0.0
        %541 = vmatmul.mubr.f32.gmra.mrb[0].mxu0 %v419
        %v542 = vpop.f32.mrb[0].mxu0
        %v543 = vadd.f32 %v401, %v542
        %v544 = vpop.f32.mrb[0].mxu0
        %545 = vmatprep.mubr.f32.mxu0 0.0
        %546 = vmatmul.mubr.f32.gmra.mrb[0].mxu0 %v422
        %v547 = vpop.f32.mrb[0].mxu0
        %v548 = vadd.f32 %v401, %v547
        %v549 = vpop.f32.mrb[0].mxu0
        %550 = vmatprep.mubr.f32.mxu0 0.0
        %551 = vmatmul.mubr.f32.gmra.mrb[0].mxu0 %v425
        %v552 = vpop.f32.mrb[0].mxu0
        %v553 = vadd.f32 %v401, %v552
        %v554 = vpop.f32.mrb[0].mxu0
        %555 = vmatprep.mubr.f32.mxu0 0.0
        %556 = vmatmul.mubr.f32.gmra.mrb[0].mxu0 %v428
        %v557 = vpop.f32.mrb[0].mxu0
        %v558 = vadd.f32 %v401, %v557
        %v559 = vpop.f32.mrb[0].mxu0
        %560 = vmatprep.mubr.f32.mxu0 0.0
        %561 = vmatmul.mubr.f32.gmra.mrb[0].mxu0 %v431
        %v562 = vpop.f32.mrb[0].mxu0
        %v563 = vadd.f32 %v401, %v562
        %v564 = vpop.f32.mrb[0].mxu0
        %565 = vmatprep.mubr.f32.mxu0 0.0
        %566 = vmatmul.mubr.f32.gmra.mrb[0].mxu0 %v434
        %v567 = vpop.f32.mrb[0].mxu0
        %v568 = vadd.f32 %v401, %v567
        %v569 = vpop.f32.mrb[0].mxu0
        %570 = vmatprep.mubr.f32.mxu0 0.0
        %571 = vmatmul.mubr.f32.gmra.mrb[0].mxu0 %v437
        %v572 = vpop.f32.mrb[0].mxu0
        %v573 = vadd.f32 %v401, %v572
        %v574 = vpop.f32.mrb[0].mxu0
        %575 = vmatprep.mubr.f32.mxu0 0.0
        %576 = vmatmul.mubr.f32.gmra.mrb[0].mxu0 %v440
        %v577 = vpop.f32.mrb[0].mxu0
        %v578 = vadd.f32 %v401, %v577
        %v579 = vpop.f32.mrb[0].mxu0
        %580 = vmatprep.mubr.f32.mxu0 0.0
        %581 = vmatmul.mubr.f32.gmra.mrb[0].mxu0 %v443
        %v582 = vpop.f32.mrb[0].mxu0
        %v583 = vadd.f32 %v401, %v582
        %v584 = vpop.f32.mrb[0].mxu0
        %585 = vmatprep.mubr.f32.mxu0 0.0
        %586 = vmatmul.mubr.f32.gmra.mrb[0].mxu0 %v446
        %v587 = vpop.f32.mrb[0].mxu0
        %v588 = vadd.f32 %v401, %v587
        %v589 = vpop.f32.mrb[0].mxu0
        %590 = vmatprep.mubr.f32.mxu0 0.0
        %591 = vmatmul.mubr.f32.gmra.mrb[0].mxu0 %v449
        %v592 = vpop.f32.mrb[0].mxu0
        %v593 = vadd.f32 %v401, %v592
        %v594 = vpop.f32.mrb[0].mxu0
        %595 = vdwg.mxu0
        %v596 = vld [vmem:[#allocation2 + $0x40] sm:$0xff]
        %v597 = vld [vmem:[#allocation2 + $0x48] sm:$0x1]
        %v598 = vlaneseq
        %v599 = vshrl.u32 %v598, 7
        %v600 = vsub.s32 0, %v599
        %v601 = vrot.slane %v597, %v600
        %602 = vrot.lane.b32.xlu0 %v160, 112
        %v603 = vpop.permute.xlu0 %602
        %604 = vrot.lane.b32.xlu0 %v161, 112
        %v605 = vpop.permute.xlu0 %604
        %606 = vrot.lane.b32.xlu0 %v162, 112
        %v607 = vpop.permute.xlu0 %606
        %608 = vrot.lane.b32.xlu0 %v163, 112
        %v609 = vpop.permute.xlu0 %608
        %610 = vrot.lane.b32.xlu0 %v164, 112
        %v611 = vpop.permute.xlu0 %610
        %612 = vrot.lane.b32.xlu0 %v165, 112
        %v613 = vpop.permute.xlu0 %612
        %614 = vrot.lane.b32.xlu0 %v166, 112
        %v615 = vpop.permute.xlu0 %614
        %616 = vrot.lane.b32.xlu0 %v167, 112
        %v617 = vpop.permute.xlu0 %616
        %618 = vrot.lane.b32.xlu0 %v168, 112
        %v619 = vpop.permute.xlu0 %618
        %620 = vrot.lane.b32.xlu0 %v169, 112
        %v621 = vpop.permute.xlu0 %620
        %622 = vrot.lane.b32.xlu0 %v170, 112
        %v623 = vpop.permute.xlu0 %622
        %624 = vrot.lane.b32.xlu0 %v171, 112
        %v625 = vpop.permute.xlu0 %624
        %626 = vrot.lane.b32.xlu0 %v172, 112
        %v627 = vpop.permute.xlu0 %626
        %628 = vrot.lane.b32.xlu0 %v173, 112
        %v629 = vpop.permute.xlu0 %628
        %630 = vrot.lane.b32.xlu0 %v174, 112
        %v631 = vpop.permute.xlu0 %630
        %632 = vrot.lane.b32.xlu0 %v175, 112
        %v633 = vpop.permute.xlu0 %632
        %vm634 = vcmask 64512
        %v635 = vsel %vm634, %v603, 0
        %v637 = vsel %vm634, %v605, 0
        %v639 = vsel %vm634, %v607, 0
        %v641 = vsel %vm634, %v609, 0
        %v643 = vsel %vm634, %v611, 0
        %v645 = vsel %vm634, %v613, 0
        %v647 = vsel %vm634, %v615, 0
        %v649 = vsel %vm634, %v617, 0
        %v651 = vsel %vm634, %v619, 0
        %v653 = vsel %vm634, %v621, 0
        %v655 = vsel %vm634, %v623, 0
        %v657 = vsel %vm634, %v625, 0
        %v659 = vsel %vm634, %v627, 0
        %v661 = vsel %vm634, %v629, 0
        %v663 = vsel %vm634, %v631, 0
        %v665 = vsel %vm634, %v633, 0
        %667 = vmatprep.subr.mxu0 0.0
        %668 = vmatpush1.msra.mxu0 %v596
        %669 = vmatprep.subr.mxu0 0.0
        %670 = vmatpush1.msra.mxu0 0.0
        %671 = vmatprep.subr.mxu0 0.0
        %672 = vmatpush1.msra.mxu0 0.0
        %673 = vmatprep.subr.mxu0 0.0
        %674 = vmatpush1.msra.mxu0 0.0
        %675 = vmatprep.subr.mxu0 0.0
        %676 = vmatpush1.msra.mxu0 0.0
        %677 = vmatprep.subr.mxu0 0.0
        %678 = vmatpush1.msra.mxu0 0.0
        %679 = vmatprep.subr.mxu0 0.0
        %680 = vmatpush1.msra.mxu0 0.0
        %681 = vmatprep.subr.mxu0 0.0
        %682 = vmatpush1.msra.mxu0 0.0
        %683 = vmatprep.subr.mxu0 0.0
        %684 = vmatpush1.msra.mxu0 0.0
        %685 = vmatprep.subr.mxu0 0.0
        %686 = vmatpush1.msra.mxu0 0.0
        %687 = vmatprep.subr.mxu0 0.0
        %688 = vmatpush1.msra.mxu0 0.0
        %689 = vmatprep.subr.mxu0 0.0
        %690 = vmatpush1.msra.mxu0 0.0
        %691 = vmatprep.subr.mxu0 0.0
        %692 = vmatpush1.msra.mxu0 0.0
        %693 = vmatprep.subr.mxu0 0.0
        %694 = vmatpush1.msra.mxu0 0.0
        %695 = vmatprep.subr.mxu0 0.0
        %696 = vmatpush1.msra.mxu0 0.0
        %697 = vmatprep.subr.mxu0 0.0
        %698 = vmatpush1.msra.mxu0 0.0
        %699 = vmatprep.subr.mxu0 0.0
        %700 = vmatpush1.msra.mxu0 0.0
        %701 = vmatprep.subr.mxu0 0.0
        %702 = vmatpush1.msra.mxu0 0.0
        %703 = vmatprep.subr.mxu0 0.0
        %704 = vmatpush1.msra.mxu0 0.0
        %705 = vmatprep.subr.mxu0 0.0
        %706 = vmatpush1.msra.mxu0 0.0
        %707 = vmatprep.subr.mxu0 0.0
        %708 = vmatpush1.msra.mxu0 0.0
        %709 = vmatprep.subr.mxu0 0.0
        %710 = vmatpush1.msra.mxu0 0.0
        %711 = vmatprep.subr.mxu0 0.0
        %712 = vmatpush1.msra.mxu0 0.0
        %713 = vmatprep.subr.mxu0 0.0
        %714 = vmatpush1.msra.mxu0 0.0
        %715 = vmatprep.subr.mxu0 0.0
        %716 = vmatpush1.msra.mxu0 0.0
        %717 = vmatprep.subr.mxu0 0.0
        %718 = vmatpush1.msra.mxu0 0.0
        %719 = vmatprep.subr.mxu0 0.0
        %720 = vmatpush1.msra.mxu0 0.0
        %721 = vmatprep.subr.mxu0 0.0
        %722 = vmatpush1.msra.mxu0 0.0
        %723 = vmatprep.subr.mxu0 0.0
        %724 = vmatpush1.msra.mxu0 0.0
        %725 = vmatprep.subr.mxu0 0.0
        %726 = vmatpush1.msra.mxu0 0.0
        %727 = vmatprep.subr.mxu0 0.0
        %728 = vmatpush1.msra.mxu0 0.0
        %729 = vmatprep.subr.mxu0 0.0
        %730 = vmatpush1.msra.mxu0 0.0
        %731 = vmatprep.mubr.f32.mxu0 0.0
        %732 = vmatmul.mubr.f32.gmra.mrb[0].mxu0 %v635
        %v733 = vpop.f32.mrb[0].mxu0
        %v734 = vadd.f32 %v601, %v733
        %v735 = vpop.f32.mrb[0].mxu0
        %736 = vmatprep.mubr.f32.mxu0 0.0
        %737 = vmatmul.mubr.f32.gmra.mrb[0].mxu0 %v637
        %v738 = vpop.f32.mrb[0].mxu0
        %v739 = vadd.f32 %v601, %v738
        %v740 = vpop.f32.mrb[0].mxu0
        %741 = vmatprep.mubr.f32.mxu0 0.0
        %742 = vmatmul.mubr.f32.gmra.mrb[0].mxu0 %v639
        %v743 = vpop.f32.mrb[0].mxu0
        %v744 = vadd.f32 %v601, %v743
        %v745 = vpop.f32.mrb[0].mxu0
        %746 = vmatprep.mubr.f32.mxu0 0.0
        %747 = vmatmul.mubr.f32.gmra.mrb[0].mxu0 %v641
        %v748 = vpop.f32.mrb[0].mxu0
        %v749 = vadd.f32 %v601, %v748
        %v750 = vpop.f32.mrb[0].mxu0
        %751 = vmatprep.mubr.f32.mxu0 0.0
        %752 = vmatmul.mubr.f32.gmra.mrb[0].mxu0 %v643
        %v753 = vpop.f32.mrb[0].mxu0
        %v754 = vadd.f32 %v601, %v753
        %v755 = vpop.f32.mrb[0].mxu0
        %756 = vmatprep.mubr.f32.mxu0 0.0
        %757 = vmatmul.mubr.f32.gmra.mrb[0].mxu0 %v645
        %v758 = vpop.f32.mrb[0].mxu0
        %v759 = vadd.f32 %v601, %v758
        %v760 = vpop.f32.mrb[0].mxu0
        %761 = vmatprep.mubr.f32.mxu0 0.0
        %762 = vmatmul.mubr.f32.gmra.mrb[0].mxu0 %v647
        %v763 = vpop.f32.mrb[0].mxu0
        %v764 = vadd.f32 %v601, %v763
        %v765 = vpop.f32.mrb[0].mxu0
        %766 = vmatprep.mubr.f32.mxu0 0.0
        %767 = vmatmul.mubr.f32.gmra.mrb[0].mxu0 %v649
        %v768 = vpop.f32.mrb[0].mxu0
        %v769 = vadd.f32 %v601, %v768
        %v770 = vpop.f32.mrb[0].mxu0
        %771 = vmatprep.mubr.f32.mxu0 0.0
        %772 = vmatmul.mubr.f32.gmra.mrb[0].mxu0 %v651
        %v773 = vpop.f32.mrb[0].mxu0
        %v774 = vadd.f32 %v601, %v773
        %v775 = vpop.f32.mrb[0].mxu0
        %776 = vmatprep.mubr.f32.mxu0 0.0
        %777 = vmatmul.mubr.f32.gmra.mrb[0].mxu0 %v653
        %v778 = vpop.f32.mrb[0].mxu0
        %v779 = vadd.f32 %v601, %v778
        %v780 = vpop.f32.mrb[0].mxu0
        %781 = vmatprep.mubr.f32.mxu0 0.0
        %782 = vmatmul.mubr.f32.gmra.mrb[0].mxu0 %v655
        %v783 = vpop.f32.mrb[0].mxu0
        %v784 = vadd.f32 %v601, %v783
        %v785 = vpop.f32.mrb[0].mxu0
        %786 = vmatprep.mubr.f32.mxu0 0.0
        %787 = vmatmul.mubr.f32.gmra.mrb[0].mxu0 %v657
        %v788 = vpop.f32.mrb[0].mxu0
        %v789 = vadd.f32 %v601, %v788
        %v790 = vpop.f32.mrb[0].mxu0
        %791 = vmatprep.mubr.f32.mxu0 0.0
        %792 = vmatmul.mubr.f32.gmra.mrb[0].mxu0 %v659
        %v793 = vpop.f32.mrb[0].mxu0
        %v794 = vadd.f32 %v601, %v793
        %v795 = vpop.f32.mrb[0].mxu0
        %796 = vmatprep.mubr.f32.mxu0 0.0
        %797 = vmatmul.mubr.f32.gmra.mrb[0].mxu0 %v661
        %v798 = vpop.f32.mrb[0].mxu0
        %v799 = vadd.f32 %v601, %v798
        %v800 = vpop.f32.mrb[0].mxu0
        %801 = vmatprep.mubr.f32.mxu0 0.0
        %802 = vmatmul.mubr.f32.gmra.mrb[0].mxu0 %v663
        %v803 = vpop.f32.mrb[0].mxu0
        %v804 = vadd.f32 %v601, %v803
        %v805 = vpop.f32.mrb[0].mxu0
        %806 = vmatprep.mubr.f32.mxu0 0.0
        %807 = vmatmul.mubr.f32.gmra.mrb[0].mxu0 %v665
        %v808 = vpop.f32.mrb[0].mxu0
        %v809 = vadd.f32 %v601, %v808
        %v810 = vpop.f32.mrb[0].mxu0
        %811 = vdwg.mxu0
        %v812 = vmul.f32 %v734, %v518
        %v813 = vmul.f32 %v739, %v523
        %v814 = vmul.f32 %v744, %v528
        %v815 = vmul.f32 %v749, %v533
        %v816 = vmul.f32 %v754, %v538
        %v817 = vmul.f32 %v759, %v543
        %v818 = vmul.f32 %v764, %v548
        %v819 = vmul.f32 %v769, %v553
        %v820 = vmul.f32 %v774, %v558
        %v821 = vmul.f32 %v779, %v563
        %v822 = vmul.f32 %v784, %v568
        %v823 = vmul.f32 %v789, %v573
        %v824 = vmul.f32 %v794, %v578
        %v825 = vmul.f32 %v799, %v583
        %v826 = vmul.f32 %v804, %v588
        %v827 = vmul.f32 %v809, %v593
        %v828 = vmax.f32 %v518, 0.0
        %v829 = vmax.f32 %v523, 0.0
        %v830 = vmax.f32 %v528, 0.0
        %v831 = vmax.f32 %v533, 0.0
        %v832 = vmax.f32 %v538, 0.0
        %v833 = vmax.f32 %v543, 0.0
        %v834 = vmax.f32 %v548, 0.0
        %v835 = vmax.f32 %v553, 0.0
        %v836 = vmax.f32 %v558, 0.0
        %v837 = vmax.f32 %v563, 0.0
        %v838 = vmax.f32 %v568, 0.0
        %v839 = vmax.f32 %v573, 0.0
        %v840 = vmax.f32 %v578, 0.0
        %v841 = vmax.f32 %v583, 0.0
        %v842 = vmax.f32 %v588, 0.0
        %v843 = vmax.f32 %v593, 0.0
        %v844 = vmax.f32 %v812, 0.0
        %v845 = vmax.f32 %v813, 0.0
        %v846 = vmax.f32 %v814, 0.0
        %v847 = vmax.f32 %v815, 0.0
        %v848 = vmax.f32 %v816, 0.0
        %v849 = vmax.f32 %v817, 0.0
        %v850 = vmax.f32 %v818, 0.0
        %v851 = vmax.f32 %v819, 0.0
        %v852 = vmax.f32 %v820, 0.0
        %v853 = vmax.f32 %v821, 0.0
        %v854 = vmax.f32 %v822, 0.0
        %v855 = vmax.f32 %v823, 0.0
        %v856 = vmax.f32 %v824, 0.0
        %v857 = vmax.f32 %v825, 0.0
        %v858 = vmax.f32 %v826, 0.0
        %v859 = vmax.f32 %v827, 0.0
        %v860 = vld [vmem:[#allocation2 + $0x50] sm:$0xff]
        %v861 = vld [vmem:[#allocation2 + $0x58] sm:$0xff]
        %v862 = vld [vmem:[#allocation2 + $0x60] sm:$0xff]
        %v863 = vld [vmem:[#allocation2 + $0x68] sm:$0xff]
        %v864 = vld [vmem:[#allocation2 + $0x70] sm:$0x1]
        %v865 = vlaneseq
        %v866 = vshrl.u32 %v865, 7
        %v867 = vsub.s32 0, %v866
        %v868 = vrot.slane %v864, %v867
        %v870 = vsel %vm402, %v844, 0
        %v873 = vsel %vm402, %v845, 0
        %v876 = vsel %vm402, %v846, 0
        %v879 = vsel %vm402, %v847, 0
        %v882 = vsel %vm402, %v848, 0
        %v885 = vsel %vm402, %v849, 0
        %v888 = vsel %vm402, %v850, 0
        %v891 = vsel %vm402, %v851, 0
        %v894 = vsel %vm402, %v852, 0
        %v897 = vsel %vm402, %v853, 0
        %v900 = vsel %vm402, %v854, 0
        %v903 = vsel %vm402, %v855, 0
        %v906 = vsel %vm402, %v856, 0
        %v909 = vsel %vm402, %v857, 0
        %v912 = vsel %vm402, %v858, 0
        %v915 = vsel %vm402, %v859, 0
        %917 = vmatprep.subr.mxu0 0.0
        %918 = vmatpush1.msra.mxu0 %v860
        %919 = vmatprep.subr.mxu0 0.0
        %920 = vmatpush1.msra.mxu0 %v861
        %921 = vmatprep.subr.mxu0 0.0
        %922 = vmatpush1.msra.mxu0 %v862
        %923 = vmatprep.subr.mxu0 0.0
        %924 = vmatpush1.msra.mxu0 %v863
        %925 = vmatprep.subr.mxu0 0.0
        %926 = vmatpush1.msra.mxu0 0.0
        %927 = vmatprep.subr.mxu0 0.0
        %928 = vmatpush1.msra.mxu0 0.0
        %929 = vmatprep.subr.mxu0 0.0
        %930 = vmatpush1.msra.mxu0 0.0
        %931 = vmatprep.subr.mxu0 0.0
        %932 = vmatpush1.msra.mxu0 0.0
        %933 = vmatprep.subr.mxu0 0.0
        %934 = vmatpush1.msra.mxu0 0.0
        %935 = vmatprep.subr.mxu0 0.0
        %936 = vmatpush1.msra.mxu0 0.0
        %937 = vmatprep.subr.mxu0 0.0
        %938 = vmatpush1.msra.mxu0 0.0
        %939 = vmatprep.subr.mxu0 0.0
        %940 = vmatpush1.msra.mxu0 0.0
        %941 = vmatprep.subr.mxu0 0.0
        %942 = vmatpush1.msra.mxu0 0.0
        %943 = vmatprep.subr.mxu0 0.0
        %944 = vmatpush1.msra.mxu0 0.0
        %945 = vmatprep.subr.mxu0 0.0
        %946 = vmatpush1.msra.mxu0 0.0
        %947 = vmatprep.subr.mxu0 0.0
        %948 = vmatpush1.msra.mxu0 0.0
        %949 = vmatprep.subr.mxu0 0.0
        %950 = vmatpush1.msra.mxu0 0.0
        %951 = vmatprep.subr.mxu0 0.0
        %952 = vmatpush1.msra.mxu0 0.0
        %953 = vmatprep.subr.mxu0 0.0
        %954 = vmatpush1.msra.mxu0 0.0
        %955 = vmatprep.subr.mxu0 0.0
        %956 = vmatpush1.msra.mxu0 0.0
        %957 = vmatprep.subr.mxu0 0.0
        %958 = vmatpush1.msra.mxu0 0.0
        %959 = vmatprep.subr.mxu0 0.0
        %960 = vmatpush1.msra.mxu0 0.0
        %961 = vmatprep.subr.mxu0 0.0
        %962 = vmatpush1.msra.mxu0 0.0
        %963 = vmatprep.subr.mxu0 0.0
        %964 = vmatpush1.msra.mxu0 0.0
        %965 = vmatprep.subr.mxu0 0.0
        %966 = vmatpush1.msra.mxu0 0.0
        %967 = vmatprep.subr.mxu0 0.0
        %968 = vmatpush1.msra.mxu0 0.0
        %969 = vmatprep.subr.mxu0 0.0
        %970 = vmatpush1.msra.mxu0 0.0
        %971 = vmatprep.subr.mxu0 0.0
        %972 = vmatpush1.msra.mxu0 0.0
        %973 = vmatprep.subr.mxu0 0.0
        %974 = vmatpush1.msra.mxu0 0.0
        %975 = vmatprep.subr.mxu0 0.0
        %976 = vmatpush1.msra.mxu0 0.0
        %977 = vmatprep.subr.mxu0 0.0
        %978 = vmatpush1.msra.mxu0 0.0
        %979 = vmatprep.subr.mxu0 0.0
        %980 = vmatpush1.msra.mxu0 0.0
        %981 = vmatprep.mubr.f32.mxu0 0.0
        %982 = vmatmul.mubr.f32.gmra.mrb[0].mxu0 %v870
        %v983 = vpop.f32.mrb[0].mxu0
        %v984 = vadd.f32 %v868, %v983
        %v985 = vpop.f32.mrb[0].mxu0
        %986 = vmatprep.mubr.f32.mxu0 0.0
        %987 = vmatmul.mubr.f32.gmra.mrb[0].mxu0 %v873
        %v988 = vpop.f32.mrb[0].mxu0
        %v989 = vadd.f32 %v868, %v988
        %v990 = vpop.f32.mrb[0].mxu0
        %991 = vmatprep.mubr.f32.mxu0 0.0
        %992 = vmatmul.mubr.f32.gmra.mrb[0].mxu0 %v876
        %v993 = vpop.f32.mrb[0].mxu0
        %v994 = vadd.f32 %v868, %v993
        %v995 = vpop.f32.mrb[0].mxu0
        %996 = vmatprep.mubr.f32.mxu0 0.0
        %997 = vmatmul.mubr.f32.gmra.mrb[0].mxu0 %v879
        %v998 = vpop.f32.mrb[0].mxu0
        %v999 = vadd.f32 %v868, %v998
        %v1000 = vpop.f32.mrb[0].mxu0
        %1001 = vmatprep.mubr.f32.mxu0 0.0
        %1002 = vmatmul.mubr.f32.gmra.mrb[0].mxu0 %v882
        %v1003 = vpop.f32.mrb[0].mxu0
        %v1004 = vadd.f32 %v868, %v1003
        %v1005 = vpop.f32.mrb[0].mxu0
        %1006 = vmatprep.mubr.f32.mxu0 0.0
        %1007 = vmatmul.mubr.f32.gmra.mrb[0].mxu0 %v885
        %v1008 = vpop.f32.mrb[0].mxu0
        %v1009 = vadd.f32 %v868, %v1008
        %v1010 = vpop.f32.mrb[0].mxu0
        %1011 = vmatprep.mubr.f32.mxu0 0.0
        %1012 = vmatmul.mubr.f32.gmra.mrb[0].mxu0 %v888
        %v1013 = vpop.f32.mrb[0].mxu0
        %v1014 = vadd.f32 %v868, %v1013
        %v1015 = vpop.f32.mrb[0].mxu0
        %1016 = vmatprep.mubr.f32.mxu0 0.0
        %1017 = vmatmul.mubr.f32.gmra.mrb[0].mxu0 %v891
        %v1018 = vpop.f32.mrb[0].mxu0
        %v1019 = vadd.f32 %v868, %v1018
        %v1020 = vpop.f32.mrb[0].mxu0
        %1021 = vmatprep.mubr.f32.mxu0 0.0
        %1022 = vmatmul.mubr.f32.gmra.mrb[0].mxu0 %v894
        %v1023 = vpop.f32.mrb[0].mxu0
        %v1024 = vadd.f32 %v868, %v1023
        %v1025 = vpop.f32.mrb[0].mxu0
        %1026 = vmatprep.mubr.f32.mxu0 0.0
        %1027 = vmatmul.mubr.f32.gmra.mrb[0].mxu0 %v897
        %v1028 = vpop.f32.mrb[0].mxu0
        %v1029 = vadd.f32 %v868, %v1028
        %v1030 = vpop.f32.mrb[0].mxu0
        %1031 = vmatprep.mubr.f32.mxu0 0.0
        %1032 = vmatmul.mubr.f32.gmra.mrb[0].mxu0 %v900
        %v1033 = vpop.f32.mrb[0].mxu0
        %v1034 = vadd.f32 %v868, %v1033
        %v1035 = vpop.f32.mrb[0].mxu0
        %1036 = vmatprep.mubr.f32.mxu0 0.0
        %1037 = vmatmul.mubr.f32.gmra.mrb[0].mxu0 %v903
        %v1038 = vpop.f32.mrb[0].mxu0
        %v1039 = vadd.f32 %v868, %v1038
        %v1040 = vpop.f32.mrb[0].mxu0
        %1041 = vmatprep.mubr.f32.mxu0 0.0
        %1042 = vmatmul.mubr.f32.gmra.mrb[0].mxu0 %v906
        %v1043 = vpop.f32.mrb[0].mxu0
        %v1044 = vadd.f32 %v868, %v1043
        %v1045 = vpop.f32.mrb[0].mxu0
        %1046 = vmatprep.mubr.f32.mxu0 0.0
        %1047 = vmatmul.mubr.f32.gmra.mrb[0].mxu0 %v909
        %v1048 = vpop.f32.mrb[0].mxu0
        %v1049 = vadd.f32 %v868, %v1048
        %v1050 = vpop.f32.mrb[0].mxu0
        %1051 = vmatprep.mubr.f32.mxu0 0.0
        %1052 = vmatmul.mubr.f32.gmra.mrb[0].mxu0 %v912
        %v1053 = vpop.f32.mrb[0].mxu0
        %v1054 = vadd.f32 %v868, %v1053
        %v1055 = vpop.f32.mrb[0].mxu0
        %1056 = vmatprep.mubr.f32.mxu0 0.0
        %1057 = vmatmul.mubr.f32.gmra.mrb[0].mxu0 %v915
        %v1058 = vpop.f32.mrb[0].mxu0
        %v1059 = vadd.f32 %v868, %v1058
        %v1060 = vpop.f32.mrb[0].mxu0
        %1061 = vdwg.mxu0
        %v1062 = vmax.f32 %v984, 0.0
        %v1063 = vmax.f32 %v989, 0.0
        %v1064 = vmax.f32 %v994, 0.0
        %v1065 = vmax.f32 %v999, 0.0
        %v1066 = vmax.f32 %v1004, 0.0
        %v1067 = vmax.f32 %v1009, 0.0
        %v1068 = vmax.f32 %v1014, 0.0
        %v1069 = vmax.f32 %v1019, 0.0
        %v1070 = vmax.f32 %v1024, 0.0
        %v1071 = vmax.f32 %v1029, 0.0
        %v1072 = vmax.f32 %v1034, 0.0
        %v1073 = vmax.f32 %v1039, 0.0
        %v1074 = vmax.f32 %v1044, 0.0
        %v1075 = vmax.f32 %v1049, 0.0
        %v1076 = vmax.f32 %v1054, 0.0
        %v1077 = vmax.f32 %v1059, 0.0
        %v1078 = vld [vmem:[#allocation2 + $0x78] sm:$0xff]
        %v1079 = vld [vmem:[#allocation2 + $0x80] sm:$0xff]
        %v1080 = vld [vmem:[#allocation2 + $0x88] sm:$0xff]
        %v1081 = vld [vmem:[#allocation2 + $0x90] sm:$0xff]
        %v1082 = vld [vmem:[#allocation2 + $0x98] sm:$0x1]
        %v1083 = vlaneseq
        %v1084 = vshrl.u32 %v1083, 7
        %v1085 = vsub.s32 0, %v1084
        %v1086 = vrot.slane %v1082, %v1085
        %v1088 = vsel %vm402, %v1062, 0
        %v1091 = vsel %vm402, %v1063, 0
        %v1094 = vsel %vm402, %v1064, 0
        %v1097 = vsel %vm402, %v1065, 0
        %v1100 = vsel %vm402, %v1066, 0
        %v1103 = vsel %vm402, %v1067, 0
        %v1106 = vsel %vm402, %v1068, 0
        %v1109 = vsel %vm402, %v1069, 0
        %v1112 = vsel %vm402, %v1070, 0
        %v1115 = vsel %vm402, %v1071, 0
        %v1118 = vsel %vm402, %v1072, 0
        %v1121 = vsel %vm402, %v1073, 0
        %v1124 = vsel %vm402, %v1074, 0
        %v1127 = vsel %vm402, %v1075, 0
        %v1130 = vsel %vm402, %v1076, 0
        %v1133 = vsel %vm402, %v1077, 0
        %1135 = vmatprep.subr.mxu0 0.0
        %1136 = vmatpush1.msra.mxu0 %v1078
        %1137 = vmatprep.subr.mxu0 0.0
        %1138 = vmatpush1.msra.mxu0 %v1079
        %1139 = vmatprep.subr.mxu0 0.0
        %1140 = vmatpush1.msra.mxu0 %v1080
        %1141 = vmatprep.subr.mxu0 0.0
        %1142 = vmatpush1.msra.mxu0 %v1081
        %1143 = vmatprep.subr.mxu0 0.0
        %1144 = vmatpush1.msra.mxu0 0.0
        %1145 = vmatprep.subr.mxu0 0.0
        %1146 = vmatpush1.msra.mxu0 0.0
        %1147 = vmatprep.subr.mxu0 0.0
        %1148 = vmatpush1.msra.mxu0 0.0
        %1149 = vmatprep.subr.mxu0 0.0
        %1150 = vmatpush1.msra.mxu0 0.0
        %1151 = vmatprep.subr.mxu0 0.0
        %1152 = vmatpush1.msra.mxu0 0.0
        %1153 = vmatprep.subr.mxu0 0.0
        %1154 = vmatpush1.msra.mxu0 0.0
        %1155 = vmatprep.subr.mxu0 0.0
        %1156 = vmatpush1.msra.mxu0 0.0
        %1157 = vmatprep.subr.mxu0 0.0
        %1158 = vmatpush1.msra.mxu0 0.0
        %1159 = vmatprep.subr.mxu0 0.0
        %1160 = vmatpush1.msra.mxu0 0.0
        %1161 = vmatprep.subr.mxu0 0.0
        %1162 = vmatpush1.msra.mxu0 0.0
        %1163 = vmatprep.subr.mxu0 0.0
        %1164 = vmatpush1.msra.mxu0 0.0
        %1165 = vmatprep.subr.mxu0 0.0
        %1166 = vmatpush1.msra.mxu0 0.0
        %1167 = vmatprep.subr.mxu0 0.0
        %1168 = vmatpush1.msra.mxu0 0.0
        %1169 = vmatprep.subr.mxu0 0.0
        %1170 = vmatpush1.msra.mxu0 0.0
        %1171 = vmatprep.subr.mxu0 0.0
        %1172 = vmatpush1.msra.mxu0 0.0
        %1173 = vmatprep.subr.mxu0 0.0
        %1174 = vmatpush1.msra.mxu0 0.0
        %1175 = vmatprep.subr.mxu0 0.0
        %1176 = vmatpush1.msra.mxu0 0.0
        %1177 = vmatprep.subr.mxu0 0.0
        %1178 = vmatpush1.msra.mxu0 0.0
        %1179 = vmatprep.subr.mxu0 0.0
        %1180 = vmatpush1.msra.mxu0 0.0
        %1181 = vmatprep.subr.mxu0 0.0
        %1182 = vmatpush1.msra.mxu0 0.0
        %1183 = vmatprep.subr.mxu0 0.0
        %1184 = vmatpush1.msra.mxu0 0.0
        %1185 = vmatprep.subr.mxu0 0.0
        %1186 = vmatpush1.msra.mxu0 0.0
        %1187 = vmatprep.subr.mxu0 0.0
        %1188 = vmatpush1.msra.mxu0 0.0
        %1189 = vmatprep.subr.mxu0 0.0
        %1190 = vmatpush1.msra.mxu0 0.0
        %1191 = vmatprep.subr.mxu0 0.0
        %1192 = vmatpush1.msra.mxu0 0.0
        %1193 = vmatprep.subr.mxu0 0.0
        %1194 = vmatpush1.msra.mxu0 0.0
        %1195 = vmatprep.subr.mxu0 0.0
        %1196 = vmatpush1.msra.mxu0 0.0
        %1197 = vmatprep.subr.mxu0 0.0
        %1198 = vmatpush1.msra.mxu0 0.0
        %1199 = vmatprep.mubr.f32.mxu0 0.0
        %1200 = vmatmul.mubr.f32.gmra.mrb[0].mxu0 %v1088
        %v1201 = vpop.f32.mrb[0].mxu0
        %v1202 = vadd.f32 %v1086, %v1201
        %v1203 = vpop.f32.mrb[0].mxu0
        %1204 = vmatprep.mubr.f32.mxu0 0.0
        %1205 = vmatmul.mubr.f32.gmra.mrb[0].mxu0 %v1091
        %v1206 = vpop.f32.mrb[0].mxu0
        %v1207 = vadd.f32 %v1086, %v1206
        %v1208 = vpop.f32.mrb[0].mxu0
        %1209 = vmatprep.mubr.f32.mxu0 0.0
        %1210 = vmatmul.mubr.f32.gmra.mrb[0].mxu0 %v1094
        %v1211 = vpop.f32.mrb[0].mxu0
        %v1212 = vadd.f32 %v1086, %v1211
        %v1213 = vpop.f32.mrb[0].mxu0
        %1214 = vmatprep.mubr.f32.mxu0 0.0
        %1215 = vmatmul.mubr.f32.gmra.mrb[0].mxu0 %v1097
        %v1216 = vpop.f32.mrb[0].mxu0
        %v1217 = vadd.f32 %v1086, %v1216
        %v1218 = vpop.f32.mrb[0].mxu0
        %1219 = vmatprep.mubr.f32.mxu0 0.0
        %1220 = vmatmul.mubr.f32.gmra.mrb[0].mxu0 %v1100
        %v1221 = vpop.f32.mrb[0].mxu0
        %v1222 = vadd.f32 %v1086, %v1221
        %v1223 = vpop.f32.mrb[0].mxu0
        %1224 = vmatprep.mubr.f32.mxu0 0.0
        %1225 = vmatmul.mubr.f32.gmra.mrb[0].mxu0 %v1103
        %v1226 = vpop.f32.mrb[0].mxu0
        %v1227 = vadd.f32 %v1086, %v1226
        %v1228 = vpop.f32.mrb[0].mxu0
        %1229 = vmatprep.mubr.f32.mxu0 0.0
        %1230 = vmatmul.mubr.f32.gmra.mrb[0].mxu0 %v1106
        %v1231 = vpop.f32.mrb[0].mxu0
        %v1232 = vadd.f32 %v1086, %v1231
        %v1233 = vpop.f32.mrb[0].mxu0
        %1234 = vmatprep.mubr.f32.mxu0 0.0
        %1235 = vmatmul.mubr.f32.gmra.mrb[0].mxu0 %v1109
        %v1236 = vpop.f32.mrb[0].mxu0
        %v1237 = vadd.f32 %v1086, %v1236
        %v1238 = vpop.f32.mrb[0].mxu0
        %1239 = vmatprep.mubr.f32.mxu0 0.0
        %1240 = vmatmul.mubr.f32.gmra.mrb[0].mxu0 %v1112
        %v1241 = vpop.f32.mrb[0].mxu0
        %v1242 = vadd.f32 %v1086, %v1241
        %v1243 = vpop.f32.mrb[0].mxu0
        %1244 = vmatprep.mubr.f32.mxu0 0.0
        %1245 = vmatmul.mubr.f32.gmra.mrb[0].mxu0 %v1115
        %v1246 = vpop.f32.mrb[0].mxu0
        %v1247 = vadd.f32 %v1086, %v1246
        %v1248 = vpop.f32.mrb[0].mxu0
        %1249 = vmatprep.mubr.f32.mxu0 0.0
        %1250 = vmatmul.mubr.f32.gmra.mrb[0].mxu0 %v1118
        %v1251 = vpop.f32.mrb[0].mxu0
        %v1252 = vadd.f32 %v1086, %v1251
        %v1253 = vpop.f32.mrb[0].mxu0
        %1254 = vmatprep.mubr.f32.mxu0 0.0
        %1255 = vmatmul.mubr.f32.gmra.mrb[0].mxu0 %v1121
        %v1256 = vpop.f32.mrb[0].mxu0
        %v1257 = vadd.f32 %v1086, %v1256
        %v1258 = vpop.f32.mrb[0].mxu0
        %1259 = vmatprep.mubr.f32.mxu0 0.0
        %1260 = vmatmul.mubr.f32.gmra.mrb[0].mxu0 %v1124
        %v1261 = vpop.f32.mrb[0].mxu0
        %v1262 = vadd.f32 %v1086, %v1261
        %v1263 = vpop.f32.mrb[0].mxu0
        %1264 = vmatprep.mubr.f32.mxu0 0.0
        %1265 = vmatmul.mubr.f32.gmra.mrb[0].mxu0 %v1127
        %v1266 = vpop.f32.mrb[0].mxu0
        %v1267 = vadd.f32 %v1086, %v1266
        %v1268 = vpop.f32.mrb[0].mxu0
        %1269 = vmatprep.mubr.f32.mxu0 0.0
        %1270 = vmatmul.mubr.f32.gmra.mrb[0].mxu0 %v1130
        %v1271 = vpop.f32.mrb[0].mxu0
        %v1272 = vadd.f32 %v1086, %v1271
        %v1273 = vpop.f32.mrb[0].mxu0
        %1274 = vmatprep.mubr.f32.mxu0 0.0
        %1275 = vmatmul.mubr.f32.gmra.mrb[0].mxu0 %v1133
        %v1276 = vpop.f32.mrb[0].mxu0
        %v1277 = vadd.f32 %v1086, %v1276
        %v1278 = vpop.f32.mrb[0].mxu0
        %1279 = vdwg.mxu0
        %v1280 = vmax.f32 %v1202, 0.0
        %v1281 = vmax.f32 %v1207, 0.0
        %v1282 = vmax.f32 %v1212, 0.0
        %v1283 = vmax.f32 %v1217, 0.0
        %v1284 = vmax.f32 %v1222, 0.0
        %v1285 = vmax.f32 %v1227, 0.0
        %v1286 = vmax.f32 %v1232, 0.0
        %v1287 = vmax.f32 %v1237, 0.0
        %v1288 = vmax.f32 %v1242, 0.0
        %v1289 = vmax.f32 %v1247, 0.0
        %v1290 = vmax.f32 %v1252, 0.0
        %v1291 = vmax.f32 %v1257, 0.0
        %v1292 = vmax.f32 %v1262, 0.0
        %v1293 = vmax.f32 %v1267, 0.0
        %v1294 = vmax.f32 %v1272, 0.0
        %v1295 = vmax.f32 %v1277, 0.0
        %v1296 = vld [vmem:[#allocation2 + $0xa0] sm:$0xff]
        %v1297 = vld [vmem:[#allocation2 + $0xa8] sm:$0xff]
        %v1298 = vld [vmem:[#allocation2 + $0xb0] sm:$0xff]
        %v1299 = vld [vmem:[#allocation2 + $0xb8] sm:$0xff]
        %v1300 = vld [vmem:[#allocation2 + $0xc0] sm:$0x1]
        %v1301 = vlaneseq
        %v1302 = vshrl.u32 %v1301, 7
        %v1303 = vsub.s32 0, %v1302
        %v1304 = vrot.slane %v1300, %v1303
        %v1306 = vsel %vm402, %v1280, 0
        %v1309 = vsel %vm402, %v1281, 0
        %v1312 = vsel %vm402, %v1282, 0
        %v1315 = vsel %vm402, %v1283, 0
        %v1318 = vsel %vm402, %v1284, 0
        %v1321 = vsel %vm402, %v1285, 0
        %v1324 = vsel %vm402, %v1286, 0
        %v1327 = vsel %vm402, %v1287, 0
        %v1330 = vsel %vm402, %v1288, 0
        %v1333 = vsel %vm402, %v1289, 0
        %v1336 = vsel %vm402, %v1290, 0
        %v1339 = vsel %vm402, %v1291, 0
        %v1342 = vsel %vm402, %v1292, 0
        %v1345 = vsel %vm402, %v1293, 0
        %v1348 = vsel %vm402, %v1294, 0
        %v1351 = vsel %vm402, %v1295, 0
        %1353 = vmatprep.subr.mxu0 0.0
        %1354 = vmatpush1.msra.mxu0 %v1296
        %1355 = vmatprep.subr.mxu0 0.0
        %1356 = vmatpush1.msra.mxu0 %v1297
        %1357 = vmatprep.subr.mxu0 0.0
        %1358 = vmatpush1.msra.mxu0 %v1298
        %1359 = vmatprep.subr.mxu0 0.0
        %1360 = vmatpush1.msra.mxu0 %v1299
        %1361 = vmatprep.subr.mxu0 0.0
        %1362 = vmatpush1.msra.mxu0 0.0
        %1363 = vmatprep.subr.mxu0 0.0
        %1364 = vmatpush1.msra.mxu0 0.0
        %1365 = vmatprep.subr.mxu0 0.0
        %1366 = vmatpush1.msra.mxu0 0.0
        %1367 = vmatprep.subr.mxu0 0.0
        %1368 = vmatpush1.msra.mxu0 0.0
        %1369 = vmatprep.subr.mxu0 0.0
        %1370 = vmatpush1.msra.mxu0 0.0
        %1371 = vmatprep.subr.mxu0 0.0
        %1372 = vmatpush1.msra.mxu0 0.0
        %1373 = vmatprep.subr.mxu0 0.0
        %1374 = vmatpush1.msra.mxu0 0.0
        %1375 = vmatprep.subr.mxu0 0.0
        %1376 = vmatpush1.msra.mxu0 0.0
        %1377 = vmatprep.subr.mxu0 0.0
        %1378 = vmatpush1.msra.mxu0 0.0
        %1379 = vmatprep.subr.mxu0 0.0
        %1380 = vmatpush1.msra.mxu0 0.0
        %1381 = vmatprep.subr.mxu0 0.0
        %1382 = vmatpush1.msra.mxu0 0.0
        %1383 = vmatprep.subr.mxu0 0.0
        %1384 = vmatpush1.msra.mxu0 0.0
        %1385 = vmatprep.subr.mxu0 0.0
        %1386 = vmatpush1.msra.mxu0 0.0
        %1387 = vmatprep.subr.mxu0 0.0
        %1388 = vmatpush1.msra.mxu0 0.0
        %1389 = vmatprep.subr.mxu0 0.0
        %1390 = vmatpush1.msra.mxu0 0.0
        %1391 = vmatprep.subr.mxu0 0.0
        %1392 = vmatpush1.msra.mxu0 0.0
        %1393 = vmatprep.subr.mxu0 0.0
        %1394 = vmatpush1.msra.mxu0 0.0
        %1395 = vmatprep.subr.mxu0 0.0
        %1396 = vmatpush1.msra.mxu0 0.0
        %1397 = vmatprep.subr.mxu0 0.0
        %1398 = vmatpush1.msra.mxu0 0.0
        %1399 = vmatprep.subr.mxu0 0.0
        %1400 = vmatpush1.msra.mxu0 0.0
        %1401 = vmatprep.subr.mxu0 0.0
        %1402 = vmatpush1.msra.mxu0 0.0
        %1403 = vmatprep.subr.mxu0 0.0
        %1404 = vmatpush1.msra.mxu0 0.0
        %1405 = vmatprep.subr.mxu0 0.0
        %1406 = vmatpush1.msra.mxu0 0.0
        %1407 = vmatprep.subr.mxu0 0.0
        %1408 = vmatpush1.msra.mxu0 0.0
        %1409 = vmatprep.subr.mxu0 0.0
        %1410 = vmatpush1.msra.mxu0 0.0
        %1411 = vmatprep.subr.mxu0 0.0
        %1412 = vmatpush1.msra.mxu0 0.0
        %1413 = vmatprep.subr.mxu0 0.0
        %1414 = vmatpush1.msra.mxu0 0.0
        %1415 = vmatprep.subr.mxu0 0.0
        %1416 = vmatpush1.msra.mxu0 0.0
        %1417 = vmatprep.mubr.f32.mxu0 0.0
        %1418 = vmatmul.mubr.f32.gmra.mrb[0].mxu0 %v1306
        %v1419 = vpop.f32.mrb[0].mxu0
        %v1420 = vadd.f32 %v1304, %v1419
        %v1421 = vpop.f32.mrb[0].mxu0
        %1422 = vmatprep.mubr.f32.mxu0 0.0
        %1423 = vmatmul.mubr.f32.gmra.mrb[0].mxu0 %v1309
        %v1424 = vpop.f32.mrb[0].mxu0
        %v1425 = vadd.f32 %v1304, %v1424
        %v1426 = vpop.f32.mrb[0].mxu0
        %1427 = vmatprep.mubr.f32.mxu0 0.0
        %1428 = vmatmul.mubr.f32.gmra.mrb[0].mxu0 %v1312
        %v1429 = vpop.f32.mrb[0].mxu0
        %v1430 = vadd.f32 %v1304, %v1429
        %v1431 = vpop.f32.mrb[0].mxu0
        %1432 = vmatprep.mubr.f32.mxu0 0.0
        %1433 = vmatmul.mubr.f32.gmra.mrb[0].mxu0 %v1315
        %v1434 = vpop.f32.mrb[0].mxu0
        %v1435 = vadd.f32 %v1304, %v1434
        %v1436 = vpop.f32.mrb[0].mxu0
        %1437 = vmatprep.mubr.f32.mxu0 0.0
        %1438 = vmatmul.mubr.f32.gmra.mrb[0].mxu0 %v1318
        %v1439 = vpop.f32.mrb[0].mxu0
        %v1440 = vadd.f32 %v1304, %v1439
        %v1441 = vpop.f32.mrb[0].mxu0
        %1442 = vmatprep.mubr.f32.mxu0 0.0
        %1443 = vmatmul.mubr.f32.gmra.mrb[0].mxu0 %v1321
        %v1444 = vpop.f32.mrb[0].mxu0
        %v1445 = vadd.f32 %v1304, %v1444
        %v1446 = vpop.f32.mrb[0].mxu0
        %1447 = vmatprep.mubr.f32.mxu0 0.0
        %1448 = vmatmul.mubr.f32.gmra.mrb[0].mxu0 %v1324
        %v1449 = vpop.f32.mrb[0].mxu0
        %v1450 = vadd.f32 %v1304, %v1449
        %v1451 = vpop.f32.mrb[0].mxu0
        %1452 = vmatprep.mubr.f32.mxu0 0.0
        %1453 = vmatmul.mubr.f32.gmra.mrb[0].mxu0 %v1327
        %v1454 = vpop.f32.mrb[0].mxu0
        %v1455 = vadd.f32 %v1304, %v1454
        %v1456 = vpop.f32.mrb[0].mxu0
        %1457 = vmatprep.mubr.f32.mxu0 0.0
        %1458 = vmatmul.mubr.f32.gmra.mrb[0].mxu0 %v1330
        %v1459 = vpop.f32.mrb[0].mxu0
        %v1460 = vadd.f32 %v1304, %v1459
        %v1461 = vpop.f32.mrb[0].mxu0
        %1462 = vmatprep.mubr.f32.mxu0 0.0
        %1463 = vmatmul.mubr.f32.gmra.mrb[0].mxu0 %v1333
        %v1464 = vpop.f32.mrb[0].mxu0
        %v1465 = vadd.f32 %v1304, %v1464
        %v1466 = vpop.f32.mrb[0].mxu0
        %1467 = vmatprep.mubr.f32.mxu0 0.0
        %1468 = vmatmul.mubr.f32.gmra.mrb[0].mxu0 %v1336
        %v1469 = vpop.f32.mrb[0].mxu0
        %v1470 = vadd.f32 %v1304, %v1469
        %v1471 = vpop.f32.mrb[0].mxu0
        %1472 = vmatprep.mubr.f32.mxu0 0.0
        %1473 = vmatmul.mubr.f32.gmra.mrb[0].mxu0 %v1339
        %v1474 = vpop.f32.mrb[0].mxu0
        %v1475 = vadd.f32 %v1304, %v1474
        %v1476 = vpop.f32.mrb[0].mxu0
        %1477 = vmatprep.mubr.f32.mxu0 0.0
        %1478 = vmatmul.mubr.f32.gmra.mrb[0].mxu0 %v1342
        %v1479 = vpop.f32.mrb[0].mxu0
        %v1480 = vadd.f32 %v1304, %v1479
        %v1481 = vpop.f32.mrb[0].mxu0
        %1482 = vmatprep.mubr.f32.mxu0 0.0
        %1483 = vmatmul.mubr.f32.gmra.mrb[0].mxu0 %v1345
        %v1484 = vpop.f32.mrb[0].mxu0
        %v1485 = vadd.f32 %v1304, %v1484
        %v1486 = vpop.f32.mrb[0].mxu0
        %1487 = vmatprep.mubr.f32.mxu0 0.0
        %1488 = vmatmul.mubr.f32.gmra.mrb[0].mxu0 %v1348
        %v1489 = vpop.f32.mrb[0].mxu0
        %v1490 = vadd.f32 %v1304, %v1489
        %v1491 = vpop.f32.mrb[0].mxu0
        %1492 = vmatprep.mubr.f32.mxu0 0.0
        %1493 = vmatmul.mubr.f32.gmra.mrb[0].mxu0 %v1351
        %v1494 = vpop.f32.mrb[0].mxu0
        %v1495 = vadd.f32 %v1304, %v1494
        %v1496 = vpop.f32.mrb[0].mxu0
        %1497 = vdwg.mxu0
        %v1498 = vsel %vm183, %v1420, -inf
        %1499 = vmax.xlane.f32.xlu0 %v1498
        %v1500 = vpop.xlane.xlu0 %1499
        %v1501 = vsel %vm183, %v1425, -inf
        %1502 = vmax.xlane.f32.xlu0 %v1501
        %v1503 = vpop.xlane.xlu0 %1502
        %v1504 = vsel %vm183, %v1430, -inf
        %1505 = vmax.xlane.f32.xlu0 %v1504
        %v1506 = vpop.xlane.xlu0 %1505
        %v1507 = vsel %vm183, %v1435, -inf
        %1508 = vmax.xlane.f32.xlu0 %v1507
        %v1509 = vpop.xlane.xlu0 %1508
        %v1510 = vsel %vm183, %v1440, -inf
        %1511 = vmax.xlane.f32.xlu0 %v1510
        %v1512 = vpop.xlane.xlu0 %1511
        %v1513 = vsel %vm183, %v1445, -inf
        %1514 = vmax.xlane.f32.xlu0 %v1513
        %v1515 = vpop.xlane.xlu0 %1514
        %v1516 = vsel %vm183, %v1450, -inf
        %1517 = vmax.xlane.f32.xlu0 %v1516
        %v1518 = vpop.xlane.xlu0 %1517
        %v1519 = vsel %vm183, %v1455, -inf
        %1520 = vmax.xlane.f32.xlu0 %v1519
        %v1521 = vpop.xlane.xlu0 %1520
        %v1522 = vsel %vm183, %v1460, -inf
        %1523 = vmax.xlane.f32.xlu0 %v1522
        %v1524 = vpop.xlane.xlu0 %1523
        %v1525 = vsel %vm183, %v1465, -inf
        %1526 = vmax.xlane.f32.xlu0 %v1525
        %v1527 = vpop.xlane.xlu0 %1526
        %v1528 = vsel %vm183, %v1470, -inf
        %1529 = vmax.xlane.f32.xlu0 %v1528
        %v1530 = vpop.xlane.xlu0 %1529
        %v1531 = vsel %vm183, %v1475, -inf
        %1532 = vmax.xlane.f32.xlu0 %v1531
        %v1533 = vpop.xlane.xlu0 %1532
        %v1534 = vsel %vm183, %v1480, -inf
        %1535 = vmax.xlane.f32.xlu0 %v1534
        %v1536 = vpop.xlane.xlu0 %1535
        %v1537 = vsel %vm183, %v1485, -inf
        %1538 = vmax.xlane.f32.xlu0 %v1537
        %v1539 = vpop.xlane.xlu0 %1538
        %v1540 = vsel %vm183, %v1490, -inf
        %1541 = vmax.xlane.f32.xlu0 %v1540
        %v1542 = vpop.xlane.xlu0 %1541
        %v1543 = vsel %vm183, %v1495, -inf
        %1544 = vmax.xlane.f32.xlu0 %v1543
        %v1545 = vpop.xlane.xlu0 %1544
        %v1546 = vsub.f32 %v1420, %v1500
        %v1547 = vsub.f32 %v1425, %v1503
        %v1548 = vsub.f32 %v1430, %v1506
        %v1549 = vsub.f32 %v1435, %v1509
        %v1550 = vsub.f32 %v1440, %v1512
        %v1551 = vsub.f32 %v1445, %v1515
        %v1552 = vsub.f32 %v1450, %v1518
        %v1553 = vsub.f32 %v1455, %v1521
        %v1554 = vsub.f32 %v1460, %v1524
        %v1555 = vsub.f32 %v1465, %v1527
        %v1556 = vsub.f32 %v1470, %v1530
        %v1557 = vsub.f32 %v1475, %v1533
        %v1558 = vsub.f32 %v1480, %v1536
        %v1559 = vsub.f32 %v1485, %v1539
        %v1560 = vsub.f32 %v1490, %v1542
        %v1561 = vsub.f32 %v1495, %v1545
        %v1562 = vmul.f32 %v1546, 1.442695
        %v1563 = vpow.pop %v1562
        %v1564 = vmul.f32 %v1547, 1.442695
        %v1565 = vpow.pop %v1564
        %v1566 = vmul.f32 %v1548, 1.442695
        %v1567 = vpow.pop %v1566
        %v1568 = vmul.f32 %v1549, 1.442695
        %v1569 = vpow.pop %v1568
        %v1570 = vmul.f32 %v1550, 1.442695
        %v1571 = vpow.pop %v1570
        %v1572 = vmul.f32 %v1551, 1.442695
        %v1573 = vpow.pop %v1572
        %v1574 = vmul.f32 %v1552, 1.442695
        %v1575 = vpow.pop %v1574
        %v1576 = vmul.f32 %v1553, 1.442695
        %v1577 = vpow.pop %v1576
        %v1578 = vmul.f32 %v1554, 1.442695
        %v1579 = vpow.pop %v1578
        %v1580 = vmul.f32 %v1555, 1.442695
        %v1581 = vpow.pop %v1580
        %v1582 = vmul.f32 %v1556, 1.442695
        %v1583 = vpow.pop %v1582
        %v1584 = vmul.f32 %v1557, 1.442695
        %v1585 = vpow.pop %v1584
        %v1586 = vmul.f32 %v1558, 1.442695
        %v1587 = vpow.pop %v1586
        %v1588 = vmul.f32 %v1559, 1.442695
        %v1589 = vpow.pop %v1588
        %v1590 = vmul.f32 %v1560, 1.442695
        %v1591 = vpow.pop %v1590
        %v1592 = vmul.f32 %v1561, 1.442695
        %v1593 = vpow.pop %v1592
        %v1594 = vld [vmem:[#allocation2 + $0x3a0] sm:$0xff]
        %v1595 = vld [vmem:[#allocation2 + $0x3a8] sm:$0xff]
        %v1597 = vsel %vm183, %v1563, 0
        %v1600 = vsel %vm183, %v1565, 0
        %v1603 = vsel %vm183, %v1567, 0
        %v1606 = vsel %vm183, %v1569, 0
        %v1609 = vsel %vm183, %v1571, 0
        %v1612 = vsel %vm183, %v1573, 0
        %v1615 = vsel %vm183, %v1575, 0
        %v1618 = vsel %vm183, %v1577, 0
        %v1621 = vsel %vm183, %v1579, 0
        %v1624 = vsel %vm183, %v1581, 0
        %v1627 = vsel %vm183, %v1583, 0
        %v1630 = vsel %vm183, %v1585, 0
        %v1633 = vsel %vm183, %v1587, 0
        %v1636 = vsel %vm183, %v1589, 0
        %v1639 = vsel %vm183, %v1591, 0
        %v1642 = vsel %vm183, %v1593, 0
        %1644 = vmatprep.subr.mxu0 0.0
        %1645 = vmatpush1.msra.mxu0 %v1594
        %1646 = vmatprep.subr.mxu0 0.0
        %1647 = vmatpush1.msra.mxu0 %v1595
        %1648 = vmatprep.subr.mxu0 0.0
        %1649 = vmatpush1.msra.mxu0 0.0
        %1650 = vmatprep.subr.mxu0 0.0
        %1651 = vmatpush1.msra.mxu0 0.0
        %1652 = vmatprep.subr.mxu0 0.0
        %1653 = vmatpush1.msra.mxu0 0.0
        %1654 = vmatprep.subr.mxu0 0.0
        %1655 = vmatpush1.msra.mxu0 0.0
        %1656 = vmatprep.subr.mxu0 0.0
        %1657 = vmatpush1.msra.mxu0 0.0
        %1658 = vmatprep.subr.mxu0 0.0
        %1659 = vmatpush1.msra.mxu0 0.0
        %1660 = vmatprep.subr.mxu0 0.0
        %1661 = vmatpush1.msra.mxu0 0.0
        %1662 = vmatprep.subr.mxu0 0.0
        %1663 = vmatpush1.msra.mxu0 0.0
        %1664 = vmatprep.subr.mxu0 0.0
        %1665 = vmatpush1.msra.mxu0 0.0
        %1666 = vmatprep.subr.mxu0 0.0
        %1667 = vmatpush1.msra.mxu0 0.0
        %1668 = vmatprep.subr.mxu0 0.0
        %1669 = vmatpush1.msra.mxu0 0.0
        %1670 = vmatprep.subr.mxu0 0.0
        %1671 = vmatpush1.msra.mxu0 0.0
        %1672 = vmatprep.subr.mxu0 0.0
        %1673 = vmatpush1.msra.mxu0 0.0
        %1674 = vmatprep.subr.mxu0 0.0
        %1675 = vmatpush1.msra.mxu0 0.0
        %1676 = vmatprep.subr.mxu0 0.0
        %1677 = vmatpush1.msra.mxu0 0.0
        %1678 = vmatprep.subr.mxu0 0.0
        %1679 = vmatpush1.msra.mxu0 0.0
        %1680 = vmatprep.subr.mxu0 0.0
        %1681 = vmatpush1.msra.mxu0 0.0
        %1682 = vmatprep.subr.mxu0 0.0
        %1683 = vmatpush1.msra.mxu0 0.0
        %1684 = vmatprep.subr.mxu0 0.0
        %1685 = vmatpush1.msra.mxu0 0.0
        %1686 = vmatprep.subr.mxu0 0.0
        %1687 = vmatpush1.msra.mxu0 0.0
        %1688 = vmatprep.subr.mxu0 0.0
        %1689 = vmatpush1.msra.mxu0 0.0
        %1690 = vmatprep.subr.mxu0 0.0
        %1691 = vmatpush1.msra.mxu0 0.0
        %1692 = vmatprep.subr.mxu0 0.0
        %1693 = vmatpush1.msra.mxu0 0.0
        %1694 = vmatprep.subr.mxu0 0.0
        %1695 = vmatpush1.msra.mxu0 0.0
        %1696 = vmatprep.subr.mxu0 0.0
        %1697 = vmatpush1.msra.mxu0 0.0
        %1698 = vmatprep.subr.mxu0 0.0
        %1699 = vmatpush1.msra.mxu0 0.0
        %1700 = vmatprep.subr.mxu0 0.0
        %1701 = vmatpush1.msra.mxu0 0.0
        %1702 = vmatprep.subr.mxu0 0.0
        %1703 = vmatpush1.msra.mxu0 0.0
        %1704 = vmatprep.subr.mxu0 0.0
        %1705 = vmatpush1.msra.mxu0 0.0
        %1706 = vmatprep.subr.mxu0 0.0
        %1707 = vmatpush1.msra.mxu0 0.0
        %1708 = vmatprep.mubr.f32.mxu0 0.0
        %1709 = vmatmul.mubr.f32.gmra.mrb[0].mxu0 %v1597
        %v1710 = vpop.f32.mrb[0].mxu0
        %v1711 = vadd.f32 0.0, %v1710
        %v1712 = vpop.f32.mrb[0].mxu0
        %1713 = vmatprep.mubr.f32.mxu0 0.0
        %1714 = vmatmul.mubr.f32.gmra.mrb[0].mxu0 %v1600
        %v1715 = vpop.f32.mrb[0].mxu0
        %v1716 = vadd.f32 0.0, %v1715
        %v1717 = vpop.f32.mrb[0].mxu0
        %1718 = vmatprep.mubr.f32.mxu0 0.0
        %1719 = vmatmul.mubr.f32.gmra.mrb[0].mxu0 %v1603
        %v1720 = vpop.f32.mrb[0].mxu0
        %v1721 = vadd.f32 0.0, %v1720
        %v1722 = vpop.f32.mrb[0].mxu0
        %1723 = vmatprep.mubr.f32.mxu0 0.0
        %1724 = vmatmul.mubr.f32.gmra.mrb[0].mxu0 %v1606
        %v1725 = vpop.f32.mrb[0].mxu0
        %v1726 = vadd.f32 0.0, %v1725
        %v1727 = vpop.f32.mrb[0].mxu0
        %1728 = vmatprep.mubr.f32.mxu0 0.0
        %1729 = vmatmul.mubr.f32.gmra.mrb[0].mxu0 %v1609
        %v1730 = vpop.f32.mrb[0].mxu0
        %v1731 = vadd.f32 0.0, %v1730
        %v1732 = vpop.f32.mrb[0].mxu0
        %1733 = vmatprep.mubr.f32.mxu0 0.0
        %1734 = vmatmul.mubr.f32.gmra.mrb[0].mxu0 %v1612
        %v1735 = vpop.f32.mrb[0].mxu0
        %v1736 = vadd.f32 0.0, %v1735
        %v1737 = vpop.f32.mrb[0].mxu0
        %1738 = vmatprep.mubr.f32.mxu0 0.0
        %1739 = vmatmul.mubr.f32.gmra.mrb[0].mxu0 %v1615
        %v1740 = vpop.f32.mrb[0].mxu0
        %v1741 = vadd.f32 0.0, %v1740
        %v1742 = vpop.f32.mrb[0].mxu0
        %1743 = vmatprep.mubr.f32.mxu0 0.0
        %1744 = vmatmul.mubr.f32.gmra.mrb[0].mxu0 %v1618
        %v1745 = vpop.f32.mrb[0].mxu0
        %v1746 = vadd.f32 0.0, %v1745
        %v1747 = vpop.f32.mrb[0].mxu0
        %1748 = vmatprep.mubr.f32.mxu0 0.0
        %1749 = vmatmul.mubr.f32.gmra.mrb[0].mxu0 %v1621
        %v1750 = vpop.f32.mrb[0].mxu0
        %v1751 = vadd.f32 0.0, %v1750
        %v1752 = vpop.f32.mrb[0].mxu0
        %1753 = vmatprep.mubr.f32.mxu0 0.0
        %1754 = vmatmul.mubr.f32.gmra.mrb[0].mxu0 %v1624
        %v1755 = vpop.f32.mrb[0].mxu0
        %v1756 = vadd.f32 0.0, %v1755
        %v1757 = vpop.f32.mrb[0].mxu0
        %1758 = vmatprep.mubr.f32.mxu0 0.0
        %1759 = vmatmul.mubr.f32.gmra.mrb[0].mxu0 %v1627
        %v1760 = vpop.f32.mrb[0].mxu0
        %v1761 = vadd.f32 0.0, %v1760
        %v1762 = vpop.f32.mrb[0].mxu0
        %1763 = vmatprep.mubr.f32.mxu0 0.0
        %1764 = vmatmul.mubr.f32.gmra.mrb[0].mxu0 %v1630
        %v1765 = vpop.f32.mrb[0].mxu0
        %v1766 = vadd.f32 0.0, %v1765
        %v1767 = vpop.f32.mrb[0].mxu0
        %1768 = vmatprep.mubr.f32.mxu0 0.0
        %1769 = vmatmul.mubr.f32.gmra.mrb[0].mxu0 %v1633
        %v1770 = vpop.f32.mrb[0].mxu0
        %v1771 = vadd.f32 0.0, %v1770
        %v1772 = vpop.f32.mrb[0].mxu0
        %1773 = vmatprep.mubr.f32.mxu0 0.0
        %1774 = vmatmul.mubr.f32.gmra.mrb[0].mxu0 %v1636
        %v1775 = vpop.f32.mrb[0].mxu0
        %v1776 = vadd.f32 0.0, %v1775
        %v1777 = vpop.f32.mrb[0].mxu0
        %1778 = vmatprep.mubr.f32.mxu0 0.0
        %1779 = vmatmul.mubr.f32.gmra.mrb[0].mxu0 %v1639
        %v1780 = vpop.f32.mrb[0].mxu0
        %v1781 = vadd.f32 0.0, %v1780
        %v1782 = vpop.f32.mrb[0].mxu0
        %1783 = vmatprep.mubr.f32.mxu0 0.0
        %1784 = vmatmul.mubr.f32.gmra.mrb[0].mxu0 %v1642
        %v1785 = vpop.f32.mrb[0].mxu0
        %v1786 = vadd.f32 0.0, %v1785
        %v1787 = vpop.f32.mrb[0].mxu0
        %1788 = vdwg.mxu0
        %v1789 = vrcp.pop %v1711
        %v1790 = vrcp.pop %v1716
        %v1791 = vrcp.pop %v1721
        %v1792 = vrcp.pop %v1726
        %v1793 = vrcp.pop %v1731
        %v1794 = vrcp.pop %v1736
        %v1795 = vrcp.pop %v1741
        %v1796 = vrcp.pop %v1746
        %v1797 = vrcp.pop %v1751
        %v1798 = vrcp.pop %v1756
        %v1799 = vrcp.pop %v1761
        %v1800 = vrcp.pop %v1766
        %v1801 = vrcp.pop %v1771
        %v1802 = vrcp.pop %v1776
        %v1803 = vrcp.pop %v1781
        %v1804 = vrcp.pop %v1786
        %v1805 = vmul.f32 %v1563, %v1789
        %v1806 = vmul.f32 %v1565, %v1790
        %v1807 = vmul.f32 %v1567, %v1791
        %v1808 = vmul.f32 %v1569, %v1792
        %v1809 = vmul.f32 %v1571, %v1793
        %v1810 = vmul.f32 %v1573, %v1794
        %v1811 = vmul.f32 %v1575, %v1795
        %v1812 = vmul.f32 %v1577, %v1796
        %v1813 = vmul.f32 %v1579, %v1797
        %v1814 = vmul.f32 %v1581, %v1798
        %v1815 = vmul.f32 %v1583, %v1799
        %v1816 = vmul.f32 %v1585, %v1800
        %v1817 = vmul.f32 %v1587, %v1801
        %v1818 = vmul.f32 %v1589, %v1802
        %v1819 = vmul.f32 %v1591, %v1803
        %v1820 = vmul.f32 %v1593, %v1804
        %v1821 = vld [vmem:[#allocation2 + $0xc8] sm:$0xff]
        %v1822 = vld [vmem:[#allocation2 + $0xd0] sm:$0xff]
        %v1823 = vld [vmem:[#allocation2 + $0xd8] sm:$0x1]
        %v1824 = vlaneseq
        %v1825 = vshrl.u32 %v1824, 7
        %v1826 = vsub.s32 0, %v1825
        %v1827 = vrot.slane %v1823, %v1826
        %v1829 = vsel %vm183, %v1805, 0
        %v1832 = vsel %vm183, %v1806, 0
        %v1835 = vsel %vm183, %v1807, 0
        %v1838 = vsel %vm183, %v1808, 0
        %v1841 = vsel %vm183, %v1809, 0
        %v1844 = vsel %vm183, %v1810, 0
        %v1847 = vsel %vm183, %v1811, 0
        %v1850 = vsel %vm183, %v1812, 0
        %v1853 = vsel %vm183, %v1813, 0
        %v1856 = vsel %vm183, %v1814, 0
        %v1859 = vsel %vm183, %v1815, 0
        %v1862 = vsel %vm183, %v1816, 0
        %v1865 = vsel %vm183, %v1817, 0
        %v1868 = vsel %vm183, %v1818, 0
        %v1871 = vsel %vm183, %v1819, 0
        %v1874 = vsel %vm183, %v1820, 0
        %1876 = vmatprep.subr.mxu0 0.0
        %1877 = vmatpush1.msra.mxu0 %v1821
        %1878 = vmatprep.subr.mxu0 0.0
        %1879 = vmatpush1.msra.mxu0 %v1822
        %1880 = vmatprep.subr.mxu0 0.0
        %1881 = vmatpush1.msra.mxu0 0.0
        %1882 = vmatprep.subr.mxu0 0.0
        %1883 = vmatpush1.msra.mxu0 0.0
        %1884 = vmatprep.subr.mxu0 0.0
        %1885 = vmatpush1.msra.mxu0 0.0
        %1886 = vmatprep.subr.mxu0 0.0
        %1887 = vmatpush1.msra.mxu0 0.0
        %1888 = vmatprep.subr.mxu0 0.0
        %1889 = vmatpush1.msra.mxu0 0.0
        %1890 = vmatprep.subr.mxu0 0.0
        %1891 = vmatpush1.msra.mxu0 0.0
        %1892 = vmatprep.subr.mxu0 0.0
        %1893 = vmatpush1.msra.mxu0 0.0
        %1894 = vmatprep.subr.mxu0 0.0
        %1895 = vmatpush1.msra.mxu0 0.0
        %1896 = vmatprep.subr.mxu0 0.0
        %1897 = vmatpush1.msra.mxu0 0.0
        %1898 = vmatprep.subr.mxu0 0.0
        %1899 = vmatpush1.msra.mxu0 0.0
        %1900 = vmatprep.subr.mxu0 0.0
        %1901 = vmatpush1.msra.mxu0 0.0
        %1902 = vmatprep.subr.mxu0 0.0
        %1903 = vmatpush1.msra.mxu0 0.0
        %1904 = vmatprep.subr.mxu0 0.0
        %1905 = vmatpush1.msra.mxu0 0.0
        %1906 = vmatprep.subr.mxu0 0.0
        %1907 = vmatpush1.msra.mxu0 0.0
        %1908 = vmatprep.subr.mxu0 0.0
        %1909 = vmatpush1.msra.mxu0 0.0
        %1910 = vmatprep.subr.mxu0 0.0
        %1911 = vmatpush1.msra.mxu0 0.0
        %1912 = vmatprep.subr.mxu0 0.0
        %1913 = vmatpush1.msra.mxu0 0.0
        %1914 = vmatprep.subr.mxu0 0.0
        %1915 = vmatpush1.msra.mxu0 0.0
        %1916 = vmatprep.subr.mxu0 0.0
        %1917 = vmatpush1.msra.mxu0 0.0
        %1918 = vmatprep.subr.mxu0 0.0
        %1919 = vmatpush1.msra.mxu0 0.0
        %1920 = vmatprep.subr.mxu0 0.0
        %1921 = vmatpush1.msra.mxu0 0.0
        %1922 = vmatprep.subr.mxu0 0.0
        %1923 = vmatpush1.msra.mxu0 0.0
        %1924 = vmatprep.subr.mxu0 0.0
        %1925 = vmatpush1.msra.mxu0 0.0
        %1926 = vmatprep.subr.mxu0 0.0
        %1927 = vmatpush1.msra.mxu0 0.0
        %1928 = vmatprep.subr.mxu0 0.0
        %1929 = vmatpush1.msra.mxu0 0.0
        %1930 = vmatprep.subr.mxu0 0.0
        %1931 = vmatpush1.msra.mxu0 0.0
        %1932 = vmatprep.subr.mxu0 0.0
        %1933 = vmatpush1.msra.mxu0 0.0
        %1934 = vmatprep.subr.mxu0 0.0
        %1935 = vmatpush1.msra.mxu0 0.0
        %1936 = vmatprep.subr.mxu0 0.0
        %1937 = vmatpush1.msra.mxu0 0.0
        %1938 = vmatprep.subr.mxu0 0.0
        %1939 = vmatpush1.msra.mxu0 0.0
        %1940 = vmatprep.mubr.f32.mxu0 0.0
        %1941 = vmatmul.mubr.f32.gmra.mrb[0].mxu0 %v1829
        %v1942 = vpop.f32.mrb[0].mxu0
        %v1943 = vadd.f32 %v1827, %v1942
        %v1944 = vpop.f32.mrb[0].mxu0
        %1945 = vmatprep.mubr.f32.mxu0 0.0
        %1946 = vmatmul.mubr.f32.gmra.mrb[0].mxu0 %v1832
        %v1947 = vpop.f32.mrb[0].mxu0
        %v1948 = vadd.f32 %v1827, %v1947
        %v1949 = vpop.f32.mrb[0].mxu0
        %1950 = vmatprep.mubr.f32.mxu0 0.0
        %1951 = vmatmul.mubr.f32.gmra.mrb[0].mxu0 %v1835
        %v1952 = vpop.f32.mrb[0].mxu0
        %v1953 = vadd.f32 %v1827, %v1952
        %v1954 = vpop.f32.mrb[0].mxu0
        %1955 = vmatprep.mubr.f32.mxu0 0.0
        %1956 = vmatmul.mubr.f32.gmra.mrb[0].mxu0 %v1838
        %v1957 = vpop.f32.mrb[0].mxu0
        %v1958 = vadd.f32 %v1827, %v1957
        %v1959 = vpop.f32.mrb[0].mxu0
        %1960 = vmatprep.mubr.f32.mxu0 0.0
        %1961 = vmatmul.mubr.f32.gmra.mrb[0].mxu0 %v1841
        %v1962 = vpop.f32.mrb[0].mxu0
        %v1963 = vadd.f32 %v1827, %v1962
        %v1964 = vpop.f32.mrb[0].mxu0
        %1965 = vmatprep.mubr.f32.mxu0 0.0
        %1966 = vmatmul.mubr.f32.gmra.mrb[0].mxu0 %v1844
        %v1967 = vpop.f32.mrb[0].mxu0
        %v1968 = vadd.f32 %v1827, %v1967
        %v1969 = vpop.f32.mrb[0].mxu0
        %1970 = vmatprep.mubr.f32.mxu0 0.0
        %1971 = vmatmul.mubr.f32.gmra.mrb[0].mxu0 %v1847
        %v1972 = vpop.f32.mrb[0].mxu0
        %v1973 = vadd.f32 %v1827, %v1972
        %v1974 = vpop.f32.mrb[0].mxu0
        %1975 = vmatprep.mubr.f32.mxu0 0.0
        %1976 = vmatmul.mubr.f32.gmra.mrb[0].mxu0 %v1850
        %v1977 = vpop.f32.mrb[0].mxu0
        %v1978 = vadd.f32 %v1827, %v1977
        %v1979 = vpop.f32.mrb[0].mxu0
        %1980 = vmatprep.mubr.f32.mxu0 0.0
        %1981 = vmatmul.mubr.f32.gmra.mrb[0].mxu0 %v1853
        %v1982 = vpop.f32.mrb[0].mxu0
        %v1983 = vadd.f32 %v1827, %v1982
        %v1984 = vpop.f32.mrb[0].mxu0
        %1985 = vmatprep.mubr.f32.mxu0 0.0
        %1986 = vmatmul.mubr.f32.gmra.mrb[0].mxu0 %v1856
        %v1987 = vpop.f32.mrb[0].mxu0
        %v1988 = vadd.f32 %v1827, %v1987
        %v1989 = vpop.f32.mrb[0].mxu0
        %1990 = vmatprep.mubr.f32.mxu0 0.0
        %1991 = vmatmul.mubr.f32.gmra.mrb[0].mxu0 %v1859
        %v1992 = vpop.f32.mrb[0].mxu0
        %v1993 = vadd.f32 %v1827, %v1992
        %v1994 = vpop.f32.mrb[0].mxu0
        %1995 = vmatprep.mubr.f32.mxu0 0.0
        %1996 = vmatmul.mubr.f32.gmra.mrb[0].mxu0 %v1862
        %v1997 = vpop.f32.mrb[0].mxu0
        %v1998 = vadd.f32 %v1827, %v1997
        %v1999 = vpop.f32.mrb[0].mxu0
        %2000 = vmatprep.mubr.f32.mxu0 0.0
        %2001 = vmatmul.mubr.f32.gmra.mrb[0].mxu0 %v1865
        %v2002 = vpop.f32.mrb[0].mxu0
        %v2003 = vadd.f32 %v1827, %v2002
        %v2004 = vpop.f32.mrb[0].mxu0
        %2005 = vmatprep.mubr.f32.mxu0 0.0
        %2006 = vmatmul.mubr.f32.gmra.mrb[0].mxu0 %v1868
        %v2007 = vpop.f32.mrb[0].mxu0
        %v2008 = vadd.f32 %v1827, %v2007
        %v2009 = vpop.f32.mrb[0].mxu0
        %2010 = vmatprep.mubr.f32.mxu0 0.0
        %2011 = vmatmul.mubr.f32.gmra.mrb[0].mxu0 %v1871
        %v2012 = vpop.f32.mrb[0].mxu0
        %v2013 = vadd.f32 %v1827, %v2012
        %v2014 = vpop.f32.mrb[0].mxu0
        %2015 = vmatprep.mubr.f32.mxu0 0.0
        %2016 = vmatmul.mubr.f32.gmra.mrb[0].mxu0 %v1874
        %v2017 = vpop.f32.mrb[0].mxu0
        %v2018 = vadd.f32 %v1827, %v2017
        %v2019 = vpop.f32.mrb[0].mxu0
        %2020 = vdwg.mxu0
        %v2021 = vmul.f32 %v1943, %v1202
        %v2022 = vmul.f32 %v1948, %v1207
        %v2023 = vmul.f32 %v1953, %v1212
        %v2024 = vmul.f32 %v1958, %v1217
        %v2025 = vmul.f32 %v1963, %v1222
        %v2026 = vmul.f32 %v1968, %v1227
        %v2027 = vmul.f32 %v1973, %v1232
        %v2028 = vmul.f32 %v1978, %v1237
        %v2029 = vmul.f32 %v1983, %v1242
        %v2030 = vmul.f32 %v1988, %v1247
        %v2031 = vmul.f32 %v1993, %v1252
        %v2032 = vmul.f32 %v1998, %v1257
        %v2033 = vmul.f32 %v2003, %v1262
        %v2034 = vmul.f32 %v2008, %v1267
        %v2035 = vmul.f32 %v2013, %v1272
        %v2036 = vmul.f32 %v2018, %v1277
        %v2037 = vmax.f32 %v2021, 0.0
        %v2038 = vmax.f32 %v2022, 0.0
        %v2039 = vmax.f32 %v2023, 0.0
        %v2040 = vmax.f32 %v2024, 0.0
        %v2041 = vmax.f32 %v2025, 0.0
        %v2042 = vmax.f32 %v2026, 0.0
        %v2043 = vmax.f32 %v2027, 0.0
        %v2044 = vmax.f32 %v2028, 0.0
        %v2045 = vmax.f32 %v2029, 0.0
        %v2046 = vmax.f32 %v2030, 0.0
        %v2047 = vmax.f32 %v2031, 0.0
        %v2048 = vmax.f32 %v2032, 0.0
        %v2049 = vmax.f32 %v2033, 0.0
        %v2050 = vmax.f32 %v2034, 0.0
        %v2051 = vmax.f32 %v2035, 0.0
        %v2052 = vmax.f32 %v2036, 0.0
        %v2053 = vld [vmem:[#allocation2 + $0xe0] sm:$0xff]
        %v2054 = vld [vmem:[#allocation2 + $0xe8] sm:$0xff]
        %v2055 = vld [vmem:[#allocation2 + $0xf0] sm:$0xff]
        %v2056 = vld [vmem:[#allocation2 + $0xf8] sm:$0xff]
        %v2057 = vld [vmem:[#allocation2 + $0x100] sm:$0x1]
        %v2058 = vlaneseq
        %v2059 = vshrl.u32 %v2058, 7
        %v2060 = vsub.s32 0, %v2059
        %v2061 = vrot.slane %v2057, %v2060
        %v2063 = vsel %vm402, %v2037, 0
        %v2066 = vsel %vm402, %v2038, 0
        %v2069 = vsel %vm402, %v2039, 0
        %v2072 = vsel %vm402, %v2040, 0
        %v2075 = vsel %vm402, %v2041, 0
        %v2078 = vsel %vm402, %v2042, 0
        %v2081 = vsel %vm402, %v2043, 0
        %v2084 = vsel %vm402, %v2044, 0
        %v2087 = vsel %vm402, %v2045, 0
        %v2090 = vsel %vm402, %v2046, 0
        %v2093 = vsel %vm402, %v2047, 0
        %v2096 = vsel %vm402, %v2048, 0
        %v2099 = vsel %vm402, %v2049, 0
        %v2102 = vsel %vm402, %v2050, 0
        %v2105 = vsel %vm402, %v2051, 0
        %v2108 = vsel %vm402, %v2052, 0
        %2110 = vmatprep.subr.mxu0 0.0
        %2111 = vmatpush1.msra.mxu0 %v2053
        %2112 = vmatprep.subr.mxu0 0.0
        %2113 = vmatpush1.msra.mxu0 %v2054
        %2114 = vmatprep.subr.mxu0 0.0
        %2115 = vmatpush1.msra.mxu0 %v2055
        %2116 = vmatprep.subr.mxu0 0.0
        %2117 = vmatpush1.msra.mxu0 %v2056
        %2118 = vmatprep.subr.mxu0 0.0
        %2119 = vmatpush1.msra.mxu0 0.0
        %2120 = vmatprep.subr.mxu0 0.0
        %2121 = vmatpush1.msra.mxu0 0.0
        %2122 = vmatprep.subr.mxu0 0.0
        %2123 = vmatpush1.msra.mxu0 0.0
        %2124 = vmatprep.subr.mxu0 0.0
        %2125 = vmatpush1.msra.mxu0 0.0
        %2126 = vmatprep.subr.mxu0 0.0
        %2127 = vmatpush1.msra.mxu0 0.0
        %2128 = vmatprep.subr.mxu0 0.0
        %2129 = vmatpush1.msra.mxu0 0.0
        %2130 = vmatprep.subr.mxu0 0.0
        %2131 = vmatpush1.msra.mxu0 0.0
        %2132 = vmatprep.subr.mxu0 0.0
        %2133 = vmatpush1.msra.mxu0 0.0
        %2134 = vmatprep.subr.mxu0 0.0
        %2135 = vmatpush1.msra.mxu0 0.0
        %2136 = vmatprep.subr.mxu0 0.0
        %2137 = vmatpush1.msra.mxu0 0.0
        %2138 = vmatprep.subr.mxu0 0.0
        %2139 = vmatpush1.msra.mxu0 0.0
        %2140 = vmatprep.subr.mxu0 0.0
        %2141 = vmatpush1.msra.mxu0 0.0
        %2142 = vmatprep.subr.mxu0 0.0
        %2143 = vmatpush1.msra.mxu0 0.0
        %2144 = vmatprep.subr.mxu0 0.0
        %2145 = vmatpush1.msra.mxu0 0.0
        %2146 = vmatprep.subr.mxu0 0.0
        %2147 = vmatpush1.msra.mxu0 0.0
        %2148 = vmatprep.subr.mxu0 0.0
        %2149 = vmatpush1.msra.mxu0 0.0
        %2150 = vmatprep.subr.mxu0 0.0
        %2151 = vmatpush1.msra.mxu0 0.0
        %2152 = vmatprep.subr.mxu0 0.0
        %2153 = vmatpush1.msra.mxu0 0.0
        %2154 = vmatprep.subr.mxu0 0.0
        %2155 = vmatpush1.msra.mxu0 0.0
        %2156 = vmatprep.subr.mxu0 0.0
        %2157 = vmatpush1.msra.mxu0 0.0
        %2158 = vmatprep.subr.mxu0 0.0
        %2159 = vmatpush1.msra.mxu0 0.0
        %2160 = vmatprep.subr.mxu0 0.0
        %2161 = vmatpush1.msra.mxu0 0.0
        %2162 = vmatprep.subr.mxu0 0.0
        %2163 = vmatpush1.msra.mxu0 0.0
        %2164 = vmatprep.subr.mxu0 0.0
        %2165 = vmatpush1.msra.mxu0 0.0
        %2166 = vmatprep.subr.mxu0 0.0
        %2167 = vmatpush1.msra.mxu0 0.0
        %2168 = vmatprep.subr.mxu0 0.0
        %2169 = vmatpush1.msra.mxu0 0.0
        %2170 = vmatprep.subr.mxu0 0.0
        %2171 = vmatpush1.msra.mxu0 0.0
        %2172 = vmatprep.subr.mxu0 0.0
        %2173 = vmatpush1.msra.mxu0 0.0
        %2174 = vmatprep.mubr.f32.mxu0 0.0
        %2175 = vmatmul.mubr.f32.gmra.mrb[0].mxu0 %v2063
        %v2176 = vpop.f32.mrb[0].mxu0
        %v2177 = vadd.f32 %v2061, %v2176
        %v2178 = vpop.f32.mrb[0].mxu0
        %2179 = vmatprep.mubr.f32.mxu0 0.0
        %2180 = vmatmul.mubr.f32.gmra.mrb[0].mxu0 %v2066
        %v2181 = vpop.f32.mrb[0].mxu0
        %v2182 = vadd.f32 %v2061, %v2181
        %v2183 = vpop.f32.mrb[0].mxu0
        %2184 = vmatprep.mubr.f32.mxu0 0.0
        %2185 = vmatmul.mubr.f32.gmra.mrb[0].mxu0 %v2069
        %v2186 = vpop.f32.mrb[0].mxu0
        %v2187 = vadd.f32 %v2061, %v2186
        %v2188 = vpop.f32.mrb[0].mxu0
        %2189 = vmatprep.mubr.f32.mxu0 0.0
        %2190 = vmatmul.mubr.f32.gmra.mrb[0].mxu0 %v2072
        %v2191 = vpop.f32.mrb[0].mxu0
        %v2192 = vadd.f32 %v2061, %v2191
        %v2193 = vpop.f32.mrb[0].mxu0
        %2194 = vmatprep.mubr.f32.mxu0 0.0
        %2195 = vmatmul.mubr.f32.gmra.mrb[0].mxu0 %v2075
        %v2196 = vpop.f32.mrb[0].mxu0
        %v2197 = vadd.f32 %v2061, %v2196
        %v2198 = vpop.f32.mrb[0].mxu0
        %2199 = vmatprep.mubr.f32.mxu0 0.0
        %2200 = vmatmul.mubr.f32.gmra.mrb[0].mxu0 %v2078
        %v2201 = vpop.f32.mrb[0].mxu0
        %v2202 = vadd.f32 %v2061, %v2201
        %v2203 = vpop.f32.mrb[0].mxu0
        %2204 = vmatprep.mubr.f32.mxu0 0.0
        %2205 = vmatmul.mubr.f32.gmra.mrb[0].mxu0 %v2081
        %v2206 = vpop.f32.mrb[0].mxu0
        %v2207 = vadd.f32 %v2061, %v2206
        %v2208 = vpop.f32.mrb[0].mxu0
        %2209 = vmatprep.mubr.f32.mxu0 0.0
        %2210 = vmatmul.mubr.f32.gmra.mrb[0].mxu0 %v2084
        %v2211 = vpop.f32.mrb[0].mxu0
        %v2212 = vadd.f32 %v2061, %v2211
        %v2213 = vpop.f32.mrb[0].mxu0
        %2214 = vmatprep.mubr.f32.mxu0 0.0
        %2215 = vmatmul.mubr.f32.gmra.mrb[0].mxu0 %v2087
        %v2216 = vpop.f32.mrb[0].mxu0
        %v2217 = vadd.f32 %v2061, %v2216
        %v2218 = vpop.f32.mrb[0].mxu0
        %2219 = vmatprep.mubr.f32.mxu0 0.0
        %2220 = vmatmul.mubr.f32.gmra.mrb[0].mxu0 %v2090
        %v2221 = vpop.f32.mrb[0].mxu0
        %v2222 = vadd.f32 %v2061, %v2221
        %v2223 = vpop.f32.mrb[0].mxu0
        %2224 = vmatprep.mubr.f32.mxu0 0.0
        %2225 = vmatmul.mubr.f32.gmra.mrb[0].mxu0 %v2093
        %v2226 = vpop.f32.mrb[0].mxu0
        %v2227 = vadd.f32 %v2061, %v2226
        %v2228 = vpop.f32.mrb[0].mxu0
        %2229 = vmatprep.mubr.f32.mxu0 0.0
        %2230 = vmatmul.mubr.f32.gmra.mrb[0].mxu0 %v2096
        %v2231 = vpop.f32.mrb[0].mxu0
        %v2232 = vadd.f32 %v2061, %v2231
        %v2233 = vpop.f32.mrb[0].mxu0
        %2234 = vmatprep.mubr.f32.mxu0 0.0
        %2235 = vmatmul.mubr.f32.gmra.mrb[0].mxu0 %v2099
        %v2236 = vpop.f32.mrb[0].mxu0
        %v2237 = vadd.f32 %v2061, %v2236
        %v2238 = vpop.f32.mrb[0].mxu0
        %2239 = vmatprep.mubr.f32.mxu0 0.0
        %2240 = vmatmul.mubr.f32.gmra.mrb[0].mxu0 %v2102
        %v2241 = vpop.f32.mrb[0].mxu0
        %v2242 = vadd.f32 %v2061, %v2241
        %v2243 = vpop.f32.mrb[0].mxu0
        %2244 = vmatprep.mubr.f32.mxu0 0.0
        %2245 = vmatmul.mubr.f32.gmra.mrb[0].mxu0 %v2105
        %v2246 = vpop.f32.mrb[0].mxu0
        %v2247 = vadd.f32 %v2061, %v2246
        %v2248 = vpop.f32.mrb[0].mxu0
        %2249 = vmatprep.mubr.f32.mxu0 0.0
        %2250 = vmatmul.mubr.f32.gmra.mrb[0].mxu0 %v2108
        %v2251 = vpop.f32.mrb[0].mxu0
        %v2252 = vadd.f32 %v2061, %v2251
        %v2253 = vpop.f32.mrb[0].mxu0
        %2254 = vdwg.mxu0
        %v2255 = vsel %vm183, %v2177, -inf
        %2256 = vmax.xlane.f32.xlu0 %v2255
        %v2257 = vpop.xlane.xlu0 %2256
        %v2258 = vsel %vm183, %v2182, -inf
        %2259 = vmax.xlane.f32.xlu0 %v2258
        %v2260 = vpop.xlane.xlu0 %2259
        %v2261 = vsel %vm183, %v2187, -inf
        %2262 = vmax.xlane.f32.xlu0 %v2261
        %v2263 = vpop.xlane.xlu0 %2262
        %v2264 = vsel %vm183, %v2192, -inf
        %2265 = vmax.xlane.f32.xlu0 %v2264
        %v2266 = vpop.xlane.xlu0 %2265
        %v2267 = vsel %vm183, %v2197, -inf
        %2268 = vmax.xlane.f32.xlu0 %v2267
        %v2269 = vpop.xlane.xlu0 %2268
        %v2270 = vsel %vm183, %v2202, -inf
        %2271 = vmax.xlane.f32.xlu0 %v2270
        %v2272 = vpop.xlane.xlu0 %2271
        %v2273 = vsel %vm183, %v2207, -inf
        %2274 = vmax.xlane.f32.xlu0 %v2273
        %v2275 = vpop.xlane.xlu0 %2274
        %v2276 = vsel %vm183, %v2212, -inf
        %2277 = vmax.xlane.f32.xlu0 %v2276
        %v2278 = vpop.xlane.xlu0 %2277
        %v2279 = vsel %vm183, %v2217, -inf
        %2280 = vmax.xlane.f32.xlu0 %v2279
        %v2281 = vpop.xlane.xlu0 %2280
        %v2282 = vsel %vm183, %v2222, -inf
        %2283 = vmax.xlane.f32.xlu0 %v2282
        %v2284 = vpop.xlane.xlu0 %2283
        %v2285 = vsel %vm183, %v2227, -inf
        %2286 = vmax.xlane.f32.xlu0 %v2285
        %v2287 = vpop.xlane.xlu0 %2286
        %v2288 = vsel %vm183, %v2232, -inf
        %2289 = vmax.xlane.f32.xlu0 %v2288
        %v2290 = vpop.xlane.xlu0 %2289
        %v2291 = vsel %vm183, %v2237, -inf
        %2292 = vmax.xlane.f32.xlu0 %v2291
        %v2293 = vpop.xlane.xlu0 %2292
        %v2294 = vsel %vm183, %v2242, -inf
        %2295 = vmax.xlane.f32.xlu0 %v2294
        %v2296 = vpop.xlane.xlu0 %2295
        %v2297 = vsel %vm183, %v2247, -inf
        %2298 = vmax.xlane.f32.xlu0 %v2297
        %v2299 = vpop.xlane.xlu0 %2298
        %v2300 = vsel %vm183, %v2252, -inf
        %2301 = vmax.xlane.f32.xlu0 %v2300
        %v2302 = vpop.xlane.xlu0 %2301
        %v2303 = vsub.f32 %v2177, %v2257
        %v2304 = vsub.f32 %v2182, %v2260
        %v2305 = vsub.f32 %v2187, %v2263
        %v2306 = vsub.f32 %v2192, %v2266
        %v2307 = vsub.f32 %v2197, %v2269
        %v2308 = vsub.f32 %v2202, %v2272
        %v2309 = vsub.f32 %v2207, %v2275
        %v2310 = vsub.f32 %v2212, %v2278
        %v2311 = vsub.f32 %v2217, %v2281
        %v2312 = vsub.f32 %v2222, %v2284
        %v2313 = vsub.f32 %v2227, %v2287
        %v2314 = vsub.f32 %v2232, %v2290
        %v2315 = vsub.f32 %v2237, %v2293
        %v2316 = vsub.f32 %v2242, %v2296
        %v2317 = vsub.f32 %v2247, %v2299
        %v2318 = vsub.f32 %v2252, %v2302
        %v2319 = vmul.f32 %v2303, 1.442695
        %v2320 = vpow.pop %v2319
        %v2321 = vmul.f32 %v2304, 1.442695
        %v2322 = vpow.pop %v2321
        %v2323 = vmul.f32 %v2305, 1.442695
        %v2324 = vpow.pop %v2323
        %v2325 = vmul.f32 %v2306, 1.442695
        %v2326 = vpow.pop %v2325
        %v2327 = vmul.f32 %v2307, 1.442695
        %v2328 = vpow.pop %v2327
        %v2329 = vmul.f32 %v2308, 1.442695
        %v2330 = vpow.pop %v2329
        %v2331 = vmul.f32 %v2309, 1.442695
        %v2332 = vpow.pop %v2331
        %v2333 = vmul.f32 %v2310, 1.442695
        %v2334 = vpow.pop %v2333
        %v2335 = vmul.f32 %v2311, 1.442695
        %v2336 = vpow.pop %v2335
        %v2337 = vmul.f32 %v2312, 1.442695
        %v2338 = vpow.pop %v2337
        %v2339 = vmul.f32 %v2313, 1.442695
        %v2340 = vpow.pop %v2339
        %v2341 = vmul.f32 %v2314, 1.442695
        %v2342 = vpow.pop %v2341
        %v2343 = vmul.f32 %v2315, 1.442695
        %v2344 = vpow.pop %v2343
        %v2345 = vmul.f32 %v2316, 1.442695
        %v2346 = vpow.pop %v2345
        %v2347 = vmul.f32 %v2317, 1.442695
        %v2348 = vpow.pop %v2347
        %v2349 = vmul.f32 %v2318, 1.442695
        %v2350 = vpow.pop %v2349
        %v2352 = vsel %vm183, %v2320, 0
        %v2355 = vsel %vm183, %v2322, 0
        %v2358 = vsel %vm183, %v2324, 0
        %v2361 = vsel %vm183, %v2326, 0
        %v2364 = vsel %vm183, %v2328, 0
        %v2367 = vsel %vm183, %v2330, 0
        %v2370 = vsel %vm183, %v2332, 0
        %v2373 = vsel %vm183, %v2334, 0
        %v2376 = vsel %vm183, %v2336, 0
        %v2379 = vsel %vm183, %v2338, 0
        %v2382 = vsel %vm183, %v2340, 0
        %v2385 = vsel %vm183, %v2342, 0
        %v2388 = vsel %vm183, %v2344, 0
        %v2391 = vsel %vm183, %v2346, 0
        %v2394 = vsel %vm183, %v2348, 0
        %v2397 = vsel %vm183, %v2350, 0
        %2399 = vmatprep.subr.mxu0 0.0
        %2400 = vmatpush1.msra.mxu0 %v1594
        %2401 = vmatprep.subr.mxu0 0.0
        %2402 = vmatpush1.msra.mxu0 %v1595
        %2403 = vmatprep.subr.mxu0 0.0
        %2404 = vmatpush1.msra.mxu0 0.0
        %2405 = vmatprep.subr.mxu0 0.0
        %2406 = vmatpush1.msra.mxu0 0.0
        %2407 = vmatprep.subr.mxu0 0.0
        %2408 = vmatpush1.msra.mxu0 0.0
        %2409 = vmatprep.subr.mxu0 0.0
        %2410 = vmatpush1.msra.mxu0 0.0
        %2411 = vmatprep.subr.mxu0 0.0
        %2412 = vmatpush1.msra.mxu0 0.0
        %2413 = vmatprep.subr.mxu0 0.0
        %2414 = vmatpush1.msra.mxu0 0.0
        %2415 = vmatprep.subr.mxu0 0.0
        %2416 = vmatpush1.msra.mxu0 0.0
        %2417 = vmatprep.subr.mxu0 0.0
        %2418 = vmatpush1.msra.mxu0 0.0
        %2419 = vmatprep.subr.mxu0 0.0
        %2420 = vmatpush1.msra.mxu0 0.0
        %2421 = vmatprep.subr.mxu0 0.0
        %2422 = vmatpush1.msra.mxu0 0.0
        %2423 = vmatprep.subr.mxu0 0.0
        %2424 = vmatpush1.msra.mxu0 0.0
        %2425 = vmatprep.subr.mxu0 0.0
        %2426 = vmatpush1.msra.mxu0 0.0
        %2427 = vmatprep.subr.mxu0 0.0
        %2428 = vmatpush1.msra.mxu0 0.0
        %2429 = vmatprep.subr.mxu0 0.0
        %2430 = vmatpush1.msra.mxu0 0.0
        %2431 = vmatprep.subr.mxu0 0.0
        %2432 = vmatpush1.msra.mxu0 0.0
        %2433 = vmatprep.subr.mxu0 0.0
        %2434 = vmatpush1.msra.mxu0 0.0
        %2435 = vmatprep.subr.mxu0 0.0
        %2436 = vmatpush1.msra.mxu0 0.0
        %2437 = vmatprep.subr.mxu0 0.0
        %2438 = vmatpush1.msra.mxu0 0.0
        %2439 = vmatprep.subr.mxu0 0.0
        %2440 = vmatpush1.msra.mxu0 0.0
        %2441 = vmatprep.subr.mxu0 0.0
        %2442 = vmatpush1.msra.mxu0 0.0
        %2443 = vmatprep.subr.mxu0 0.0
        %2444 = vmatpush1.msra.mxu0 0.0
        %2445 = vmatprep.subr.mxu0 0.0
        %2446 = vmatpush1.msra.mxu0 0.0
        %2447 = vmatprep.subr.mxu0 0.0
        %2448 = vmatpush1.msra.mxu0 0.0
        %2449 = vmatprep.subr.mxu0 0.0
        %2450 = vmatpush1.msra.mxu0 0.0
        %2451 = vmatprep.subr.mxu0 0.0
        %2452 = vmatpush1.msra.mxu0 0.0
        %2453 = vmatprep.subr.mxu0 0.0
        %2454 = vmatpush1.msra.mxu0 0.0
        %2455 = vmatprep.subr.mxu0 0.0
        %2456 = vmatpush1.msra.mxu0 0.0
        %2457 = vmatprep.subr.mxu0 0.0
        %2458 = vmatpush1.msra.mxu0 0.0
        %2459 = vmatprep.subr.mxu0 0.0
        %2460 = vmatpush1.msra.mxu0 0.0
        %2461 = vmatprep.subr.mxu0 0.0
        %2462 = vmatpush1.msra.mxu0 0.0
        %2463 = vmatprep.mubr.f32.mxu0 0.0
        %2464 = vmatmul.mubr.f32.gmra.mrb[0].mxu0 %v2352
        %v2465 = vpop.f32.mrb[0].mxu0
        %v2466 = vadd.f32 0.0, %v2465
        %v2467 = vpop.f32.mrb[0].mxu0
        %2468 = vmatprep.mubr.f32.mxu0 0.0
        %2469 = vmatmul.mubr.f32.gmra.mrb[0].mxu0 %v2355
        %v2470 = vpop.f32.mrb[0].mxu0
        %v2471 = vadd.f32 0.0, %v2470
        %v2472 = vpop.f32.mrb[0].mxu0
        %2473 = vmatprep.mubr.f32.mxu0 0.0
        %2474 = vmatmul.mubr.f32.gmra.mrb[0].mxu0 %v2358
        %v2475 = vpop.f32.mrb[0].mxu0
        %v2476 = vadd.f32 0.0, %v2475
        %v2477 = vpop.f32.mrb[0].mxu0
        %2478 = vmatprep.mubr.f32.mxu0 0.0
        %2479 = vmatmul.mubr.f32.gmra.mrb[0].mxu0 %v2361
        %v2480 = vpop.f32.mrb[0].mxu0
        %v2481 = vadd.f32 0.0, %v2480
        %v2482 = vpop.f32.mrb[0].mxu0
        %2483 = vmatprep.mubr.f32.mxu0 0.0
        %2484 = vmatmul.mubr.f32.gmra.mrb[0].mxu0 %v2364
        %v2485 = vpop.f32.mrb[0].mxu0
        %v2486 = vadd.f32 0.0, %v2485
        %v2487 = vpop.f32.mrb[0].mxu0
        %2488 = vmatprep.mubr.f32.mxu0 0.0
        %2489 = vmatmul.mubr.f32.gmra.mrb[0].mxu0 %v2367
        %v2490 = vpop.f32.mrb[0].mxu0
        %v2491 = vadd.f32 0.0, %v2490
        %v2492 = vpop.f32.mrb[0].mxu0
        %2493 = vmatprep.mubr.f32.mxu0 0.0
        %2494 = vmatmul.mubr.f32.gmra.mrb[0].mxu0 %v2370
        %v2495 = vpop.f32.mrb[0].mxu0
        %v2496 = vadd.f32 0.0, %v2495
        %v2497 = vpop.f32.mrb[0].mxu0
        %2498 = vmatprep.mubr.f32.mxu0 0.0
        %2499 = vmatmul.mubr.f32.gmra.mrb[0].mxu0 %v2373
        %v2500 = vpop.f32.mrb[0].mxu0
        %v2501 = vadd.f32 0.0, %v2500
        %v2502 = vpop.f32.mrb[0].mxu0
        %2503 = vmatprep.mubr.f32.mxu0 0.0
        %2504 = vmatmul.mubr.f32.gmra.mrb[0].mxu0 %v2376
        %v2505 = vpop.f32.mrb[0].mxu0
        %v2506 = vadd.f32 0.0, %v2505
        %v2507 = vpop.f32.mrb[0].mxu0
        %2508 = vmatprep.mubr.f32.mxu0 0.0
        %2509 = vmatmul.mubr.f32.gmra.mrb[0].mxu0 %v2379
        %v2510 = vpop.f32.mrb[0].mxu0
        %v2511 = vadd.f32 0.0, %v2510
        %v2512 = vpop.f32.mrb[0].mxu0
        %2513 = vmatprep.mubr.f32.mxu0 0.0
        %2514 = vmatmul.mubr.f32.gmra.mrb[0].mxu0 %v2382
        %v2515 = vpop.f32.mrb[0].mxu0
        %v2516 = vadd.f32 0.0, %v2515
        %v2517 = vpop.f32.mrb[0].mxu0
        %2518 = vmatprep.mubr.f32.mxu0 0.0
        %2519 = vmatmul.mubr.f32.gmra.mrb[0].mxu0 %v2385
        %v2520 = vpop.f32.mrb[0].mxu0
        %v2521 = vadd.f32 0.0, %v2520
        %v2522 = vpop.f32.mrb[0].mxu0
        %2523 = vmatprep.mubr.f32.mxu0 0.0
        %2524 = vmatmul.mubr.f32.gmra.mrb[0].mxu0 %v2388
        %v2525 = vpop.f32.mrb[0].mxu0
        %v2526 = vadd.f32 0.0, %v2525
        %v2527 = vpop.f32.mrb[0].mxu0
        %2528 = vmatprep.mubr.f32.mxu0 0.0
        %2529 = vmatmul.mubr.f32.gmra.mrb[0].mxu0 %v2391
        %v2530 = vpop.f32.mrb[0].mxu0
        %v2531 = vadd.f32 0.0, %v2530
        %v2532 = vpop.f32.mrb[0].mxu0
        %2533 = vmatprep.mubr.f32.mxu0 0.0
        %2534 = vmatmul.mubr.f32.gmra.mrb[0].mxu0 %v2394
        %v2535 = vpop.f32.mrb[0].mxu0
        %v2536 = vadd.f32 0.0, %v2535
        %v2537 = vpop.f32.mrb[0].mxu0
        %2538 = vmatprep.mubr.f32.mxu0 0.0
        %2539 = vmatmul.mubr.f32.gmra.mrb[0].mxu0 %v2397
        %v2540 = vpop.f32.mrb[0].mxu0
        %v2541 = vadd.f32 0.0, %v2540
        %v2542 = vpop.f32.mrb[0].mxu0
        %2543 = vdwg.mxu0
        %v2544 = vrcp.pop %v2466
        %v2545 = vrcp.pop %v2471
        %v2546 = vrcp.pop %v2476
        %v2547 = vrcp.pop %v2481
        %v2548 = vrcp.pop %v2486
        %v2549 = vrcp.pop %v2491
        %v2550 = vrcp.pop %v2496
        %v2551 = vrcp.pop %v2501
        %v2552 = vrcp.pop %v2506
        %v2553 = vrcp.pop %v2511
        %v2554 = vrcp.pop %v2516
        %v2555 = vrcp.pop %v2521
        %v2556 = vrcp.pop %v2526
        %v2557 = vrcp.pop %v2531
        %v2558 = vrcp.pop %v2536
        %v2559 = vrcp.pop %v2541
        %v2560 = vmul.f32 %v2320, %v2544
        %v2561 = vmul.f32 %v2322, %v2545
        %v2562 = vmul.f32 %v2324, %v2546
        %v2563 = vmul.f32 %v2326, %v2547
        %v2564 = vmul.f32 %v2328, %v2548
        %v2565 = vmul.f32 %v2330, %v2549
        %v2566 = vmul.f32 %v2332, %v2550
        %v2567 = vmul.f32 %v2334, %v2551
        %v2568 = vmul.f32 %v2336, %v2552
        %v2569 = vmul.f32 %v2338, %v2553
        %v2570 = vmul.f32 %v2340, %v2554
        %v2571 = vmul.f32 %v2342, %v2555
        %v2572 = vmul.f32 %v2344, %v2556
        %v2573 = vmul.f32 %v2346, %v2557
        %v2574 = vmul.f32 %v2348, %v2558
        %v2575 = vmul.f32 %v2350, %v2559
        %v2576 = vld [vmem:[#allocation2 + $0x108] sm:$0xff]
        %v2577 = vld [vmem:[#allocation2 + $0x110] sm:$0xff]
        %v2578 = vld [vmem:[#allocation2 + $0x118] sm:$0xff]
        %v2579 = vld [vmem:[#allocation2 + $0x120] sm:$0xff]
        %v2581 = vsel %vm183, %v2560, 0
        %v2584 = vsel %vm183, %v2561, 0
        %v2587 = vsel %vm183, %v2562, 0
        %v2590 = vsel %vm183, %v2563, 0
        %v2593 = vsel %vm183, %v2564, 0
        %v2596 = vsel %vm183, %v2565, 0
        %v2599 = vsel %vm183, %v2566, 0
        %v2602 = vsel %vm183, %v2567, 0
        %v2605 = vsel %vm183, %v2568, 0
        %v2608 = vsel %vm183, %v2569, 0
        %v2611 = vsel %vm183, %v2570, 0
        %v2614 = vsel %vm183, %v2571, 0
        %v2617 = vsel %vm183, %v2572, 0
        %v2620 = vsel %vm183, %v2573, 0
        %v2623 = vsel %vm183, %v2574, 0
        %v2626 = vsel %vm183, %v2575, 0
        %2628 = vmatprep.subr.mxu0 0.0
        %2629 = vmatpush1.msra.mxu0 %v2578
        %2630 = vmatprep.subr.mxu0 0.0
        %2631 = vmatpush1.msra.mxu0 %v2579
        %2632 = vmatprep.subr.mxu0 0.0
        %2633 = vmatpush1.msra.mxu0 0.0
        %2634 = vmatprep.subr.mxu0 0.0
        %2635 = vmatpush1.msra.mxu0 0.0
        %2636 = vmatprep.subr.mxu0 0.0
        %2637 = vmatpush1.msra.mxu0 0.0
        %2638 = vmatprep.subr.mxu0 0.0
        %2639 = vmatpush1.msra.mxu0 0.0
        %2640 = vmatprep.subr.mxu0 0.0
        %2641 = vmatpush1.msra.mxu0 0.0
        %2642 = vmatprep.subr.mxu0 0.0
        %2643 = vmatpush1.msra.mxu0 0.0
        %2644 = vmatprep.subr.mxu0 0.0
        %2645 = vmatpush1.msra.mxu0 0.0
        %2646 = vmatprep.subr.mxu0 0.0
        %2647 = vmatpush1.msra.mxu0 0.0
        %2648 = vmatprep.subr.mxu0 0.0
        %2649 = vmatpush1.msra.mxu0 0.0
        %2650 = vmatprep.subr.mxu0 0.0
        %2651 = vmatpush1.msra.mxu0 0.0
        %2652 = vmatprep.subr.mxu0 0.0
        %2653 = vmatpush1.msra.mxu0 0.0
        %2654 = vmatprep.subr.mxu0 0.0
        %2655 = vmatpush1.msra.mxu0 0.0
        %2656 = vmatprep.subr.mxu0 0.0
        %2657 = vmatpush1.msra.mxu0 0.0
        %2658 = vmatprep.subr.mxu0 0.0
        %2659 = vmatpush1.msra.mxu0 0.0
        %2660 = vmatprep.subr.mxu0 0.0
        %2661 = vmatpush1.msra.mxu0 0.0
        %2662 = vmatprep.subr.mxu0 0.0
        %2663 = vmatpush1.msra.mxu0 0.0
        %2664 = vmatprep.subr.mxu0 0.0
        %2665 = vmatpush1.msra.mxu0 0.0
        %2666 = vmatprep.subr.mxu0 0.0
        %2667 = vmatpush1.msra.mxu0 0.0
        %2668 = vmatprep.subr.mxu0 0.0
        %2669 = vmatpush1.msra.mxu0 0.0
        %2670 = vmatprep.subr.mxu0 0.0
        %2671 = vmatpush1.msra.mxu0 0.0
        %2672 = vmatprep.subr.mxu0 0.0
        %2673 = vmatpush1.msra.mxu0 0.0
        %2674 = vmatprep.subr.mxu0 0.0
        %2675 = vmatpush1.msra.mxu0 0.0
        %2676 = vmatprep.subr.mxu0 0.0
        %2677 = vmatpush1.msra.mxu0 0.0
        %2678 = vmatprep.subr.mxu0 0.0
        %2679 = vmatpush1.msra.mxu0 0.0
        %2680 = vmatprep.subr.mxu0 0.0
        %2681 = vmatpush1.msra.mxu0 0.0
        %2682 = vmatprep.subr.mxu0 0.0
        %2683 = vmatpush1.msra.mxu0 0.0
        %2684 = vmatprep.subr.mxu0 0.0
        %2685 = vmatpush1.msra.mxu0 0.0
        %2686 = vmatprep.subr.mxu0 0.0
        %2687 = vmatpush1.msra.mxu0 0.0
        %2688 = vmatprep.subr.mxu0 0.0
        %2689 = vmatpush1.msra.mxu0 0.0
        %2690 = vmatprep.subr.mxu0 0.0
        %2691 = vmatpush1.msra.mxu0 0.0
        %2692 = vmatprep.mubr.f32.mxu0 0.0
        %2693 = vmatmul.mubr.f32.gmra.mrb[0].mxu0 %v2581
        %v2694 = vpop.f32.mrb[0].mxu0
        %v2695 = vadd.f32 0.0, %v2694
        %v2696 = vpop.f32.mrb[0].mxu0
        %2697 = vmatprep.mubr.f32.mxu0 0.0
        %2698 = vmatmul.mubr.f32.gmra.mrb[0].mxu0 %v2584
        %v2699 = vpop.f32.mrb[0].mxu0
        %v2700 = vadd.f32 0.0, %v2699
        %v2701 = vpop.f32.mrb[0].mxu0
        %2702 = vmatprep.mubr.f32.mxu0 0.0
        %2703 = vmatmul.mubr.f32.gmra.mrb[0].mxu0 %v2587
        %v2704 = vpop.f32.mrb[0].mxu0
        %v2705 = vadd.f32 0.0, %v2704
        %v2706 = vpop.f32.mrb[0].mxu0
        %2707 = vmatprep.mubr.f32.mxu0 0.0
        %2708 = vmatmul.mubr.f32.gmra.mrb[0].mxu0 %v2590
        %v2709 = vpop.f32.mrb[0].mxu0
        %v2710 = vadd.f32 0.0, %v2709
        %v2711 = vpop.f32.mrb[0].mxu0
        %2712 = vmatprep.mubr.f32.mxu0 0.0
        %2713 = vmatmul.mubr.f32.gmra.mrb[0].mxu0 %v2593
        %v2714 = vpop.f32.mrb[0].mxu0
        %v2715 = vadd.f32 0.0, %v2714
        %v2716 = vpop.f32.mrb[0].mxu0
        %2717 = vmatprep.mubr.f32.mxu0 0.0
        %2718 = vmatmul.mubr.f32.gmra.mrb[0].mxu0 %v2596
        %v2719 = vpop.f32.mrb[0].mxu0
        %v2720 = vadd.f32 0.0, %v2719
        %v2721 = vpop.f32.mrb[0].mxu0
        %2722 = vmatprep.mubr.f32.mxu0 0.0
        %2723 = vmatmul.mubr.f32.gmra.mrb[0].mxu0 %v2599
        %v2724 = vpop.f32.mrb[0].mxu0
        %v2725 = vadd.f32 0.0, %v2724
        %v2726 = vpop.f32.mrb[0].mxu0
        %2727 = vmatprep.mubr.f32.mxu0 0.0
        %2728 = vmatmul.mubr.f32.gmra.mrb[0].mxu0 %v2602
        %v2729 = vpop.f32.mrb[0].mxu0
        %v2730 = vadd.f32 0.0, %v2729
        %v2731 = vpop.f32.mrb[0].mxu0
        %2732 = vmatprep.mubr.f32.mxu0 0.0
        %2733 = vmatmul.mubr.f32.gmra.mrb[0].mxu0 %v2605
        %v2734 = vpop.f32.mrb[0].mxu0
        %v2735 = vadd.f32 0.0, %v2734
        %v2736 = vpop.f32.mrb[0].mxu0
        %2737 = vmatprep.mubr.f32.mxu0 0.0
        %2738 = vmatmul.mubr.f32.gmra.mrb[0].mxu0 %v2608
        %v2739 = vpop.f32.mrb[0].mxu0
        %v2740 = vadd.f32 0.0, %v2739
        %v2741 = vpop.f32.mrb[0].mxu0
        %2742 = vmatprep.mubr.f32.mxu0 0.0
        %2743 = vmatmul.mubr.f32.gmra.mrb[0].mxu0 %v2611
        %v2744 = vpop.f32.mrb[0].mxu0
        %v2745 = vadd.f32 0.0, %v2744
        %v2746 = vpop.f32.mrb[0].mxu0
        %2747 = vmatprep.mubr.f32.mxu0 0.0
        %2748 = vmatmul.mubr.f32.gmra.mrb[0].mxu0 %v2614
        %v2749 = vpop.f32.mrb[0].mxu0
        %v2750 = vadd.f32 0.0, %v2749
        %v2751 = vpop.f32.mrb[0].mxu0
        %2752 = vmatprep.mubr.f32.mxu0 0.0
        %2753 = vmatmul.mubr.f32.gmra.mrb[0].mxu0 %v2617
        %v2754 = vpop.f32.mrb[0].mxu0
        %v2755 = vadd.f32 0.0, %v2754
        %v2756 = vpop.f32.mrb[0].mxu0
        %2757 = vmatprep.mubr.f32.mxu0 0.0
        %2758 = vmatmul.mubr.f32.gmra.mrb[0].mxu0 %v2620
        %v2759 = vpop.f32.mrb[0].mxu0
        %v2760 = vadd.f32 0.0, %v2759
        %v2761 = vpop.f32.mrb[0].mxu0
        %2762 = vmatprep.mubr.f32.mxu0 0.0
        %2763 = vmatmul.mubr.f32.gmra.mrb[0].mxu0 %v2623
        %v2764 = vpop.f32.mrb[0].mxu0
        %v2765 = vadd.f32 0.0, %v2764
        %v2766 = vpop.f32.mrb[0].mxu0
        %2767 = vmatprep.mubr.f32.mxu0 0.0
        %2768 = vmatmul.mubr.f32.gmra.mrb[0].mxu0 %v2626
        %v2769 = vpop.f32.mrb[0].mxu0
        %v2770 = vadd.f32 0.0, %v2769
        %v2771 = vpop.f32.mrb[0].mxu0
        %2772 = vdwg.mxu0
        %2773 = vmatprep.subr.mxu0 0.0
        %2774 = vmatpush1.msra.mxu0 %v2576
        %2775 = vmatprep.subr.mxu0 0.0
        %2776 = vmatpush1.msra.mxu0 %v2577
        %2777 = vmatprep.subr.mxu0 0.0
        %2778 = vmatpush1.msra.mxu0 0.0
        %2779 = vmatprep.subr.mxu0 0.0
        %2780 = vmatpush1.msra.mxu0 0.0
        %2781 = vmatprep.subr.mxu0 0.0
        %2782 = vmatpush1.msra.mxu0 0.0
        %2783 = vmatprep.subr.mxu0 0.0
        %2784 = vmatpush1.msra.mxu0 0.0
        %2785 = vmatprep.subr.mxu0 0.0
        %2786 = vmatpush1.msra.mxu0 0.0
        %2787 = vmatprep.subr.mxu0 0.0
        %2788 = vmatpush1.msra.mxu0 0.0
        %2789 = vmatprep.subr.mxu0 0.0
        %2790 = vmatpush1.msra.mxu0 0.0
        %2791 = vmatprep.subr.mxu0 0.0
        %2792 = vmatpush1.msra.mxu0 0.0
        %2793 = vmatprep.subr.mxu0 0.0
        %2794 = vmatpush1.msra.mxu0 0.0
        %2795 = vmatprep.subr.mxu0 0.0
        %2796 = vmatpush1.msra.mxu0 0.0
        %2797 = vmatprep.subr.mxu0 0.0
        %2798 = vmatpush1.msra.mxu0 0.0
        %2799 = vmatprep.subr.mxu0 0.0
        %2800 = vmatpush1.msra.mxu0 0.0
        %2801 = vmatprep.subr.mxu0 0.0
        %2802 = vmatpush1.msra.mxu0 0.0
        %2803 = vmatprep.subr.mxu0 0.0
        %2804 = vmatpush1.msra.mxu0 0.0
        %2805 = vmatprep.subr.mxu0 0.0
        %2806 = vmatpush1.msra.mxu0 0.0
        %2807 = vmatprep.subr.mxu0 0.0
        %2808 = vmatpush1.msra.mxu0 0.0
        %2809 = vmatprep.subr.mxu0 0.0
        %2810 = vmatpush1.msra.mxu0 0.0
        %2811 = vmatprep.subr.mxu0 0.0
        %2812 = vmatpush1.msra.mxu0 0.0
        %2813 = vmatprep.subr.mxu0 0.0
        %2814 = vmatpush1.msra.mxu0 0.0
        %2815 = vmatprep.subr.mxu0 0.0
        %2816 = vmatpush1.msra.mxu0 0.0
        %2817 = vmatprep.subr.mxu0 0.0
        %2818 = vmatpush1.msra.mxu0 0.0
        %2819 = vmatprep.subr.mxu0 0.0
        %2820 = vmatpush1.msra.mxu0 0.0
        %2821 = vmatprep.subr.mxu0 0.0
        %2822 = vmatpush1.msra.mxu0 0.0
        %2823 = vmatprep.subr.mxu0 0.0
        %2824 = vmatpush1.msra.mxu0 0.0
        %2825 = vmatprep.subr.mxu0 0.0
        %2826 = vmatpush1.msra.mxu0 0.0
        %2827 = vmatprep.subr.mxu0 0.0
        %2828 = vmatpush1.msra.mxu0 0.0
        %2829 = vmatprep.subr.mxu0 0.0
        %2830 = vmatpush1.msra.mxu0 0.0
        %2831 = vmatprep.subr.mxu0 0.0
        %2832 = vmatpush1.msra.mxu0 0.0
        %2833 = vmatprep.subr.mxu0 0.0
        %2834 = vmatpush1.msra.mxu0 0.0
        %2835 = vmatprep.subr.mxu0 0.0
        %2836 = vmatpush1.msra.mxu0 0.0
        %2837 = vmatprep.mubr.f32.mxu0 0.0
        %2838 = vmatmul.mubr.f32.gmra.mrb[0].mxu0 %v1829
        %v2839 = vpop.f32.mrb[0].mxu0
        %v2840 = vadd.f32 %v2695, %v2839
        %v2841 = vpop.f32.mrb[0].mxu0
        %2842 = vmatprep.mubr.f32.mxu0 0.0
        %2843 = vmatmul.mubr.f32.gmra.mrb[0].mxu0 %v1832
        %v2844 = vpop.f32.mrb[0].mxu0
        %v2845 = vadd.f32 %v2700, %v2844
        %v2846 = vpop.f32.mrb[0].mxu0
        %2847 = vmatprep.mubr.f32.mxu0 0.0
        %2848 = vmatmul.mubr.f32.gmra.mrb[0].mxu0 %v1835
        %v2849 = vpop.f32.mrb[0].mxu0
        %v2850 = vadd.f32 %v2705, %v2849
        %v2851 = vpop.f32.mrb[0].mxu0
        %2852 = vmatprep.mubr.f32.mxu0 0.0
        %2853 = vmatmul.mubr.f32.gmra.mrb[0].mxu0 %v1838
        %v2854 = vpop.f32.mrb[0].mxu0
        %v2855 = vadd.f32 %v2710, %v2854
        %v2856 = vpop.f32.mrb[0].mxu0
        %2857 = vmatprep.mubr.f32.mxu0 0.0
        %2858 = vmatmul.mubr.f32.gmra.mrb[0].mxu0 %v1841
        %v2859 = vpop.f32.mrb[0].mxu0
        %v2860 = vadd.f32 %v2715, %v2859
        %v2861 = vpop.f32.mrb[0].mxu0
        %2862 = vmatprep.mubr.f32.mxu0 0.0
        %2863 = vmatmul.mubr.f32.gmra.mrb[0].mxu0 %v1844
        %v2864 = vpop.f32.mrb[0].mxu0
        %v2865 = vadd.f32 %v2720, %v2864
        %v2866 = vpop.f32.mrb[0].mxu0
        %2867 = vmatprep.mubr.f32.mxu0 0.0
        %2868 = vmatmul.mubr.f32.gmra.mrb[0].mxu0 %v1847
        %v2869 = vpop.f32.mrb[0].mxu0
        %v2870 = vadd.f32 %v2725, %v2869
        %v2871 = vpop.f32.mrb[0].mxu0
        %2872 = vmatprep.mubr.f32.mxu0 0.0
        %2873 = vmatmul.mubr.f32.gmra.mrb[0].mxu0 %v1850
        %v2874 = vpop.f32.mrb[0].mxu0
        %v2875 = vadd.f32 %v2730, %v2874
        %v2876 = vpop.f32.mrb[0].mxu0
        %2877 = vmatprep.mubr.f32.mxu0 0.0
        %2878 = vmatmul.mubr.f32.gmra.mrb[0].mxu0 %v1853
        %v2879 = vpop.f32.mrb[0].mxu0
        %v2880 = vadd.f32 %v2735, %v2879
        %v2881 = vpop.f32.mrb[0].mxu0
        %2882 = vmatprep.mubr.f32.mxu0 0.0
        %2883 = vmatmul.mubr.f32.gmra.mrb[0].mxu0 %v1856
        %v2884 = vpop.f32.mrb[0].mxu0
        %v2885 = vadd.f32 %v2740, %v2884
        %v2886 = vpop.f32.mrb[0].mxu0
        %2887 = vmatprep.mubr.f32.mxu0 0.0
        %2888 = vmatmul.mubr.f32.gmra.mrb[0].mxu0 %v1859
        %v2889 = vpop.f32.mrb[0].mxu0
        %v2890 = vadd.f32 %v2745, %v2889
        %v2891 = vpop.f32.mrb[0].mxu0
        %2892 = vmatprep.mubr.f32.mxu0 0.0
        %2893 = vmatmul.mubr.f32.gmra.mrb[0].mxu0 %v1862
        %v2894 = vpop.f32.mrb[0].mxu0
        %v2895 = vadd.f32 %v2750, %v2894
        %v2896 = vpop.f32.mrb[0].mxu0
        %2897 = vmatprep.mubr.f32.mxu0 0.0
        %2898 = vmatmul.mubr.f32.gmra.mrb[0].mxu0 %v1865
        %v2899 = vpop.f32.mrb[0].mxu0
        %v2900 = vadd.f32 %v2755, %v2899
        %v2901 = vpop.f32.mrb[0].mxu0
        %2902 = vmatprep.mubr.f32.mxu0 0.0
        %2903 = vmatmul.mubr.f32.gmra.mrb[0].mxu0 %v1868
        %v2904 = vpop.f32.mrb[0].mxu0
        %v2905 = vadd.f32 %v2760, %v2904
        %v2906 = vpop.f32.mrb[0].mxu0
        %2907 = vmatprep.mubr.f32.mxu0 0.0
        %2908 = vmatmul.mubr.f32.gmra.mrb[0].mxu0 %v1871
        %v2909 = vpop.f32.mrb[0].mxu0
        %v2910 = vadd.f32 %v2765, %v2909
        %v2911 = vpop.f32.mrb[0].mxu0
        %2912 = vmatprep.mubr.f32.mxu0 0.0
        %2913 = vmatmul.mubr.f32.gmra.mrb[0].mxu0 %v1874
        %v2914 = vpop.f32.mrb[0].mxu0
        %v2915 = vadd.f32 %v2770, %v2914
        %v2916 = vpop.f32.mrb[0].mxu0
        %2917 = vdwg.mxu0
        %v2918 = vld [vmem:[#allocation2 + $0x128] sm:$0x1]
        %v2919 = vlaneseq
        %v2920 = vshrl.u32 %v2919, 7
        %v2921 = vsub.s32 0, %v2920
        %v2922 = vrot.slane %v2918, %v2921
        %v2923 = vadd.f32 %v2840, %v2922
        %v2924 = vadd.f32 %v2845, %v2922
        %v2925 = vadd.f32 %v2850, %v2922
        %v2926 = vadd.f32 %v2855, %v2922
        %v2927 = vadd.f32 %v2860, %v2922
        %v2928 = vadd.f32 %v2865, %v2922
        %v2929 = vadd.f32 %v2870, %v2922
        %v2930 = vadd.f32 %v2875, %v2922
        %v2931 = vadd.f32 %v2880, %v2922
        %v2932 = vadd.f32 %v2885, %v2922
        %v2933 = vadd.f32 %v2890, %v2922
        %v2934 = vadd.f32 %v2895, %v2922
        %v2935 = vadd.f32 %v2900, %v2922
        %v2936 = vadd.f32 %v2905, %v2922
        %v2937 = vadd.f32 %v2910, %v2922
        %v2938 = vadd.f32 %v2915, %v2922
        %v2939 = vmul.f32 %v2923, %v1202
        %v2940 = vmul.f32 %v2924, %v1207
        %v2941 = vmul.f32 %v2925, %v1212
        %v2942 = vmul.f32 %v2926, %v1217
        %v2943 = vmul.f32 %v2927, %v1222
        %v2944 = vmul.f32 %v2928, %v1227
        %v2945 = vmul.f32 %v2929, %v1232
        %v2946 = vmul.f32 %v2930, %v1237
        %v2947 = vmul.f32 %v2931, %v1242
        %v2948 = vmul.f32 %v2932, %v1247
        %v2949 = vmul.f32 %v2933, %v1252
        %v2950 = vmul.f32 %v2934, %v1257
        %v2951 = vmul.f32 %v2935, %v1262
        %v2952 = vmul.f32 %v2936, %v1267
        %v2953 = vmul.f32 %v2937, %v1272
        %v2954 = vmul.f32 %v2938, %v1277
        %v2955 = vmax.f32 %v2939, 0.0
        %v2956 = vmax.f32 %v2940, 0.0
        %v2957 = vmax.f32 %v2941, 0.0
        %v2958 = vmax.f32 %v2942, 0.0
        %v2959 = vmax.f32 %v2943, 0.0
        %v2960 = vmax.f32 %v2944, 0.0
        %v2961 = vmax.f32 %v2945, 0.0
        %v2962 = vmax.f32 %v2946, 0.0
        %v2963 = vmax.f32 %v2947, 0.0
        %v2964 = vmax.f32 %v2948, 0.0
        %v2965 = vmax.f32 %v2949, 0.0
        %v2966 = vmax.f32 %v2950, 0.0
        %v2967 = vmax.f32 %v2951, 0.0
        %v2968 = vmax.f32 %v2952, 0.0
        %v2969 = vmax.f32 %v2953, 0.0
        %v2970 = vmax.f32 %v2954, 0.0
        %v2971 = vld [vmem:[#allocation2 + $0x130] sm:$0xff]
        %v2972 = vld [vmem:[#allocation2 + $0x138] sm:$0xff]
        %v2973 = vld [vmem:[#allocation2 + $0x140] sm:$0xff]
        %v2974 = vld [vmem:[#allocation2 + $0x148] sm:$0xff]
        %v2975 = vld [vmem:[#allocation2 + $0x150] sm:$0x1]
        %v2976 = vlaneseq
        %v2977 = vshrl.u32 %v2976, 7
        %v2978 = vsub.s32 0, %v2977
        %v2979 = vrot.slane %v2975, %v2978
        %v2981 = vsel %vm402, %v2955, 0
        %v2984 = vsel %vm402, %v2956, 0
        %v2987 = vsel %vm402, %v2957, 0
        %v2990 = vsel %vm402, %v2958, 0
        %v2993 = vsel %vm402, %v2959, 0
        %v2996 = vsel %vm402, %v2960, 0
        %v2999 = vsel %vm402, %v2961, 0
        %v3002 = vsel %vm402, %v2962, 0
        %v3005 = vsel %vm402, %v2963, 0
        %v3008 = vsel %vm402, %v2964, 0
        %v3011 = vsel %vm402, %v2965, 0
        %v3014 = vsel %vm402, %v2966, 0
        %v3017 = vsel %vm402, %v2967, 0
        %v3020 = vsel %vm402, %v2968, 0
        %v3023 = vsel %vm402, %v2969, 0
        %v3026 = vsel %vm402, %v2970, 0
        %3028 = vmatprep.subr.mxu0 0.0
        %3029 = vmatpush1.msra.mxu0 %v2971
        %3030 = vmatprep.subr.mxu0 0.0
        %3031 = vmatpush1.msra.mxu0 %v2972
        %3032 = vmatprep.subr.mxu0 0.0
        %3033 = vmatpush1.msra.mxu0 %v2973
        %3034 = vmatprep.subr.mxu0 0.0
        %3035 = vmatpush1.msra.mxu0 %v2974
        %3036 = vmatprep.subr.mxu0 0.0
        %3037 = vmatpush1.msra.mxu0 0.0
        %3038 = vmatprep.subr.mxu0 0.0
        %3039 = vmatpush1.msra.mxu0 0.0
        %3040 = vmatprep.subr.mxu0 0.0
        %3041 = vmatpush1.msra.mxu0 0.0
        %3042 = vmatprep.subr.mxu0 0.0
        %3043 = vmatpush1.msra.mxu0 0.0
        %3044 = vmatprep.subr.mxu0 0.0
        %3045 = vmatpush1.msra.mxu0 0.0
        %3046 = vmatprep.subr.mxu0 0.0
        %3047 = vmatpush1.msra.mxu0 0.0
        %3048 = vmatprep.subr.mxu0 0.0
        %3049 = vmatpush1.msra.mxu0 0.0
        %3050 = vmatprep.subr.mxu0 0.0
        %3051 = vmatpush1.msra.mxu0 0.0
        %3052 = vmatprep.subr.mxu0 0.0
        %3053 = vmatpush1.msra.mxu0 0.0
        %3054 = vmatprep.subr.mxu0 0.0
        %3055 = vmatpush1.msra.mxu0 0.0
        %3056 = vmatprep.subr.mxu0 0.0
        %3057 = vmatpush1.msra.mxu0 0.0
        %3058 = vmatprep.subr.mxu0 0.0
        %3059 = vmatpush1.msra.mxu0 0.0
        %3060 = vmatprep.subr.mxu0 0.0
        %3061 = vmatpush1.msra.mxu0 0.0
        %3062 = vmatprep.subr.mxu0 0.0
        %3063 = vmatpush1.msra.mxu0 0.0
        %3064 = vmatprep.subr.mxu0 0.0
        %3065 = vmatpush1.msra.mxu0 0.0
        %3066 = vmatprep.subr.mxu0 0.0
        %3067 = vmatpush1.msra.mxu0 0.0
        %3068 = vmatprep.subr.mxu0 0.0
        %3069 = vmatpush1.msra.mxu0 0.0
        %3070 = vmatprep.subr.mxu0 0.0
        %3071 = vmatpush1.msra.mxu0 0.0
        %3072 = vmatprep.subr.mxu0 0.0
        %3073 = vmatpush1.msra.mxu0 0.0
        %3074 = vmatprep.subr.mxu0 0.0
        %3075 = vmatpush1.msra.mxu0 0.0
        %3076 = vmatprep.subr.mxu0 0.0
        %3077 = vmatpush1.msra.mxu0 0.0
        %3078 = vmatprep.subr.mxu0 0.0
        %3079 = vmatpush1.msra.mxu0 0.0
        %3080 = vmatprep.subr.mxu0 0.0
        %3081 = vmatpush1.msra.mxu0 0.0
        %3082 = vmatprep.subr.mxu0 0.0
        %3083 = vmatpush1.msra.mxu0 0.0
        %3084 = vmatprep.subr.mxu0 0.0
        %3085 = vmatpush1.msra.mxu0 0.0
        %3086 = vmatprep.subr.mxu0 0.0
        %3087 = vmatpush1.msra.mxu0 0.0
        %3088 = vmatprep.subr.mxu0 0.0
        %3089 = vmatpush1.msra.mxu0 0.0
        %3090 = vmatprep.subr.mxu0 0.0
        %3091 = vmatpush1.msra.mxu0 0.0
        %3092 = vmatprep.mubr.f32.mxu0 0.0
        %3093 = vmatmul.mubr.f32.gmra.mrb[0].mxu0 %v2981
        %v3094 = vpop.f32.mrb[0].mxu0
        %v3095 = vadd.f32 %v2979, %v3094
        %v3096 = vpop.f32.mrb[0].mxu0
        %3097 = vmatprep.mubr.f32.mxu0 0.0
        %3098 = vmatmul.mubr.f32.gmra.mrb[0].mxu0 %v2984
        %v3099 = vpop.f32.mrb[0].mxu0
        %v3100 = vadd.f32 %v2979, %v3099
        %v3101 = vpop.f32.mrb[0].mxu0
        %3102 = vmatprep.mubr.f32.mxu0 0.0
        %3103 = vmatmul.mubr.f32.gmra.mrb[0].mxu0 %v2987
        %v3104 = vpop.f32.mrb[0].mxu0
        %v3105 = vadd.f32 %v2979, %v3104
        %v3106 = vpop.f32.mrb[0].mxu0
        %3107 = vmatprep.mubr.f32.mxu0 0.0
        %3108 = vmatmul.mubr.f32.gmra.mrb[0].mxu0 %v2990
        %v3109 = vpop.f32.mrb[0].mxu0
        %v3110 = vadd.f32 %v2979, %v3109
        %v3111 = vpop.f32.mrb[0].mxu0
        %3112 = vmatprep.mubr.f32.mxu0 0.0
        %3113 = vmatmul.mubr.f32.gmra.mrb[0].mxu0 %v2993
        %v3114 = vpop.f32.mrb[0].mxu0
        %v3115 = vadd.f32 %v2979, %v3114
        %v3116 = vpop.f32.mrb[0].mxu0
        %3117 = vmatprep.mubr.f32.mxu0 0.0
        %3118 = vmatmul.mubr.f32.gmra.mrb[0].mxu0 %v2996
        %v3119 = vpop.f32.mrb[0].mxu0
        %v3120 = vadd.f32 %v2979, %v3119
        %v3121 = vpop.f32.mrb[0].mxu0
        %3122 = vmatprep.mubr.f32.mxu0 0.0
        %3123 = vmatmul.mubr.f32.gmra.mrb[0].mxu0 %v2999
        %v3124 = vpop.f32.mrb[0].mxu0
        %v3125 = vadd.f32 %v2979, %v3124
        %v3126 = vpop.f32.mrb[0].mxu0
        %3127 = vmatprep.mubr.f32.mxu0 0.0
        %3128 = vmatmul.mubr.f32.gmra.mrb[0].mxu0 %v3002
        %v3129 = vpop.f32.mrb[0].mxu0
        %v3130 = vadd.f32 %v2979, %v3129
        %v3131 = vpop.f32.mrb[0].mxu0
        %3132 = vmatprep.mubr.f32.mxu0 0.0
        %3133 = vmatmul.mubr.f32.gmra.mrb[0].mxu0 %v3005
        %v3134 = vpop.f32.mrb[0].mxu0
        %v3135 = vadd.f32 %v2979, %v3134
        %v3136 = vpop.f32.mrb[0].mxu0
        %3137 = vmatprep.mubr.f32.mxu0 0.0
        %3138 = vmatmul.mubr.f32.gmra.mrb[0].mxu0 %v3008
        %v3139 = vpop.f32.mrb[0].mxu0
        %v3140 = vadd.f32 %v2979, %v3139
        %v3141 = vpop.f32.mrb[0].mxu0
        %3142 = vmatprep.mubr.f32.mxu0 0.0
        %3143 = vmatmul.mubr.f32.gmra.mrb[0].mxu0 %v3011
        %v3144 = vpop.f32.mrb[0].mxu0
        %v3145 = vadd.f32 %v2979, %v3144
        %v3146 = vpop.f32.mrb[0].mxu0
        %3147 = vmatprep.mubr.f32.mxu0 0.0
        %3148 = vmatmul.mubr.f32.gmra.mrb[0].mxu0 %v3014
        %v3149 = vpop.f32.mrb[0].mxu0
        %v3150 = vadd.f32 %v2979, %v3149
        %v3151 = vpop.f32.mrb[0].mxu0
        %3152 = vmatprep.mubr.f32.mxu0 0.0
        %3153 = vmatmul.mubr.f32.gmra.mrb[0].mxu0 %v3017
        %v3154 = vpop.f32.mrb[0].mxu0
        %v3155 = vadd.f32 %v2979, %v3154
        %v3156 = vpop.f32.mrb[0].mxu0
        %3157 = vmatprep.mubr.f32.mxu0 0.0
        %3158 = vmatmul.mubr.f32.gmra.mrb[0].mxu0 %v3020
        %v3159 = vpop.f32.mrb[0].mxu0
        %v3160 = vadd.f32 %v2979, %v3159
        %v3161 = vpop.f32.mrb[0].mxu0
        %3162 = vmatprep.mubr.f32.mxu0 0.0
        %3163 = vmatmul.mubr.f32.gmra.mrb[0].mxu0 %v3023
        %v3164 = vpop.f32.mrb[0].mxu0
        %v3165 = vadd.f32 %v2979, %v3164
        %v3166 = vpop.f32.mrb[0].mxu0
        %3167 = vmatprep.mubr.f32.mxu0 0.0
        %3168 = vmatmul.mubr.f32.gmra.mrb[0].mxu0 %v3026
        %v3169 = vpop.f32.mrb[0].mxu0
        %v3170 = vadd.f32 %v2979, %v3169
        %v3171 = vpop.f32.mrb[0].mxu0
        %3172 = vdwg.mxu0
        %v3173 = vsel %vm183, %v3095, -inf
        %3174 = vmax.xlane.f32.xlu0 %v3173
        %v3175 = vpop.xlane.xlu0 %3174
        %v3176 = vsel %vm183, %v3100, -inf
        %3177 = vmax.xlane.f32.xlu0 %v3176
        %v3178 = vpop.xlane.xlu0 %3177
        %v3179 = vsel %vm183, %v3105, -inf
        %3180 = vmax.xlane.f32.xlu0 %v3179
        %v3181 = vpop.xlane.xlu0 %3180
        %v3182 = vsel %vm183, %v3110, -inf
        %3183 = vmax.xlane.f32.xlu0 %v3182
        %v3184 = vpop.xlane.xlu0 %3183
        %v3185 = vsel %vm183, %v3115, -inf
        %3186 = vmax.xlane.f32.xlu0 %v3185
        %v3187 = vpop.xlane.xlu0 %3186
        %v3188 = vsel %vm183, %v3120, -inf
        %3189 = vmax.xlane.f32.xlu0 %v3188
        %v3190 = vpop.xlane.xlu0 %3189
        %v3191 = vsel %vm183, %v3125, -inf
        %3192 = vmax.xlane.f32.xlu0 %v3191
        %v3193 = vpop.xlane.xlu0 %3192
        %v3194 = vsel %vm183, %v3130, -inf
        %3195 = vmax.xlane.f32.xlu0 %v3194
        %v3196 = vpop.xlane.xlu0 %3195
        %v3197 = vsel %vm183, %v3135, -inf
        %3198 = vmax.xlane.f32.xlu0 %v3197
        %v3199 = vpop.xlane.xlu0 %3198
        %v3200 = vsel %vm183, %v3140, -inf
        %3201 = vmax.xlane.f32.xlu0 %v3200
        %v3202 = vpop.xlane.xlu0 %3201
        %v3203 = vsel %vm183, %v3145, -inf
        %3204 = vmax.xlane.f32.xlu0 %v3203
        %v3205 = vpop.xlane.xlu0 %3204
        %v3206 = vsel %vm183, %v3150, -inf
        %3207 = vmax.xlane.f32.xlu0 %v3206
        %v3208 = vpop.xlane.xlu0 %3207
        %v3209 = vsel %vm183, %v3155, -inf
        %3210 = vmax.xlane.f32.xlu0 %v3209
        %v3211 = vpop.xlane.xlu0 %3210
        %v3212 = vsel %vm183, %v3160, -inf
        %3213 = vmax.xlane.f32.xlu0 %v3212
        %v3214 = vpop.xlane.xlu0 %3213
        %v3215 = vsel %vm183, %v3165, -inf
        %3216 = vmax.xlane.f32.xlu0 %v3215
        %v3217 = vpop.xlane.xlu0 %3216
        %v3218 = vsel %vm183, %v3170, -inf
        %3219 = vmax.xlane.f32.xlu0 %v3218
        %v3220 = vpop.xlane.xlu0 %3219
        %v3221 = vsub.f32 %v3095, %v3175
        %v3222 = vsub.f32 %v3100, %v3178
        %v3223 = vsub.f32 %v3105, %v3181
        %v3224 = vsub.f32 %v3110, %v3184
        %v3225 = vsub.f32 %v3115, %v3187
        %v3226 = vsub.f32 %v3120, %v3190
        %v3227 = vsub.f32 %v3125, %v3193
        %v3228 = vsub.f32 %v3130, %v3196
        %v3229 = vsub.f32 %v3135, %v3199
        %v3230 = vsub.f32 %v3140, %v3202
        %v3231 = vsub.f32 %v3145, %v3205
        %v3232 = vsub.f32 %v3150, %v3208
        %v3233 = vsub.f32 %v3155, %v3211
        %v3234 = vsub.f32 %v3160, %v3214
        %v3235 = vsub.f32 %v3165, %v3217
        %v3236 = vsub.f32 %v3170, %v3220
        %v3237 = vmul.f32 %v3221, 1.442695
        %v3238 = vpow.pop %v3237
        %v3239 = vmul.f32 %v3222, 1.442695
        %v3240 = vpow.pop %v3239
        %v3241 = vmul.f32 %v3223, 1.442695
        %v3242 = vpow.pop %v3241
        %v3243 = vmul.f32 %v3224, 1.442695
        %v3244 = vpow.pop %v3243
        %v3245 = vmul.f32 %v3225, 1.442695
        %v3246 = vpow.pop %v3245
        %v3247 = vmul.f32 %v3226, 1.442695
        %v3248 = vpow.pop %v3247
        %v3249 = vmul.f32 %v3227, 1.442695
        %v3250 = vpow.pop %v3249
        %v3251 = vmul.f32 %v3228, 1.442695
        %v3252 = vpow.pop %v3251
        %v3253 = vmul.f32 %v3229, 1.442695
        %v3254 = vpow.pop %v3253
        %v3255 = vmul.f32 %v3230, 1.442695
        %v3256 = vpow.pop %v3255
        %v3257 = vmul.f32 %v3231, 1.442695
        %v3258 = vpow.pop %v3257
        %v3259 = vmul.f32 %v3232, 1.442695
        %v3260 = vpow.pop %v3259
        %v3261 = vmul.f32 %v3233, 1.442695
        %v3262 = vpow.pop %v3261
        %v3263 = vmul.f32 %v3234, 1.442695
        %v3264 = vpow.pop %v3263
        %v3265 = vmul.f32 %v3235, 1.442695
        %v3266 = vpow.pop %v3265
        %v3267 = vmul.f32 %v3236, 1.442695
        %v3268 = vpow.pop %v3267
        %v3270 = vsel %vm183, %v3238, 0
        %v3273 = vsel %vm183, %v3240, 0
        %v3276 = vsel %vm183, %v3242, 0
        %v3279 = vsel %vm183, %v3244, 0
        %v3282 = vsel %vm183, %v3246, 0
        %v3285 = vsel %vm183, %v3248, 0
        %v3288 = vsel %vm183, %v3250, 0
        %v3291 = vsel %vm183, %v3252, 0
        %v3294 = vsel %vm183, %v3254, 0
        %v3297 = vsel %vm183, %v3256, 0
        %v3300 = vsel %vm183, %v3258, 0
        %v3303 = vsel %vm183, %v3260, 0
        %v3306 = vsel %vm183, %v3262, 0
        %v3309 = vsel %vm183, %v3264, 0
        %v3312 = vsel %vm183, %v3266, 0
        %v3315 = vsel %vm183, %v3268, 0
        %3317 = vmatprep.subr.mxu0 0.0
        %3318 = vmatpush1.msra.mxu0 %v1594
        %3319 = vmatprep.subr.mxu0 0.0
        %3320 = vmatpush1.msra.mxu0 %v1595
        %3321 = vmatprep.subr.mxu0 0.0
        %3322 = vmatpush1.msra.mxu0 0.0
        %3323 = vmatprep.subr.mxu0 0.0
        %3324 = vmatpush1.msra.mxu0 0.0
        %3325 = vmatprep.subr.mxu0 0.0
        %3326 = vmatpush1.msra.mxu0 0.0
        %3327 = vmatprep.subr.mxu0 0.0
        %3328 = vmatpush1.msra.mxu0 0.0
        %3329 = vmatprep.subr.mxu0 0.0
        %3330 = vmatpush1.msra.mxu0 0.0
        %3331 = vmatprep.subr.mxu0 0.0
        %3332 = vmatpush1.msra.mxu0 0.0
        %3333 = vmatprep.subr.mxu0 0.0
        %3334 = vmatpush1.msra.mxu0 0.0
        %3335 = vmatprep.subr.mxu0 0.0
        %3336 = vmatpush1.msra.mxu0 0.0
        %3337 = vmatprep.subr.mxu0 0.0
        %3338 = vmatpush1.msra.mxu0 0.0
        %3339 = vmatprep.subr.mxu0 0.0
        %3340 = vmatpush1.msra.mxu0 0.0
        %3341 = vmatprep.subr.mxu0 0.0
        %3342 = vmatpush1.msra.mxu0 0.0
        %3343 = vmatprep.subr.mxu0 0.0
        %3344 = vmatpush1.msra.mxu0 0.0
        %3345 = vmatprep.subr.mxu0 0.0
        %3346 = vmatpush1.msra.mxu0 0.0
        %3347 = vmatprep.subr.mxu0 0.0
        %3348 = vmatpush1.msra.mxu0 0.0
        %3349 = vmatprep.subr.mxu0 0.0
        %3350 = vmatpush1.msra.mxu0 0.0
        %3351 = vmatprep.subr.mxu0 0.0
        %3352 = vmatpush1.msra.mxu0 0.0
        %3353 = vmatprep.subr.mxu0 0.0
        %3354 = vmatpush1.msra.mxu0 0.0
        %3355 = vmatprep.subr.mxu0 0.0
        %3356 = vmatpush1.msra.mxu0 0.0
        %3357 = vmatprep.subr.mxu0 0.0
        %3358 = vmatpush1.msra.mxu0 0.0
        %3359 = vmatprep.subr.mxu0 0.0
        %3360 = vmatpush1.msra.mxu0 0.0
        %3361 = vmatprep.subr.mxu0 0.0
        %3362 = vmatpush1.msra.mxu0 0.0
        %3363 = vmatprep.subr.mxu0 0.0
        %3364 = vmatpush1.msra.mxu0 0.0
        %3365 = vmatprep.subr.mxu0 0.0
        %3366 = vmatpush1.msra.mxu0 0.0
        %3367 = vmatprep.subr.mxu0 0.0
        %3368 = vmatpush1.msra.mxu0 0.0
        %3369 = vmatprep.subr.mxu0 0.0
        %3370 = vmatpush1.msra.mxu0 0.0
        %3371 = vmatprep.subr.mxu0 0.0
        %3372 = vmatpush1.msra.mxu0 0.0
        %3373 = vmatprep.subr.mxu0 0.0
        %3374 = vmatpush1.msra.mxu0 0.0
        %3375 = vmatprep.subr.mxu0 0.0
        %3376 = vmatpush1.msra.mxu0 0.0
        %3377 = vmatprep.subr.mxu0 0.0
        %3378 = vmatpush1.msra.mxu0 0.0
        %3379 = vmatprep.subr.mxu0 0.0
        %3380 = vmatpush1.msra.mxu0 0.0
        %3381 = vmatprep.mubr.f32.mxu0 0.0
        %3382 = vmatmul.mubr.f32.gmra.mrb[0].mxu0 %v3270
        %v3383 = vpop.f32.mrb[0].mxu0
        %v3384 = vadd.f32 0.0, %v3383
        %v3385 = vpop.f32.mrb[0].mxu0
        %3386 = vmatprep.mubr.f32.mxu0 0.0
        %3387 = vmatmul.mubr.f32.gmra.mrb[0].mxu0 %v3273
        %v3388 = vpop.f32.mrb[0].mxu0
        %v3389 = vadd.f32 0.0, %v3388
        %v3390 = vpop.f32.mrb[0].mxu0
        %3391 = vmatprep.mubr.f32.mxu0 0.0
        %3392 = vmatmul.mubr.f32.gmra.mrb[0].mxu0 %v3276
        %v3393 = vpop.f32.mrb[0].mxu0
        %v3394 = vadd.f32 0.0, %v3393
        %v3395 = vpop.f32.mrb[0].mxu0
        %3396 = vmatprep.mubr.f32.mxu0 0.0
        %3397 = vmatmul.mubr.f32.gmra.mrb[0].mxu0 %v3279
        %v3398 = vpop.f32.mrb[0].mxu0
        %v3399 = vadd.f32 0.0, %v3398
        %v3400 = vpop.f32.mrb[0].mxu0
        %3401 = vmatprep.mubr.f32.mxu0 0.0
        %3402 = vmatmul.mubr.f32.gmra.mrb[0].mxu0 %v3282
        %v3403 = vpop.f32.mrb[0].mxu0
        %v3404 = vadd.f32 0.0, %v3403
        %v3405 = vpop.f32.mrb[0].mxu0
        %3406 = vmatprep.mubr.f32.mxu0 0.0
        %3407 = vmatmul.mubr.f32.gmra.mrb[0].mxu0 %v3285
        %v3408 = vpop.f32.mrb[0].mxu0
        %v3409 = vadd.f32 0.0, %v3408
        %v3410 = vpop.f32.mrb[0].mxu0
        %3411 = vmatprep.mubr.f32.mxu0 0.0
        %3412 = vmatmul.mubr.f32.gmra.mrb[0].mxu0 %v3288
        %v3413 = vpop.f32.mrb[0].mxu0
        %v3414 = vadd.f32 0.0, %v3413
        %v3415 = vpop.f32.mrb[0].mxu0
        %3416 = vmatprep.mubr.f32.mxu0 0.0
        %3417 = vmatmul.mubr.f32.gmra.mrb[0].mxu0 %v3291
        %v3418 = vpop.f32.mrb[0].mxu0
        %v3419 = vadd.f32 0.0, %v3418
        %v3420 = vpop.f32.mrb[0].mxu0
        %3421 = vmatprep.mubr.f32.mxu0 0.0
        %3422 = vmatmul.mubr.f32.gmra.mrb[0].mxu0 %v3294
        %v3423 = vpop.f32.mrb[0].mxu0
        %v3424 = vadd.f32 0.0, %v3423
        %v3425 = vpop.f32.mrb[0].mxu0
        %3426 = vmatprep.mubr.f32.mxu0 0.0
        %3427 = vmatmul.mubr.f32.gmra.mrb[0].mxu0 %v3297
        %v3428 = vpop.f32.mrb[0].mxu0
        %v3429 = vadd.f32 0.0, %v3428
        %v3430 = vpop.f32.mrb[0].mxu0
        %3431 = vmatprep.mubr.f32.mxu0 0.0
        %3432 = vmatmul.mubr.f32.gmra.mrb[0].mxu0 %v3300
        %v3433 = vpop.f32.mrb[0].mxu0
        %v3434 = vadd.f32 0.0, %v3433
        %v3435 = vpop.f32.mrb[0].mxu0
        %3436 = vmatprep.mubr.f32.mxu0 0.0
        %3437 = vmatmul.mubr.f32.gmra.mrb[0].mxu0 %v3303
        %v3438 = vpop.f32.mrb[0].mxu0
        %v3439 = vadd.f32 0.0, %v3438
        %v3440 = vpop.f32.mrb[0].mxu0
        %3441 = vmatprep.mubr.f32.mxu0 0.0
        %3442 = vmatmul.mubr.f32.gmra.mrb[0].mxu0 %v3306
        %v3443 = vpop.f32.mrb[0].mxu0
        %v3444 = vadd.f32 0.0, %v3443
        %v3445 = vpop.f32.mrb[0].mxu0
        %3446 = vmatprep.mubr.f32.mxu0 0.0
        %3447 = vmatmul.mubr.f32.gmra.mrb[0].mxu0 %v3309
        %v3448 = vpop.f32.mrb[0].mxu0
        %v3449 = vadd.f32 0.0, %v3448
        %v3450 = vpop.f32.mrb[0].mxu0
        %3451 = vmatprep.mubr.f32.mxu0 0.0
        %3452 = vmatmul.mubr.f32.gmra.mrb[0].mxu0 %v3312
        %v3453 = vpop.f32.mrb[0].mxu0
        %v3454 = vadd.f32 0.0, %v3453
        %v3455 = vpop.f32.mrb[0].mxu0
        %3456 = vmatprep.mubr.f32.mxu0 0.0
        %3457 = vmatmul.mubr.f32.gmra.mrb[0].mxu0 %v3315
        %v3458 = vpop.f32.mrb[0].mxu0
        %v3459 = vadd.f32 0.0, %v3458
        %v3460 = vpop.f32.mrb[0].mxu0
        %3461 = vdwg.mxu0
        %v3462 = vrcp.pop %v3384
        %v3463 = vrcp.pop %v3389
        %v3464 = vrcp.pop %v3394
        %v3465 = vrcp.pop %v3399
        %v3466 = vrcp.pop %v3404
        %v3467 = vrcp.pop %v3409
        %v3468 = vrcp.pop %v3414
        %v3469 = vrcp.pop %v3419
        %v3470 = vrcp.pop %v3424
        %v3471 = vrcp.pop %v3429
        %v3472 = vrcp.pop %v3434
        %v3473 = vrcp.pop %v3439
        %v3474 = vrcp.pop %v3444
        %v3475 = vrcp.pop %v3449
        %v3476 = vrcp.pop %v3454
        %v3477 = vrcp.pop %v3459
        %v3478 = vmul.f32 %v3238, %v3462
        %v3479 = vmul.f32 %v3240, %v3463
        %v3480 = vmul.f32 %v3242, %v3464
        %v3481 = vmul.f32 %v3244, %v3465
        %v3482 = vmul.f32 %v3246, %v3466
        %v3483 = vmul.f32 %v3248, %v3467
        %v3484 = vmul.f32 %v3250, %v3468
        %v3485 = vmul.f32 %v3252, %v3469
        %v3486 = vmul.f32 %v3254, %v3470
        %v3487 = vmul.f32 %v3256, %v3471
        %v3488 = vmul.f32 %v3258, %v3472
        %v3489 = vmul.f32 %v3260, %v3473
        %v3490 = vmul.f32 %v3262, %v3474
        %v3491 = vmul.f32 %v3264, %v3475
        %v3492 = vmul.f32 %v3266, %v3476
        %v3493 = vmul.f32 %v3268, %v3477
        %v3494 = vld [vmem:[#allocation2 + $0x158] sm:$0xff]
        %v3495 = vld [vmem:[#allocation2 + $0x160] sm:$0xff]
        %v3496 = vld [vmem:[#allocation2 + $0x168] sm:$0xff]
        %v3497 = vld [vmem:[#allocation2 + $0x170] sm:$0xff]
        %3498 = vmatprep.subr.mxu0 0.0
        %3499 = vmatpush1.msra.mxu0 %v3496
        %3500 = vmatprep.subr.mxu0 0.0
        %3501 = vmatpush1.msra.mxu0 %v3497
        %3502 = vmatprep.subr.mxu0 0.0
        %3503 = vmatpush1.msra.mxu0 0.0
        %3504 = vmatprep.subr.mxu0 0.0
        %3505 = vmatpush1.msra.mxu0 0.0
        %3506 = vmatprep.subr.mxu0 0.0
        %3507 = vmatpush1.msra.mxu0 0.0
        %3508 = vmatprep.subr.mxu0 0.0
        %3509 = vmatpush1.msra.mxu0 0.0
        %3510 = vmatprep.subr.mxu0 0.0
        %3511 = vmatpush1.msra.mxu0 0.0
        %3512 = vmatprep.subr.mxu0 0.0
        %3513 = vmatpush1.msra.mxu0 0.0
        %3514 = vmatprep.subr.mxu0 0.0
        %3515 = vmatpush1.msra.mxu0 0.0
        %3516 = vmatprep.subr.mxu0 0.0
        %3517 = vmatpush1.msra.mxu0 0.0
        %3518 = vmatprep.subr.mxu0 0.0
        %3519 = vmatpush1.msra.mxu0 0.0
        %3520 = vmatprep.subr.mxu0 0.0
        %3521 = vmatpush1.msra.mxu0 0.0
        %3522 = vmatprep.subr.mxu0 0.0
        %3523 = vmatpush1.msra.mxu0 0.0
        %3524 = vmatprep.subr.mxu0 0.0
        %3525 = vmatpush1.msra.mxu0 0.0
        %3526 = vmatprep.subr.mxu0 0.0
        %3527 = vmatpush1.msra.mxu0 0.0
        %3528 = vmatprep.subr.mxu0 0.0
        %3529 = vmatpush1.msra.mxu0 0.0
        %3530 = vmatprep.subr.mxu0 0.0
        %3531 = vmatpush1.msra.mxu0 0.0
        %3532 = vmatprep.subr.mxu0 0.0
        %3533 = vmatpush1.msra.mxu0 0.0
        %3534 = vmatprep.subr.mxu0 0.0
        %3535 = vmatpush1.msra.mxu0 0.0
        %3536 = vmatprep.subr.mxu0 0.0
        %3537 = vmatpush1.msra.mxu0 0.0
        %3538 = vmatprep.subr.mxu0 0.0
        %3539 = vmatpush1.msra.mxu0 0.0
        %3540 = vmatprep.subr.mxu0 0.0
        %3541 = vmatpush1.msra.mxu0 0.0
        %3542 = vmatprep.subr.mxu0 0.0
        %3543 = vmatpush1.msra.mxu0 0.0
        %3544 = vmatprep.subr.mxu0 0.0
        %3545 = vmatpush1.msra.mxu0 0.0
        %3546 = vmatprep.subr.mxu0 0.0
        %3547 = vmatpush1.msra.mxu0 0.0
        %3548 = vmatprep.subr.mxu0 0.0
        %3549 = vmatpush1.msra.mxu0 0.0
        %3550 = vmatprep.subr.mxu0 0.0
        %3551 = vmatpush1.msra.mxu0 0.0
        %3552 = vmatprep.subr.mxu0 0.0
        %3553 = vmatpush1.msra.mxu0 0.0
        %3554 = vmatprep.subr.mxu0 0.0
        %3555 = vmatpush1.msra.mxu0 0.0
        %3556 = vmatprep.subr.mxu0 0.0
        %3557 = vmatpush1.msra.mxu0 0.0
        %3558 = vmatprep.subr.mxu0 0.0
        %3559 = vmatpush1.msra.mxu0 0.0
        %3560 = vmatprep.subr.mxu0 0.0
        %3561 = vmatpush1.msra.mxu0 0.0
        %3562 = vmatprep.mubr.f32.mxu0 0.0
        %3563 = vmatmul.mubr.f32.gmra.mrb[0].mxu0 %v2581
        %v3564 = vpop.f32.mrb[0].mxu0
        %v3565 = vadd.f32 0.0, %v3564
        %v3566 = vpop.f32.mrb[0].mxu0
        %3567 = vmatprep.mubr.f32.mxu0 0.0
        %3568 = vmatmul.mubr.f32.gmra.mrb[0].mxu0 %v2584
        %v3569 = vpop.f32.mrb[0].mxu0
        %v3570 = vadd.f32 0.0, %v3569
        %v3571 = vpop.f32.mrb[0].mxu0
        %3572 = vmatprep.mubr.f32.mxu0 0.0
        %3573 = vmatmul.mubr.f32.gmra.mrb[0].mxu0 %v2587
        %v3574 = vpop.f32.mrb[0].mxu0
        %v3575 = vadd.f32 0.0, %v3574
        %v3576 = vpop.f32.mrb[0].mxu0
        %3577 = vmatprep.mubr.f32.mxu0 0.0
        %3578 = vmatmul.mubr.f32.gmra.mrb[0].mxu0 %v2590
        %v3579 = vpop.f32.mrb[0].mxu0
        %v3580 = vadd.f32 0.0, %v3579
        %v3581 = vpop.f32.mrb[0].mxu0
        %3582 = vmatprep.mubr.f32.mxu0 0.0
        %3583 = vmatmul.mubr.f32.gmra.mrb[0].mxu0 %v2593
        %v3584 = vpop.f32.mrb[0].mxu0
        %v3585 = vadd.f32 0.0, %v3584
        %v3586 = vpop.f32.mrb[0].mxu0
        %3587 = vmatprep.mubr.f32.mxu0 0.0
        %3588 = vmatmul.mubr.f32.gmra.mrb[0].mxu0 %v2596
        %v3589 = vpop.f32.mrb[0].mxu0
        %v3590 = vadd.f32 0.0, %v3589
        %v3591 = vpop.f32.mrb[0].mxu0
        %3592 = vmatprep.mubr.f32.mxu0 0.0
        %3593 = vmatmul.mubr.f32.gmra.mrb[0].mxu0 %v2599
        %v3594 = vpop.f32.mrb[0].mxu0
        %v3595 = vadd.f32 0.0, %v3594
        %v3596 = vpop.f32.mrb[0].mxu0
        %3597 = vmatprep.mubr.f32.mxu0 0.0
        %3598 = vmatmul.mubr.f32.gmra.mrb[0].mxu0 %v2602
        %v3599 = vpop.f32.mrb[0].mxu0
        %v3600 = vadd.f32 0.0, %v3599
        %v3601 = vpop.f32.mrb[0].mxu0
        %3602 = vmatprep.mubr.f32.mxu0 0.0
        %3603 = vmatmul.mubr.f32.gmra.mrb[0].mxu0 %v2605
        %v3604 = vpop.f32.mrb[0].mxu0
        %v3605 = vadd.f32 0.0, %v3604
        %v3606 = vpop.f32.mrb[0].mxu0
        %3607 = vmatprep.mubr.f32.mxu0 0.0
        %3608 = vmatmul.mubr.f32.gmra.mrb[0].mxu0 %v2608
        %v3609 = vpop.f32.mrb[0].mxu0
        %v3610 = vadd.f32 0.0, %v3609
        %v3611 = vpop.f32.mrb[0].mxu0
        %3612 = vmatprep.mubr.f32.mxu0 0.0
        %3613 = vmatmul.mubr.f32.gmra.mrb[0].mxu0 %v2611
        %v3614 = vpop.f32.mrb[0].mxu0
        %v3615 = vadd.f32 0.0, %v3614
        %v3616 = vpop.f32.mrb[0].mxu0
        %3617 = vmatprep.mubr.f32.mxu0 0.0
        %3618 = vmatmul.mubr.f32.gmra.mrb[0].mxu0 %v2614
        %v3619 = vpop.f32.mrb[0].mxu0
        %v3620 = vadd.f32 0.0, %v3619
        %v3621 = vpop.f32.mrb[0].mxu0
        %3622 = vmatprep.mubr.f32.mxu0 0.0
        %3623 = vmatmul.mubr.f32.gmra.mrb[0].mxu0 %v2617
        %v3624 = vpop.f32.mrb[0].mxu0
        %v3625 = vadd.f32 0.0, %v3624
        %v3626 = vpop.f32.mrb[0].mxu0
        %3627 = vmatprep.mubr.f32.mxu0 0.0
        %3628 = vmatmul.mubr.f32.gmra.mrb[0].mxu0 %v2620
        %v3629 = vpop.f32.mrb[0].mxu0
        %v3630 = vadd.f32 0.0, %v3629
        %v3631 = vpop.f32.mrb[0].mxu0
        %3632 = vmatprep.mubr.f32.mxu0 0.0
        %3633 = vmatmul.mubr.f32.gmra.mrb[0].mxu0 %v2623
        %v3634 = vpop.f32.mrb[0].mxu0
        %v3635 = vadd.f32 0.0, %v3634
        %v3636 = vpop.f32.mrb[0].mxu0
        %3637 = vmatprep.mubr.f32.mxu0 0.0
        %3638 = vmatmul.mubr.f32.gmra.mrb[0].mxu0 %v2626
        %v3639 = vpop.f32.mrb[0].mxu0
        %v3640 = vadd.f32 0.0, %v3639
        %v3641 = vpop.f32.mrb[0].mxu0
        %3642 = vdwg.mxu0
        %3643 = vmatprep.subr.mxu0 0.0
        %3644 = vmatpush1.msra.mxu0 %v3494
        %3645 = vmatprep.subr.mxu0 0.0
        %3646 = vmatpush1.msra.mxu0 %v3495
        %3647 = vmatprep.subr.mxu0 0.0
        %3648 = vmatpush1.msra.mxu0 0.0
        %3649 = vmatprep.subr.mxu0 0.0
        %3650 = vmatpush1.msra.mxu0 0.0
        %3651 = vmatprep.subr.mxu0 0.0
        %3652 = vmatpush1.msra.mxu0 0.0
        %3653 = vmatprep.subr.mxu0 0.0
        %3654 = vmatpush1.msra.mxu0 0.0
        %3655 = vmatprep.subr.mxu0 0.0
        %3656 = vmatpush1.msra.mxu0 0.0
        %3657 = vmatprep.subr.mxu0 0.0
        %3658 = vmatpush1.msra.mxu0 0.0
        %3659 = vmatprep.subr.mxu0 0.0
        %3660 = vmatpush1.msra.mxu0 0.0
        %3661 = vmatprep.subr.mxu0 0.0
        %3662 = vmatpush1.msra.mxu0 0.0
        %3663 = vmatprep.subr.mxu0 0.0
        %3664 = vmatpush1.msra.mxu0 0.0
        %3665 = vmatprep.subr.mxu0 0.0
        %3666 = vmatpush1.msra.mxu0 0.0
        %3667 = vmatprep.subr.mxu0 0.0
        %3668 = vmatpush1.msra.mxu0 0.0
        %3669 = vmatprep.subr.mxu0 0.0
        %3670 = vmatpush1.msra.mxu0 0.0
        %3671 = vmatprep.subr.mxu0 0.0
        %3672 = vmatpush1.msra.mxu0 0.0
        %3673 = vmatprep.subr.mxu0 0.0
        %3674 = vmatpush1.msra.mxu0 0.0
        %3675 = vmatprep.subr.mxu0 0.0
        %3676 = vmatpush1.msra.mxu0 0.0
        %3677 = vmatprep.subr.mxu0 0.0
        %3678 = vmatpush1.msra.mxu0 0.0
        %3679 = vmatprep.subr.mxu0 0.0
        %3680 = vmatpush1.msra.mxu0 0.0
        %3681 = vmatprep.subr.mxu0 0.0
        %3682 = vmatpush1.msra.mxu0 0.0
        %3683 = vmatprep.subr.mxu0 0.0
        %3684 = vmatpush1.msra.mxu0 0.0
        %3685 = vmatprep.subr.mxu0 0.0
        %3686 = vmatpush1.msra.mxu0 0.0
        %3687 = vmatprep.subr.mxu0 0.0
        %3688 = vmatpush1.msra.mxu0 0.0
        %3689 = vmatprep.subr.mxu0 0.0
        %3690 = vmatpush1.msra.mxu0 0.0
        %3691 = vmatprep.subr.mxu0 0.0
        %3692 = vmatpush1.msra.mxu0 0.0
        %3693 = vmatprep.subr.mxu0 0.0
        %3694 = vmatpush1.msra.mxu0 0.0
        %3695 = vmatprep.subr.mxu0 0.0
        %3696 = vmatpush1.msra.mxu0 0.0
        %3697 = vmatprep.subr.mxu0 0.0
        %3698 = vmatpush1.msra.mxu0 0.0
        %3699 = vmatprep.subr.mxu0 0.0
        %3700 = vmatpush1.msra.mxu0 0.0
        %3701 = vmatprep.subr.mxu0 0.0
        %3702 = vmatpush1.msra.mxu0 0.0
        %3703 = vmatprep.subr.mxu0 0.0
        %3704 = vmatpush1.msra.mxu0 0.0
        %3705 = vmatprep.subr.mxu0 0.0
        %3706 = vmatpush1.msra.mxu0 0.0
        %3707 = vmatprep.mubr.f32.mxu0 0.0
        %3708 = vmatmul.mubr.f32.gmra.mrb[0].mxu0 %v1829
        %v3709 = vpop.f32.mrb[0].mxu0
        %v3710 = vadd.f32 %v3565, %v3709
        %v3711 = vpop.f32.mrb[0].mxu0
        %3712 = vmatprep.mubr.f32.mxu0 0.0
        %3713 = vmatmul.mubr.f32.gmra.mrb[0].mxu0 %v1832
        %v3714 = vpop.f32.mrb[0].mxu0
        %v3715 = vadd.f32 %v3570, %v3714
        %v3716 = vpop.f32.mrb[0].mxu0
        %3717 = vmatprep.mubr.f32.mxu0 0.0
        %3718 = vmatmul.mubr.f32.gmra.mrb[0].mxu0 %v1835
        %v3719 = vpop.f32.mrb[0].mxu0
        %v3720 = vadd.f32 %v3575, %v3719
        %v3721 = vpop.f32.mrb[0].mxu0
        %3722 = vmatprep.mubr.f32.mxu0 0.0
        %3723 = vmatmul.mubr.f32.gmra.mrb[0].mxu0 %v1838
        %v3724 = vpop.f32.mrb[0].mxu0
        %v3725 = vadd.f32 %v3580, %v3724
        %v3726 = vpop.f32.mrb[0].mxu0
        %3727 = vmatprep.mubr.f32.mxu0 0.0
        %3728 = vmatmul.mubr.f32.gmra.mrb[0].mxu0 %v1841
        %v3729 = vpop.f32.mrb[0].mxu0
        %v3730 = vadd.f32 %v3585, %v3729
        %v3731 = vpop.f32.mrb[0].mxu0
        %3732 = vmatprep.mubr.f32.mxu0 0.0
        %3733 = vmatmul.mubr.f32.gmra.mrb[0].mxu0 %v1844
        %v3734 = vpop.f32.mrb[0].mxu0
        %v3735 = vadd.f32 %v3590, %v3734
        %v3736 = vpop.f32.mrb[0].mxu0
        %3737 = vmatprep.mubr.f32.mxu0 0.0
        %3738 = vmatmul.mubr.f32.gmra.mrb[0].mxu0 %v1847
        %v3739 = vpop.f32.mrb[0].mxu0
        %v3740 = vadd.f32 %v3595, %v3739
        %v3741 = vpop.f32.mrb[0].mxu0
        %3742 = vmatprep.mubr.f32.mxu0 0.0
        %3743 = vmatmul.mubr.f32.gmra.mrb[0].mxu0 %v1850
        %v3744 = vpop.f32.mrb[0].mxu0
        %v3745 = vadd.f32 %v3600, %v3744
        %v3746 = vpop.f32.mrb[0].mxu0
        %3747 = vmatprep.mubr.f32.mxu0 0.0
        %3748 = vmatmul.mubr.f32.gmra.mrb[0].mxu0 %v1853
        %v3749 = vpop.f32.mrb[0].mxu0
        %v3750 = vadd.f32 %v3605, %v3749
        %v3751 = vpop.f32.mrb[0].mxu0
        %3752 = vmatprep.mubr.f32.mxu0 0.0
        %3753 = vmatmul.mubr.f32.gmra.mrb[0].mxu0 %v1856
        %v3754 = vpop.f32.mrb[0].mxu0
        %v3755 = vadd.f32 %v3610, %v3754
        %v3756 = vpop.f32.mrb[0].mxu0
        %3757 = vmatprep.mubr.f32.mxu0 0.0
        %3758 = vmatmul.mubr.f32.gmra.mrb[0].mxu0 %v1859
        %v3759 = vpop.f32.mrb[0].mxu0
        %v3760 = vadd.f32 %v3615, %v3759
        %v3761 = vpop.f32.mrb[0].mxu0
        %3762 = vmatprep.mubr.f32.mxu0 0.0
        %3763 = vmatmul.mubr.f32.gmra.mrb[0].mxu0 %v1862
        %v3764 = vpop.f32.mrb[0].mxu0
        %v3765 = vadd.f32 %v3620, %v3764
        %v3766 = vpop.f32.mrb[0].mxu0
        %3767 = vmatprep.mubr.f32.mxu0 0.0
        %3768 = vmatmul.mubr.f32.gmra.mrb[0].mxu0 %v1865
        %v3769 = vpop.f32.mrb[0].mxu0
        %v3770 = vadd.f32 %v3625, %v3769
        %v3771 = vpop.f32.mrb[0].mxu0
        %3772 = vmatprep.mubr.f32.mxu0 0.0
        %3773 = vmatmul.mubr.f32.gmra.mrb[0].mxu0 %v1868
        %v3774 = vpop.f32.mrb[0].mxu0
        %v3775 = vadd.f32 %v3630, %v3774
        %v3776 = vpop.f32.mrb[0].mxu0
        %3777 = vmatprep.mubr.f32.mxu0 0.0
        %3778 = vmatmul.mubr.f32.gmra.mrb[0].mxu0 %v1871
        %v3779 = vpop.f32.mrb[0].mxu0
        %v3780 = vadd.f32 %v3635, %v3779
        %v3781 = vpop.f32.mrb[0].mxu0
        %3782 = vmatprep.mubr.f32.mxu0 0.0
        %3783 = vmatmul.mubr.f32.gmra.mrb[0].mxu0 %v1874
        %v3784 = vpop.f32.mrb[0].mxu0
        %v3785 = vadd.f32 %v3640, %v3784
        %v3786 = vpop.f32.mrb[0].mxu0
        %3787 = vdwg.mxu0
        %v3788 = vld [vmem:[#allocation2 + $0x178] sm:$0xff]
        %v3789 = vld [vmem:[#allocation2 + $0x180] sm:$0xff]
        %v3791 = vsel %vm183, %v3478, 0
        %v3794 = vsel %vm183, %v3479, 0
        %v3797 = vsel %vm183, %v3480, 0
        %v3800 = vsel %vm183, %v3481, 0
        %v3803 = vsel %vm183, %v3482, 0
        %v3806 = vsel %vm183, %v3483, 0
        %v3809 = vsel %vm183, %v3484, 0
        %v3812 = vsel %vm183, %v3485, 0
        %v3815 = vsel %vm183, %v3486, 0
        %v3818 = vsel %vm183, %v3487, 0
        %v3821 = vsel %vm183, %v3488, 0
        %v3824 = vsel %vm183, %v3489, 0
        %v3827 = vsel %vm183, %v3490, 0
        %v3830 = vsel %vm183, %v3491, 0
        %v3833 = vsel %vm183, %v3492, 0
        %v3836 = vsel %vm183, %v3493, 0
        %3838 = vmatprep.subr.mxu0 0.0
        %3839 = vmatpush1.msra.mxu0 %v3788
        %3840 = vmatprep.subr.mxu0 0.0
        %3841 = vmatpush1.msra.mxu0 %v3789
        %3842 = vmatprep.subr.mxu0 0.0
        %3843 = vmatpush1.msra.mxu0 0.0
        %3844 = vmatprep.subr.mxu0 0.0
        %3845 = vmatpush1.msra.mxu0 0.0
        %3846 = vmatprep.subr.mxu0 0.0
        %3847 = vmatpush1.msra.mxu0 0.0
        %3848 = vmatprep.subr.mxu0 0.0
        %3849 = vmatpush1.msra.mxu0 0.0
        %3850 = vmatprep.subr.mxu0 0.0
        %3851 = vmatpush1.msra.mxu0 0.0
        %3852 = vmatprep.subr.mxu0 0.0
        %3853 = vmatpush1.msra.mxu0 0.0
        %3854 = vmatprep.subr.mxu0 0.0
        %3855 = vmatpush1.msra.mxu0 0.0
        %3856 = vmatprep.subr.mxu0 0.0
        %3857 = vmatpush1.msra.mxu0 0.0
        %3858 = vmatprep.subr.mxu0 0.0
        %3859 = vmatpush1.msra.mxu0 0.0
        %3860 = vmatprep.subr.mxu0 0.0
        %3861 = vmatpush1.msra.mxu0 0.0
        %3862 = vmatprep.subr.mxu0 0.0
        %3863 = vmatpush1.msra.mxu0 0.0
        %3864 = vmatprep.subr.mxu0 0.0
        %3865 = vmatpush1.msra.mxu0 0.0
        %3866 = vmatprep.subr.mxu0 0.0
        %3867 = vmatpush1.msra.mxu0 0.0
        %3868 = vmatprep.subr.mxu0 0.0
        %3869 = vmatpush1.msra.mxu0 0.0
        %3870 = vmatprep.subr.mxu0 0.0
        %3871 = vmatpush1.msra.mxu0 0.0
        %3872 = vmatprep.subr.mxu0 0.0
        %3873 = vmatpush1.msra.mxu0 0.0
        %3874 = vmatprep.subr.mxu0 0.0
        %3875 = vmatpush1.msra.mxu0 0.0
        %3876 = vmatprep.subr.mxu0 0.0
        %3877 = vmatpush1.msra.mxu0 0.0
        %3878 = vmatprep.subr.mxu0 0.0
        %3879 = vmatpush1.msra.mxu0 0.0
        %3880 = vmatprep.subr.mxu0 0.0
        %3881 = vmatpush1.msra.mxu0 0.0
        %3882 = vmatprep.subr.mxu0 0.0
        %3883 = vmatpush1.msra.mxu0 0.0
        %3884 = vmatprep.subr.mxu0 0.0
        %3885 = vmatpush1.msra.mxu0 0.0
        %3886 = vmatprep.subr.mxu0 0.0
        %3887 = vmatpush1.msra.mxu0 0.0
        %3888 = vmatprep.subr.mxu0 0.0
        %3889 = vmatpush1.msra.mxu0 0.0
        %3890 = vmatprep.subr.mxu0 0.0
        %3891 = vmatpush1.msra.mxu0 0.0
        %3892 = vmatprep.subr.mxu0 0.0
        %3893 = vmatpush1.msra.mxu0 0.0
        %3894 = vmatprep.subr.mxu0 0.0
        %3895 = vmatpush1.msra.mxu0 0.0
        %3896 = vmatprep.subr.mxu0 0.0
        %3897 = vmatpush1.msra.mxu0 0.0
        %3898 = vmatprep.subr.mxu0 0.0
        %3899 = vmatpush1.msra.mxu0 0.0
        %3900 = vmatprep.subr.mxu0 0.0
        %3901 = vmatpush1.msra.mxu0 0.0
        %3902 = vmatprep.mubr.f32.mxu0 0.0
        %3903 = vmatmul.mubr.f32.gmra.mrb[0].mxu0 %v3791
        %v3904 = vpop.f32.mrb[0].mxu0
        %v3905 = vadd.f32 0.0, %v3904
        %v3906 = vpop.f32.mrb[0].mxu0
        %3907 = vmatprep.mubr.f32.mxu0 0.0
        %3908 = vmatmul.mubr.f32.gmra.mrb[0].mxu0 %v3794
        %v3909 = vpop.f32.mrb[0].mxu0
        %v3910 = vadd.f32 0.0, %v3909
        %v3911 = vpop.f32.mrb[0].mxu0
        %3912 = vmatprep.mubr.f32.mxu0 0.0
        %3913 = vmatmul.mubr.f32.gmra.mrb[0].mxu0 %v3797
        %v3914 = vpop.f32.mrb[0].mxu0
        %v3915 = vadd.f32 0.0, %v3914
        %v3916 = vpop.f32.mrb[0].mxu0
        %3917 = vmatprep.mubr.f32.mxu0 0.0
        %3918 = vmatmul.mubr.f32.gmra.mrb[0].mxu0 %v3800
        %v3919 = vpop.f32.mrb[0].mxu0
        %v3920 = vadd.f32 0.0, %v3919
        %v3921 = vpop.f32.mrb[0].mxu0
        %3922 = vmatprep.mubr.f32.mxu0 0.0
        %3923 = vmatmul.mubr.f32.gmra.mrb[0].mxu0 %v3803
        %v3924 = vpop.f32.mrb[0].mxu0
        %v3925 = vadd.f32 0.0, %v3924
        %v3926 = vpop.f32.mrb[0].mxu0
        %3927 = vmatprep.mubr.f32.mxu0 0.0
        %3928 = vmatmul.mubr.f32.gmra.mrb[0].mxu0 %v3806
        %v3929 = vpop.f32.mrb[0].mxu0
        %v3930 = vadd.f32 0.0, %v3929
        %v3931 = vpop.f32.mrb[0].mxu0
        %3932 = vmatprep.mubr.f32.mxu0 0.0
        %3933 = vmatmul.mubr.f32.gmra.mrb[0].mxu0 %v3809
        %v3934 = vpop.f32.mrb[0].mxu0
        %v3935 = vadd.f32 0.0, %v3934
        %v3936 = vpop.f32.mrb[0].mxu0
        %3937 = vmatprep.mubr.f32.mxu0 0.0
        %3938 = vmatmul.mubr.f32.gmra.mrb[0].mxu0 %v3812
        %v3939 = vpop.f32.mrb[0].mxu0
        %v3940 = vadd.f32 0.0, %v3939
        %v3941 = vpop.f32.mrb[0].mxu0
        %3942 = vmatprep.mubr.f32.mxu0 0.0
        %3943 = vmatmul.mubr.f32.gmra.mrb[0].mxu0 %v3815
        %v3944 = vpop.f32.mrb[0].mxu0
        %v3945 = vadd.f32 0.0, %v3944
        %v3946 = vpop.f32.mrb[0].mxu0
        %3947 = vmatprep.mubr.f32.mxu0 0.0
        %3948 = vmatmul.mubr.f32.gmra.mrb[0].mxu0 %v3818
        %v3949 = vpop.f32.mrb[0].mxu0
        %v3950 = vadd.f32 0.0, %v3949
        %v3951 = vpop.f32.mrb[0].mxu0
        %3952 = vmatprep.mubr.f32.mxu0 0.0
        %3953 = vmatmul.mubr.f32.gmra.mrb[0].mxu0 %v3821
        %v3954 = vpop.f32.mrb[0].mxu0
        %v3955 = vadd.f32 0.0, %v3954
        %v3956 = vpop.f32.mrb[0].mxu0
        %3957 = vmatprep.mubr.f32.mxu0 0.0
        %3958 = vmatmul.mubr.f32.gmra.mrb[0].mxu0 %v3824
        %v3959 = vpop.f32.mrb[0].mxu0
        %v3960 = vadd.f32 0.0, %v3959
        %v3961 = vpop.f32.mrb[0].mxu0
        %3962 = vmatprep.mubr.f32.mxu0 0.0
        %3963 = vmatmul.mubr.f32.gmra.mrb[0].mxu0 %v3827
        %v3964 = vpop.f32.mrb[0].mxu0
        %v3965 = vadd.f32 0.0, %v3964
        %v3966 = vpop.f32.mrb[0].mxu0
        %3967 = vmatprep.mubr.f32.mxu0 0.0
        %3968 = vmatmul.mubr.f32.gmra.mrb[0].mxu0 %v3830
        %v3969 = vpop.f32.mrb[0].mxu0
        %v3970 = vadd.f32 0.0, %v3969
        %v3971 = vpop.f32.mrb[0].mxu0
        %3972 = vmatprep.mubr.f32.mxu0 0.0
        %3973 = vmatmul.mubr.f32.gmra.mrb[0].mxu0 %v3833
        %v3974 = vpop.f32.mrb[0].mxu0
        %v3975 = vadd.f32 0.0, %v3974
        %v3976 = vpop.f32.mrb[0].mxu0
        %3977 = vmatprep.mubr.f32.mxu0 0.0
        %3978 = vmatmul.mubr.f32.gmra.mrb[0].mxu0 %v3836
        %v3979 = vpop.f32.mrb[0].mxu0
        %v3980 = vadd.f32 0.0, %v3979
        %v3981 = vpop.f32.mrb[0].mxu0
        %3982 = vdwg.mxu0
        %v3983 = vadd.f32 %v3710, %v3905
        %v3984 = vadd.f32 %v3715, %v3910
        %v3985 = vadd.f32 %v3720, %v3915
        %v3986 = vadd.f32 %v3725, %v3920
        %v3987 = vadd.f32 %v3730, %v3925
        %v3988 = vadd.f32 %v3735, %v3930
        %v3989 = vadd.f32 %v3740, %v3935
        %v3990 = vadd.f32 %v3745, %v3940
        %v3991 = vadd.f32 %v3750, %v3945
        %v3992 = vadd.f32 %v3755, %v3950
        %v3993 = vadd.f32 %v3760, %v3955
        %v3994 = vadd.f32 %v3765, %v3960
        %v3995 = vadd.f32 %v3770, %v3965
        %v3996 = vadd.f32 %v3775, %v3970
        %v3997 = vadd.f32 %v3780, %v3975
        %v3998 = vadd.f32 %v3785, %v3980
        %v3999 = vld [vmem:[#allocation2 + $0x188] sm:$0x1]
        %v4000 = vlaneseq
        %v4001 = vshrl.u32 %v4000, 7
        %v4002 = vsub.s32 0, %v4001
        %v4003 = vrot.slane %v3999, %v4002
        %v4004 = vadd.f32 %v3983, %v4003
        %v4005 = vadd.f32 %v3984, %v4003
        %v4006 = vadd.f32 %v3985, %v4003
        %v4007 = vadd.f32 %v3986, %v4003
        %v4008 = vadd.f32 %v3987, %v4003
        %v4009 = vadd.f32 %v3988, %v4003
        %v4010 = vadd.f32 %v3989, %v4003
        %v4011 = vadd.f32 %v3990, %v4003
        %v4012 = vadd.f32 %v3991, %v4003
        %v4013 = vadd.f32 %v3992, %v4003
        %v4014 = vadd.f32 %v3993, %v4003
        %v4015 = vadd.f32 %v3994, %v4003
        %v4016 = vadd.f32 %v3995, %v4003
        %v4017 = vadd.f32 %v3996, %v4003
        %v4018 = vadd.f32 %v3997, %v4003
        %v4019 = vadd.f32 %v3998, %v4003
        %v4020 = vmul.f32 %v4004, %v1202
        %v4021 = vmul.f32 %v4005, %v1207
        %v4022 = vmul.f32 %v4006, %v1212
        %v4023 = vmul.f32 %v4007, %v1217
        %v4024 = vmul.f32 %v4008, %v1222
        %v4025 = vmul.f32 %v4009, %v1227
        %v4026 = vmul.f32 %v4010, %v1232
        %v4027 = vmul.f32 %v4011, %v1237
        %v4028 = vmul.f32 %v4012, %v1242
        %v4029 = vmul.f32 %v4013, %v1247
        %v4030 = vmul.f32 %v4014, %v1252
        %v4031 = vmul.f32 %v4015, %v1257
        %v4032 = vmul.f32 %v4016, %v1262
        %v4033 = vmul.f32 %v4017, %v1267
        %v4034 = vmul.f32 %v4018, %v1272
        %v4035 = vmul.f32 %v4019, %v1277
        %v4036 = vmax.f32 %v4020, 0.0
        %v4037 = vmax.f32 %v4021, 0.0
        %v4038 = vmax.f32 %v4022, 0.0
        %v4039 = vmax.f32 %v4023, 0.0
        %v4040 = vmax.f32 %v4024, 0.0
        %v4041 = vmax.f32 %v4025, 0.0
        %v4042 = vmax.f32 %v4026, 0.0
        %v4043 = vmax.f32 %v4027, 0.0
        %v4044 = vmax.f32 %v4028, 0.0
        %v4045 = vmax.f32 %v4029, 0.0
        %v4046 = vmax.f32 %v4030, 0.0
        %v4047 = vmax.f32 %v4031, 0.0
        %v4048 = vmax.f32 %v4032, 0.0
        %v4049 = vmax.f32 %v4033, 0.0
        %v4050 = vmax.f32 %v4034, 0.0
        %v4051 = vmax.f32 %v4035, 0.0
        %v4052 = vld [vmem:[#allocation2 + $0x190] sm:$0xff]
        %v4053 = vld [vmem:[#allocation2 + $0x198] sm:$0xff]
        %v4054 = vld [vmem:[#allocation2 + $0x1a0] sm:$0xff]
        %v4055 = vld [vmem:[#allocation2 + $0x1a8] sm:$0xff]
        %v4056 = vld [vmem:[#allocation2 + $0x1b0] sm:$0x1]
        %v4057 = vlaneseq
        %v4058 = vshrl.u32 %v4057, 7
        %v4059 = vsub.s32 0, %v4058
        %v4060 = vrot.slane %v4056, %v4059
        %v4062 = vsel %vm402, %v4036, 0
        %v4065 = vsel %vm402, %v4037, 0
        %v4068 = vsel %vm402, %v4038, 0
        %v4071 = vsel %vm402, %v4039, 0
        %v4074 = vsel %vm402, %v4040, 0
        %v4077 = vsel %vm402, %v4041, 0
        %v4080 = vsel %vm402, %v4042, 0
        %v4083 = vsel %vm402, %v4043, 0
        %v4086 = vsel %vm402, %v4044, 0
        %v4089 = vsel %vm402, %v4045, 0
        %v4092 = vsel %vm402, %v4046, 0
        %v4095 = vsel %vm402, %v4047, 0
        %v4098 = vsel %vm402, %v4048, 0
        %v4101 = vsel %vm402, %v4049, 0
        %v4104 = vsel %vm402, %v4050, 0
        %v4107 = vsel %vm402, %v4051, 0
        %4109 = vmatprep.subr.mxu0 0.0
        %4110 = vmatpush1.msra.mxu0 %v4052
        %4111 = vmatprep.subr.mxu0 0.0
        %4112 = vmatpush1.msra.mxu0 %v4053
        %4113 = vmatprep.subr.mxu0 0.0
        %4114 = vmatpush1.msra.mxu0 %v4054
        %4115 = vmatprep.subr.mxu0 0.0
        %4116 = vmatpush1.msra.mxu0 %v4055
        %4117 = vmatprep.subr.mxu0 0.0
        %4118 = vmatpush1.msra.mxu0 0.0
        %4119 = vmatprep.subr.mxu0 0.0
        %4120 = vmatpush1.msra.mxu0 0.0
        %4121 = vmatprep.subr.mxu0 0.0
        %4122 = vmatpush1.msra.mxu0 0.0
        %4123 = vmatprep.subr.mxu0 0.0
        %4124 = vmatpush1.msra.mxu0 0.0
        %4125 = vmatprep.subr.mxu0 0.0
        %4126 = vmatpush1.msra.mxu0 0.0
        %4127 = vmatprep.subr.mxu0 0.0
        %4128 = vmatpush1.msra.mxu0 0.0
        %4129 = vmatprep.subr.mxu0 0.0
        %4130 = vmatpush1.msra.mxu0 0.0
        %4131 = vmatprep.subr.mxu0 0.0
        %4132 = vmatpush1.msra.mxu0 0.0
        %4133 = vmatprep.subr.mxu0 0.0
        %4134 = vmatpush1.msra.mxu0 0.0
        %4135 = vmatprep.subr.mxu0 0.0
        %4136 = vmatpush1.msra.mxu0 0.0
        %4137 = vmatprep.subr.mxu0 0.0
        %4138 = vmatpush1.msra.mxu0 0.0
        %4139 = vmatprep.subr.mxu0 0.0
        %4140 = vmatpush1.msra.mxu0 0.0
        %4141 = vmatprep.subr.mxu0 0.0
        %4142 = vmatpush1.msra.mxu0 0.0
        %4143 = vmatprep.subr.mxu0 0.0
        %4144 = vmatpush1.msra.mxu0 0.0
        %4145 = vmatprep.subr.mxu0 0.0
        %4146 = vmatpush1.msra.mxu0 0.0
        %4147 = vmatprep.subr.mxu0 0.0
        %4148 = vmatpush1.msra.mxu0 0.0
        %4149 = vmatprep.subr.mxu0 0.0
        %4150 = vmatpush1.msra.mxu0 0.0
        %4151 = vmatprep.subr.mxu0 0.0
        %4152 = vmatpush1.msra.mxu0 0.0
        %4153 = vmatprep.subr.mxu0 0.0
        %4154 = vmatpush1.msra.mxu0 0.0
        %4155 = vmatprep.subr.mxu0 0.0
        %4156 = vmatpush1.msra.mxu0 0.0
        %4157 = vmatprep.subr.mxu0 0.0
        %4158 = vmatpush1.msra.mxu0 0.0
        %4159 = vmatprep.subr.mxu0 0.0
        %4160 = vmatpush1.msra.mxu0 0.0
        %4161 = vmatprep.subr.mxu0 0.0
        %4162 = vmatpush1.msra.mxu0 0.0
        %4163 = vmatprep.subr.mxu0 0.0
        %4164 = vmatpush1.msra.mxu0 0.0
        %4165 = vmatprep.subr.mxu0 0.0
        %4166 = vmatpush1.msra.mxu0 0.0
        %4167 = vmatprep.subr.mxu0 0.0
        %4168 = vmatpush1.msra.mxu0 0.0
        %4169 = vmatprep.subr.mxu0 0.0
        %4170 = vmatpush1.msra.mxu0 0.0
        %4171 = vmatprep.subr.mxu0 0.0
        %4172 = vmatpush1.msra.mxu0 0.0
        %4173 = vmatprep.mubr.f32.mxu0 0.0
        %4174 = vmatmul.mubr.f32.gmra.mrb[0].mxu0 %v4062
        %v4175 = vpop.f32.mrb[0].mxu0
        %v4176 = vadd.f32 %v4060, %v4175
        %v4177 = vpop.f32.mrb[0].mxu0
        %4178 = vmatprep.mubr.f32.mxu0 0.0
        %4179 = vmatmul.mubr.f32.gmra.mrb[0].mxu0 %v4065
        %v4180 = vpop.f32.mrb[0].mxu0
        %v4181 = vadd.f32 %v4060, %v4180
        %v4182 = vpop.f32.mrb[0].mxu0
        %4183 = vmatprep.mubr.f32.mxu0 0.0
        %4184 = vmatmul.mubr.f32.gmra.mrb[0].mxu0 %v4068
        %v4185 = vpop.f32.mrb[0].mxu0
        %v4186 = vadd.f32 %v4060, %v4185
        %v4187 = vpop.f32.mrb[0].mxu0
        %4188 = vmatprep.mubr.f32.mxu0 0.0
        %4189 = vmatmul.mubr.f32.gmra.mrb[0].mxu0 %v4071
        %v4190 = vpop.f32.mrb[0].mxu0
        %v4191 = vadd.f32 %v4060, %v4190
        %v4192 = vpop.f32.mrb[0].mxu0
        %4193 = vmatprep.mubr.f32.mxu0 0.0
        %4194 = vmatmul.mubr.f32.gmra.mrb[0].mxu0 %v4074
        %v4195 = vpop.f32.mrb[0].mxu0
        %v4196 = vadd.f32 %v4060, %v4195
        %v4197 = vpop.f32.mrb[0].mxu0
        %4198 = vmatprep.mubr.f32.mxu0 0.0
        %4199 = vmatmul.mubr.f32.gmra.mrb[0].mxu0 %v4077
        %v4200 = vpop.f32.mrb[0].mxu0
        %v4201 = vadd.f32 %v4060, %v4200
        %v4202 = vpop.f32.mrb[0].mxu0
        %4203 = vmatprep.mubr.f32.mxu0 0.0
        %4204 = vmatmul.mubr.f32.gmra.mrb[0].mxu0 %v4080
        %v4205 = vpop.f32.mrb[0].mxu0
        %v4206 = vadd.f32 %v4060, %v4205
        %v4207 = vpop.f32.mrb[0].mxu0
        %4208 = vmatprep.mubr.f32.mxu0 0.0
        %4209 = vmatmul.mubr.f32.gmra.mrb[0].mxu0 %v4083
        %v4210 = vpop.f32.mrb[0].mxu0
        %v4211 = vadd.f32 %v4060, %v4210
        %v4212 = vpop.f32.mrb[0].mxu0
        %4213 = vmatprep.mubr.f32.mxu0 0.0
        %4214 = vmatmul.mubr.f32.gmra.mrb[0].mxu0 %v4086
        %v4215 = vpop.f32.mrb[0].mxu0
        %v4216 = vadd.f32 %v4060, %v4215
        %v4217 = vpop.f32.mrb[0].mxu0
        %4218 = vmatprep.mubr.f32.mxu0 0.0
        %4219 = vmatmul.mubr.f32.gmra.mrb[0].mxu0 %v4089
        %v4220 = vpop.f32.mrb[0].mxu0
        %v4221 = vadd.f32 %v4060, %v4220
        %v4222 = vpop.f32.mrb[0].mxu0
        %4223 = vmatprep.mubr.f32.mxu0 0.0
        %4224 = vmatmul.mubr.f32.gmra.mrb[0].mxu0 %v4092
        %v4225 = vpop.f32.mrb[0].mxu0
        %v4226 = vadd.f32 %v4060, %v4225
        %v4227 = vpop.f32.mrb[0].mxu0
        %4228 = vmatprep.mubr.f32.mxu0 0.0
        %4229 = vmatmul.mubr.f32.gmra.mrb[0].mxu0 %v4095
        %v4230 = vpop.f32.mrb[0].mxu0
        %v4231 = vadd.f32 %v4060, %v4230
        %v4232 = vpop.f32.mrb[0].mxu0
        %4233 = vmatprep.mubr.f32.mxu0 0.0
        %4234 = vmatmul.mubr.f32.gmra.mrb[0].mxu0 %v4098
        %v4235 = vpop.f32.mrb[0].mxu0
        %v4236 = vadd.f32 %v4060, %v4235
        %v4237 = vpop.f32.mrb[0].mxu0
        %4238 = vmatprep.mubr.f32.mxu0 0.0
        %4239 = vmatmul.mubr.f32.gmra.mrb[0].mxu0 %v4101
        %v4240 = vpop.f32.mrb[0].mxu0
        %v4241 = vadd.f32 %v4060, %v4240
        %v4242 = vpop.f32.mrb[0].mxu0
        %4243 = vmatprep.mubr.f32.mxu0 0.0
        %4244 = vmatmul.mubr.f32.gmra.mrb[0].mxu0 %v4104
        %v4245 = vpop.f32.mrb[0].mxu0
        %v4246 = vadd.f32 %v4060, %v4245
        %v4247 = vpop.f32.mrb[0].mxu0
        %4248 = vmatprep.mubr.f32.mxu0 0.0
        %4249 = vmatmul.mubr.f32.gmra.mrb[0].mxu0 %v4107
        %v4250 = vpop.f32.mrb[0].mxu0
        %v4251 = vadd.f32 %v4060, %v4250
        %v4252 = vpop.f32.mrb[0].mxu0
        %4253 = vdwg.mxu0
        %vm4254 = vcmask 31744
        %v4255 = vsel %vm4254, %v4176, -inf
        %4256 = vmax.xlane.f32.xlu0 %v4255
        %v4257 = vpop.xlane.xlu0 %4256
        %v4258 = vsel %vm4254, %v4181, -inf
        %4259 = vmax.xlane.f32.xlu0 %v4258
        %v4260 = vpop.xlane.xlu0 %4259
        %v4261 = vsel %vm4254, %v4186, -inf
        %4262 = vmax.xlane.f32.xlu0 %v4261
        %v4263 = vpop.xlane.xlu0 %4262
        %v4264 = vsel %vm4254, %v4191, -inf
        %4265 = vmax.xlane.f32.xlu0 %v4264
        %v4266 = vpop.xlane.xlu0 %4265
        %v4267 = vsel %vm4254, %v4196, -inf
        %4268 = vmax.xlane.f32.xlu0 %v4267
        %v4269 = vpop.xlane.xlu0 %4268
        %v4270 = vsel %vm4254, %v4201, -inf
        %4271 = vmax.xlane.f32.xlu0 %v4270
        %v4272 = vpop.xlane.xlu0 %4271
        %v4273 = vsel %vm4254, %v4206, -inf
        %4274 = vmax.xlane.f32.xlu0 %v4273
        %v4275 = vpop.xlane.xlu0 %4274
        %v4276 = vsel %vm4254, %v4211, -inf
        %4277 = vmax.xlane.f32.xlu0 %v4276
        %v4278 = vpop.xlane.xlu0 %4277
        %v4279 = vsel %vm4254, %v4216, -inf
        %4280 = vmax.xlane.f32.xlu0 %v4279
        %v4281 = vpop.xlane.xlu0 %4280
        %v4282 = vsel %vm4254, %v4221, -inf
        %4283 = vmax.xlane.f32.xlu0 %v4282
        %v4284 = vpop.xlane.xlu0 %4283
        %v4285 = vsel %vm4254, %v4226, -inf
        %4286 = vmax.xlane.f32.xlu0 %v4285
        %v4287 = vpop.xlane.xlu0 %4286
        %v4288 = vsel %vm4254, %v4231, -inf
        %4289 = vmax.xlane.f32.xlu0 %v4288
        %v4290 = vpop.xlane.xlu0 %4289
        %v4291 = vsel %vm4254, %v4236, -inf
        %4292 = vmax.xlane.f32.xlu0 %v4291
        %v4293 = vpop.xlane.xlu0 %4292
        %v4294 = vsel %vm4254, %v4241, -inf
        %4295 = vmax.xlane.f32.xlu0 %v4294
        %v4296 = vpop.xlane.xlu0 %4295
        %v4297 = vsel %vm4254, %v4246, -inf
        %4298 = vmax.xlane.f32.xlu0 %v4297
        %v4299 = vpop.xlane.xlu0 %4298
        %v4300 = vsel %vm4254, %v4251, -inf
        %4301 = vmax.xlane.f32.xlu0 %v4300
        %v4302 = vpop.xlane.xlu0 %4301
        %v4303 = vsub.f32 %v4176, %v4257
        %v4304 = vsub.f32 %v4181, %v4260
        %v4305 = vsub.f32 %v4186, %v4263
        %v4306 = vsub.f32 %v4191, %v4266
        %v4307 = vsub.f32 %v4196, %v4269
        %v4308 = vsub.f32 %v4201, %v4272
        %v4309 = vsub.f32 %v4206, %v4275
        %v4310 = vsub.f32 %v4211, %v4278
        %v4311 = vsub.f32 %v4216, %v4281
        %v4312 = vsub.f32 %v4221, %v4284
        %v4313 = vsub.f32 %v4226, %v4287
        %v4314 = vsub.f32 %v4231, %v4290
        %v4315 = vsub.f32 %v4236, %v4293
        %v4316 = vsub.f32 %v4241, %v4296
        %v4317 = vsub.f32 %v4246, %v4299
        %v4318 = vsub.f32 %v4251, %v4302
        %v4319 = vmul.f32 %v4303, 1.442695
        %v4320 = vpow.pop %v4319
        %v4321 = vmul.f32 %v4304, 1.442695
        %v4322 = vpow.pop %v4321
        %v4323 = vmul.f32 %v4305, 1.442695
        %v4324 = vpow.pop %v4323
        %v4325 = vmul.f32 %v4306, 1.442695
        %v4326 = vpow.pop %v4325
        %v4327 = vmul.f32 %v4307, 1.442695
        %v4328 = vpow.pop %v4327
        %v4329 = vmul.f32 %v4308, 1.442695
        %v4330 = vpow.pop %v4329
        %v4331 = vmul.f32 %v4309, 1.442695
        %v4332 = vpow.pop %v4331
        %v4333 = vmul.f32 %v4310, 1.442695
        %v4334 = vpow.pop %v4333
        %v4335 = vmul.f32 %v4311, 1.442695
        %v4336 = vpow.pop %v4335
        %v4337 = vmul.f32 %v4312, 1.442695
        %v4338 = vpow.pop %v4337
        %v4339 = vmul.f32 %v4313, 1.442695
        %v4340 = vpow.pop %v4339
        %v4341 = vmul.f32 %v4314, 1.442695
        %v4342 = vpow.pop %v4341
        %v4343 = vmul.f32 %v4315, 1.442695
        %v4344 = vpow.pop %v4343
        %v4345 = vmul.f32 %v4316, 1.442695
        %v4346 = vpow.pop %v4345
        %v4347 = vmul.f32 %v4317, 1.442695
        %v4348 = vpow.pop %v4347
        %v4349 = vmul.f32 %v4318, 1.442695
        %v4350 = vpow.pop %v4349
        %v4351 = vsel %vm4254, %v4320, 0.0
        %4352 = vadd.xlane.f32.xlu0 %v4351
        %v4353 = vpop.xlane.xlu0 %4352
        %v4354 = vsel %vm4254, %v4322, 0.0
        %4355 = vadd.xlane.f32.xlu0 %v4354
        %v4356 = vpop.xlane.xlu0 %4355
        %v4357 = vsel %vm4254, %v4324, 0.0
        %4358 = vadd.xlane.f32.xlu0 %v4357
        %v4359 = vpop.xlane.xlu0 %4358
        %v4360 = vsel %vm4254, %v4326, 0.0
        %4361 = vadd.xlane.f32.xlu0 %v4360
        %v4362 = vpop.xlane.xlu0 %4361
        %v4363 = vsel %vm4254, %v4328, 0.0
        %4364 = vadd.xlane.f32.xlu0 %v4363
        %v4365 = vpop.xlane.xlu0 %4364
        %v4366 = vsel %vm4254, %v4330, 0.0
        %4367 = vadd.xlane.f32.xlu0 %v4366
        %v4368 = vpop.xlane.xlu0 %4367
        %v4369 = vsel %vm4254, %v4332, 0.0
        %4370 = vadd.xlane.f32.xlu0 %v4369
        %v4371 = vpop.xlane.xlu0 %4370
        %v4372 = vsel %vm4254, %v4334, 0.0
        %4373 = vadd.xlane.f32.xlu0 %v4372
        %v4374 = vpop.xlane.xlu0 %4373
        %v4375 = vsel %vm4254, %v4336, 0.0
        %4376 = vadd.xlane.f32.xlu0 %v4375
        %v4377 = vpop.xlane.xlu0 %4376
        %v4378 = vsel %vm4254, %v4338, 0.0
        %4379 = vadd.xlane.f32.xlu0 %v4378
        %v4380 = vpop.xlane.xlu0 %4379
        %v4381 = vsel %vm4254, %v4340, 0.0
        %4382 = vadd.xlane.f32.xlu0 %v4381
        %v4383 = vpop.xlane.xlu0 %4382
        %v4384 = vsel %vm4254, %v4342, 0.0
        %4385 = vadd.xlane.f32.xlu0 %v4384
        %v4386 = vpop.xlane.xlu0 %4385
        %v4387 = vsel %vm4254, %v4344, 0.0
        %4388 = vadd.xlane.f32.xlu0 %v4387
        %v4389 = vpop.xlane.xlu0 %4388
        %v4390 = vsel %vm4254, %v4346, 0.0
        %4391 = vadd.xlane.f32.xlu0 %v4390
        %v4392 = vpop.xlane.xlu0 %4391
        %v4393 = vsel %vm4254, %v4348, 0.0
        %4394 = vadd.xlane.f32.xlu0 %v4393
        %v4395 = vpop.xlane.xlu0 %4394
        %v4396 = vsel %vm4254, %v4350, 0.0
        %4397 = vadd.xlane.f32.xlu0 %v4396
        %v4398 = vpop.xlane.xlu0 %4397
        %v4399 = vrcp.pop %v4353
        %v4400 = vrcp.pop %v4356
        %v4401 = vrcp.pop %v4359
        %v4402 = vrcp.pop %v4362
        %v4403 = vrcp.pop %v4365
        %v4404 = vrcp.pop %v4368
        %v4405 = vrcp.pop %v4371
        %v4406 = vrcp.pop %v4374
        %v4407 = vrcp.pop %v4377
        %v4408 = vrcp.pop %v4380
        %v4409 = vrcp.pop %v4383
        %v4410 = vrcp.pop %v4386
        %v4411 = vrcp.pop %v4389
        %v4412 = vrcp.pop %v4392
        %v4413 = vrcp.pop %v4395
        %v4414 = vrcp.pop %v4398
        %v4415 = vmul.f32 %v4320, %v4399
        %v4416 = vmul.f32 %v4322, %v4400
        %v4417 = vmul.f32 %v4324, %v4401
        %v4418 = vmul.f32 %v4326, %v4402
        %v4419 = vmul.f32 %v4328, %v4403
        %v4420 = vmul.f32 %v4330, %v4404
        %v4421 = vmul.f32 %v4332, %v4405
        %v4422 = vmul.f32 %v4334, %v4406
        %v4423 = vmul.f32 %v4336, %v4407
        %v4424 = vmul.f32 %v4338, %v4408
        %v4425 = vmul.f32 %v4340, %v4409
        %v4426 = vmul.f32 %v4342, %v4410
        %v4427 = vmul.f32 %v4344, %v4411
        %v4428 = vmul.f32 %v4346, %v4412
        %v4429 = vmul.f32 %v4348, %v4413
        %v4430 = vmul.f32 %v4350, %v4414
        %v4431 = vld [vmem:[#allocation2 + $0x1e0] sm:$0xff]
        %v4432 = vld [vmem:[#allocation2 + $0x1e8] sm:$0xff]
        %v4433 = vld [vmem:[#allocation2 + $0x1f0] sm:$0xff]
        %v4434 = vld [vmem:[#allocation2 + $0x1f8] sm:$0xff]
        %v4435 = vld [vmem:[#allocation2 + $0x200] sm:$0x1]
        %v4436 = vlaneseq
        %v4437 = vshrl.u32 %v4436, 7
        %v4438 = vsub.s32 0, %v4437
        %v4439 = vrot.slane %v4435, %v4438
        %v4441 = vsel %vm402, %v828, 0
        %v4444 = vsel %vm402, %v829, 0
        %v4447 = vsel %vm402, %v830, 0
        %v4450 = vsel %vm402, %v831, 0
        %v4453 = vsel %vm402, %v832, 0
        %v4456 = vsel %vm402, %v833, 0
        %v4459 = vsel %vm402, %v834, 0
        %v4462 = vsel %vm402, %v835, 0
        %v4465 = vsel %vm402, %v836, 0
        %v4468 = vsel %vm402, %v837, 0
        %v4471 = vsel %vm402, %v838, 0
        %v4474 = vsel %vm402, %v839, 0
        %v4477 = vsel %vm402, %v840, 0
        %v4480 = vsel %vm402, %v841, 0
        %v4483 = vsel %vm402, %v842, 0
        %v4486 = vsel %vm402, %v843, 0
        %4488 = vmatprep.subr.mxu0 0.0
        %4489 = vmatpush1.msra.mxu0 %v4431
        %4490 = vmatprep.subr.mxu0 0.0
        %4491 = vmatpush1.msra.mxu0 %v4432
        %4492 = vmatprep.subr.mxu0 0.0
        %4493 = vmatpush1.msra.mxu0 %v4433
        %4494 = vmatprep.subr.mxu0 0.0
        %4495 = vmatpush1.msra.mxu0 %v4434
        %4496 = vmatprep.subr.mxu0 0.0
        %4497 = vmatpush1.msra.mxu0 0.0
        %4498 = vmatprep.subr.mxu0 0.0
        %4499 = vmatpush1.msra.mxu0 0.0
        %4500 = vmatprep.subr.mxu0 0.0
        %4501 = vmatpush1.msra.mxu0 0.0
        %4502 = vmatprep.subr.mxu0 0.0
        %4503 = vmatpush1.msra.mxu0 0.0
        %4504 = vmatprep.subr.mxu0 0.0
        %4505 = vmatpush1.msra.mxu0 0.0
        %4506 = vmatprep.subr.mxu0 0.0
        %4507 = vmatpush1.msra.mxu0 0.0
        %4508 = vmatprep.subr.mxu0 0.0
        %4509 = vmatpush1.msra.mxu0 0.0
        %4510 = vmatprep.subr.mxu0 0.0
        %4511 = vmatpush1.msra.mxu0 0.0
        %4512 = vmatprep.subr.mxu0 0.0
        %4513 = vmatpush1.msra.mxu0 0.0
        %4514 = vmatprep.subr.mxu0 0.0
        %4515 = vmatpush1.msra.mxu0 0.0
        %4516 = vmatprep.subr.mxu0 0.0
        %4517 = vmatpush1.msra.mxu0 0.0
        %4518 = vmatprep.subr.mxu0 0.0
        %4519 = vmatpush1.msra.mxu0 0.0
        %4520 = vmatprep.subr.mxu0 0.0
        %4521 = vmatpush1.msra.mxu0 0.0
        %4522 = vmatprep.subr.mxu0 0.0
        %4523 = vmatpush1.msra.mxu0 0.0
        %4524 = vmatprep.subr.mxu0 0.0
        %4525 = vmatpush1.msra.mxu0 0.0
        %4526 = vmatprep.subr.mxu0 0.0
        %4527 = vmatpush1.msra.mxu0 0.0
        %4528 = vmatprep.subr.mxu0 0.0
        %4529 = vmatpush1.msra.mxu0 0.0
        %4530 = vmatprep.subr.mxu0 0.0
        %4531 = vmatpush1.msra.mxu0 0.0
        %4532 = vmatprep.subr.mxu0 0.0
        %4533 = vmatpush1.msra.mxu0 0.0
        %4534 = vmatprep.subr.mxu0 0.0
        %4535 = vmatpush1.msra.mxu0 0.0
        %4536 = vmatprep.subr.mxu0 0.0
        %4537 = vmatpush1.msra.mxu0 0.0
        %4538 = vmatprep.subr.mxu0 0.0
        %4539 = vmatpush1.msra.mxu0 0.0
        %4540 = vmatprep.subr.mxu0 0.0
        %4541 = vmatpush1.msra.mxu0 0.0
        %4542 = vmatprep.subr.mxu0 0.0
        %4543 = vmatpush1.msra.mxu0 0.0
        %4544 = vmatprep.subr.mxu0 0.0
        %4545 = vmatpush1.msra.mxu0 0.0
        %4546 = vmatprep.subr.mxu0 0.0
        %4547 = vmatpush1.msra.mxu0 0.0
        %4548 = vmatprep.subr.mxu0 0.0
        %4549 = vmatpush1.msra.mxu0 0.0
        %4550 = vmatprep.subr.mxu0 0.0
        %4551 = vmatpush1.msra.mxu0 0.0
        %4552 = vmatprep.mubr.f32.mxu0 0.0
        %4553 = vmatmul.mubr.f32.gmra.mrb[0].mxu0 %v4441
        %v4554 = vpop.f32.mrb[0].mxu0
        %v4555 = vadd.f32 %v4439, %v4554
        %v4556 = vpop.f32.mrb[0].mxu0
        %4557 = vmatprep.mubr.f32.mxu0 0.0
        %4558 = vmatmul.mubr.f32.gmra.mrb[0].mxu0 %v4444
        %v4559 = vpop.f32.mrb[0].mxu0
        %v4560 = vadd.f32 %v4439, %v4559
        %v4561 = vpop.f32.mrb[0].mxu0
        %4562 = vmatprep.mubr.f32.mxu0 0.0
        %4563 = vmatmul.mubr.f32.gmra.mrb[0].mxu0 %v4447
        %v4564 = vpop.f32.mrb[0].mxu0
        %v4565 = vadd.f32 %v4439, %v4564
        %v4566 = vpop.f32.mrb[0].mxu0
        %4567 = vmatprep.mubr.f32.mxu0 0.0
        %4568 = vmatmul.mubr.f32.gmra.mrb[0].mxu0 %v4450
        %v4569 = vpop.f32.mrb[0].mxu0
        %v4570 = vadd.f32 %v4439, %v4569
        %v4571 = vpop.f32.mrb[0].mxu0
        %4572 = vmatprep.mubr.f32.mxu0 0.0
        %4573 = vmatmul.mubr.f32.gmra.mrb[0].mxu0 %v4453
        %v4574 = vpop.f32.mrb[0].mxu0
        %v4575 = vadd.f32 %v4439, %v4574
        %v4576 = vpop.f32.mrb[0].mxu0
        %4577 = vmatprep.mubr.f32.mxu0 0.0
        %4578 = vmatmul.mubr.f32.gmra.mrb[0].mxu0 %v4456
        %v4579 = vpop.f32.mrb[0].mxu0
        %v4580 = vadd.f32 %v4439, %v4579
        %v4581 = vpop.f32.mrb[0].mxu0
        %4582 = vmatprep.mubr.f32.mxu0 0.0
        %4583 = vmatmul.mubr.f32.gmra.mrb[0].mxu0 %v4459
        %v4584 = vpop.f32.mrb[0].mxu0
        %v4585 = vadd.f32 %v4439, %v4584
        %v4586 = vpop.f32.mrb[0].mxu0
        %4587 = vmatprep.mubr.f32.mxu0 0.0
        %4588 = vmatmul.mubr.f32.gmra.mrb[0].mxu0 %v4462
        %v4589 = vpop.f32.mrb[0].mxu0
        %v4590 = vadd.f32 %v4439, %v4589
        %v4591 = vpop.f32.mrb[0].mxu0
        %4592 = vmatprep.mubr.f32.mxu0 0.0
        %4593 = vmatmul.mubr.f32.gmra.mrb[0].mxu0 %v4465
        %v4594 = vpop.f32.mrb[0].mxu0
        %v4595 = vadd.f32 %v4439, %v4594
        %v4596 = vpop.f32.mrb[0].mxu0
        %4597 = vmatprep.mubr.f32.mxu0 0.0
        %4598 = vmatmul.mubr.f32.gmra.mrb[0].mxu0 %v4468
        %v4599 = vpop.f32.mrb[0].mxu0
        %v4600 = vadd.f32 %v4439, %v4599
        %v4601 = vpop.f32.mrb[0].mxu0
        %4602 = vmatprep.mubr.f32.mxu0 0.0
        %4603 = vmatmul.mubr.f32.gmra.mrb[0].mxu0 %v4471
        %v4604 = vpop.f32.mrb[0].mxu0
        %v4605 = vadd.f32 %v4439, %v4604
        %v4606 = vpop.f32.mrb[0].mxu0
        %4607 = vmatprep.mubr.f32.mxu0 0.0
        %4608 = vmatmul.mubr.f32.gmra.mrb[0].mxu0 %v4474
        %v4609 = vpop.f32.mrb[0].mxu0
        %v4610 = vadd.f32 %v4439, %v4609
        %v4611 = vpop.f32.mrb[0].mxu0
        %4612 = vmatprep.mubr.f32.mxu0 0.0
        %4613 = vmatmul.mubr.f32.gmra.mrb[0].mxu0 %v4477
        %v4614 = vpop.f32.mrb[0].mxu0
        %v4615 = vadd.f32 %v4439, %v4614
        %v4616 = vpop.f32.mrb[0].mxu0
        %4617 = vmatprep.mubr.f32.mxu0 0.0
        %4618 = vmatmul.mubr.f32.gmra.mrb[0].mxu0 %v4480
        %v4619 = vpop.f32.mrb[0].mxu0
        %v4620 = vadd.f32 %v4439, %v4619
        %v4621 = vpop.f32.mrb[0].mxu0
        %4622 = vmatprep.mubr.f32.mxu0 0.0
        %4623 = vmatmul.mubr.f32.gmra.mrb[0].mxu0 %v4483
        %v4624 = vpop.f32.mrb[0].mxu0
        %v4625 = vadd.f32 %v4439, %v4624
        %v4626 = vpop.f32.mrb[0].mxu0
        %4627 = vmatprep.mubr.f32.mxu0 0.0
        %4628 = vmatmul.mubr.f32.gmra.mrb[0].mxu0 %v4486
        %v4629 = vpop.f32.mrb[0].mxu0
        %v4630 = vadd.f32 %v4439, %v4629
        %v4631 = vpop.f32.mrb[0].mxu0
        %4632 = vdwg.mxu0
        %v4633 = vld [vmem:[#allocation2 + $0x3b0] sm:$0xff]
        %v4634 = vld [vmem:[#allocation2 + $0x3b8] sm:$0xff]
        %4635 = vmatprep.subr.mxu0 0.0
        %4636 = vmatpush1.msra.mxu0 %v4633
        %4637 = vmatprep.subr.mxu0 0.0
        %4638 = vmatpush1.msra.mxu0 %v4634
        %4639 = vmatprep.subr.mxu0 0.0
        %4640 = vmatpush1.msra.mxu0 0.0
        %4641 = vmatprep.subr.mxu0 0.0
        %4642 = vmatpush1.msra.mxu0 0.0
        %4643 = vmatprep.subr.mxu0 0.0
        %4644 = vmatpush1.msra.mxu0 0.0
        %4645 = vmatprep.subr.mxu0 0.0
        %4646 = vmatpush1.msra.mxu0 0.0
        %4647 = vmatprep.subr.mxu0 0.0
        %4648 = vmatpush1.msra.mxu0 0.0
        %4649 = vmatprep.subr.mxu0 0.0
        %4650 = vmatpush1.msra.mxu0 0.0
        %4651 = vmatprep.subr.mxu0 0.0
        %4652 = vmatpush1.msra.mxu0 0.0
        %4653 = vmatprep.subr.mxu0 0.0
        %4654 = vmatpush1.msra.mxu0 0.0
        %4655 = vmatprep.subr.mxu0 0.0
        %4656 = vmatpush1.msra.mxu0 0.0
        %4657 = vmatprep.subr.mxu0 0.0
        %4658 = vmatpush1.msra.mxu0 0.0
        %4659 = vmatprep.subr.mxu0 0.0
        %4660 = vmatpush1.msra.mxu0 0.0
        %4661 = vmatprep.subr.mxu0 0.0
        %4662 = vmatpush1.msra.mxu0 0.0
        %4663 = vmatprep.subr.mxu0 0.0
        %4664 = vmatpush1.msra.mxu0 0.0
        %4665 = vmatprep.subr.mxu0 0.0
        %4666 = vmatpush1.msra.mxu0 0.0
        %4667 = vmatprep.subr.mxu0 0.0
        %4668 = vmatpush1.msra.mxu0 0.0
        %4669 = vmatprep.subr.mxu0 0.0
        %4670 = vmatpush1.msra.mxu0 0.0
        %4671 = vmatprep.subr.mxu0 0.0
        %4672 = vmatpush1.msra.mxu0 0.0
        %4673 = vmatprep.subr.mxu0 0.0
        %4674 = vmatpush1.msra.mxu0 0.0
        %4675 = vmatprep.subr.mxu0 0.0
        %4676 = vmatpush1.msra.mxu0 0.0
        %4677 = vmatprep.subr.mxu0 0.0
        %4678 = vmatpush1.msra.mxu0 0.0
        %4679 = vmatprep.subr.mxu0 0.0
        %4680 = vmatpush1.msra.mxu0 0.0
        %4681 = vmatprep.subr.mxu0 0.0
        %4682 = vmatpush1.msra.mxu0 0.0
        %4683 = vmatprep.subr.mxu0 0.0
        %4684 = vmatpush1.msra.mxu0 0.0
        %4685 = vmatprep.subr.mxu0 0.0
        %4686 = vmatpush1.msra.mxu0 0.0
        %4687 = vmatprep.subr.mxu0 0.0
        %4688 = vmatpush1.msra.mxu0 0.0
        %4689 = vmatprep.subr.mxu0 0.0
        %4690 = vmatpush1.msra.mxu0 0.0
        %4691 = vmatprep.subr.mxu0 0.0
        %4692 = vmatpush1.msra.mxu0 0.0
        %4693 = vmatprep.subr.mxu0 0.0
        %4694 = vmatpush1.msra.mxu0 0.0
        %4695 = vmatprep.subr.mxu0 0.0
        %4696 = vmatpush1.msra.mxu0 0.0
        %4697 = vmatprep.subr.mxu0 0.0
        %4698 = vmatpush1.msra.mxu0 0.0
        %4699 = vmatprep.mubr.f32.mxu0 0.0
        %4700 = vmatmul.mubr.f32.gmra.mrb[0].mxu0 %v1829
        %v4701 = vpop.f32.mrb[0].mxu0
        %v4702 = vadd.f32 0.0, %v4701
        %v4703 = vpop.f32.mrb[0].mxu0
        %4704 = vmatprep.mubr.f32.mxu0 0.0
        %4705 = vmatmul.mubr.f32.gmra.mrb[0].mxu0 %v1832
        %v4706 = vpop.f32.mrb[0].mxu0
        %v4707 = vadd.f32 0.0, %v4706
        %v4708 = vpop.f32.mrb[0].mxu0
        %4709 = vmatprep.mubr.f32.mxu0 0.0
        %4710 = vmatmul.mubr.f32.gmra.mrb[0].mxu0 %v1835
        %v4711 = vpop.f32.mrb[0].mxu0
        %v4712 = vadd.f32 0.0, %v4711
        %v4713 = vpop.f32.mrb[0].mxu0
        %4714 = vmatprep.mubr.f32.mxu0 0.0
        %4715 = vmatmul.mubr.f32.gmra.mrb[0].mxu0 %v1838
        %v4716 = vpop.f32.mrb[0].mxu0
        %v4717 = vadd.f32 0.0, %v4716
        %v4718 = vpop.f32.mrb[0].mxu0
        %4719 = vmatprep.mubr.f32.mxu0 0.0
        %4720 = vmatmul.mubr.f32.gmra.mrb[0].mxu0 %v1841
        %v4721 = vpop.f32.mrb[0].mxu0
        %v4722 = vadd.f32 0.0, %v4721
        %v4723 = vpop.f32.mrb[0].mxu0
        %4724 = vmatprep.mubr.f32.mxu0 0.0
        %4725 = vmatmul.mubr.f32.gmra.mrb[0].mxu0 %v1844
        %v4726 = vpop.f32.mrb[0].mxu0
        %v4727 = vadd.f32 0.0, %v4726
        %v4728 = vpop.f32.mrb[0].mxu0
        %4729 = vmatprep.mubr.f32.mxu0 0.0
        %4730 = vmatmul.mubr.f32.gmra.mrb[0].mxu0 %v1847
        %v4731 = vpop.f32.mrb[0].mxu0
        %v4732 = vadd.f32 0.0, %v4731
        %v4733 = vpop.f32.mrb[0].mxu0
        %4734 = vmatprep.mubr.f32.mxu0 0.0
        %4735 = vmatmul.mubr.f32.gmra.mrb[0].mxu0 %v1850
        %v4736 = vpop.f32.mrb[0].mxu0
        %v4737 = vadd.f32 0.0, %v4736
        %v4738 = vpop.f32.mrb[0].mxu0
        %4739 = vmatprep.mubr.f32.mxu0 0.0
        %4740 = vmatmul.mubr.f32.gmra.mrb[0].mxu0 %v1853
        %v4741 = vpop.f32.mrb[0].mxu0
        %v4742 = vadd.f32 0.0, %v4741
        %v4743 = vpop.f32.mrb[0].mxu0
        %4744 = vmatprep.mubr.f32.mxu0 0.0
        %4745 = vmatmul.mubr.f32.gmra.mrb[0].mxu0 %v1856
        %v4746 = vpop.f32.mrb[0].mxu0
        %v4747 = vadd.f32 0.0, %v4746
        %v4748 = vpop.f32.mrb[0].mxu0
        %4749 = vmatprep.mubr.f32.mxu0 0.0
        %4750 = vmatmul.mubr.f32.gmra.mrb[0].mxu0 %v1859
        %v4751 = vpop.f32.mrb[0].mxu0
        %v4752 = vadd.f32 0.0, %v4751
        %v4753 = vpop.f32.mrb[0].mxu0
        %4754 = vmatprep.mubr.f32.mxu0 0.0
        %4755 = vmatmul.mubr.f32.gmra.mrb[0].mxu0 %v1862
        %v4756 = vpop.f32.mrb[0].mxu0
        %v4757 = vadd.f32 0.0, %v4756
        %v4758 = vpop.f32.mrb[0].mxu0
        %4759 = vmatprep.mubr.f32.mxu0 0.0
        %4760 = vmatmul.mubr.f32.gmra.mrb[0].mxu0 %v1865
        %v4761 = vpop.f32.mrb[0].mxu0
        %v4762 = vadd.f32 0.0, %v4761
        %v4763 = vpop.f32.mrb[0].mxu0
        %4764 = vmatprep.mubr.f32.mxu0 0.0
        %4765 = vmatmul.mubr.f32.gmra.mrb[0].mxu0 %v1868
        %v4766 = vpop.f32.mrb[0].mxu0
        %v4767 = vadd.f32 0.0, %v4766
        %v4768 = vpop.f32.mrb[0].mxu0
        %4769 = vmatprep.mubr.f32.mxu0 0.0
        %4770 = vmatmul.mubr.f32.gmra.mrb[0].mxu0 %v1871
        %v4771 = vpop.f32.mrb[0].mxu0
        %v4772 = vadd.f32 0.0, %v4771
        %v4773 = vpop.f32.mrb[0].mxu0
        %4774 = vmatprep.mubr.f32.mxu0 0.0
        %4775 = vmatmul.mubr.f32.gmra.mrb[0].mxu0 %v1874
        %v4776 = vpop.f32.mrb[0].mxu0
        %v4777 = vadd.f32 0.0, %v4776
        %v4778 = vpop.f32.mrb[0].mxu0
        %4779 = vdwg.mxu0
        %v4780 = vld [vmem:[#allocation2 + $0x3f0] sm:$0xff]
        %v4781 = vld [vmem:[#allocation2 + $0x3f8] sm:$0xff]
        %v4782 = vld [vmem:[#allocation2 + $0x400] sm:$0xff]
        %v4783 = vld [vmem:[#allocation2 + $0x408] sm:$0xff]
        %v4784 = vld [vmem:[#allocation2 + $0x410] sm:$0xff]
        %v4785 = vld [vmem:[#allocation2 + $0x418] sm:$0xff]
        %v4786 = vld [vmem:[#allocation2 + $0x420] sm:$0xff]
        %v4787 = vld [vmem:[#allocation2 + $0x428] sm:$0xff]
        %v4788 = vld [vmem:[#allocation2 + $0x430] sm:$0xff]
        %v4789 = vld [vmem:[#allocation2 + $0x438] sm:$0xff]
        %v4790 = vld [vmem:[#allocation2 + $0x440] sm:$0xff]
        %v4791 = vld [vmem:[#allocation2 + $0x448] sm:$0xff]
        %v4792 = vld [vmem:[#allocation2 + $0x450] sm:$0xff]
        %v4793 = vld [vmem:[#allocation2 + $0x458] sm:$0xff]
        %v4794 = vld [vmem:[#allocation2 + $0x460] sm:$0xff]
        %v4795 = vld [vmem:[#allocation2 + $0x468] sm:$0xff]
        %4796 = vmatprep.subr.mxu0 0.0
        %4797 = vmatpush1.msra.mxu0 %v4780
        %4798 = vmatprep.subr.mxu0 0.0
        %4799 = vmatpush1.msra.mxu0 %v4781
        %4800 = vmatprep.subr.mxu0 0.0
        %4801 = vmatpush1.msra.mxu0 %v4782
        %4802 = vmatprep.subr.mxu0 0.0
        %4803 = vmatpush1.msra.mxu0 %v4783
        %4804 = vmatprep.subr.mxu0 0.0
        %4805 = vmatpush1.msra.mxu0 %v4784
        %4806 = vmatprep.subr.mxu0 0.0
        %4807 = vmatpush1.msra.mxu0 %v4785
        %4808 = vmatprep.subr.mxu0 0.0
        %4809 = vmatpush1.msra.mxu0 %v4786
        %4810 = vmatprep.subr.mxu0 0.0
        %4811 = vmatpush1.msra.mxu0 %v4787
        %4812 = vmatprep.subr.mxu0 0.0
        %4813 = vmatpush1.msra.mxu0 %v4788
        %4814 = vmatprep.subr.mxu0 0.0
        %4815 = vmatpush1.msra.mxu0 %v4789
        %4816 = vmatprep.subr.mxu0 0.0
        %4817 = vmatpush1.msra.mxu0 %v4790
        %4818 = vmatprep.subr.mxu0 0.0
        %4819 = vmatpush1.msra.mxu0 %v4791
        %4820 = vmatprep.subr.mxu0 0.0
        %4821 = vmatpush1.msra.mxu0 %v4792
        %4822 = vmatprep.subr.mxu0 0.0
        %4823 = vmatpush1.msra.mxu0 %v4793
        %4824 = vmatprep.subr.mxu0 0.0
        %4825 = vmatpush1.msra.mxu0 %v4794
        %4826 = vmatprep.subr.mxu0 0.0
        %4827 = vmatpush1.msra.mxu0 %v4795
        %4828 = vmatprep.subr.mxu0 0.0
        %4829 = vmatpush1.msra.mxu0 0.0
        %4830 = vmatprep.subr.mxu0 0.0
        %4831 = vmatpush1.msra.mxu0 0.0
        %4832 = vmatprep.subr.mxu0 0.0
        %4833 = vmatpush1.msra.mxu0 0.0
        %4834 = vmatprep.subr.mxu0 0.0
        %4835 = vmatpush1.msra.mxu0 0.0
        %4836 = vmatprep.subr.mxu0 0.0
        %4837 = vmatpush1.msra.mxu0 0.0
        %4838 = vmatprep.subr.mxu0 0.0
        %4839 = vmatpush1.msra.mxu0 0.0
        %4840 = vmatprep.subr.mxu0 0.0
        %4841 = vmatpush1.msra.mxu0 0.0
        %4842 = vmatprep.subr.mxu0 0.0
        %4843 = vmatpush1.msra.mxu0 0.0
        %4844 = vmatprep.subr.mxu0 0.0
        %4845 = vmatpush1.msra.mxu0 0.0
        %4846 = vmatprep.subr.mxu0 0.0
        %4847 = vmatpush1.msra.mxu0 0.0
        %4848 = vmatprep.subr.mxu0 0.0
        %4849 = vmatpush1.msra.mxu0 0.0
        %4850 = vmatprep.subr.mxu0 0.0
        %4851 = vmatpush1.msra.mxu0 0.0
        %4852 = vmatprep.subr.mxu0 0.0
        %4853 = vmatpush1.msra.mxu0 0.0
        %4854 = vmatprep.subr.mxu0 0.0
        %4855 = vmatpush1.msra.mxu0 0.0
        %4856 = vmatprep.subr.mxu0 0.0
        %4857 = vmatpush1.msra.mxu0 0.0
        %4858 = vmatprep.subr.mxu0 0.0
        %4859 = vmatpush1.msra.mxu0 0.0
        %4860 = vmatprep.mubr.f32.mxu0 0.0
        %4861 = vmatmul.mubr.f32.gmra.mrb[0].mxu0 %v4555
        %v4862 = vpop.f32.mrb[0].mxu0
        %v4863 = vadd.f32 0.0, %v4862
        %v4864 = vpop.f32.mrb[0].mxu0
        %4865 = vmatprep.mubr.f32.mxu0 0.0
        %4866 = vmatmul.mubr.f32.gmra.mrb[0].mxu0 %v4560
        %v4867 = vpop.f32.mrb[0].mxu0
        %v4868 = vadd.f32 0.0, %v4867
        %v4869 = vpop.f32.mrb[0].mxu0
        %4870 = vmatprep.mubr.f32.mxu0 0.0
        %4871 = vmatmul.mubr.f32.gmra.mrb[0].mxu0 %v4565
        %v4872 = vpop.f32.mrb[0].mxu0
        %v4873 = vadd.f32 0.0, %v4872
        %v4874 = vpop.f32.mrb[0].mxu0
        %4875 = vmatprep.mubr.f32.mxu0 0.0
        %4876 = vmatmul.mubr.f32.gmra.mrb[0].mxu0 %v4570
        %v4877 = vpop.f32.mrb[0].mxu0
        %v4878 = vadd.f32 0.0, %v4877
        %v4879 = vpop.f32.mrb[0].mxu0
        %4880 = vmatprep.mubr.f32.mxu0 0.0
        %4881 = vmatmul.mubr.f32.gmra.mrb[0].mxu0 %v4575
        %v4882 = vpop.f32.mrb[0].mxu0
        %v4883 = vadd.f32 0.0, %v4882
        %v4884 = vpop.f32.mrb[0].mxu0
        %4885 = vmatprep.mubr.f32.mxu0 0.0
        %4886 = vmatmul.mubr.f32.gmra.mrb[0].mxu0 %v4580
        %v4887 = vpop.f32.mrb[0].mxu0
        %v4888 = vadd.f32 0.0, %v4887
        %v4889 = vpop.f32.mrb[0].mxu0
        %4890 = vmatprep.mubr.f32.mxu0 0.0
        %4891 = vmatmul.mubr.f32.gmra.mrb[0].mxu0 %v4585
        %v4892 = vpop.f32.mrb[0].mxu0
        %v4893 = vadd.f32 0.0, %v4892
        %v4894 = vpop.f32.mrb[0].mxu0
        %4895 = vmatprep.mubr.f32.mxu0 0.0
        %4896 = vmatmul.mubr.f32.gmra.mrb[0].mxu0 %v4590
        %v4897 = vpop.f32.mrb[0].mxu0
        %v4898 = vadd.f32 0.0, %v4897
        %v4899 = vpop.f32.mrb[0].mxu0
        %4900 = vmatprep.mubr.f32.mxu0 0.0
        %4901 = vmatmul.mubr.f32.gmra.mrb[0].mxu0 %v4595
        %v4902 = vpop.f32.mrb[0].mxu0
        %v4903 = vadd.f32 0.0, %v4902
        %v4904 = vpop.f32.mrb[0].mxu0
        %4905 = vmatprep.mubr.f32.mxu0 0.0
        %4906 = vmatmul.mubr.f32.gmra.mrb[0].mxu0 %v4600
        %v4907 = vpop.f32.mrb[0].mxu0
        %v4908 = vadd.f32 0.0, %v4907
        %v4909 = vpop.f32.mrb[0].mxu0
        %4910 = vmatprep.mubr.f32.mxu0 0.0
        %4911 = vmatmul.mubr.f32.gmra.mrb[0].mxu0 %v4605
        %v4912 = vpop.f32.mrb[0].mxu0
        %v4913 = vadd.f32 0.0, %v4912
        %v4914 = vpop.f32.mrb[0].mxu0
        %4915 = vmatprep.mubr.f32.mxu0 0.0
        %4916 = vmatmul.mubr.f32.gmra.mrb[0].mxu0 %v4610
        %v4917 = vpop.f32.mrb[0].mxu0
        %v4918 = vadd.f32 0.0, %v4917
        %v4919 = vpop.f32.mrb[0].mxu0
        %4920 = vmatprep.mubr.f32.mxu0 0.0
        %4921 = vmatmul.mubr.f32.gmra.mrb[0].mxu0 %v4615
        %v4922 = vpop.f32.mrb[0].mxu0
        %v4923 = vadd.f32 0.0, %v4922
        %v4924 = vpop.f32.mrb[0].mxu0
        %4925 = vmatprep.mubr.f32.mxu0 0.0
        %4926 = vmatmul.mubr.f32.gmra.mrb[0].mxu0 %v4620
        %v4927 = vpop.f32.mrb[0].mxu0
        %v4928 = vadd.f32 0.0, %v4927
        %v4929 = vpop.f32.mrb[0].mxu0
        %4930 = vmatprep.mubr.f32.mxu0 0.0
        %4931 = vmatmul.mubr.f32.gmra.mrb[0].mxu0 %v4625
        %v4932 = vpop.f32.mrb[0].mxu0
        %v4933 = vadd.f32 0.0, %v4932
        %v4934 = vpop.f32.mrb[0].mxu0
        %4935 = vmatprep.mubr.f32.mxu0 0.0
        %4936 = vmatmul.mubr.f32.gmra.mrb[0].mxu0 %v4630
        %v4937 = vpop.f32.mrb[0].mxu0
        %v4938 = vadd.f32 0.0, %v4937
        %v4939 = vpop.f32.mrb[0].mxu0
        %4940 = vdwg.mxu0
        %v4941 = vmul.f32 %v4702, %v4863
        %v4942 = vmul.f32 %v4707, %v4868
        %v4943 = vmul.f32 %v4712, %v4873
        %v4944 = vmul.f32 %v4717, %v4878
        %v4945 = vmul.f32 %v4722, %v4883
        %v4946 = vmul.f32 %v4727, %v4888
        %v4947 = vmul.f32 %v4732, %v4893
        %v4948 = vmul.f32 %v4737, %v4898
        %v4949 = vmul.f32 %v4742, %v4903
        %v4950 = vmul.f32 %v4747, %v4908
        %v4951 = vmul.f32 %v4752, %v4913
        %v4952 = vmul.f32 %v4757, %v4918
        %v4953 = vmul.f32 %v4762, %v4923
        %v4954 = vmul.f32 %v4767, %v4928
        %v4955 = vmul.f32 %v4772, %v4933
        %v4956 = vmul.f32 %v4777, %v4938
        %v4957 = vld [vmem:[#allocation2 + $0x3c0] sm:$0xff]
        %v4958 = vld [vmem:[#allocation2 + $0x3c8] sm:$0xff]
        %4959 = vmatprep.subr.mxu0 0.0
        %4960 = vmatpush1.msra.mxu0 %v4957
        %4961 = vmatprep.subr.mxu0 0.0
        %4962 = vmatpush1.msra.mxu0 %v4958
        %4963 = vmatprep.subr.mxu0 0.0
        %4964 = vmatpush1.msra.mxu0 0.0
        %4965 = vmatprep.subr.mxu0 0.0
        %4966 = vmatpush1.msra.mxu0 0.0
        %4967 = vmatprep.subr.mxu0 0.0
        %4968 = vmatpush1.msra.mxu0 0.0
        %4969 = vmatprep.subr.mxu0 0.0
        %4970 = vmatpush1.msra.mxu0 0.0
        %4971 = vmatprep.subr.mxu0 0.0
        %4972 = vmatpush1.msra.mxu0 0.0
        %4973 = vmatprep.subr.mxu0 0.0
        %4974 = vmatpush1.msra.mxu0 0.0
        %4975 = vmatprep.subr.mxu0 0.0
        %4976 = vmatpush1.msra.mxu0 0.0
        %4977 = vmatprep.subr.mxu0 0.0
        %4978 = vmatpush1.msra.mxu0 0.0
        %4979 = vmatprep.subr.mxu0 0.0
        %4980 = vmatpush1.msra.mxu0 0.0
        %4981 = vmatprep.subr.mxu0 0.0
        %4982 = vmatpush1.msra.mxu0 0.0
        %4983 = vmatprep.subr.mxu0 0.0
        %4984 = vmatpush1.msra.mxu0 0.0
        %4985 = vmatprep.subr.mxu0 0.0
        %4986 = vmatpush1.msra.mxu0 0.0
        %4987 = vmatprep.subr.mxu0 0.0
        %4988 = vmatpush1.msra.mxu0 0.0
        %4989 = vmatprep.subr.mxu0 0.0
        %4990 = vmatpush1.msra.mxu0 0.0
        %4991 = vmatprep.subr.mxu0 0.0
        %4992 = vmatpush1.msra.mxu0 0.0
        %4993 = vmatprep.subr.mxu0 0.0
        %4994 = vmatpush1.msra.mxu0 0.0
        %4995 = vmatprep.subr.mxu0 0.0
        %4996 = vmatpush1.msra.mxu0 0.0
        %4997 = vmatprep.subr.mxu0 0.0
        %4998 = vmatpush1.msra.mxu0 0.0
        %4999 = vmatprep.subr.mxu0 0.0
        %5000 = vmatpush1.msra.mxu0 0.0
        %5001 = vmatprep.subr.mxu0 0.0
        %5002 = vmatpush1.msra.mxu0 0.0
        %5003 = vmatprep.subr.mxu0 0.0
        %5004 = vmatpush1.msra.mxu0 0.0
        %5005 = vmatprep.subr.mxu0 0.0
        %5006 = vmatpush1.msra.mxu0 0.0
        %5007 = vmatprep.subr.mxu0 0.0
        %5008 = vmatpush1.msra.mxu0 0.0
        %5009 = vmatprep.subr.mxu0 0.0
        %5010 = vmatpush1.msra.mxu0 0.0
        %5011 = vmatprep.subr.mxu0 0.0
        %5012 = vmatpush1.msra.mxu0 0.0
        %5013 = vmatprep.subr.mxu0 0.0
        %5014 = vmatpush1.msra.mxu0 0.0
        %5015 = vmatprep.subr.mxu0 0.0
        %5016 = vmatpush1.msra.mxu0 0.0
        %5017 = vmatprep.subr.mxu0 0.0
        %5018 = vmatpush1.msra.mxu0 0.0
        %5019 = vmatprep.subr.mxu0 0.0
        %5020 = vmatpush1.msra.mxu0 0.0
        %5021 = vmatprep.subr.mxu0 0.0
        %5022 = vmatpush1.msra.mxu0 0.0
        %5023 = vmatprep.mubr.f32.mxu0 0.0
        %5024 = vmatmul.mubr.f32.gmra.mrb[0].mxu0 %v1829
        %v5025 = vpop.f32.mrb[0].mxu0
        %v5026 = vadd.f32 0.0, %v5025
        %v5027 = vpop.f32.mrb[0].mxu0
        %5028 = vmatprep.mubr.f32.mxu0 0.0
        %5029 = vmatmul.mubr.f32.gmra.mrb[0].mxu0 %v1832
        %v5030 = vpop.f32.mrb[0].mxu0
        %v5031 = vadd.f32 0.0, %v5030
        %v5032 = vpop.f32.mrb[0].mxu0
        %5033 = vmatprep.mubr.f32.mxu0 0.0
        %5034 = vmatmul.mubr.f32.gmra.mrb[0].mxu0 %v1835
        %v5035 = vpop.f32.mrb[0].mxu0
        %v5036 = vadd.f32 0.0, %v5035
        %v5037 = vpop.f32.mrb[0].mxu0
        %5038 = vmatprep.mubr.f32.mxu0 0.0
        %5039 = vmatmul.mubr.f32.gmra.mrb[0].mxu0 %v1838
        %v5040 = vpop.f32.mrb[0].mxu0
        %v5041 = vadd.f32 0.0, %v5040
        %v5042 = vpop.f32.mrb[0].mxu0
        %5043 = vmatprep.mubr.f32.mxu0 0.0
        %5044 = vmatmul.mubr.f32.gmra.mrb[0].mxu0 %v1841
        %v5045 = vpop.f32.mrb[0].mxu0
        %v5046 = vadd.f32 0.0, %v5045
        %v5047 = vpop.f32.mrb[0].mxu0
        %5048 = vmatprep.mubr.f32.mxu0 0.0
        %5049 = vmatmul.mubr.f32.gmra.mrb[0].mxu0 %v1844
        %v5050 = vpop.f32.mrb[0].mxu0
        %v5051 = vadd.f32 0.0, %v5050
        %v5052 = vpop.f32.mrb[0].mxu0
        %5053 = vmatprep.mubr.f32.mxu0 0.0
        %5054 = vmatmul.mubr.f32.gmra.mrb[0].mxu0 %v1847
        %v5055 = vpop.f32.mrb[0].mxu0
        %v5056 = vadd.f32 0.0, %v5055
        %v5057 = vpop.f32.mrb[0].mxu0
        %5058 = vmatprep.mubr.f32.mxu0 0.0
        %5059 = vmatmul.mubr.f32.gmra.mrb[0].mxu0 %v1850
        %v5060 = vpop.f32.mrb[0].mxu0
        %v5061 = vadd.f32 0.0, %v5060
        %v5062 = vpop.f32.mrb[0].mxu0
        %5063 = vmatprep.mubr.f32.mxu0 0.0
        %5064 = vmatmul.mubr.f32.gmra.mrb[0].mxu0 %v1853
        %v5065 = vpop.f32.mrb[0].mxu0
        %v5066 = vadd.f32 0.0, %v5065
        %v5067 = vpop.f32.mrb[0].mxu0
        %5068 = vmatprep.mubr.f32.mxu0 0.0
        %5069 = vmatmul.mubr.f32.gmra.mrb[0].mxu0 %v1856
        %v5070 = vpop.f32.mrb[0].mxu0
        %v5071 = vadd.f32 0.0, %v5070
        %v5072 = vpop.f32.mrb[0].mxu0
        %5073 = vmatprep.mubr.f32.mxu0 0.0
        %5074 = vmatmul.mubr.f32.gmra.mrb[0].mxu0 %v1859
        %v5075 = vpop.f32.mrb[0].mxu0
        %v5076 = vadd.f32 0.0, %v5075
        %v5077 = vpop.f32.mrb[0].mxu0
        %5078 = vmatprep.mubr.f32.mxu0 0.0
        %5079 = vmatmul.mubr.f32.gmra.mrb[0].mxu0 %v1862
        %v5080 = vpop.f32.mrb[0].mxu0
        %v5081 = vadd.f32 0.0, %v5080
        %v5082 = vpop.f32.mrb[0].mxu0
        %5083 = vmatprep.mubr.f32.mxu0 0.0
        %5084 = vmatmul.mubr.f32.gmra.mrb[0].mxu0 %v1865
        %v5085 = vpop.f32.mrb[0].mxu0
        %v5086 = vadd.f32 0.0, %v5085
        %v5087 = vpop.f32.mrb[0].mxu0
        %5088 = vmatprep.mubr.f32.mxu0 0.0
        %5089 = vmatmul.mubr.f32.gmra.mrb[0].mxu0 %v1868
        %v5090 = vpop.f32.mrb[0].mxu0
        %v5091 = vadd.f32 0.0, %v5090
        %v5092 = vpop.f32.mrb[0].mxu0
        %5093 = vmatprep.mubr.f32.mxu0 0.0
        %5094 = vmatmul.mubr.f32.gmra.mrb[0].mxu0 %v1871
        %v5095 = vpop.f32.mrb[0].mxu0
        %v5096 = vadd.f32 0.0, %v5095
        %v5097 = vpop.f32.mrb[0].mxu0
        %5098 = vmatprep.mubr.f32.mxu0 0.0
        %5099 = vmatmul.mubr.f32.gmra.mrb[0].mxu0 %v1874
        %v5100 = vpop.f32.mrb[0].mxu0
        %v5101 = vadd.f32 0.0, %v5100
        %v5102 = vpop.f32.mrb[0].mxu0
        %5103 = vdwg.mxu0
        %v5104 = vld [vmem:[#allocation2 + $0x470] sm:$0xff]
        %v5105 = vld [vmem:[#allocation2 + $0x478] sm:$0xff]
        %v5106 = vld [vmem:[#allocation2 + $0x480] sm:$0xff]
        %v5107 = vld [vmem:[#allocation2 + $0x488] sm:$0xff]
        %v5108 = vld [vmem:[#allocation2 + $0x490] sm:$0xff]
        %v5109 = vld [vmem:[#allocation2 + $0x498] sm:$0xff]
        %v5110 = vld [vmem:[#allocation2 + $0x4a0] sm:$0xff]
        %v5111 = vld [vmem:[#allocation2 + $0x4a8] sm:$0xff]
        %v5112 = vld [vmem:[#allocation2 + $0x4b0] sm:$0xff]
        %v5113 = vld [vmem:[#allocation2 + $0x4b8] sm:$0xff]
        %v5114 = vld [vmem:[#allocation2 + $0x4c0] sm:$0xff]
        %v5115 = vld [vmem:[#allocation2 + $0x4c8] sm:$0xff]
        %v5116 = vld [vmem:[#allocation2 + $0x4d0] sm:$0xff]
        %v5117 = vld [vmem:[#allocation2 + $0x4d8] sm:$0xff]
        %v5118 = vld [vmem:[#allocation2 + $0x4e0] sm:$0xff]
        %v5119 = vld [vmem:[#allocation2 + $0x4e8] sm:$0xff]
        %5120 = vmatprep.subr.mxu0 0.0
        %5121 = vmatpush1.msra.mxu0 %v5104
        %5122 = vmatprep.subr.mxu0 0.0
        %5123 = vmatpush1.msra.mxu0 %v5105
        %5124 = vmatprep.subr.mxu0 0.0
        %5125 = vmatpush1.msra.mxu0 %v5106
        %5126 = vmatprep.subr.mxu0 0.0
        %5127 = vmatpush1.msra.mxu0 %v5107
        %5128 = vmatprep.subr.mxu0 0.0
        %5129 = vmatpush1.msra.mxu0 %v5108
        %5130 = vmatprep.subr.mxu0 0.0
        %5131 = vmatpush1.msra.mxu0 %v5109
        %5132 = vmatprep.subr.mxu0 0.0
        %5133 = vmatpush1.msra.mxu0 %v5110
        %5134 = vmatprep.subr.mxu0 0.0
        %5135 = vmatpush1.msra.mxu0 %v5111
        %5136 = vmatprep.subr.mxu0 0.0
        %5137 = vmatpush1.msra.mxu0 %v5112
        %5138 = vmatprep.subr.mxu0 0.0
        %5139 = vmatpush1.msra.mxu0 %v5113
        %5140 = vmatprep.subr.mxu0 0.0
        %5141 = vmatpush1.msra.mxu0 %v5114
        %5142 = vmatprep.subr.mxu0 0.0
        %5143 = vmatpush1.msra.mxu0 %v5115
        %5144 = vmatprep.subr.mxu0 0.0
        %5145 = vmatpush1.msra.mxu0 %v5116
        %5146 = vmatprep.subr.mxu0 0.0
        %5147 = vmatpush1.msra.mxu0 %v5117
        %5148 = vmatprep.subr.mxu0 0.0
        %5149 = vmatpush1.msra.mxu0 %v5118
        %5150 = vmatprep.subr.mxu0 0.0
        %5151 = vmatpush1.msra.mxu0 %v5119
        %5152 = vmatprep.subr.mxu0 0.0
        %5153 = vmatpush1.msra.mxu0 0.0
        %5154 = vmatprep.subr.mxu0 0.0
        %5155 = vmatpush1.msra.mxu0 0.0
        %5156 = vmatprep.subr.mxu0 0.0
        %5157 = vmatpush1.msra.mxu0 0.0
        %5158 = vmatprep.subr.mxu0 0.0
        %5159 = vmatpush1.msra.mxu0 0.0
        %5160 = vmatprep.subr.mxu0 0.0
        %5161 = vmatpush1.msra.mxu0 0.0
        %5162 = vmatprep.subr.mxu0 0.0
        %5163 = vmatpush1.msra.mxu0 0.0
        %5164 = vmatprep.subr.mxu0 0.0
        %5165 = vmatpush1.msra.mxu0 0.0
        %5166 = vmatprep.subr.mxu0 0.0
        %5167 = vmatpush1.msra.mxu0 0.0
        %5168 = vmatprep.subr.mxu0 0.0
        %5169 = vmatpush1.msra.mxu0 0.0
        %5170 = vmatprep.subr.mxu0 0.0
        %5171 = vmatpush1.msra.mxu0 0.0
        %5172 = vmatprep.subr.mxu0 0.0
        %5173 = vmatpush1.msra.mxu0 0.0
        %5174 = vmatprep.subr.mxu0 0.0
        %5175 = vmatpush1.msra.mxu0 0.0
        %5176 = vmatprep.subr.mxu0 0.0
        %5177 = vmatpush1.msra.mxu0 0.0
        %5178 = vmatprep.subr.mxu0 0.0
        %5179 = vmatpush1.msra.mxu0 0.0
        %5180 = vmatprep.subr.mxu0 0.0
        %5181 = vmatpush1.msra.mxu0 0.0
        %5182 = vmatprep.subr.mxu0 0.0
        %5183 = vmatpush1.msra.mxu0 0.0
        %5184 = vmatprep.mubr.f32.mxu0 0.0
        %5185 = vmatmul.mubr.f32.gmra.mrb[0].mxu0 %v4555
        %v5186 = vpop.f32.mrb[0].mxu0
        %v5187 = vadd.f32 0.0, %v5186
        %v5188 = vpop.f32.mrb[0].mxu0
        %5189 = vmatprep.mubr.f32.mxu0 0.0
        %5190 = vmatmul.mubr.f32.gmra.mrb[0].mxu0 %v4560
        %v5191 = vpop.f32.mrb[0].mxu0
        %v5192 = vadd.f32 0.0, %v5191
        %v5193 = vpop.f32.mrb[0].mxu0
        %5194 = vmatprep.mubr.f32.mxu0 0.0
        %5195 = vmatmul.mubr.f32.gmra.mrb[0].mxu0 %v4565
        %v5196 = vpop.f32.mrb[0].mxu0
        %v5197 = vadd.f32 0.0, %v5196
        %v5198 = vpop.f32.mrb[0].mxu0
        %5199 = vmatprep.mubr.f32.mxu0 0.0
        %5200 = vmatmul.mubr.f32.gmra.mrb[0].mxu0 %v4570
        %v5201 = vpop.f32.mrb[0].mxu0
        %v5202 = vadd.f32 0.0, %v5201
        %v5203 = vpop.f32.mrb[0].mxu0
        %5204 = vmatprep.mubr.f32.mxu0 0.0
        %5205 = vmatmul.mubr.f32.gmra.mrb[0].mxu0 %v4575
        %v5206 = vpop.f32.mrb[0].mxu0
        %v5207 = vadd.f32 0.0, %v5206
        %v5208 = vpop.f32.mrb[0].mxu0
        %5209 = vmatprep.mubr.f32.mxu0 0.0
        %5210 = vmatmul.mubr.f32.gmra.mrb[0].mxu0 %v4580
        %v5211 = vpop.f32.mrb[0].mxu0
        %v5212 = vadd.f32 0.0, %v5211
        %v5213 = vpop.f32.mrb[0].mxu0
        %5214 = vmatprep.mubr.f32.mxu0 0.0
        %5215 = vmatmul.mubr.f32.gmra.mrb[0].mxu0 %v4585
        %v5216 = vpop.f32.mrb[0].mxu0
        %v5217 = vadd.f32 0.0, %v5216
        %v5218 = vpop.f32.mrb[0].mxu0
        %5219 = vmatprep.mubr.f32.mxu0 0.0
        %5220 = vmatmul.mubr.f32.gmra.mrb[0].mxu0 %v4590
        %v5221 = vpop.f32.mrb[0].mxu0
        %v5222 = vadd.f32 0.0, %v5221
        %v5223 = vpop.f32.mrb[0].mxu0
        %5224 = vmatprep.mubr.f32.mxu0 0.0
        %5225 = vmatmul.mubr.f32.gmra.mrb[0].mxu0 %v4595
        %v5226 = vpop.f32.mrb[0].mxu0
        %v5227 = vadd.f32 0.0, %v5226
        %v5228 = vpop.f32.mrb[0].mxu0
        %5229 = vmatprep.mubr.f32.mxu0 0.0
        %5230 = vmatmul.mubr.f32.gmra.mrb[0].mxu0 %v4600
        %v5231 = vpop.f32.mrb[0].mxu0
        %v5232 = vadd.f32 0.0, %v5231
        %v5233 = vpop.f32.mrb[0].mxu0
        %5234 = vmatprep.mubr.f32.mxu0 0.0
        %5235 = vmatmul.mubr.f32.gmra.mrb[0].mxu0 %v4605
        %v5236 = vpop.f32.mrb[0].mxu0
        %v5237 = vadd.f32 0.0, %v5236
        %v5238 = vpop.f32.mrb[0].mxu0
        %5239 = vmatprep.mubr.f32.mxu0 0.0
        %5240 = vmatmul.mubr.f32.gmra.mrb[0].mxu0 %v4610
        %v5241 = vpop.f32.mrb[0].mxu0
        %v5242 = vadd.f32 0.0, %v5241
        %v5243 = vpop.f32.mrb[0].mxu0
        %5244 = vmatprep.mubr.f32.mxu0 0.0
        %5245 = vmatmul.mubr.f32.gmra.mrb[0].mxu0 %v4615
        %v5246 = vpop.f32.mrb[0].mxu0
        %v5247 = vadd.f32 0.0, %v5246
        %v5248 = vpop.f32.mrb[0].mxu0
        %5249 = vmatprep.mubr.f32.mxu0 0.0
        %5250 = vmatmul.mubr.f32.gmra.mrb[0].mxu0 %v4620
        %v5251 = vpop.f32.mrb[0].mxu0
        %v5252 = vadd.f32 0.0, %v5251
        %v5253 = vpop.f32.mrb[0].mxu0
        %5254 = vmatprep.mubr.f32.mxu0 0.0
        %5255 = vmatmul.mubr.f32.gmra.mrb[0].mxu0 %v4625
        %v5256 = vpop.f32.mrb[0].mxu0
        %v5257 = vadd.f32 0.0, %v5256
        %v5258 = vpop.f32.mrb[0].mxu0
        %5259 = vmatprep.mubr.f32.mxu0 0.0
        %5260 = vmatmul.mubr.f32.gmra.mrb[0].mxu0 %v4630
        %v5261 = vpop.f32.mrb[0].mxu0
        %v5262 = vadd.f32 0.0, %v5261
        %v5263 = vpop.f32.mrb[0].mxu0
        %5264 = vdwg.mxu0
        %v5265 = vmul.f32 %v5026, %v5187
        %v5266 = vmul.f32 %v5031, %v5192
        %v5267 = vmul.f32 %v5036, %v5197
        %v5268 = vmul.f32 %v5041, %v5202
        %v5269 = vmul.f32 %v5046, %v5207
        %v5270 = vmul.f32 %v5051, %v5212
        %v5271 = vmul.f32 %v5056, %v5217
        %v5272 = vmul.f32 %v5061, %v5222
        %v5273 = vmul.f32 %v5066, %v5227
        %v5274 = vmul.f32 %v5071, %v5232
        %v5275 = vmul.f32 %v5076, %v5237
        %v5276 = vmul.f32 %v5081, %v5242
        %v5277 = vmul.f32 %v5086, %v5247
        %v5278 = vmul.f32 %v5091, %v5252
        %v5279 = vmul.f32 %v5096, %v5257
        %v5280 = vmul.f32 %v5101, %v5262
        %v5281 = vadd.f32 %v4941, %v5265
        %v5282 = vadd.f32 %v4942, %v5266
        %v5283 = vadd.f32 %v4943, %v5267
        %v5284 = vadd.f32 %v4944, %v5268
        %v5285 = vadd.f32 %v4945, %v5269
        %v5286 = vadd.f32 %v4946, %v5270
        %v5287 = vadd.f32 %v4947, %v5271
        %v5288 = vadd.f32 %v4948, %v5272
        %v5289 = vadd.f32 %v4949, %v5273
        %v5290 = vadd.f32 %v4950, %v5274
        %v5291 = vadd.f32 %v4951, %v5275
        %v5292 = vadd.f32 %v4952, %v5276
        %v5293 = vadd.f32 %v4953, %v5277
        %v5294 = vadd.f32 %v4954, %v5278
        %v5295 = vadd.f32 %v4955, %v5279
        %v5296 = vadd.f32 %v4956, %v5280
        %v5297 = vld [vmem:[#allocation2 + $0x3d0] sm:$0xff]
        %v5298 = vld [vmem:[#allocation2 + $0x3d8] sm:$0xff]
        %5299 = vmatprep.subr.mxu0 0.0
        %5300 = vmatpush1.msra.mxu0 %v5297
        %5301 = vmatprep.subr.mxu0 0.0
        %5302 = vmatpush1.msra.mxu0 %v5298
        %5303 = vmatprep.subr.mxu0 0.0
        %5304 = vmatpush1.msra.mxu0 0.0
        %5305 = vmatprep.subr.mxu0 0.0
        %5306 = vmatpush1.msra.mxu0 0.0
        %5307 = vmatprep.subr.mxu0 0.0
        %5308 = vmatpush1.msra.mxu0 0.0
        %5309 = vmatprep.subr.mxu0 0.0
        %5310 = vmatpush1.msra.mxu0 0.0
        %5311 = vmatprep.subr.mxu0 0.0
        %5312 = vmatpush1.msra.mxu0 0.0
        %5313 = vmatprep.subr.mxu0 0.0
        %5314 = vmatpush1.msra.mxu0 0.0
        %5315 = vmatprep.subr.mxu0 0.0
        %5316 = vmatpush1.msra.mxu0 0.0
        %5317 = vmatprep.subr.mxu0 0.0
        %5318 = vmatpush1.msra.mxu0 0.0
        %5319 = vmatprep.subr.mxu0 0.0
        %5320 = vmatpush1.msra.mxu0 0.0
        %5321 = vmatprep.subr.mxu0 0.0
        %5322 = vmatpush1.msra.mxu0 0.0
        %5323 = vmatprep.subr.mxu0 0.0
        %5324 = vmatpush1.msra.mxu0 0.0
        %5325 = vmatprep.subr.mxu0 0.0
        %5326 = vmatpush1.msra.mxu0 0.0
        %5327 = vmatprep.subr.mxu0 0.0
        %5328 = vmatpush1.msra.mxu0 0.0
        %5329 = vmatprep.subr.mxu0 0.0
        %5330 = vmatpush1.msra.mxu0 0.0
        %5331 = vmatprep.subr.mxu0 0.0
        %5332 = vmatpush1.msra.mxu0 0.0
        %5333 = vmatprep.subr.mxu0 0.0
        %5334 = vmatpush1.msra.mxu0 0.0
        %5335 = vmatprep.subr.mxu0 0.0
        %5336 = vmatpush1.msra.mxu0 0.0
        %5337 = vmatprep.subr.mxu0 0.0
        %5338 = vmatpush1.msra.mxu0 0.0
        %5339 = vmatprep.subr.mxu0 0.0
        %5340 = vmatpush1.msra.mxu0 0.0
        %5341 = vmatprep.subr.mxu0 0.0
        %5342 = vmatpush1.msra.mxu0 0.0
        %5343 = vmatprep.subr.mxu0 0.0
        %5344 = vmatpush1.msra.mxu0 0.0
        %5345 = vmatprep.subr.mxu0 0.0
        %5346 = vmatpush1.msra.mxu0 0.0
        %5347 = vmatprep.subr.mxu0 0.0
        %5348 = vmatpush1.msra.mxu0 0.0
        %5349 = vmatprep.subr.mxu0 0.0
        %5350 = vmatpush1.msra.mxu0 0.0
        %5351 = vmatprep.subr.mxu0 0.0
        %5352 = vmatpush1.msra.mxu0 0.0
        %5353 = vmatprep.subr.mxu0 0.0
        %5354 = vmatpush1.msra.mxu0 0.0
        %5355 = vmatprep.subr.mxu0 0.0
        %5356 = vmatpush1.msra.mxu0 0.0
        %5357 = vmatprep.subr.mxu0 0.0
        %5358 = vmatpush1.msra.mxu0 0.0
        %5359 = vmatprep.subr.mxu0 0.0
        %5360 = vmatpush1.msra.mxu0 0.0
        %5361 = vmatprep.subr.mxu0 0.0
        %5362 = vmatpush1.msra.mxu0 0.0
        %5363 = vmatprep.mubr.f32.mxu0 0.0
        %5364 = vmatmul.mubr.f32.gmra.mrb[0].mxu0 %v1829
        %v5365 = vpop.f32.mrb[0].mxu0
        %v5366 = vadd.f32 0.0, %v5365
        %v5367 = vpop.f32.mrb[0].mxu0
        %5368 = vmatprep.mubr.f32.mxu0 0.0
        %5369 = vmatmul.mubr.f32.gmra.mrb[0].mxu0 %v1832
        %v5370 = vpop.f32.mrb[0].mxu0
        %v5371 = vadd.f32 0.0, %v5370
        %v5372 = vpop.f32.mrb[0].mxu0
        %5373 = vmatprep.mubr.f32.mxu0 0.0
        %5374 = vmatmul.mubr.f32.gmra.mrb[0].mxu0 %v1835
        %v5375 = vpop.f32.mrb[0].mxu0
        %v5376 = vadd.f32 0.0, %v5375
        %v5377 = vpop.f32.mrb[0].mxu0
        %5378 = vmatprep.mubr.f32.mxu0 0.0
        %5379 = vmatmul.mubr.f32.gmra.mrb[0].mxu0 %v1838
        %v5380 = vpop.f32.mrb[0].mxu0
        %v5381 = vadd.f32 0.0, %v5380
        %v5382 = vpop.f32.mrb[0].mxu0
        %5383 = vmatprep.mubr.f32.mxu0 0.0
        %5384 = vmatmul.mubr.f32.gmra.mrb[0].mxu0 %v1841
        %v5385 = vpop.f32.mrb[0].mxu0
        %v5386 = vadd.f32 0.0, %v5385
        %v5387 = vpop.f32.mrb[0].mxu0
        %5388 = vmatprep.mubr.f32.mxu0 0.0
        %5389 = vmatmul.mubr.f32.gmra.mrb[0].mxu0 %v1844
        %v5390 = vpop.f32.mrb[0].mxu0
        %v5391 = vadd.f32 0.0, %v5390
        %v5392 = vpop.f32.mrb[0].mxu0
        %5393 = vmatprep.mubr.f32.mxu0 0.0
        %5394 = vmatmul.mubr.f32.gmra.mrb[0].mxu0 %v1847
        %v5395 = vpop.f32.mrb[0].mxu0
        %v5396 = vadd.f32 0.0, %v5395
        %v5397 = vpop.f32.mrb[0].mxu0
        %5398 = vmatprep.mubr.f32.mxu0 0.0
        %5399 = vmatmul.mubr.f32.gmra.mrb[0].mxu0 %v1850
        %v5400 = vpop.f32.mrb[0].mxu0
        %v5401 = vadd.f32 0.0, %v5400
        %v5402 = vpop.f32.mrb[0].mxu0
        %5403 = vmatprep.mubr.f32.mxu0 0.0
        %5404 = vmatmul.mubr.f32.gmra.mrb[0].mxu0 %v1853
        %v5405 = vpop.f32.mrb[0].mxu0
        %v5406 = vadd.f32 0.0, %v5405
        %v5407 = vpop.f32.mrb[0].mxu0
        %5408 = vmatprep.mubr.f32.mxu0 0.0
        %5409 = vmatmul.mubr.f32.gmra.mrb[0].mxu0 %v1856
        %v5410 = vpop.f32.mrb[0].mxu0
        %v5411 = vadd.f32 0.0, %v5410
        %v5412 = vpop.f32.mrb[0].mxu0
        %5413 = vmatprep.mubr.f32.mxu0 0.0
        %5414 = vmatmul.mubr.f32.gmra.mrb[0].mxu0 %v1859
        %v5415 = vpop.f32.mrb[0].mxu0
        %v5416 = vadd.f32 0.0, %v5415
        %v5417 = vpop.f32.mrb[0].mxu0
        %5418 = vmatprep.mubr.f32.mxu0 0.0
        %5419 = vmatmul.mubr.f32.gmra.mrb[0].mxu0 %v1862
        %v5420 = vpop.f32.mrb[0].mxu0
        %v5421 = vadd.f32 0.0, %v5420
        %v5422 = vpop.f32.mrb[0].mxu0
        %5423 = vmatprep.mubr.f32.mxu0 0.0
        %5424 = vmatmul.mubr.f32.gmra.mrb[0].mxu0 %v1865
        %v5425 = vpop.f32.mrb[0].mxu0
        %v5426 = vadd.f32 0.0, %v5425
        %v5427 = vpop.f32.mrb[0].mxu0
        %5428 = vmatprep.mubr.f32.mxu0 0.0
        %5429 = vmatmul.mubr.f32.gmra.mrb[0].mxu0 %v1868
        %v5430 = vpop.f32.mrb[0].mxu0
        %v5431 = vadd.f32 0.0, %v5430
        %v5432 = vpop.f32.mrb[0].mxu0
        %5433 = vmatprep.mubr.f32.mxu0 0.0
        %5434 = vmatmul.mubr.f32.gmra.mrb[0].mxu0 %v1871
        %v5435 = vpop.f32.mrb[0].mxu0
        %v5436 = vadd.f32 0.0, %v5435
        %v5437 = vpop.f32.mrb[0].mxu0
        %5438 = vmatprep.mubr.f32.mxu0 0.0
        %5439 = vmatmul.mubr.f32.gmra.mrb[0].mxu0 %v1874
        %v5440 = vpop.f32.mrb[0].mxu0
        %v5441 = vadd.f32 0.0, %v5440
        %v5442 = vpop.f32.mrb[0].mxu0
        %5443 = vdwg.mxu0
        %v5444 = vld [vmem:[#allocation2 + $0x4f0] sm:$0xff]
        %v5445 = vld [vmem:[#allocation2 + $0x4f8] sm:$0xff]
        %v5446 = vld [vmem:[#allocation2 + $0x500] sm:$0xff]
        %v5447 = vld [vmem:[#allocation2 + $0x508] sm:$0xff]
        %v5448 = vld [vmem:[#allocation2 + $0x510] sm:$0xff]
        %v5449 = vld [vmem:[#allocation2 + $0x518] sm:$0xff]
        %v5450 = vld [vmem:[#allocation2 + $0x520] sm:$0xff]
        %v5451 = vld [vmem:[#allocation2 + $0x528] sm:$0xff]
        %v5452 = vld [vmem:[#allocation2 + $0x530] sm:$0xff]
        %v5453 = vld [vmem:[#allocation2 + $0x538] sm:$0xff]
        %v5454 = vld [vmem:[#allocation2 + $0x540] sm:$0xff]
        %v5455 = vld [vmem:[#allocation2 + $0x548] sm:$0xff]
        %v5456 = vld [vmem:[#allocation2 + $0x550] sm:$0xff]
        %v5457 = vld [vmem:[#allocation2 + $0x558] sm:$0xff]
        %v5458 = vld [vmem:[#allocation2 + $0x560] sm:$0xff]
        %v5459 = vld [vmem:[#allocation2 + $0x568] sm:$0xff]
        %5460 = vmatprep.subr.mxu0 0.0
        %5461 = vmatpush1.msra.mxu0 %v5444
        %5462 = vmatprep.subr.mxu0 0.0
        %5463 = vmatpush1.msra.mxu0 %v5445
        %5464 = vmatprep.subr.mxu0 0.0
        %5465 = vmatpush1.msra.mxu0 %v5446
        %5466 = vmatprep.subr.mxu0 0.0
        %5467 = vmatpush1.msra.mxu0 %v5447
        %5468 = vmatprep.subr.mxu0 0.0
        %5469 = vmatpush1.msra.mxu0 %v5448
        %5470 = vmatprep.subr.mxu0 0.0
        %5471 = vmatpush1.msra.mxu0 %v5449
        %5472 = vmatprep.subr.mxu0 0.0
        %5473 = vmatpush1.msra.mxu0 %v5450
        %5474 = vmatprep.subr.mxu0 0.0
        %5475 = vmatpush1.msra.mxu0 %v5451
        %5476 = vmatprep.subr.mxu0 0.0
        %5477 = vmatpush1.msra.mxu0 %v5452
        %5478 = vmatprep.subr.mxu0 0.0
        %5479 = vmatpush1.msra.mxu0 %v5453
        %5480 = vmatprep.subr.mxu0 0.0
        %5481 = vmatpush1.msra.mxu0 %v5454
        %5482 = vmatprep.subr.mxu0 0.0
        %5483 = vmatpush1.msra.mxu0 %v5455
        %5484 = vmatprep.subr.mxu0 0.0
        %5485 = vmatpush1.msra.mxu0 %v5456
        %5486 = vmatprep.subr.mxu0 0.0
        %5487 = vmatpush1.msra.mxu0 %v5457
        %5488 = vmatprep.subr.mxu0 0.0
        %5489 = vmatpush1.msra.mxu0 %v5458
        %5490 = vmatprep.subr.mxu0 0.0
        %5491 = vmatpush1.msra.mxu0 %v5459
        %5492 = vmatprep.subr.mxu0 0.0
        %5493 = vmatpush1.msra.mxu0 0.0
        %5494 = vmatprep.subr.mxu0 0.0
        %5495 = vmatpush1.msra.mxu0 0.0
        %5496 = vmatprep.subr.mxu0 0.0
        %5497 = vmatpush1.msra.mxu0 0.0
        %5498 = vmatprep.subr.mxu0 0.0
        %5499 = vmatpush1.msra.mxu0 0.0
        %5500 = vmatprep.subr.mxu0 0.0
        %5501 = vmatpush1.msra.mxu0 0.0
        %5502 = vmatprep.subr.mxu0 0.0
        %5503 = vmatpush1.msra.mxu0 0.0
        %5504 = vmatprep.subr.mxu0 0.0
        %5505 = vmatpush1.msra.mxu0 0.0
        %5506 = vmatprep.subr.mxu0 0.0
        %5507 = vmatpush1.msra.mxu0 0.0
        %5508 = vmatprep.subr.mxu0 0.0
        %5509 = vmatpush1.msra.mxu0 0.0
        %5510 = vmatprep.subr.mxu0 0.0
        %5511 = vmatpush1.msra.mxu0 0.0
        %5512 = vmatprep.subr.mxu0 0.0
        %5513 = vmatpush1.msra.mxu0 0.0
        %5514 = vmatprep.subr.mxu0 0.0
        %5515 = vmatpush1.msra.mxu0 0.0
        %5516 = vmatprep.subr.mxu0 0.0
        %5517 = vmatpush1.msra.mxu0 0.0
        %5518 = vmatprep.subr.mxu0 0.0
        %5519 = vmatpush1.msra.mxu0 0.0
        %5520 = vmatprep.subr.mxu0 0.0
        %5521 = vmatpush1.msra.mxu0 0.0
        %5522 = vmatprep.subr.mxu0 0.0
        %5523 = vmatpush1.msra.mxu0 0.0
        %5524 = vmatprep.mubr.f32.mxu0 0.0
        %5525 = vmatmul.mubr.f32.gmra.mrb[0].mxu0 %v4555
        %v5526 = vpop.f32.mrb[0].mxu0
        %v5527 = vadd.f32 0.0, %v5526
        %v5528 = vpop.f32.mrb[0].mxu0
        %5529 = vmatprep.mubr.f32.mxu0 0.0
        %5530 = vmatmul.mubr.f32.gmra.mrb[0].mxu0 %v4560
        %v5531 = vpop.f32.mrb[0].mxu0
        %v5532 = vadd.f32 0.0, %v5531
        %v5533 = vpop.f32.mrb[0].mxu0
        %5534 = vmatprep.mubr.f32.mxu0 0.0
        %5535 = vmatmul.mubr.f32.gmra.mrb[0].mxu0 %v4565
        %v5536 = vpop.f32.mrb[0].mxu0
        %v5537 = vadd.f32 0.0, %v5536
        %v5538 = vpop.f32.mrb[0].mxu0
        %5539 = vmatprep.mubr.f32.mxu0 0.0
        %5540 = vmatmul.mubr.f32.gmra.mrb[0].mxu0 %v4570
        %v5541 = vpop.f32.mrb[0].mxu0
        %v5542 = vadd.f32 0.0, %v5541
        %v5543 = vpop.f32.mrb[0].mxu0
        %5544 = vmatprep.mubr.f32.mxu0 0.0
        %5545 = vmatmul.mubr.f32.gmra.mrb[0].mxu0 %v4575
        %v5546 = vpop.f32.mrb[0].mxu0
        %v5547 = vadd.f32 0.0, %v5546
        %v5548 = vpop.f32.mrb[0].mxu0
        %5549 = vmatprep.mubr.f32.mxu0 0.0
        %5550 = vmatmul.mubr.f32.gmra.mrb[0].mxu0 %v4580
        %v5551 = vpop.f32.mrb[0].mxu0
        %v5552 = vadd.f32 0.0, %v5551
        %v5553 = vpop.f32.mrb[0].mxu0
        %5554 = vmatprep.mubr.f32.mxu0 0.0
        %5555 = vmatmul.mubr.f32.gmra.mrb[0].mxu0 %v4585
        %v5556 = vpop.f32.mrb[0].mxu0
        %v5557 = vadd.f32 0.0, %v5556
        %v5558 = vpop.f32.mrb[0].mxu0
        %5559 = vmatprep.mubr.f32.mxu0 0.0
        %5560 = vmatmul.mubr.f32.gmra.mrb[0].mxu0 %v4590
        %v5561 = vpop.f32.mrb[0].mxu0
        %v5562 = vadd.f32 0.0, %v5561
        %v5563 = vpop.f32.mrb[0].mxu0
        %5564 = vmatprep.mubr.f32.mxu0 0.0
        %5565 = vmatmul.mubr.f32.gmra.mrb[0].mxu0 %v4595
        %v5566 = vpop.f32.mrb[0].mxu0
        %v5567 = vadd.f32 0.0, %v5566
        %v5568 = vpop.f32.mrb[0].mxu0
        %5569 = vmatprep.mubr.f32.mxu0 0.0
        %5570 = vmatmul.mubr.f32.gmra.mrb[0].mxu0 %v4600
        %v5571 = vpop.f32.mrb[0].mxu0
        %v5572 = vadd.f32 0.0, %v5571
        %v5573 = vpop.f32.mrb[0].mxu0
        %5574 = vmatprep.mubr.f32.mxu0 0.0
        %5575 = vmatmul.mubr.f32.gmra.mrb[0].mxu0 %v4605
        %v5576 = vpop.f32.mrb[0].mxu0
        %v5577 = vadd.f32 0.0, %v5576
        %v5578 = vpop.f32.mrb[0].mxu0
        %5579 = vmatprep.mubr.f32.mxu0 0.0
        %5580 = vmatmul.mubr.f32.gmra.mrb[0].mxu0 %v4610
        %v5581 = vpop.f32.mrb[0].mxu0
        %v5582 = vadd.f32 0.0, %v5581
        %v5583 = vpop.f32.mrb[0].mxu0
        %5584 = vmatprep.mubr.f32.mxu0 0.0
        %5585 = vmatmul.mubr.f32.gmra.mrb[0].mxu0 %v4615
        %v5586 = vpop.f32.mrb[0].mxu0
        %v5587 = vadd.f32 0.0, %v5586
        %v5588 = vpop.f32.mrb[0].mxu0
        %5589 = vmatprep.mubr.f32.mxu0 0.0
        %5590 = vmatmul.mubr.f32.gmra.mrb[0].mxu0 %v4620
        %v5591 = vpop.f32.mrb[0].mxu0
        %v5592 = vadd.f32 0.0, %v5591
        %v5593 = vpop.f32.mrb[0].mxu0
        %5594 = vmatprep.mubr.f32.mxu0 0.0
        %5595 = vmatmul.mubr.f32.gmra.mrb[0].mxu0 %v4625
        %v5596 = vpop.f32.mrb[0].mxu0
        %v5597 = vadd.f32 0.0, %v5596
        %v5598 = vpop.f32.mrb[0].mxu0
        %5599 = vmatprep.mubr.f32.mxu0 0.0
        %5600 = vmatmul.mubr.f32.gmra.mrb[0].mxu0 %v4630
        %v5601 = vpop.f32.mrb[0].mxu0
        %v5602 = vadd.f32 0.0, %v5601
        %v5603 = vpop.f32.mrb[0].mxu0
        %5604 = vdwg.mxu0
        %v5605 = vmul.f32 %v5366, %v5527
        %v5606 = vmul.f32 %v5371, %v5532
        %v5607 = vmul.f32 %v5376, %v5537
        %v5608 = vmul.f32 %v5381, %v5542
        %v5609 = vmul.f32 %v5386, %v5547
        %v5610 = vmul.f32 %v5391, %v5552
        %v5611 = vmul.f32 %v5396, %v5557
        %v5612 = vmul.f32 %v5401, %v5562
        %v5613 = vmul.f32 %v5406, %v5567
        %v5614 = vmul.f32 %v5411, %v5572
        %v5615 = vmul.f32 %v5416, %v5577
        %v5616 = vmul.f32 %v5421, %v5582
        %v5617 = vmul.f32 %v5426, %v5587
        %v5618 = vmul.f32 %v5431, %v5592
        %v5619 = vmul.f32 %v5436, %v5597
        %v5620 = vmul.f32 %v5441, %v5602
        %v5621 = vadd.f32 %v5281, %v5605
        %v5622 = vadd.f32 %v5282, %v5606
        %v5623 = vadd.f32 %v5283, %v5607
        %v5624 = vadd.f32 %v5284, %v5608
        %v5625 = vadd.f32 %v5285, %v5609
        %v5626 = vadd.f32 %v5286, %v5610
        %v5627 = vadd.f32 %v5287, %v5611
        %v5628 = vadd.f32 %v5288, %v5612
        %v5629 = vadd.f32 %v5289, %v5613
        %v5630 = vadd.f32 %v5290, %v5614
        %v5631 = vadd.f32 %v5291, %v5615
        %v5632 = vadd.f32 %v5292, %v5616
        %v5633 = vadd.f32 %v5293, %v5617
        %v5634 = vadd.f32 %v5294, %v5618
        %v5635 = vadd.f32 %v5295, %v5619
        %v5636 = vadd.f32 %v5296, %v5620
        %v5637 = vld [vmem:[#allocation2 + $0x3e0] sm:$0xff]
        %v5638 = vld [vmem:[#allocation2 + $0x3e8] sm:$0xff]
        %5639 = vmatprep.subr.mxu0 0.0
        %5640 = vmatpush1.msra.mxu0 %v5637
        %5641 = vmatprep.subr.mxu0 0.0
        %5642 = vmatpush1.msra.mxu0 %v5638
        %5643 = vmatprep.subr.mxu0 0.0
        %5644 = vmatpush1.msra.mxu0 0.0
        %5645 = vmatprep.subr.mxu0 0.0
        %5646 = vmatpush1.msra.mxu0 0.0
        %5647 = vmatprep.subr.mxu0 0.0
        %5648 = vmatpush1.msra.mxu0 0.0
        %5649 = vmatprep.subr.mxu0 0.0
        %5650 = vmatpush1.msra.mxu0 0.0
        %5651 = vmatprep.subr.mxu0 0.0
        %5652 = vmatpush1.msra.mxu0 0.0
        %5653 = vmatprep.subr.mxu0 0.0
        %5654 = vmatpush1.msra.mxu0 0.0
        %5655 = vmatprep.subr.mxu0 0.0
        %5656 = vmatpush1.msra.mxu0 0.0
        %5657 = vmatprep.subr.mxu0 0.0
        %5658 = vmatpush1.msra.mxu0 0.0
        %5659 = vmatprep.subr.mxu0 0.0
        %5660 = vmatpush1.msra.mxu0 0.0
        %5661 = vmatprep.subr.mxu0 0.0
        %5662 = vmatpush1.msra.mxu0 0.0
        %5663 = vmatprep.subr.mxu0 0.0
        %5664 = vmatpush1.msra.mxu0 0.0
        %5665 = vmatprep.subr.mxu0 0.0
        %5666 = vmatpush1.msra.mxu0 0.0
        %5667 = vmatprep.subr.mxu0 0.0
        %5668 = vmatpush1.msra.mxu0 0.0
        %5669 = vmatprep.subr.mxu0 0.0
        %5670 = vmatpush1.msra.mxu0 0.0
        %5671 = vmatprep.subr.mxu0 0.0
        %5672 = vmatpush1.msra.mxu0 0.0
        %5673 = vmatprep.subr.mxu0 0.0
        %5674 = vmatpush1.msra.mxu0 0.0
        %5675 = vmatprep.subr.mxu0 0.0
        %5676 = vmatpush1.msra.mxu0 0.0
        %5677 = vmatprep.subr.mxu0 0.0
        %5678 = vmatpush1.msra.mxu0 0.0
        %5679 = vmatprep.subr.mxu0 0.0
        %5680 = vmatpush1.msra.mxu0 0.0
        %5681 = vmatprep.subr.mxu0 0.0
        %5682 = vmatpush1.msra.mxu0 0.0
        %5683 = vmatprep.subr.mxu0 0.0
        %5684 = vmatpush1.msra.mxu0 0.0
        %5685 = vmatprep.subr.mxu0 0.0
        %5686 = vmatpush1.msra.mxu0 0.0
        %5687 = vmatprep.subr.mxu0 0.0
        %5688 = vmatpush1.msra.mxu0 0.0
        %5689 = vmatprep.subr.mxu0 0.0
        %5690 = vmatpush1.msra.mxu0 0.0
        %5691 = vmatprep.subr.mxu0 0.0
        %5692 = vmatpush1.msra.mxu0 0.0
        %5693 = vmatprep.subr.mxu0 0.0
        %5694 = vmatpush1.msra.mxu0 0.0
        %5695 = vmatprep.subr.mxu0 0.0
        %5696 = vmatpush1.msra.mxu0 0.0
        %5697 = vmatprep.subr.mxu0 0.0
        %5698 = vmatpush1.msra.mxu0 0.0
        %5699 = vmatprep.subr.mxu0 0.0
        %5700 = vmatpush1.msra.mxu0 0.0
        %5701 = vmatprep.subr.mxu0 0.0
        %5702 = vmatpush1.msra.mxu0 0.0
        %5703 = vmatprep.mubr.f32.mxu0 0.0
        %5704 = vmatmul.mubr.f32.gmra.mrb[0].mxu0 %v1829
        %v5705 = vpop.f32.mrb[0].mxu0
        %v5706 = vadd.f32 0.0, %v5705
        %v5707 = vpop.f32.mrb[0].mxu0
        %5708 = vmatprep.mubr.f32.mxu0 0.0
        %5709 = vmatmul.mubr.f32.gmra.mrb[0].mxu0 %v1832
        %v5710 = vpop.f32.mrb[0].mxu0
        %v5711 = vadd.f32 0.0, %v5710
        %v5712 = vpop.f32.mrb[0].mxu0
        %5713 = vmatprep.mubr.f32.mxu0 0.0
        %5714 = vmatmul.mubr.f32.gmra.mrb[0].mxu0 %v1835
        %v5715 = vpop.f32.mrb[0].mxu0
        %v5716 = vadd.f32 0.0, %v5715
        %v5717 = vpop.f32.mrb[0].mxu0
        %5718 = vmatprep.mubr.f32.mxu0 0.0
        %5719 = vmatmul.mubr.f32.gmra.mrb[0].mxu0 %v1838
        %v5720 = vpop.f32.mrb[0].mxu0
        %v5721 = vadd.f32 0.0, %v5720
        %v5722 = vpop.f32.mrb[0].mxu0
        %5723 = vmatprep.mubr.f32.mxu0 0.0
        %5724 = vmatmul.mubr.f32.gmra.mrb[0].mxu0 %v1841
        %v5725 = vpop.f32.mrb[0].mxu0
        %v5726 = vadd.f32 0.0, %v5725
        %v5727 = vpop.f32.mrb[0].mxu0
        %5728 = vmatprep.mubr.f32.mxu0 0.0
        %5729 = vmatmul.mubr.f32.gmra.mrb[0].mxu0 %v1844
        %v5730 = vpop.f32.mrb[0].mxu0
        %v5731 = vadd.f32 0.0, %v5730
        %v5732 = vpop.f32.mrb[0].mxu0
        %5733 = vmatprep.mubr.f32.mxu0 0.0
        %5734 = vmatmul.mubr.f32.gmra.mrb[0].mxu0 %v1847
        %v5735 = vpop.f32.mrb[0].mxu0
        %v5736 = vadd.f32 0.0, %v5735
        %v5737 = vpop.f32.mrb[0].mxu0
        %5738 = vmatprep.mubr.f32.mxu0 0.0
        %5739 = vmatmul.mubr.f32.gmra.mrb[0].mxu0 %v1850
        %v5740 = vpop.f32.mrb[0].mxu0
        %v5741 = vadd.f32 0.0, %v5740
        %v5742 = vpop.f32.mrb[0].mxu0
        %5743 = vmatprep.mubr.f32.mxu0 0.0
        %5744 = vmatmul.mubr.f32.gmra.mrb[0].mxu0 %v1853
        %v5745 = vpop.f32.mrb[0].mxu0
        %v5746 = vadd.f32 0.0, %v5745
        %v5747 = vpop.f32.mrb[0].mxu0
        %5748 = vmatprep.mubr.f32.mxu0 0.0
        %5749 = vmatmul.mubr.f32.gmra.mrb[0].mxu0 %v1856
        %v5750 = vpop.f32.mrb[0].mxu0
        %v5751 = vadd.f32 0.0, %v5750
        %v5752 = vpop.f32.mrb[0].mxu0
        %5753 = vmatprep.mubr.f32.mxu0 0.0
        %5754 = vmatmul.mubr.f32.gmra.mrb[0].mxu0 %v1859
        %v5755 = vpop.f32.mrb[0].mxu0
        %v5756 = vadd.f32 0.0, %v5755
        %v5757 = vpop.f32.mrb[0].mxu0
        %5758 = vmatprep.mubr.f32.mxu0 0.0
        %5759 = vmatmul.mubr.f32.gmra.mrb[0].mxu0 %v1862
        %v5760 = vpop.f32.mrb[0].mxu0
        %v5761 = vadd.f32 0.0, %v5760
        %v5762 = vpop.f32.mrb[0].mxu0
        %5763 = vmatprep.mubr.f32.mxu0 0.0
        %5764 = vmatmul.mubr.f32.gmra.mrb[0].mxu0 %v1865
        %v5765 = vpop.f32.mrb[0].mxu0
        %v5766 = vadd.f32 0.0, %v5765
        %v5767 = vpop.f32.mrb[0].mxu0
        %5768 = vmatprep.mubr.f32.mxu0 0.0
        %5769 = vmatmul.mubr.f32.gmra.mrb[0].mxu0 %v1868
        %v5770 = vpop.f32.mrb[0].mxu0
        %v5771 = vadd.f32 0.0, %v5770
        %v5772 = vpop.f32.mrb[0].mxu0
        %5773 = vmatprep.mubr.f32.mxu0 0.0
        %5774 = vmatmul.mubr.f32.gmra.mrb[0].mxu0 %v1871
        %v5775 = vpop.f32.mrb[0].mxu0
        %v5776 = vadd.f32 0.0, %v5775
        %v5777 = vpop.f32.mrb[0].mxu0
        %5778 = vmatprep.mubr.f32.mxu0 0.0
        %5779 = vmatmul.mubr.f32.gmra.mrb[0].mxu0 %v1874
        %v5780 = vpop.f32.mrb[0].mxu0
        %v5781 = vadd.f32 0.0, %v5780
        %v5782 = vpop.f32.mrb[0].mxu0
        %5783 = vdwg.mxu0
        %v5784 = vld [vmem:[#allocation2 + $0x570] sm:$0xff]
        %v5785 = vld [vmem:[#allocation2 + $0x578] sm:$0xff]
        %v5786 = vld [vmem:[#allocation2 + $0x580] sm:$0xff]
        %v5787 = vld [vmem:[#allocation2 + $0x588] sm:$0xff]
        %v5788 = vld [vmem:[#allocation2 + $0x590] sm:$0xff]
        %v5789 = vld [vmem:[#allocation2 + $0x598] sm:$0xff]
        %v5790 = vld [vmem:[#allocation2 + $0x5a0] sm:$0xff]
        %v5791 = vld [vmem:[#allocation2 + $0x5a8] sm:$0xff]
        %v5792 = vld [vmem:[#allocation2 + $0x5b0] sm:$0xff]
        %v5793 = vld [vmem:[#allocation2 + $0x5b8] sm:$0xff]
        %v5794 = vld [vmem:[#allocation2 + $0x5c0] sm:$0xff]
        %v5795 = vld [vmem:[#allocation2 + $0x5c8] sm:$0xff]
        %v5796 = vld [vmem:[#allocation2 + $0x5d0] sm:$0xff]
        %v5797 = vld [vmem:[#allocation2 + $0x5d8] sm:$0xff]
        %v5798 = vld [vmem:[#allocation2 + $0x5e0] sm:$0xff]
        %v5799 = vld [vmem:[#allocation2 + $0x5e8] sm:$0xff]
        %5800 = vmatprep.subr.mxu0 0.0
        %5801 = vmatpush1.msra.mxu0 %v5784
        %5802 = vmatprep.subr.mxu0 0.0
        %5803 = vmatpush1.msra.mxu0 %v5785
        %5804 = vmatprep.subr.mxu0 0.0
        %5805 = vmatpush1.msra.mxu0 %v5786
        %5806 = vmatprep.subr.mxu0 0.0
        %5807 = vmatpush1.msra.mxu0 %v5787
        %5808 = vmatprep.subr.mxu0 0.0
        %5809 = vmatpush1.msra.mxu0 %v5788
        %5810 = vmatprep.subr.mxu0 0.0
        %5811 = vmatpush1.msra.mxu0 %v5789
        %5812 = vmatprep.subr.mxu0 0.0
        %5813 = vmatpush1.msra.mxu0 %v5790
        %5814 = vmatprep.subr.mxu0 0.0
        %5815 = vmatpush1.msra.mxu0 %v5791
        %5816 = vmatprep.subr.mxu0 0.0
        %5817 = vmatpush1.msra.mxu0 %v5792
        %5818 = vmatprep.subr.mxu0 0.0
        %5819 = vmatpush1.msra.mxu0 %v5793
        %5820 = vmatprep.subr.mxu0 0.0
        %5821 = vmatpush1.msra.mxu0 %v5794
        %5822 = vmatprep.subr.mxu0 0.0
        %5823 = vmatpush1.msra.mxu0 %v5795
        %5824 = vmatprep.subr.mxu0 0.0
        %5825 = vmatpush1.msra.mxu0 %v5796
        %5826 = vmatprep.subr.mxu0 0.0
        %5827 = vmatpush1.msra.mxu0 %v5797
        %5828 = vmatprep.subr.mxu0 0.0
        %5829 = vmatpush1.msra.mxu0 %v5798
        %5830 = vmatprep.subr.mxu0 0.0
        %5831 = vmatpush1.msra.mxu0 %v5799
        %5832 = vmatprep.subr.mxu0 0.0
        %5833 = vmatpush1.msra.mxu0 0.0
        %5834 = vmatprep.subr.mxu0 0.0
        %5835 = vmatpush1.msra.mxu0 0.0
        %5836 = vmatprep.subr.mxu0 0.0
        %5837 = vmatpush1.msra.mxu0 0.0
        %5838 = vmatprep.subr.mxu0 0.0
        %5839 = vmatpush1.msra.mxu0 0.0
        %5840 = vmatprep.subr.mxu0 0.0
        %5841 = vmatpush1.msra.mxu0 0.0
        %5842 = vmatprep.subr.mxu0 0.0
        %5843 = vmatpush1.msra.mxu0 0.0
        %5844 = vmatprep.subr.mxu0 0.0
        %5845 = vmatpush1.msra.mxu0 0.0
        %5846 = vmatprep.subr.mxu0 0.0
        %5847 = vmatpush1.msra.mxu0 0.0
        %5848 = vmatprep.subr.mxu0 0.0
        %5849 = vmatpush1.msra.mxu0 0.0
        %5850 = vmatprep.subr.mxu0 0.0
        %5851 = vmatpush1.msra.mxu0 0.0
        %5852 = vmatprep.subr.mxu0 0.0
        %5853 = vmatpush1.msra.mxu0 0.0
        %5854 = vmatprep.subr.mxu0 0.0
        %5855 = vmatpush1.msra.mxu0 0.0
        %5856 = vmatprep.subr.mxu0 0.0
        %5857 = vmatpush1.msra.mxu0 0.0
        %5858 = vmatprep.subr.mxu0 0.0
        %5859 = vmatpush1.msra.mxu0 0.0
        %5860 = vmatprep.subr.mxu0 0.0
        %5861 = vmatpush1.msra.mxu0 0.0
        %5862 = vmatprep.subr.mxu0 0.0
        %5863 = vmatpush1.msra.mxu0 0.0
        %5864 = vmatprep.mubr.f32.mxu0 0.0
        %5865 = vmatmul.mubr.f32.gmra.mrb[0].mxu0 %v4555
        %v5866 = vpop.f32.mrb[0].mxu0
        %v5867 = vadd.f32 0.0, %v5866
        %v5868 = vpop.f32.mrb[0].mxu0
        %5869 = vmatprep.mubr.f32.mxu0 0.0
        %5870 = vmatmul.mubr.f32.gmra.mrb[0].mxu0 %v4560
        %v5871 = vpop.f32.mrb[0].mxu0
        %v5872 = vadd.f32 0.0, %v5871
        %v5873 = vpop.f32.mrb[0].mxu0
        %5874 = vmatprep.mubr.f32.mxu0 0.0
        %5875 = vmatmul.mubr.f32.gmra.mrb[0].mxu0 %v4565
        %v5876 = vpop.f32.mrb[0].mxu0
        %v5877 = vadd.f32 0.0, %v5876
        %v5878 = vpop.f32.mrb[0].mxu0
        %5879 = vmatprep.mubr.f32.mxu0 0.0
        %5880 = vmatmul.mubr.f32.gmra.mrb[0].mxu0 %v4570
        %v5881 = vpop.f32.mrb[0].mxu0
        %v5882 = vadd.f32 0.0, %v5881
        %v5883 = vpop.f32.mrb[0].mxu0
        %5884 = vmatprep.mubr.f32.mxu0 0.0
        %5885 = vmatmul.mubr.f32.gmra.mrb[0].mxu0 %v4575
        %v5886 = vpop.f32.mrb[0].mxu0
        %v5887 = vadd.f32 0.0, %v5886
        %v5888 = vpop.f32.mrb[0].mxu0
        %5889 = vmatprep.mubr.f32.mxu0 0.0
        %5890 = vmatmul.mubr.f32.gmra.mrb[0].mxu0 %v4580
        %v5891 = vpop.f32.mrb[0].mxu0
        %v5892 = vadd.f32 0.0, %v5891
        %v5893 = vpop.f32.mrb[0].mxu0
        %5894 = vmatprep.mubr.f32.mxu0 0.0
        %5895 = vmatmul.mubr.f32.gmra.mrb[0].mxu0 %v4585
        %v5896 = vpop.f32.mrb[0].mxu0
        %v5897 = vadd.f32 0.0, %v5896
        %v5898 = vpop.f32.mrb[0].mxu0
        %5899 = vmatprep.mubr.f32.mxu0 0.0
        %5900 = vmatmul.mubr.f32.gmra.mrb[0].mxu0 %v4590
        %v5901 = vpop.f32.mrb[0].mxu0
        %v5902 = vadd.f32 0.0, %v5901
        %v5903 = vpop.f32.mrb[0].mxu0
        %5904 = vmatprep.mubr.f32.mxu0 0.0
        %5905 = vmatmul.mubr.f32.gmra.mrb[0].mxu0 %v4595
        %v5906 = vpop.f32.mrb[0].mxu0
        %v5907 = vadd.f32 0.0, %v5906
        %v5908 = vpop.f32.mrb[0].mxu0
        %5909 = vmatprep.mubr.f32.mxu0 0.0
        %5910 = vmatmul.mubr.f32.gmra.mrb[0].mxu0 %v4600
        %v5911 = vpop.f32.mrb[0].mxu0
        %v5912 = vadd.f32 0.0, %v5911
        %v5913 = vpop.f32.mrb[0].mxu0
        %5914 = vmatprep.mubr.f32.mxu0 0.0
        %5915 = vmatmul.mubr.f32.gmra.mrb[0].mxu0 %v4605
        %v5916 = vpop.f32.mrb[0].mxu0
        %v5917 = vadd.f32 0.0, %v5916
        %v5918 = vpop.f32.mrb[0].mxu0
        %5919 = vmatprep.mubr.f32.mxu0 0.0
        %5920 = vmatmul.mubr.f32.gmra.mrb[0].mxu0 %v4610
        %v5921 = vpop.f32.mrb[0].mxu0
        %v5922 = vadd.f32 0.0, %v5921
        %v5923 = vpop.f32.mrb[0].mxu0
        %5924 = vmatprep.mubr.f32.mxu0 0.0
        %5925 = vmatmul.mubr.f32.gmra.mrb[0].mxu0 %v4615
        %v5926 = vpop.f32.mrb[0].mxu0
        %v5927 = vadd.f32 0.0, %v5926
        %v5928 = vpop.f32.mrb[0].mxu0
        %5929 = vmatprep.mubr.f32.mxu0 0.0
        %5930 = vmatmul.mubr.f32.gmra.mrb[0].mxu0 %v4620
        %v5931 = vpop.f32.mrb[0].mxu0
        %v5932 = vadd.f32 0.0, %v5931
        %v5933 = vpop.f32.mrb[0].mxu0
        %5934 = vmatprep.mubr.f32.mxu0 0.0
        %5935 = vmatmul.mubr.f32.gmra.mrb[0].mxu0 %v4625
        %v5936 = vpop.f32.mrb[0].mxu0
        %v5937 = vadd.f32 0.0, %v5936
        %v5938 = vpop.f32.mrb[0].mxu0
        %5939 = vmatprep.mubr.f32.mxu0 0.0
        %5940 = vmatmul.mubr.f32.gmra.mrb[0].mxu0 %v4630
        %v5941 = vpop.f32.mrb[0].mxu0
        %v5942 = vadd.f32 0.0, %v5941
        %v5943 = vpop.f32.mrb[0].mxu0
        %5944 = vdwg.mxu0
        %v5945 = vmul.f32 %v5706, %v5867
        %v5946 = vmul.f32 %v5711, %v5872
        %v5947 = vmul.f32 %v5716, %v5877
        %v5948 = vmul.f32 %v5721, %v5882
        %v5949 = vmul.f32 %v5726, %v5887
        %v5950 = vmul.f32 %v5731, %v5892
        %v5951 = vmul.f32 %v5736, %v5897
        %v5952 = vmul.f32 %v5741, %v5902
        %v5953 = vmul.f32 %v5746, %v5907
        %v5954 = vmul.f32 %v5751, %v5912
        %v5955 = vmul.f32 %v5756, %v5917
        %v5956 = vmul.f32 %v5761, %v5922
        %v5957 = vmul.f32 %v5766, %v5927
        %v5958 = vmul.f32 %v5771, %v5932
        %v5959 = vmul.f32 %v5776, %v5937
        %v5960 = vmul.f32 %v5781, %v5942
        %v5961 = vadd.f32 %v5621, %v5945
        %v5962 = vadd.f32 %v5622, %v5946
        %v5963 = vadd.f32 %v5623, %v5947
        %v5964 = vadd.f32 %v5624, %v5948
        %v5965 = vadd.f32 %v5625, %v5949
        %v5966 = vadd.f32 %v5626, %v5950
        %v5967 = vadd.f32 %v5627, %v5951
        %v5968 = vadd.f32 %v5628, %v5952
        %v5969 = vadd.f32 %v5629, %v5953
        %v5970 = vadd.f32 %v5630, %v5954
        %v5971 = vadd.f32 %v5631, %v5955
        %v5972 = vadd.f32 %v5632, %v5956
        %v5973 = vadd.f32 %v5633, %v5957
        %v5974 = vadd.f32 %v5634, %v5958
        %v5975 = vadd.f32 %v5635, %v5959
        %v5976 = vadd.f32 %v5636, %v5960
        %v5977 = vmax.f32 %v5961, 0.0
        %v5978 = vmax.f32 %v5962, 0.0
        %v5979 = vmax.f32 %v5963, 0.0
        %v5980 = vmax.f32 %v5964, 0.0
        %v5981 = vmax.f32 %v5965, 0.0
        %v5982 = vmax.f32 %v5966, 0.0
        %v5983 = vmax.f32 %v5967, 0.0
        %v5984 = vmax.f32 %v5968, 0.0
        %v5985 = vmax.f32 %v5969, 0.0
        %v5986 = vmax.f32 %v5970, 0.0
        %v5987 = vmax.f32 %v5971, 0.0
        %v5988 = vmax.f32 %v5972, 0.0
        %v5989 = vmax.f32 %v5973, 0.0
        %v5990 = vmax.f32 %v5974, 0.0
        %v5991 = vmax.f32 %v5975, 0.0
        %v5992 = vmax.f32 %v5976, 0.0
        %v5993 = vld [vmem:[#allocation2 + $0x208] sm:$0xff]
        %v5994 = vld [vmem:[#allocation2 + $0x210] sm:$0xff]
        %v5995 = vld [vmem:[#allocation2 + $0x218] sm:$0xff]
        %v5996 = vld [vmem:[#allocation2 + $0x220] sm:$0xff]
        %v5997 = vld [vmem:[#allocation2 + $0x228] sm:$0xff]
        %v5998 = vld [vmem:[#allocation2 + $0x230] sm:$0xff]
        %v5999 = vld [vmem:[#allocation2 + $0x238] sm:$0xff]
        %v6000 = vld [vmem:[#allocation2 + $0x240] sm:$0xff]
        %v6001 = vld [vmem:[#allocation2 + $0x248] sm:$0xff]
        %v6002 = vld [vmem:[#allocation2 + $0x250] sm:$0xff]
        %v6003 = vld [vmem:[#allocation2 + $0x258] sm:$0xff]
        %v6004 = vld [vmem:[#allocation2 + $0x260] sm:$0xff]
        %v6005 = vld [vmem:[#allocation2 + $0x268] sm:$0xff]
        %v6006 = vld [vmem:[#allocation2 + $0x270] sm:$0xff]
        %v6007 = vld [vmem:[#allocation2 + $0x278] sm:$0xff]
        %v6008 = vld [vmem:[#allocation2 + $0x280] sm:$0xff]
        %v6009 = vld [vmem:[#allocation2 + $0x288] sm:$0x1]
        %v6010 = vlaneseq
        %v6011 = vshrl.u32 %v6010, 7
        %v6012 = vsub.s32 0, %v6011
        %v6013 = vrot.slane %v6009, %v6012
        %6014 = vmatprep.subr.mxu0 0.0
        %6015 = vmatpush1.msra.mxu0 %v5993
        %6016 = vmatprep.subr.mxu0 0.0
        %6017 = vmatpush1.msra.mxu0 %v5994
        %6018 = vmatprep.subr.mxu0 0.0
        %6019 = vmatpush1.msra.mxu0 %v5995
        %6020 = vmatprep.subr.mxu0 0.0
        %6021 = vmatpush1.msra.mxu0 %v5996
        %6022 = vmatprep.subr.mxu0 0.0
        %6023 = vmatpush1.msra.mxu0 %v5997
        %6024 = vmatprep.subr.mxu0 0.0
        %6025 = vmatpush1.msra.mxu0 %v5998
        %6026 = vmatprep.subr.mxu0 0.0
        %6027 = vmatpush1.msra.mxu0 %v5999
        %6028 = vmatprep.subr.mxu0 0.0
        %6029 = vmatpush1.msra.mxu0 %v6000
        %6030 = vmatprep.subr.mxu0 0.0
        %6031 = vmatpush1.msra.mxu0 %v6001
        %6032 = vmatprep.subr.mxu0 0.0
        %6033 = vmatpush1.msra.mxu0 %v6002
        %6034 = vmatprep.subr.mxu0 0.0
        %6035 = vmatpush1.msra.mxu0 %v6003
        %6036 = vmatprep.subr.mxu0 0.0
        %6037 = vmatpush1.msra.mxu0 %v6004
        %6038 = vmatprep.subr.mxu0 0.0
        %6039 = vmatpush1.msra.mxu0 %v6005
        %6040 = vmatprep.subr.mxu0 0.0
        %6041 = vmatpush1.msra.mxu0 %v6006
        %6042 = vmatprep.subr.mxu0 0.0
        %6043 = vmatpush1.msra.mxu0 %v6007
        %6044 = vmatprep.subr.mxu0 0.0
        %6045 = vmatpush1.msra.mxu0 %v6008
        %6046 = vmatprep.subr.mxu0 0.0
        %6047 = vmatpush1.msra.mxu0 0.0
        %6048 = vmatprep.subr.mxu0 0.0
        %6049 = vmatpush1.msra.mxu0 0.0
        %6050 = vmatprep.subr.mxu0 0.0
        %6051 = vmatpush1.msra.mxu0 0.0
        %6052 = vmatprep.subr.mxu0 0.0
        %6053 = vmatpush1.msra.mxu0 0.0
        %6054 = vmatprep.subr.mxu0 0.0
        %6055 = vmatpush1.msra.mxu0 0.0
        %6056 = vmatprep.subr.mxu0 0.0
        %6057 = vmatpush1.msra.mxu0 0.0
        %6058 = vmatprep.subr.mxu0 0.0
        %6059 = vmatpush1.msra.mxu0 0.0
        %6060 = vmatprep.subr.mxu0 0.0
        %6061 = vmatpush1.msra.mxu0 0.0
        %6062 = vmatprep.subr.mxu0 0.0
        %6063 = vmatpush1.msra.mxu0 0.0
        %6064 = vmatprep.subr.mxu0 0.0
        %6065 = vmatpush1.msra.mxu0 0.0
        %6066 = vmatprep.subr.mxu0 0.0
        %6067 = vmatpush1.msra.mxu0 0.0
        %6068 = vmatprep.subr.mxu0 0.0
        %6069 = vmatpush1.msra.mxu0 0.0
        %6070 = vmatprep.subr.mxu0 0.0
        %6071 = vmatpush1.msra.mxu0 0.0
        %6072 = vmatprep.subr.mxu0 0.0
        %6073 = vmatpush1.msra.mxu0 0.0
        %6074 = vmatprep.subr.mxu0 0.0
        %6075 = vmatpush1.msra.mxu0 0.0
        %6076 = vmatprep.subr.mxu0 0.0
        %6077 = vmatpush1.msra.mxu0 0.0
        %6078 = vmatprep.mubr.f32.mxu0 0.0
        %6079 = vmatmul.mubr.f32.gmra.mrb[0].mxu0 %v5977
        %v6080 = vpop.f32.mrb[0].mxu0
        %v6081 = vadd.f32 %v6013, %v6080
        %v6082 = vpop.f32.mrb[0].mxu0
        %6083 = vmatprep.mubr.f32.mxu0 0.0
        %6084 = vmatmul.mubr.f32.gmra.mrb[0].mxu0 %v5978
        %v6085 = vpop.f32.mrb[0].mxu0
        %v6086 = vadd.f32 %v6013, %v6085
        %v6087 = vpop.f32.mrb[0].mxu0
        %6088 = vmatprep.mubr.f32.mxu0 0.0
        %6089 = vmatmul.mubr.f32.gmra.mrb[0].mxu0 %v5979
        %v6090 = vpop.f32.mrb[0].mxu0
        %v6091 = vadd.f32 %v6013, %v6090
        %v6092 = vpop.f32.mrb[0].mxu0
        %6093 = vmatprep.mubr.f32.mxu0 0.0
        %6094 = vmatmul.mubr.f32.gmra.mrb[0].mxu0 %v5980
        %v6095 = vpop.f32.mrb[0].mxu0
        %v6096 = vadd.f32 %v6013, %v6095
        %v6097 = vpop.f32.mrb[0].mxu0
        %6098 = vmatprep.mubr.f32.mxu0 0.0
        %6099 = vmatmul.mubr.f32.gmra.mrb[0].mxu0 %v5981
        %v6100 = vpop.f32.mrb[0].mxu0
        %v6101 = vadd.f32 %v6013, %v6100
        %v6102 = vpop.f32.mrb[0].mxu0
        %6103 = vmatprep.mubr.f32.mxu0 0.0
        %6104 = vmatmul.mubr.f32.gmra.mrb[0].mxu0 %v5982
        %v6105 = vpop.f32.mrb[0].mxu0
        %v6106 = vadd.f32 %v6013, %v6105
        %v6107 = vpop.f32.mrb[0].mxu0
        %6108 = vmatprep.mubr.f32.mxu0 0.0
        %6109 = vmatmul.mubr.f32.gmra.mrb[0].mxu0 %v5983
        %v6110 = vpop.f32.mrb[0].mxu0
        %v6111 = vadd.f32 %v6013, %v6110
        %v6112 = vpop.f32.mrb[0].mxu0
        %6113 = vmatprep.mubr.f32.mxu0 0.0
        %6114 = vmatmul.mubr.f32.gmra.mrb[0].mxu0 %v5984
        %v6115 = vpop.f32.mrb[0].mxu0
        %v6116 = vadd.f32 %v6013, %v6115
        %v6117 = vpop.f32.mrb[0].mxu0
        %6118 = vmatprep.mubr.f32.mxu0 0.0
        %6119 = vmatmul.mubr.f32.gmra.mrb[0].mxu0 %v5985
        %v6120 = vpop.f32.mrb[0].mxu0
        %v6121 = vadd.f32 %v6013, %v6120
        %v6122 = vpop.f32.mrb[0].mxu0
        %6123 = vmatprep.mubr.f32.mxu0 0.0
        %6124 = vmatmul.mubr.f32.gmra.mrb[0].mxu0 %v5986
        %v6125 = vpop.f32.mrb[0].mxu0
        %v6126 = vadd.f32 %v6013, %v6125
        %v6127 = vpop.f32.mrb[0].mxu0
        %6128 = vmatprep.mubr.f32.mxu0 0.0
        %6129 = vmatmul.mubr.f32.gmra.mrb[0].mxu0 %v5987
        %v6130 = vpop.f32.mrb[0].mxu0
        %v6131 = vadd.f32 %v6013, %v6130
        %v6132 = vpop.f32.mrb[0].mxu0
        %6133 = vmatprep.mubr.f32.mxu0 0.0
        %6134 = vmatmul.mubr.f32.gmra.mrb[0].mxu0 %v5988
        %v6135 = vpop.f32.mrb[0].mxu0
        %v6136 = vadd.f32 %v6013, %v6135
        %v6137 = vpop.f32.mrb[0].mxu0
        %6138 = vmatprep.mubr.f32.mxu0 0.0
        %6139 = vmatmul.mubr.f32.gmra.mrb[0].mxu0 %v5989
        %v6140 = vpop.f32.mrb[0].mxu0
        %v6141 = vadd.f32 %v6013, %v6140
        %v6142 = vpop.f32.mrb[0].mxu0
        %6143 = vmatprep.mubr.f32.mxu0 0.0
        %6144 = vmatmul.mubr.f32.gmra.mrb[0].mxu0 %v5990
        %v6145 = vpop.f32.mrb[0].mxu0
        %v6146 = vadd.f32 %v6013, %v6145
        %v6147 = vpop.f32.mrb[0].mxu0
        %6148 = vmatprep.mubr.f32.mxu0 0.0
        %6149 = vmatmul.mubr.f32.gmra.mrb[0].mxu0 %v5991
        %v6150 = vpop.f32.mrb[0].mxu0
        %v6151 = vadd.f32 %v6013, %v6150
        %v6152 = vpop.f32.mrb[0].mxu0
        %6153 = vmatprep.mubr.f32.mxu0 0.0
        %6154 = vmatmul.mubr.f32.gmra.mrb[0].mxu0 %v5992
        %v6155 = vpop.f32.mrb[0].mxu0
        %v6156 = vadd.f32 %v6013, %v6155
        %v6157 = vpop.f32.mrb[0].mxu0
        %6158 = vdwg.mxu0
        %6159 = vmatprep.subr.mxu0 0.0
        %6160 = vmatpush1.msra.mxu0 %v4633
        %6161 = vmatprep.subr.mxu0 0.0
        %6162 = vmatpush1.msra.mxu0 %v4634
        %6163 = vmatprep.subr.mxu0 0.0
        %6164 = vmatpush1.msra.mxu0 0.0
        %6165 = vmatprep.subr.mxu0 0.0
        %6166 = vmatpush1.msra.mxu0 0.0
        %6167 = vmatprep.subr.mxu0 0.0
        %6168 = vmatpush1.msra.mxu0 0.0
        %6169 = vmatprep.subr.mxu0 0.0
        %6170 = vmatpush1.msra.mxu0 0.0
        %6171 = vmatprep.subr.mxu0 0.0
        %6172 = vmatpush1.msra.mxu0 0.0
        %6173 = vmatprep.subr.mxu0 0.0
        %6174 = vmatpush1.msra.mxu0 0.0
        %6175 = vmatprep.subr.mxu0 0.0
        %6176 = vmatpush1.msra.mxu0 0.0
        %6177 = vmatprep.subr.mxu0 0.0
        %6178 = vmatpush1.msra.mxu0 0.0
        %6179 = vmatprep.subr.mxu0 0.0
        %6180 = vmatpush1.msra.mxu0 0.0
        %6181 = vmatprep.subr.mxu0 0.0
        %6182 = vmatpush1.msra.mxu0 0.0
        %6183 = vmatprep.subr.mxu0 0.0
        %6184 = vmatpush1.msra.mxu0 0.0
        %6185 = vmatprep.subr.mxu0 0.0
        %6186 = vmatpush1.msra.mxu0 0.0
        %6187 = vmatprep.subr.mxu0 0.0
        %6188 = vmatpush1.msra.mxu0 0.0
        %6189 = vmatprep.subr.mxu0 0.0
        %6190 = vmatpush1.msra.mxu0 0.0
        %6191 = vmatprep.subr.mxu0 0.0
        %6192 = vmatpush1.msra.mxu0 0.0
        %6193 = vmatprep.subr.mxu0 0.0
        %6194 = vmatpush1.msra.mxu0 0.0
        %6195 = vmatprep.subr.mxu0 0.0
        %6196 = vmatpush1.msra.mxu0 0.0
        %6197 = vmatprep.subr.mxu0 0.0
        %6198 = vmatpush1.msra.mxu0 0.0
        %6199 = vmatprep.subr.mxu0 0.0
        %6200 = vmatpush1.msra.mxu0 0.0
        %6201 = vmatprep.subr.mxu0 0.0
        %6202 = vmatpush1.msra.mxu0 0.0
        %6203 = vmatprep.subr.mxu0 0.0
        %6204 = vmatpush1.msra.mxu0 0.0
        %6205 = vmatprep.subr.mxu0 0.0
        %6206 = vmatpush1.msra.mxu0 0.0
        %6207 = vmatprep.subr.mxu0 0.0
        %6208 = vmatpush1.msra.mxu0 0.0
        %6209 = vmatprep.subr.mxu0 0.0
        %6210 = vmatpush1.msra.mxu0 0.0
        %6211 = vmatprep.subr.mxu0 0.0
        %6212 = vmatpush1.msra.mxu0 0.0
        %6213 = vmatprep.subr.mxu0 0.0
        %6214 = vmatpush1.msra.mxu0 0.0
        %6215 = vmatprep.subr.mxu0 0.0
        %6216 = vmatpush1.msra.mxu0 0.0
        %6217 = vmatprep.subr.mxu0 0.0
        %6218 = vmatpush1.msra.mxu0 0.0
        %6219 = vmatprep.subr.mxu0 0.0
        %6220 = vmatpush1.msra.mxu0 0.0
        %6221 = vmatprep.subr.mxu0 0.0
        %6222 = vmatpush1.msra.mxu0 0.0
        %6223 = vmatprep.mubr.f32.mxu0 0.0
        %6224 = vmatmul.mubr.f32.gmra.mrb[0].mxu0 %v2581
        %v6225 = vpop.f32.mrb[0].mxu0
        %v6226 = vadd.f32 0.0, %v6225
        %v6227 = vpop.f32.mrb[0].mxu0
        %6228 = vmatprep.mubr.f32.mxu0 0.0
        %6229 = vmatmul.mubr.f32.gmra.mrb[0].mxu0 %v2584
        %v6230 = vpop.f32.mrb[0].mxu0
        %v6231 = vadd.f32 0.0, %v6230
        %v6232 = vpop.f32.mrb[0].mxu0
        %6233 = vmatprep.mubr.f32.mxu0 0.0
        %6234 = vmatmul.mubr.f32.gmra.mrb[0].mxu0 %v2587
        %v6235 = vpop.f32.mrb[0].mxu0
        %v6236 = vadd.f32 0.0, %v6235
        %v6237 = vpop.f32.mrb[0].mxu0
        %6238 = vmatprep.mubr.f32.mxu0 0.0
        %6239 = vmatmul.mubr.f32.gmra.mrb[0].mxu0 %v2590
        %v6240 = vpop.f32.mrb[0].mxu0
        %v6241 = vadd.f32 0.0, %v6240
        %v6242 = vpop.f32.mrb[0].mxu0
        %6243 = vmatprep.mubr.f32.mxu0 0.0
        %6244 = vmatmul.mubr.f32.gmra.mrb[0].mxu0 %v2593
        %v6245 = vpop.f32.mrb[0].mxu0
        %v6246 = vadd.f32 0.0, %v6245
        %v6247 = vpop.f32.mrb[0].mxu0
        %6248 = vmatprep.mubr.f32.mxu0 0.0
        %6249 = vmatmul.mubr.f32.gmra.mrb[0].mxu0 %v2596
        %v6250 = vpop.f32.mrb[0].mxu0
        %v6251 = vadd.f32 0.0, %v6250
        %v6252 = vpop.f32.mrb[0].mxu0
        %6253 = vmatprep.mubr.f32.mxu0 0.0
        %6254 = vmatmul.mubr.f32.gmra.mrb[0].mxu0 %v2599
        %v6255 = vpop.f32.mrb[0].mxu0
        %v6256 = vadd.f32 0.0, %v6255
        %v6257 = vpop.f32.mrb[0].mxu0
        %6258 = vmatprep.mubr.f32.mxu0 0.0
        %6259 = vmatmul.mubr.f32.gmra.mrb[0].mxu0 %v2602
        %v6260 = vpop.f32.mrb[0].mxu0
        %v6261 = vadd.f32 0.0, %v6260
        %v6262 = vpop.f32.mrb[0].mxu0
        %6263 = vmatprep.mubr.f32.mxu0 0.0
        %6264 = vmatmul.mubr.f32.gmra.mrb[0].mxu0 %v2605
        %v6265 = vpop.f32.mrb[0].mxu0
        %v6266 = vadd.f32 0.0, %v6265
        %v6267 = vpop.f32.mrb[0].mxu0
        %6268 = vmatprep.mubr.f32.mxu0 0.0
        %6269 = vmatmul.mubr.f32.gmra.mrb[0].mxu0 %v2608
        %v6270 = vpop.f32.mrb[0].mxu0
        %v6271 = vadd.f32 0.0, %v6270
        %v6272 = vpop.f32.mrb[0].mxu0
        %6273 = vmatprep.mubr.f32.mxu0 0.0
        %6274 = vmatmul.mubr.f32.gmra.mrb[0].mxu0 %v2611
        %v6275 = vpop.f32.mrb[0].mxu0
        %v6276 = vadd.f32 0.0, %v6275
        %v6277 = vpop.f32.mrb[0].mxu0
        %6278 = vmatprep.mubr.f32.mxu0 0.0
        %6279 = vmatmul.mubr.f32.gmra.mrb[0].mxu0 %v2614
        %v6280 = vpop.f32.mrb[0].mxu0
        %v6281 = vadd.f32 0.0, %v6280
        %v6282 = vpop.f32.mrb[0].mxu0
        %6283 = vmatprep.mubr.f32.mxu0 0.0
        %6284 = vmatmul.mubr.f32.gmra.mrb[0].mxu0 %v2617
        %v6285 = vpop.f32.mrb[0].mxu0
        %v6286 = vadd.f32 0.0, %v6285
        %v6287 = vpop.f32.mrb[0].mxu0
        %6288 = vmatprep.mubr.f32.mxu0 0.0
        %6289 = vmatmul.mubr.f32.gmra.mrb[0].mxu0 %v2620
        %v6290 = vpop.f32.mrb[0].mxu0
        %v6291 = vadd.f32 0.0, %v6290
        %v6292 = vpop.f32.mrb[0].mxu0
        %6293 = vmatprep.mubr.f32.mxu0 0.0
        %6294 = vmatmul.mubr.f32.gmra.mrb[0].mxu0 %v2623
        %v6295 = vpop.f32.mrb[0].mxu0
        %v6296 = vadd.f32 0.0, %v6295
        %v6297 = vpop.f32.mrb[0].mxu0
        %6298 = vmatprep.mubr.f32.mxu0 0.0
        %6299 = vmatmul.mubr.f32.gmra.mrb[0].mxu0 %v2626
        %v6300 = vpop.f32.mrb[0].mxu0
        %v6301 = vadd.f32 0.0, %v6300
        %v6302 = vpop.f32.mrb[0].mxu0
        %6303 = vdwg.mxu0
        %6304 = vmatprep.subr.mxu0 0.0
        %6305 = vmatpush1.msra.mxu0 %v4780
        %6306 = vmatprep.subr.mxu0 0.0
        %6307 = vmatpush1.msra.mxu0 %v4781
        %6308 = vmatprep.subr.mxu0 0.0
        %6309 = vmatpush1.msra.mxu0 %v4782
        %6310 = vmatprep.subr.mxu0 0.0
        %6311 = vmatpush1.msra.mxu0 %v4783
        %6312 = vmatprep.subr.mxu0 0.0
        %6313 = vmatpush1.msra.mxu0 %v4784
        %6314 = vmatprep.subr.mxu0 0.0
        %6315 = vmatpush1.msra.mxu0 %v4785
        %6316 = vmatprep.subr.mxu0 0.0
        %6317 = vmatpush1.msra.mxu0 %v4786
        %6318 = vmatprep.subr.mxu0 0.0
        %6319 = vmatpush1.msra.mxu0 %v4787
        %6320 = vmatprep.subr.mxu0 0.0
        %6321 = vmatpush1.msra.mxu0 %v4788
        %6322 = vmatprep.subr.mxu0 0.0
        %6323 = vmatpush1.msra.mxu0 %v4789
        %6324 = vmatprep.subr.mxu0 0.0
        %6325 = vmatpush1.msra.mxu0 %v4790
        %6326 = vmatprep.subr.mxu0 0.0
        %6327 = vmatpush1.msra.mxu0 %v4791
        %6328 = vmatprep.subr.mxu0 0.0
        %6329 = vmatpush1.msra.mxu0 %v4792
        %6330 = vmatprep.subr.mxu0 0.0
        %6331 = vmatpush1.msra.mxu0 %v4793
        %6332 = vmatprep.subr.mxu0 0.0
        %6333 = vmatpush1.msra.mxu0 %v4794
        %6334 = vmatprep.subr.mxu0 0.0
        %6335 = vmatpush1.msra.mxu0 %v4795
        %6336 = vmatprep.subr.mxu0 0.0
        %6337 = vmatpush1.msra.mxu0 0.0
        %6338 = vmatprep.subr.mxu0 0.0
        %6339 = vmatpush1.msra.mxu0 0.0
        %6340 = vmatprep.subr.mxu0 0.0
        %6341 = vmatpush1.msra.mxu0 0.0
        %6342 = vmatprep.subr.mxu0 0.0
        %6343 = vmatpush1.msra.mxu0 0.0
        %6344 = vmatprep.subr.mxu0 0.0
        %6345 = vmatpush1.msra.mxu0 0.0
        %6346 = vmatprep.subr.mxu0 0.0
        %6347 = vmatpush1.msra.mxu0 0.0
        %6348 = vmatprep.subr.mxu0 0.0
        %6349 = vmatpush1.msra.mxu0 0.0
        %6350 = vmatprep.subr.mxu0 0.0
        %6351 = vmatpush1.msra.mxu0 0.0
        %6352 = vmatprep.subr.mxu0 0.0
        %6353 = vmatpush1.msra.mxu0 0.0
        %6354 = vmatprep.subr.mxu0 0.0
        %6355 = vmatpush1.msra.mxu0 0.0
        %6356 = vmatprep.subr.mxu0 0.0
        %6357 = vmatpush1.msra.mxu0 0.0
        %6358 = vmatprep.subr.mxu0 0.0
        %6359 = vmatpush1.msra.mxu0 0.0
        %6360 = vmatprep.subr.mxu0 0.0
        %6361 = vmatpush1.msra.mxu0 0.0
        %6362 = vmatprep.subr.mxu0 0.0
        %6363 = vmatpush1.msra.mxu0 0.0
        %6364 = vmatprep.subr.mxu0 0.0
        %6365 = vmatpush1.msra.mxu0 0.0
        %6366 = vmatprep.subr.mxu0 0.0
        %6367 = vmatpush1.msra.mxu0 0.0
        %6368 = vmatprep.mubr.f32.mxu0 0.0
        %6369 = vmatmul.mubr.f32.gmra.mrb[0].mxu0 %v6081
        %v6370 = vpop.f32.mrb[0].mxu0
        %v6371 = vadd.f32 0.0, %v6370
        %v6372 = vpop.f32.mrb[0].mxu0
        %6373 = vmatprep.mubr.f32.mxu0 0.0
        %6374 = vmatmul.mubr.f32.gmra.mrb[0].mxu0 %v6086
        %v6375 = vpop.f32.mrb[0].mxu0
        %v6376 = vadd.f32 0.0, %v6375
        %v6377 = vpop.f32.mrb[0].mxu0
        %6378 = vmatprep.mubr.f32.mxu0 0.0
        %6379 = vmatmul.mubr.f32.gmra.mrb[0].mxu0 %v6091
        %v6380 = vpop.f32.mrb[0].mxu0
        %v6381 = vadd.f32 0.0, %v6380
        %v6382 = vpop.f32.mrb[0].mxu0
        %6383 = vmatprep.mubr.f32.mxu0 0.0
        %6384 = vmatmul.mubr.f32.gmra.mrb[0].mxu0 %v6096
        %v6385 = vpop.f32.mrb[0].mxu0
        %v6386 = vadd.f32 0.0, %v6385
        %v6387 = vpop.f32.mrb[0].mxu0
        %6388 = vmatprep.mubr.f32.mxu0 0.0
        %6389 = vmatmul.mubr.f32.gmra.mrb[0].mxu0 %v6101
        %v6390 = vpop.f32.mrb[0].mxu0
        %v6391 = vadd.f32 0.0, %v6390
        %v6392 = vpop.f32.mrb[0].mxu0
        %6393 = vmatprep.mubr.f32.mxu0 0.0
        %6394 = vmatmul.mubr.f32.gmra.mrb[0].mxu0 %v6106
        %v6395 = vpop.f32.mrb[0].mxu0
        %v6396 = vadd.f32 0.0, %v6395
        %v6397 = vpop.f32.mrb[0].mxu0
        %6398 = vmatprep.mubr.f32.mxu0 0.0
        %6399 = vmatmul.mubr.f32.gmra.mrb[0].mxu0 %v6111
        %v6400 = vpop.f32.mrb[0].mxu0
        %v6401 = vadd.f32 0.0, %v6400
        %v6402 = vpop.f32.mrb[0].mxu0
        %6403 = vmatprep.mubr.f32.mxu0 0.0
        %6404 = vmatmul.mubr.f32.gmra.mrb[0].mxu0 %v6116
        %v6405 = vpop.f32.mrb[0].mxu0
        %v6406 = vadd.f32 0.0, %v6405
        %v6407 = vpop.f32.mrb[0].mxu0
        %6408 = vmatprep.mubr.f32.mxu0 0.0
        %6409 = vmatmul.mubr.f32.gmra.mrb[0].mxu0 %v6121
        %v6410 = vpop.f32.mrb[0].mxu0
        %v6411 = vadd.f32 0.0, %v6410
        %v6412 = vpop.f32.mrb[0].mxu0
        %6413 = vmatprep.mubr.f32.mxu0 0.0
        %6414 = vmatmul.mubr.f32.gmra.mrb[0].mxu0 %v6126
        %v6415 = vpop.f32.mrb[0].mxu0
        %v6416 = vadd.f32 0.0, %v6415
        %v6417 = vpop.f32.mrb[0].mxu0
        %6418 = vmatprep.mubr.f32.mxu0 0.0
        %6419 = vmatmul.mubr.f32.gmra.mrb[0].mxu0 %v6131
        %v6420 = vpop.f32.mrb[0].mxu0
        %v6421 = vadd.f32 0.0, %v6420
        %v6422 = vpop.f32.mrb[0].mxu0
        %6423 = vmatprep.mubr.f32.mxu0 0.0
        %6424 = vmatmul.mubr.f32.gmra.mrb[0].mxu0 %v6136
        %v6425 = vpop.f32.mrb[0].mxu0
        %v6426 = vadd.f32 0.0, %v6425
        %v6427 = vpop.f32.mrb[0].mxu0
        %6428 = vmatprep.mubr.f32.mxu0 0.0
        %6429 = vmatmul.mubr.f32.gmra.mrb[0].mxu0 %v6141
        %v6430 = vpop.f32.mrb[0].mxu0
        %v6431 = vadd.f32 0.0, %v6430
        %v6432 = vpop.f32.mrb[0].mxu0
        %6433 = vmatprep.mubr.f32.mxu0 0.0
        %6434 = vmatmul.mubr.f32.gmra.mrb[0].mxu0 %v6146
        %v6435 = vpop.f32.mrb[0].mxu0
        %v6436 = vadd.f32 0.0, %v6435
        %v6437 = vpop.f32.mrb[0].mxu0
        %6438 = vmatprep.mubr.f32.mxu0 0.0
        %6439 = vmatmul.mubr.f32.gmra.mrb[0].mxu0 %v6151
        %v6440 = vpop.f32.mrb[0].mxu0
        %v6441 = vadd.f32 0.0, %v6440
        %v6442 = vpop.f32.mrb[0].mxu0
        %6443 = vmatprep.mubr.f32.mxu0 0.0
        %6444 = vmatmul.mubr.f32.gmra.mrb[0].mxu0 %v6156
        %v6445 = vpop.f32.mrb[0].mxu0
        %v6446 = vadd.f32 0.0, %v6445
        %v6447 = vpop.f32.mrb[0].mxu0
        %6448 = vdwg.mxu0
        %v6449 = vmul.f32 %v6226, %v6371
        %v6450 = vmul.f32 %v6231, %v6376
        %v6451 = vmul.f32 %v6236, %v6381
        %v6452 = vmul.f32 %v6241, %v6386
        %v6453 = vmul.f32 %v6246, %v6391
        %v6454 = vmul.f32 %v6251, %v6396
        %v6455 = vmul.f32 %v6256, %v6401
        %v6456 = vmul.f32 %v6261, %v6406
        %v6457 = vmul.f32 %v6266, %v6411
        %v6458 = vmul.f32 %v6271, %v6416
        %v6459 = vmul.f32 %v6276, %v6421
        %v6460 = vmul.f32 %v6281, %v6426
        %v6461 = vmul.f32 %v6286, %v6431
        %v6462 = vmul.f32 %v6291, %v6436
        %v6463 = vmul.f32 %v6296, %v6441
        %v6464 = vmul.f32 %v6301, %v6446
        %6465 = vmatprep.subr.mxu0 0.0
        %6466 = vmatpush1.msra.mxu0 %v4957
        %6467 = vmatprep.subr.mxu0 0.0
        %6468 = vmatpush1.msra.mxu0 %v4958
        %6469 = vmatprep.subr.mxu0 0.0
        %6470 = vmatpush1.msra.mxu0 0.0
        %6471 = vmatprep.subr.mxu0 0.0
        %6472 = vmatpush1.msra.mxu0 0.0
        %6473 = vmatprep.subr.mxu0 0.0
        %6474 = vmatpush1.msra.mxu0 0.0
        %6475 = vmatprep.subr.mxu0 0.0
        %6476 = vmatpush1.msra.mxu0 0.0
        %6477 = vmatprep.subr.mxu0 0.0
        %6478 = vmatpush1.msra.mxu0 0.0
        %6479 = vmatprep.subr.mxu0 0.0
        %6480 = vmatpush1.msra.mxu0 0.0
        %6481 = vmatprep.subr.mxu0 0.0
        %6482 = vmatpush1.msra.mxu0 0.0
        %6483 = vmatprep.subr.mxu0 0.0
        %6484 = vmatpush1.msra.mxu0 0.0
        %6485 = vmatprep.subr.mxu0 0.0
        %6486 = vmatpush1.msra.mxu0 0.0
        %6487 = vmatprep.subr.mxu0 0.0
        %6488 = vmatpush1.msra.mxu0 0.0
        %6489 = vmatprep.subr.mxu0 0.0
        %6490 = vmatpush1.msra.mxu0 0.0
        %6491 = vmatprep.subr.mxu0 0.0
        %6492 = vmatpush1.msra.mxu0 0.0
        %6493 = vmatprep.subr.mxu0 0.0
        %6494 = vmatpush1.msra.mxu0 0.0
        %6495 = vmatprep.subr.mxu0 0.0
        %6496 = vmatpush1.msra.mxu0 0.0
        %6497 = vmatprep.subr.mxu0 0.0
        %6498 = vmatpush1.msra.mxu0 0.0
        %6499 = vmatprep.subr.mxu0 0.0
        %6500 = vmatpush1.msra.mxu0 0.0
        %6501 = vmatprep.subr.mxu0 0.0
        %6502 = vmatpush1.msra.mxu0 0.0
        %6503 = vmatprep.subr.mxu0 0.0
        %6504 = vmatpush1.msra.mxu0 0.0
        %6505 = vmatprep.subr.mxu0 0.0
        %6506 = vmatpush1.msra.mxu0 0.0
        %6507 = vmatprep.subr.mxu0 0.0
        %6508 = vmatpush1.msra.mxu0 0.0
        %6509 = vmatprep.subr.mxu0 0.0
        %6510 = vmatpush1.msra.mxu0 0.0
        %6511 = vmatprep.subr.mxu0 0.0
        %6512 = vmatpush1.msra.mxu0 0.0
        %6513 = vmatprep.subr.mxu0 0.0
        %6514 = vmatpush1.msra.mxu0 0.0
        %6515 = vmatprep.subr.mxu0 0.0
        %6516 = vmatpush1.msra.mxu0 0.0
        %6517 = vmatprep.subr.mxu0 0.0
        %6518 = vmatpush1.msra.mxu0 0.0
        %6519 = vmatprep.subr.mxu0 0.0
        %6520 = vmatpush1.msra.mxu0 0.0
        %6521 = vmatprep.subr.mxu0 0.0
        %6522 = vmatpush1.msra.mxu0 0.0
        %6523 = vmatprep.subr.mxu0 0.0
        %6524 = vmatpush1.msra.mxu0 0.0
        %6525 = vmatprep.subr.mxu0 0.0
        %6526 = vmatpush1.msra.mxu0 0.0
        %6527 = vmatprep.subr.mxu0 0.0
        %6528 = vmatpush1.msra.mxu0 0.0
        %6529 = vmatprep.mubr.f32.mxu0 0.0
        %6530 = vmatmul.mubr.f32.gmra.mrb[0].mxu0 %v2581
        %v6531 = vpop.f32.mrb[0].mxu0
        %v6532 = vadd.f32 0.0, %v6531
        %v6533 = vpop.f32.mrb[0].mxu0
        %6534 = vmatprep.mubr.f32.mxu0 0.0
        %6535 = vmatmul.mubr.f32.gmra.mrb[0].mxu0 %v2584
        %v6536 = vpop.f32.mrb[0].mxu0
        %v6537 = vadd.f32 0.0, %v6536
        %v6538 = vpop.f32.mrb[0].mxu0
        %6539 = vmatprep.mubr.f32.mxu0 0.0
        %6540 = vmatmul.mubr.f32.gmra.mrb[0].mxu0 %v2587
        %v6541 = vpop.f32.mrb[0].mxu0
        %v6542 = vadd.f32 0.0, %v6541
        %v6543 = vpop.f32.mrb[0].mxu0
        %6544 = vmatprep.mubr.f32.mxu0 0.0
        %6545 = vmatmul.mubr.f32.gmra.mrb[0].mxu0 %v2590
        %v6546 = vpop.f32.mrb[0].mxu0
        %v6547 = vadd.f32 0.0, %v6546
        %v6548 = vpop.f32.mrb[0].mxu0
        %6549 = vmatprep.mubr.f32.mxu0 0.0
        %6550 = vmatmul.mubr.f32.gmra.mrb[0].mxu0 %v2593
        %v6551 = vpop.f32.mrb[0].mxu0
        %v6552 = vadd.f32 0.0, %v6551
        %v6553 = vpop.f32.mrb[0].mxu0
        %6554 = vmatprep.mubr.f32.mxu0 0.0
        %6555 = vmatmul.mubr.f32.gmra.mrb[0].mxu0 %v2596
        %v6556 = vpop.f32.mrb[0].mxu0
        %v6557 = vadd.f32 0.0, %v6556
        %v6558 = vpop.f32.mrb[0].mxu0
        %6559 = vmatprep.mubr.f32.mxu0 0.0
        %6560 = vmatmul.mubr.f32.gmra.mrb[0].mxu0 %v2599
        %v6561 = vpop.f32.mrb[0].mxu0
        %v6562 = vadd.f32 0.0, %v6561
        %v6563 = vpop.f32.mrb[0].mxu0
        %6564 = vmatprep.mubr.f32.mxu0 0.0
        %6565 = vmatmul.mubr.f32.gmra.mrb[0].mxu0 %v2602
        %v6566 = vpop.f32.mrb[0].mxu0
        %v6567 = vadd.f32 0.0, %v6566
        %v6568 = vpop.f32.mrb[0].mxu0
        %6569 = vmatprep.mubr.f32.mxu0 0.0
        %6570 = vmatmul.mubr.f32.gmra.mrb[0].mxu0 %v2605
        %v6571 = vpop.f32.mrb[0].mxu0
        %v6572 = vadd.f32 0.0, %v6571
        %v6573 = vpop.f32.mrb[0].mxu0
        %6574 = vmatprep.mubr.f32.mxu0 0.0
        %6575 = vmatmul.mubr.f32.gmra.mrb[0].mxu0 %v2608
        %v6576 = vpop.f32.mrb[0].mxu0
        %v6577 = vadd.f32 0.0, %v6576
        %v6578 = vpop.f32.mrb[0].mxu0
        %6579 = vmatprep.mubr.f32.mxu0 0.0
        %6580 = vmatmul.mubr.f32.gmra.mrb[0].mxu0 %v2611
        %v6581 = vpop.f32.mrb[0].mxu0
        %v6582 = vadd.f32 0.0, %v6581
        %v6583 = vpop.f32.mrb[0].mxu0
        %6584 = vmatprep.mubr.f32.mxu0 0.0
        %6585 = vmatmul.mubr.f32.gmra.mrb[0].mxu0 %v2614
        %v6586 = vpop.f32.mrb[0].mxu0
        %v6587 = vadd.f32 0.0, %v6586
        %v6588 = vpop.f32.mrb[0].mxu0
        %6589 = vmatprep.mubr.f32.mxu0 0.0
        %6590 = vmatmul.mubr.f32.gmra.mrb[0].mxu0 %v2617
        %v6591 = vpop.f32.mrb[0].mxu0
        %v6592 = vadd.f32 0.0, %v6591
        %v6593 = vpop.f32.mrb[0].mxu0
        %6594 = vmatprep.mubr.f32.mxu0 0.0
        %6595 = vmatmul.mubr.f32.gmra.mrb[0].mxu0 %v2620
        %v6596 = vpop.f32.mrb[0].mxu0
        %v6597 = vadd.f32 0.0, %v6596
        %v6598 = vpop.f32.mrb[0].mxu0
        %6599 = vmatprep.mubr.f32.mxu0 0.0
        %6600 = vmatmul.mubr.f32.gmra.mrb[0].mxu0 %v2623
        %v6601 = vpop.f32.mrb[0].mxu0
        %v6602 = vadd.f32 0.0, %v6601
        %v6603 = vpop.f32.mrb[0].mxu0
        %6604 = vmatprep.mubr.f32.mxu0 0.0
        %6605 = vmatmul.mubr.f32.gmra.mrb[0].mxu0 %v2626
        %v6606 = vpop.f32.mrb[0].mxu0
        %v6607 = vadd.f32 0.0, %v6606
        %v6608 = vpop.f32.mrb[0].mxu0
        %6609 = vdwg.mxu0
        %6610 = vmatprep.subr.mxu0 0.0
        %6611 = vmatpush1.msra.mxu0 %v5104
        %6612 = vmatprep.subr.mxu0 0.0
        %6613 = vmatpush1.msra.mxu0 %v5105
        %6614 = vmatprep.subr.mxu0 0.0
        %6615 = vmatpush1.msra.mxu0 %v5106
        %6616 = vmatprep.subr.mxu0 0.0
        %6617 = vmatpush1.msra.mxu0 %v5107
        %6618 = vmatprep.subr.mxu0 0.0
        %6619 = vmatpush1.msra.mxu0 %v5108
        %6620 = vmatprep.subr.mxu0 0.0
        %6621 = vmatpush1.msra.mxu0 %v5109
        %6622 = vmatprep.subr.mxu0 0.0
        %6623 = vmatpush1.msra.mxu0 %v5110
        %6624 = vmatprep.subr.mxu0 0.0
        %6625 = vmatpush1.msra.mxu0 %v5111
        %6626 = vmatprep.subr.mxu0 0.0
        %6627 = vmatpush1.msra.mxu0 %v5112
        %6628 = vmatprep.subr.mxu0 0.0
        %6629 = vmatpush1.msra.mxu0 %v5113
        %6630 = vmatprep.subr.mxu0 0.0
        %6631 = vmatpush1.msra.mxu0 %v5114
        %6632 = vmatprep.subr.mxu0 0.0
        %6633 = vmatpush1.msra.mxu0 %v5115
        %6634 = vmatprep.subr.mxu0 0.0
        %6635 = vmatpush1.msra.mxu0 %v5116
        %6636 = vmatprep.subr.mxu0 0.0
        %6637 = vmatpush1.msra.mxu0 %v5117
        %6638 = vmatprep.subr.mxu0 0.0
        %6639 = vmatpush1.msra.mxu0 %v5118
        %6640 = vmatprep.subr.mxu0 0.0
        %6641 = vmatpush1.msra.mxu0 %v5119
        %6642 = vmatprep.subr.mxu0 0.0
        %6643 = vmatpush1.msra.mxu0 0.0
        %6644 = vmatprep.subr.mxu0 0.0
        %6645 = vmatpush1.msra.mxu0 0.0
        %6646 = vmatprep.subr.mxu0 0.0
        %6647 = vmatpush1.msra.mxu0 0.0
        %6648 = vmatprep.subr.mxu0 0.0
        %6649 = vmatpush1.msra.mxu0 0.0
        %6650 = vmatprep.subr.mxu0 0.0
        %6651 = vmatpush1.msra.mxu0 0.0
        %6652 = vmatprep.subr.mxu0 0.0
        %6653 = vmatpush1.msra.mxu0 0.0
        %6654 = vmatprep.subr.mxu0 0.0
        %6655 = vmatpush1.msra.mxu0 0.0
        %6656 = vmatprep.subr.mxu0 0.0
        %6657 = vmatpush1.msra.mxu0 0.0
        %6658 = vmatprep.subr.mxu0 0.0
        %6659 = vmatpush1.msra.mxu0 0.0
        %6660 = vmatprep.subr.mxu0 0.0
        %6661 = vmatpush1.msra.mxu0 0.0
        %6662 = vmatprep.subr.mxu0 0.0
        %6663 = vmatpush1.msra.mxu0 0.0
        %6664 = vmatprep.subr.mxu0 0.0
        %6665 = vmatpush1.msra.mxu0 0.0
        %6666 = vmatprep.subr.mxu0 0.0
        %6667 = vmatpush1.msra.mxu0 0.0
        %6668 = vmatprep.subr.mxu0 0.0
        %6669 = vmatpush1.msra.mxu0 0.0
        %6670 = vmatprep.subr.mxu0 0.0
        %6671 = vmatpush1.msra.mxu0 0.0
        %6672 = vmatprep.subr.mxu0 0.0
        %6673 = vmatpush1.msra.mxu0 0.0
        %6674 = vmatprep.mubr.f32.mxu0 0.0
        %6675 = vmatmul.mubr.f32.gmra.mrb[0].mxu0 %v6081
        %v6676 = vpop.f32.mrb[0].mxu0
        %v6677 = vadd.f32 0.0, %v6676
        %v6678 = vpop.f32.mrb[0].mxu0
        %6679 = vmatprep.mubr.f32.mxu0 0.0
        %6680 = vmatmul.mubr.f32.gmra.mrb[0].mxu0 %v6086
        %v6681 = vpop.f32.mrb[0].mxu0
        %v6682 = vadd.f32 0.0, %v6681
        %v6683 = vpop.f32.mrb[0].mxu0
        %6684 = vmatprep.mubr.f32.mxu0 0.0
        %6685 = vmatmul.mubr.f32.gmra.mrb[0].mxu0 %v6091
        %v6686 = vpop.f32.mrb[0].mxu0
        %v6687 = vadd.f32 0.0, %v6686
        %v6688 = vpop.f32.mrb[0].mxu0
        %6689 = vmatprep.mubr.f32.mxu0 0.0
        %6690 = vmatmul.mubr.f32.gmra.mrb[0].mxu0 %v6096
        %v6691 = vpop.f32.mrb[0].mxu0
        %v6692 = vadd.f32 0.0, %v6691
        %v6693 = vpop.f32.mrb[0].mxu0
        %6694 = vmatprep.mubr.f32.mxu0 0.0
        %6695 = vmatmul.mubr.f32.gmra.mrb[0].mxu0 %v6101
        %v6696 = vpop.f32.mrb[0].mxu0
        %v6697 = vadd.f32 0.0, %v6696
        %v6698 = vpop.f32.mrb[0].mxu0
        %6699 = vmatprep.mubr.f32.mxu0 0.0
        %6700 = vmatmul.mubr.f32.gmra.mrb[0].mxu0 %v6106
        %v6701 = vpop.f32.mrb[0].mxu0
        %v6702 = vadd.f32 0.0, %v6701
        %v6703 = vpop.f32.mrb[0].mxu0
        %6704 = vmatprep.mubr.f32.mxu0 0.0
        %6705 = vmatmul.mubr.f32.gmra.mrb[0].mxu0 %v6111
        %v6706 = vpop.f32.mrb[0].mxu0
        %v6707 = vadd.f32 0.0, %v6706
        %v6708 = vpop.f32.mrb[0].mxu0
        %6709 = vmatprep.mubr.f32.mxu0 0.0
        %6710 = vmatmul.mubr.f32.gmra.mrb[0].mxu0 %v6116
        %v6711 = vpop.f32.mrb[0].mxu0
        %v6712 = vadd.f32 0.0, %v6711
        %v6713 = vpop.f32.mrb[0].mxu0
        %6714 = vmatprep.mubr.f32.mxu0 0.0
        %6715 = vmatmul.mubr.f32.gmra.mrb[0].mxu0 %v6121
        %v6716 = vpop.f32.mrb[0].mxu0
        %v6717 = vadd.f32 0.0, %v6716
        %v6718 = vpop.f32.mrb[0].mxu0
        %6719 = vmatprep.mubr.f32.mxu0 0.0
        %6720 = vmatmul.mubr.f32.gmra.mrb[0].mxu0 %v6126
        %v6721 = vpop.f32.mrb[0].mxu0
        %v6722 = vadd.f32 0.0, %v6721
        %v6723 = vpop.f32.mrb[0].mxu0
        %6724 = vmatprep.mubr.f32.mxu0 0.0
        %6725 = vmatmul.mubr.f32.gmra.mrb[0].mxu0 %v6131
        %v6726 = vpop.f32.mrb[0].mxu0
        %v6727 = vadd.f32 0.0, %v6726
        %v6728 = vpop.f32.mrb[0].mxu0
        %6729 = vmatprep.mubr.f32.mxu0 0.0
        %6730 = vmatmul.mubr.f32.gmra.mrb[0].mxu0 %v6136
        %v6731 = vpop.f32.mrb[0].mxu0
        %v6732 = vadd.f32 0.0, %v6731
        %v6733 = vpop.f32.mrb[0].mxu0
        %6734 = vmatprep.mubr.f32.mxu0 0.0
        %6735 = vmatmul.mubr.f32.gmra.mrb[0].mxu0 %v6141
        %v6736 = vpop.f32.mrb[0].mxu0
        %v6737 = vadd.f32 0.0, %v6736
        %v6738 = vpop.f32.mrb[0].mxu0
        %6739 = vmatprep.mubr.f32.mxu0 0.0
        %6740 = vmatmul.mubr.f32.gmra.mrb[0].mxu0 %v6146
        %v6741 = vpop.f32.mrb[0].mxu0
        %v6742 = vadd.f32 0.0, %v6741
        %v6743 = vpop.f32.mrb[0].mxu0
        %6744 = vmatprep.mubr.f32.mxu0 0.0
        %6745 = vmatmul.mubr.f32.gmra.mrb[0].mxu0 %v6151
        %v6746 = vpop.f32.mrb[0].mxu0
        %v6747 = vadd.f32 0.0, %v6746
        %v6748 = vpop.f32.mrb[0].mxu0
        %6749 = vmatprep.mubr.f32.mxu0 0.0
        %6750 = vmatmul.mubr.f32.gmra.mrb[0].mxu0 %v6156
        %v6751 = vpop.f32.mrb[0].mxu0
        %v6752 = vadd.f32 0.0, %v6751
        %v6753 = vpop.f32.mrb[0].mxu0
        %6754 = vdwg.mxu0
        %v6755 = vmul.f32 %v6532, %v6677
        %v6756 = vmul.f32 %v6537, %v6682
        %v6757 = vmul.f32 %v6542, %v6687
        %v6758 = vmul.f32 %v6547, %v6692
        %v6759 = vmul.f32 %v6552, %v6697
        %v6760 = vmul.f32 %v6557, %v6702
        %v6761 = vmul.f32 %v6562, %v6707
        %v6762 = vmul.f32 %v6567, %v6712
        %v6763 = vmul.f32 %v6572, %v6717
        %v6764 = vmul.f32 %v6577, %v6722
        %v6765 = vmul.f32 %v6582, %v6727
        %v6766 = vmul.f32 %v6587, %v6732
        %v6767 = vmul.f32 %v6592, %v6737
        %v6768 = vmul.f32 %v6597, %v6742
        %v6769 = vmul.f32 %v6602, %v6747
        %v6770 = vmul.f32 %v6607, %v6752
        %v6771 = vadd.f32 %v6449, %v6755
        %v6772 = vadd.f32 %v6450, %v6756
        %v6773 = vadd.f32 %v6451, %v6757
        %v6774 = vadd.f32 %v6452, %v6758
        %v6775 = vadd.f32 %v6453, %v6759
        %v6776 = vadd.f32 %v6454, %v6760
        %v6777 = vadd.f32 %v6455, %v6761
        %v6778 = vadd.f32 %v6456, %v6762
        %v6779 = vadd.f32 %v6457, %v6763
        %v6780 = vadd.f32 %v6458, %v6764
        %v6781 = vadd.f32 %v6459, %v6765
        %v6782 = vadd.f32 %v6460, %v6766
        %v6783 = vadd.f32 %v6461, %v6767
        %v6784 = vadd.f32 %v6462, %v6768
        %v6785 = vadd.f32 %v6463, %v6769
        %v6786 = vadd.f32 %v6464, %v6770
        %6787 = vmatprep.subr.mxu0 0.0
        %6788 = vmatpush1.msra.mxu0 %v5297
        %6789 = vmatprep.subr.mxu0 0.0
        %6790 = vmatpush1.msra.mxu0 %v5298
        %6791 = vmatprep.subr.mxu0 0.0
        %6792 = vmatpush1.msra.mxu0 0.0
        %6793 = vmatprep.subr.mxu0 0.0
        %6794 = vmatpush1.msra.mxu0 0.0
        %6795 = vmatprep.subr.mxu0 0.0
        %6796 = vmatpush1.msra.mxu0 0.0
        %6797 = vmatprep.subr.mxu0 0.0
        %6798 = vmatpush1.msra.mxu0 0.0
        %6799 = vmatprep.subr.mxu0 0.0
        %6800 = vmatpush1.msra.mxu0 0.0
        %6801 = vmatprep.subr.mxu0 0.0
        %6802 = vmatpush1.msra.mxu0 0.0
        %6803 = vmatprep.subr.mxu0 0.0
        %6804 = vmatpush1.msra.mxu0 0.0
        %6805 = vmatprep.subr.mxu0 0.0
        %6806 = vmatpush1.msra.mxu0 0.0
        %6807 = vmatprep.subr.mxu0 0.0
        %6808 = vmatpush1.msra.mxu0 0.0
        %6809 = vmatprep.subr.mxu0 0.0
        %6810 = vmatpush1.msra.mxu0 0.0
        %6811 = vmatprep.subr.mxu0 0.0
        %6812 = vmatpush1.msra.mxu0 0.0
        %6813 = vmatprep.subr.mxu0 0.0
        %6814 = vmatpush1.msra.mxu0 0.0
        %6815 = vmatprep.subr.mxu0 0.0
        %6816 = vmatpush1.msra.mxu0 0.0
        %6817 = vmatprep.subr.mxu0 0.0
        %6818 = vmatpush1.msra.mxu0 0.0
        %6819 = vmatprep.subr.mxu0 0.0
        %6820 = vmatpush1.msra.mxu0 0.0
        %6821 = vmatprep.subr.mxu0 0.0
        %6822 = vmatpush1.msra.mxu0 0.0
        %6823 = vmatprep.subr.mxu0 0.0
        %6824 = vmatpush1.msra.mxu0 0.0
        %6825 = vmatprep.subr.mxu0 0.0
        %6826 = vmatpush1.msra.mxu0 0.0
        %6827 = vmatprep.subr.mxu0 0.0
        %6828 = vmatpush1.msra.mxu0 0.0
        %6829 = vmatprep.subr.mxu0 0.0
        %6830 = vmatpush1.msra.mxu0 0.0
        %6831 = vmatprep.subr.mxu0 0.0
        %6832 = vmatpush1.msra.mxu0 0.0
        %6833 = vmatprep.subr.mxu0 0.0
        %6834 = vmatpush1.msra.mxu0 0.0
        %6835 = vmatprep.subr.mxu0 0.0
        %6836 = vmatpush1.msra.mxu0 0.0
        %6837 = vmatprep.subr.mxu0 0.0
        %6838 = vmatpush1.msra.mxu0 0.0
        %6839 = vmatprep.subr.mxu0 0.0
        %6840 = vmatpush1.msra.mxu0 0.0
        %6841 = vmatprep.subr.mxu0 0.0
        %6842 = vmatpush1.msra.mxu0 0.0
        %6843 = vmatprep.subr.mxu0 0.0
        %6844 = vmatpush1.msra.mxu0 0.0
        %6845 = vmatprep.subr.mxu0 0.0
        %6846 = vmatpush1.msra.mxu0 0.0
        %6847 = vmatprep.subr.mxu0 0.0
        %6848 = vmatpush1.msra.mxu0 0.0
        %6849 = vmatprep.subr.mxu0 0.0
        %6850 = vmatpush1.msra.mxu0 0.0
        %6851 = vmatprep.mubr.f32.mxu0 0.0
        %6852 = vmatmul.mubr.f32.gmra.mrb[0].mxu0 %v2581
        %v6853 = vpop.f32.mrb[0].mxu0
        %v6854 = vadd.f32 0.0, %v6853
        %v6855 = vpop.f32.mrb[0].mxu0
        %6856 = vmatprep.mubr.f32.mxu0 0.0
        %6857 = vmatmul.mubr.f32.gmra.mrb[0].mxu0 %v2584
        %v6858 = vpop.f32.mrb[0].mxu0
        %v6859 = vadd.f32 0.0, %v6858
        %v6860 = vpop.f32.mrb[0].mxu0
        %6861 = vmatprep.mubr.f32.mxu0 0.0
        %6862 = vmatmul.mubr.f32.gmra.mrb[0].mxu0 %v2587
        %v6863 = vpop.f32.mrb[0].mxu0
        %v6864 = vadd.f32 0.0, %v6863
        %v6865 = vpop.f32.mrb[0].mxu0
        %6866 = vmatprep.mubr.f32.mxu0 0.0
        %6867 = vmatmul.mubr.f32.gmra.mrb[0].mxu0 %v2590
        %v6868 = vpop.f32.mrb[0].mxu0
        %v6869 = vadd.f32 0.0, %v6868
        %v6870 = vpop.f32.mrb[0].mxu0
        %6871 = vmatprep.mubr.f32.mxu0 0.0
        %6872 = vmatmul.mubr.f32.gmra.mrb[0].mxu0 %v2593
        %v6873 = vpop.f32.mrb[0].mxu0
        %v6874 = vadd.f32 0.0, %v6873
        %v6875 = vpop.f32.mrb[0].mxu0
        %6876 = vmatprep.mubr.f32.mxu0 0.0
        %6877 = vmatmul.mubr.f32.gmra.mrb[0].mxu0 %v2596
        %v6878 = vpop.f32.mrb[0].mxu0
        %v6879 = vadd.f32 0.0, %v6878
        %v6880 = vpop.f32.mrb[0].mxu0
        %6881 = vmatprep.mubr.f32.mxu0 0.0
        %6882 = vmatmul.mubr.f32.gmra.mrb[0].mxu0 %v2599
        %v6883 = vpop.f32.mrb[0].mxu0
        %v6884 = vadd.f32 0.0, %v6883
        %v6885 = vpop.f32.mrb[0].mxu0
        %6886 = vmatprep.mubr.f32.mxu0 0.0
        %6887 = vmatmul.mubr.f32.gmra.mrb[0].mxu0 %v2602
        %v6888 = vpop.f32.mrb[0].mxu0
        %v6889 = vadd.f32 0.0, %v6888
        %v6890 = vpop.f32.mrb[0].mxu0
        %6891 = vmatprep.mubr.f32.mxu0 0.0
        %6892 = vmatmul.mubr.f32.gmra.mrb[0].mxu0 %v2605
        %v6893 = vpop.f32.mrb[0].mxu0
        %v6894 = vadd.f32 0.0, %v6893
        %v6895 = vpop.f32.mrb[0].mxu0
        %6896 = vmatprep.mubr.f32.mxu0 0.0
        %6897 = vmatmul.mubr.f32.gmra.mrb[0].mxu0 %v2608
        %v6898 = vpop.f32.mrb[0].mxu0
        %v6899 = vadd.f32 0.0, %v6898
        %v6900 = vpop.f32.mrb[0].mxu0
        %6901 = vmatprep.mubr.f32.mxu0 0.0
        %6902 = vmatmul.mubr.f32.gmra.mrb[0].mxu0 %v2611
        %v6903 = vpop.f32.mrb[0].mxu0
        %v6904 = vadd.f32 0.0, %v6903
        %v6905 = vpop.f32.mrb[0].mxu0
        %6906 = vmatprep.mubr.f32.mxu0 0.0
        %6907 = vmatmul.mubr.f32.gmra.mrb[0].mxu0 %v2614
        %v6908 = vpop.f32.mrb[0].mxu0
        %v6909 = vadd.f32 0.0, %v6908
        %v6910 = vpop.f32.mrb[0].mxu0
        %6911 = vmatprep.mubr.f32.mxu0 0.0
        %6912 = vmatmul.mubr.f32.gmra.mrb[0].mxu0 %v2617
        %v6913 = vpop.f32.mrb[0].mxu0
        %v6914 = vadd.f32 0.0, %v6913
        %v6915 = vpop.f32.mrb[0].mxu0
        %6916 = vmatprep.mubr.f32.mxu0 0.0
        %6917 = vmatmul.mubr.f32.gmra.mrb[0].mxu0 %v2620
        %v6918 = vpop.f32.mrb[0].mxu0
        %v6919 = vadd.f32 0.0, %v6918
        %v6920 = vpop.f32.mrb[0].mxu0
        %6921 = vmatprep.mubr.f32.mxu0 0.0
        %6922 = vmatmul.mubr.f32.gmra.mrb[0].mxu0 %v2623
        %v6923 = vpop.f32.mrb[0].mxu0
        %v6924 = vadd.f32 0.0, %v6923
        %v6925 = vpop.f32.mrb[0].mxu0
        %6926 = vmatprep.mubr.f32.mxu0 0.0
        %6927 = vmatmul.mubr.f32.gmra.mrb[0].mxu0 %v2626
        %v6928 = vpop.f32.mrb[0].mxu0
        %v6929 = vadd.f32 0.0, %v6928
        %v6930 = vpop.f32.mrb[0].mxu0
        %6931 = vdwg.mxu0
        %6932 = vmatprep.subr.mxu0 0.0
        %6933 = vmatpush1.msra.mxu0 %v5444
        %6934 = vmatprep.subr.mxu0 0.0
        %6935 = vmatpush1.msra.mxu0 %v5445
        %6936 = vmatprep.subr.mxu0 0.0
        %6937 = vmatpush1.msra.mxu0 %v5446
        %6938 = vmatprep.subr.mxu0 0.0
        %6939 = vmatpush1.msra.mxu0 %v5447
        %6940 = vmatprep.subr.mxu0 0.0
        %6941 = vmatpush1.msra.mxu0 %v5448
        %6942 = vmatprep.subr.mxu0 0.0
        %6943 = vmatpush1.msra.mxu0 %v5449
        %6944 = vmatprep.subr.mxu0 0.0
        %6945 = vmatpush1.msra.mxu0 %v5450
        %6946 = vmatprep.subr.mxu0 0.0
        %6947 = vmatpush1.msra.mxu0 %v5451
        %6948 = vmatprep.subr.mxu0 0.0
        %6949 = vmatpush1.msra.mxu0 %v5452
        %6950 = vmatprep.subr.mxu0 0.0
        %6951 = vmatpush1.msra.mxu0 %v5453
        %6952 = vmatprep.subr.mxu0 0.0
        %6953 = vmatpush1.msra.mxu0 %v5454
        %6954 = vmatprep.subr.mxu0 0.0
        %6955 = vmatpush1.msra.mxu0 %v5455
        %6956 = vmatprep.subr.mxu0 0.0
        %6957 = vmatpush1.msra.mxu0 %v5456
        %6958 = vmatprep.subr.mxu0 0.0
        %6959 = vmatpush1.msra.mxu0 %v5457
        %6960 = vmatprep.subr.mxu0 0.0
        %6961 = vmatpush1.msra.mxu0 %v5458
        %6962 = vmatprep.subr.mxu0 0.0
        %6963 = vmatpush1.msra.mxu0 %v5459
        %6964 = vmatprep.subr.mxu0 0.0
        %6965 = vmatpush1.msra.mxu0 0.0
        %6966 = vmatprep.subr.mxu0 0.0
        %6967 = vmatpush1.msra.mxu0 0.0
        %6968 = vmatprep.subr.mxu0 0.0
        %6969 = vmatpush1.msra.mxu0 0.0
        %6970 = vmatprep.subr.mxu0 0.0
        %6971 = vmatpush1.msra.mxu0 0.0
        %6972 = vmatprep.subr.mxu0 0.0
        %6973 = vmatpush1.msra.mxu0 0.0
        %6974 = vmatprep.subr.mxu0 0.0
        %6975 = vmatpush1.msra.mxu0 0.0
        %6976 = vmatprep.subr.mxu0 0.0
        %6977 = vmatpush1.msra.mxu0 0.0
        %6978 = vmatprep.subr.mxu0 0.0
        %6979 = vmatpush1.msra.mxu0 0.0
        %6980 = vmatprep.subr.mxu0 0.0
        %6981 = vmatpush1.msra.mxu0 0.0
        %6982 = vmatprep.subr.mxu0 0.0
        %6983 = vmatpush1.msra.mxu0 0.0
        %6984 = vmatprep.subr.mxu0 0.0
        %6985 = vmatpush1.msra.mxu0 0.0
        %6986 = vmatprep.subr.mxu0 0.0
        %6987 = vmatpush1.msra.mxu0 0.0
        %6988 = vmatprep.subr.mxu0 0.0
        %6989 = vmatpush1.msra.mxu0 0.0
        %6990 = vmatprep.subr.mxu0 0.0
        %6991 = vmatpush1.msra.mxu0 0.0
        %6992 = vmatprep.subr.mxu0 0.0
        %6993 = vmatpush1.msra.mxu0 0.0
        %6994 = vmatprep.subr.mxu0 0.0
        %6995 = vmatpush1.msra.mxu0 0.0
        %6996 = vmatprep.mubr.f32.mxu0 0.0
        %6997 = vmatmul.mubr.f32.gmra.mrb[0].mxu0 %v6081
        %v6998 = vpop.f32.mrb[0].mxu0
        %v6999 = vadd.f32 0.0, %v6998
        %v7000 = vpop.f32.mrb[0].mxu0
        %7001 = vmatprep.mubr.f32.mxu0 0.0
        %7002 = vmatmul.mubr.f32.gmra.mrb[0].mxu0 %v6086
        %v7003 = vpop.f32.mrb[0].mxu0
        %v7004 = vadd.f32 0.0, %v7003
        %v7005 = vpop.f32.mrb[0].mxu0
        %7006 = vmatprep.mubr.f32.mxu0 0.0
        %7007 = vmatmul.mubr.f32.gmra.mrb[0].mxu0 %v6091
        %v7008 = vpop.f32.mrb[0].mxu0
        %v7009 = vadd.f32 0.0, %v7008
        %v7010 = vpop.f32.mrb[0].mxu0
        %7011 = vmatprep.mubr.f32.mxu0 0.0
        %7012 = vmatmul.mubr.f32.gmra.mrb[0].mxu0 %v6096
        %v7013 = vpop.f32.mrb[0].mxu0
        %v7014 = vadd.f32 0.0, %v7013
        %v7015 = vpop.f32.mrb[0].mxu0
        %7016 = vmatprep.mubr.f32.mxu0 0.0
        %7017 = vmatmul.mubr.f32.gmra.mrb[0].mxu0 %v6101
        %v7018 = vpop.f32.mrb[0].mxu0
        %v7019 = vadd.f32 0.0, %v7018
        %v7020 = vpop.f32.mrb[0].mxu0
        %7021 = vmatprep.mubr.f32.mxu0 0.0
        %7022 = vmatmul.mubr.f32.gmra.mrb[0].mxu0 %v6106
        %v7023 = vpop.f32.mrb[0].mxu0
        %v7024 = vadd.f32 0.0, %v7023
        %v7025 = vpop.f32.mrb[0].mxu0
        %7026 = vmatprep.mubr.f32.mxu0 0.0
        %7027 = vmatmul.mubr.f32.gmra.mrb[0].mxu0 %v6111
        %v7028 = vpop.f32.mrb[0].mxu0
        %v7029 = vadd.f32 0.0, %v7028
        %v7030 = vpop.f32.mrb[0].mxu0
        %7031 = vmatprep.mubr.f32.mxu0 0.0
        %7032 = vmatmul.mubr.f32.gmra.mrb[0].mxu0 %v6116
        %v7033 = vpop.f32.mrb[0].mxu0
        %v7034 = vadd.f32 0.0, %v7033
        %v7035 = vpop.f32.mrb[0].mxu0
        %7036 = vmatprep.mubr.f32.mxu0 0.0
        %7037 = vmatmul.mubr.f32.gmra.mrb[0].mxu0 %v6121
        %v7038 = vpop.f32.mrb[0].mxu0
        %v7039 = vadd.f32 0.0, %v7038
        %v7040 = vpop.f32.mrb[0].mxu0
        %7041 = vmatprep.mubr.f32.mxu0 0.0
        %7042 = vmatmul.mubr.f32.gmra.mrb[0].mxu0 %v6126
        %v7043 = vpop.f32.mrb[0].mxu0
        %v7044 = vadd.f32 0.0, %v7043
        %v7045 = vpop.f32.mrb[0].mxu0
        %7046 = vmatprep.mubr.f32.mxu0 0.0
        %7047 = vmatmul.mubr.f32.gmra.mrb[0].mxu0 %v6131
        %v7048 = vpop.f32.mrb[0].mxu0
        %v7049 = vadd.f32 0.0, %v7048
        %v7050 = vpop.f32.mrb[0].mxu0
        %7051 = vmatprep.mubr.f32.mxu0 0.0
        %7052 = vmatmul.mubr.f32.gmra.mrb[0].mxu0 %v6136
        %v7053 = vpop.f32.mrb[0].mxu0
        %v7054 = vadd.f32 0.0, %v7053
        %v7055 = vpop.f32.mrb[0].mxu0
        %7056 = vmatprep.mubr.f32.mxu0 0.0
        %7057 = vmatmul.mubr.f32.gmra.mrb[0].mxu0 %v6141
        %v7058 = vpop.f32.mrb[0].mxu0
        %v7059 = vadd.f32 0.0, %v7058
        %v7060 = vpop.f32.mrb[0].mxu0
        %7061 = vmatprep.mubr.f32.mxu0 0.0
        %7062 = vmatmul.mubr.f32.gmra.mrb[0].mxu0 %v6146
        %v7063 = vpop.f32.mrb[0].mxu0
        %v7064 = vadd.f32 0.0, %v7063
        %v7065 = vpop.f32.mrb[0].mxu0
        %7066 = vmatprep.mubr.f32.mxu0 0.0
        %7067 = vmatmul.mubr.f32.gmra.mrb[0].mxu0 %v6151
        %v7068 = vpop.f32.mrb[0].mxu0
        %v7069 = vadd.f32 0.0, %v7068
        %v7070 = vpop.f32.mrb[0].mxu0
        %7071 = vmatprep.mubr.f32.mxu0 0.0
        %7072 = vmatmul.mubr.f32.gmra.mrb[0].mxu0 %v6156
        %v7073 = vpop.f32.mrb[0].mxu0
        %v7074 = vadd.f32 0.0, %v7073
        %v7075 = vpop.f32.mrb[0].mxu0
        %7076 = vdwg.mxu0
        %v7077 = vmul.f32 %v6854, %v6999
        %v7078 = vmul.f32 %v6859, %v7004
        %v7079 = vmul.f32 %v6864, %v7009
        %v7080 = vmul.f32 %v6869, %v7014
        %v7081 = vmul.f32 %v6874, %v7019
        %v7082 = vmul.f32 %v6879, %v7024
        %v7083 = vmul.f32 %v6884, %v7029
        %v7084 = vmul.f32 %v6889, %v7034
        %v7085 = vmul.f32 %v6894, %v7039
        %v7086 = vmul.f32 %v6899, %v7044
        %v7087 = vmul.f32 %v6904, %v7049
        %v7088 = vmul.f32 %v6909, %v7054
        %v7089 = vmul.f32 %v6914, %v7059
        %v7090 = vmul.f32 %v6919, %v7064
        %v7091 = vmul.f32 %v6924, %v7069
        %v7092 = vmul.f32 %v6929, %v7074
        %v7093 = vadd.f32 %v6771, %v7077
        %v7094 = vadd.f32 %v6772, %v7078
        %v7095 = vadd.f32 %v6773, %v7079
        %v7096 = vadd.f32 %v6774, %v7080
        %v7097 = vadd.f32 %v6775, %v7081
        %v7098 = vadd.f32 %v6776, %v7082
        %v7099 = vadd.f32 %v6777, %v7083
        %v7100 = vadd.f32 %v6778, %v7084
        %v7101 = vadd.f32 %v6779, %v7085
        %v7102 = vadd.f32 %v6780, %v7086
        %v7103 = vadd.f32 %v6781, %v7087
        %v7104 = vadd.f32 %v6782, %v7088
        %v7105 = vadd.f32 %v6783, %v7089
        %v7106 = vadd.f32 %v6784, %v7090
        %v7107 = vadd.f32 %v6785, %v7091
        %v7108 = vadd.f32 %v6786, %v7092
        %7109 = vmatprep.subr.mxu0 0.0
        %7110 = vmatpush1.msra.mxu0 %v5637
        %7111 = vmatprep.subr.mxu0 0.0
        %7112 = vmatpush1.msra.mxu0 %v5638
        %7113 = vmatprep.subr.mxu0 0.0
        %7114 = vmatpush1.msra.mxu0 0.0
        %7115 = vmatprep.subr.mxu0 0.0
        %7116 = vmatpush1.msra.mxu0 0.0
        %7117 = vmatprep.subr.mxu0 0.0
        %7118 = vmatpush1.msra.mxu0 0.0
        %7119 = vmatprep.subr.mxu0 0.0
        %7120 = vmatpush1.msra.mxu0 0.0
        %7121 = vmatprep.subr.mxu0 0.0
        %7122 = vmatpush1.msra.mxu0 0.0
        %7123 = vmatprep.subr.mxu0 0.0
        %7124 = vmatpush1.msra.mxu0 0.0
        %7125 = vmatprep.subr.mxu0 0.0
        %7126 = vmatpush1.msra.mxu0 0.0
        %7127 = vmatprep.subr.mxu0 0.0
        %7128 = vmatpush1.msra.mxu0 0.0
        %7129 = vmatprep.subr.mxu0 0.0
        %7130 = vmatpush1.msra.mxu0 0.0
        %7131 = vmatprep.subr.mxu0 0.0
        %7132 = vmatpush1.msra.mxu0 0.0
        %7133 = vmatprep.subr.mxu0 0.0
        %7134 = vmatpush1.msra.mxu0 0.0
        %7135 = vmatprep.subr.mxu0 0.0
        %7136 = vmatpush1.msra.mxu0 0.0
        %7137 = vmatprep.subr.mxu0 0.0
        %7138 = vmatpush1.msra.mxu0 0.0
        %7139 = vmatprep.subr.mxu0 0.0
        %7140 = vmatpush1.msra.mxu0 0.0
        %7141 = vmatprep.subr.mxu0 0.0
        %7142 = vmatpush1.msra.mxu0 0.0
        %7143 = vmatprep.subr.mxu0 0.0
        %7144 = vmatpush1.msra.mxu0 0.0
        %7145 = vmatprep.subr.mxu0 0.0
        %7146 = vmatpush1.msra.mxu0 0.0
        %7147 = vmatprep.subr.mxu0 0.0
        %7148 = vmatpush1.msra.mxu0 0.0
        %7149 = vmatprep.subr.mxu0 0.0
        %7150 = vmatpush1.msra.mxu0 0.0
        %7151 = vmatprep.subr.mxu0 0.0
        %7152 = vmatpush1.msra.mxu0 0.0
        %7153 = vmatprep.subr.mxu0 0.0
        %7154 = vmatpush1.msra.mxu0 0.0
        %7155 = vmatprep.subr.mxu0 0.0
        %7156 = vmatpush1.msra.mxu0 0.0
        %7157 = vmatprep.subr.mxu0 0.0
        %7158 = vmatpush1.msra.mxu0 0.0
        %7159 = vmatprep.subr.mxu0 0.0
        %7160 = vmatpush1.msra.mxu0 0.0
        %7161 = vmatprep.subr.mxu0 0.0
        %7162 = vmatpush1.msra.mxu0 0.0
        %7163 = vmatprep.subr.mxu0 0.0
        %7164 = vmatpush1.msra.mxu0 0.0
        %7165 = vmatprep.subr.mxu0 0.0
        %7166 = vmatpush1.msra.mxu0 0.0
        %7167 = vmatprep.subr.mxu0 0.0
        %7168 = vmatpush1.msra.mxu0 0.0
        %7169 = vmatprep.subr.mxu0 0.0
        %7170 = vmatpush1.msra.mxu0 0.0
        %7171 = vmatprep.subr.mxu0 0.0
        %7172 = vmatpush1.msra.mxu0 0.0
        %7173 = vmatprep.mubr.f32.mxu0 0.0
        %7174 = vmatmul.mubr.f32.gmra.mrb[0].mxu0 %v2581
        %v7175 = vpop.f32.mrb[0].mxu0
        %v7176 = vadd.f32 0.0, %v7175
        %v7177 = vpop.f32.mrb[0].mxu0
        %7178 = vmatprep.mubr.f32.mxu0 0.0
        %7179 = vmatmul.mubr.f32.gmra.mrb[0].mxu0 %v2584
        %v7180 = vpop.f32.mrb[0].mxu0
        %v7181 = vadd.f32 0.0, %v7180
        %v7182 = vpop.f32.mrb[0].mxu0
        %7183 = vmatprep.mubr.f32.mxu0 0.0
        %7184 = vmatmul.mubr.f32.gmra.mrb[0].mxu0 %v2587
        %v7185 = vpop.f32.mrb[0].mxu0
        %v7186 = vadd.f32 0.0, %v7185
        %v7187 = vpop.f32.mrb[0].mxu0
        %7188 = vmatprep.mubr.f32.mxu0 0.0
        %7189 = vmatmul.mubr.f32.gmra.mrb[0].mxu0 %v2590
        %v7190 = vpop.f32.mrb[0].mxu0
        %v7191 = vadd.f32 0.0, %v7190
        %v7192 = vpop.f32.mrb[0].mxu0
        %7193 = vmatprep.mubr.f32.mxu0 0.0
        %7194 = vmatmul.mubr.f32.gmra.mrb[0].mxu0 %v2593
        %v7195 = vpop.f32.mrb[0].mxu0
        %v7196 = vadd.f32 0.0, %v7195
        %v7197 = vpop.f32.mrb[0].mxu0
        %7198 = vmatprep.mubr.f32.mxu0 0.0
        %7199 = vmatmul.mubr.f32.gmra.mrb[0].mxu0 %v2596
        %v7200 = vpop.f32.mrb[0].mxu0
        %v7201 = vadd.f32 0.0, %v7200
        %v7202 = vpop.f32.mrb[0].mxu0
        %7203 = vmatprep.mubr.f32.mxu0 0.0
        %7204 = vmatmul.mubr.f32.gmra.mrb[0].mxu0 %v2599
        %v7205 = vpop.f32.mrb[0].mxu0
        %v7206 = vadd.f32 0.0, %v7205
        %v7207 = vpop.f32.mrb[0].mxu0
        %7208 = vmatprep.mubr.f32.mxu0 0.0
        %7209 = vmatmul.mubr.f32.gmra.mrb[0].mxu0 %v2602
        %v7210 = vpop.f32.mrb[0].mxu0
        %v7211 = vadd.f32 0.0, %v7210
        %v7212 = vpop.f32.mrb[0].mxu0
        %7213 = vmatprep.mubr.f32.mxu0 0.0
        %7214 = vmatmul.mubr.f32.gmra.mrb[0].mxu0 %v2605
        %v7215 = vpop.f32.mrb[0].mxu0
        %v7216 = vadd.f32 0.0, %v7215
        %v7217 = vpop.f32.mrb[0].mxu0
        %7218 = vmatprep.mubr.f32.mxu0 0.0
        %7219 = vmatmul.mubr.f32.gmra.mrb[0].mxu0 %v2608
        %v7220 = vpop.f32.mrb[0].mxu0
        %v7221 = vadd.f32 0.0, %v7220
        %v7222 = vpop.f32.mrb[0].mxu0
        %7223 = vmatprep.mubr.f32.mxu0 0.0
        %7224 = vmatmul.mubr.f32.gmra.mrb[0].mxu0 %v2611
        %v7225 = vpop.f32.mrb[0].mxu0
        %v7226 = vadd.f32 0.0, %v7225
        %v7227 = vpop.f32.mrb[0].mxu0
        %7228 = vmatprep.mubr.f32.mxu0 0.0
        %7229 = vmatmul.mubr.f32.gmra.mrb[0].mxu0 %v2614
        %v7230 = vpop.f32.mrb[0].mxu0
        %v7231 = vadd.f32 0.0, %v7230
        %v7232 = vpop.f32.mrb[0].mxu0
        %7233 = vmatprep.mubr.f32.mxu0 0.0
        %7234 = vmatmul.mubr.f32.gmra.mrb[0].mxu0 %v2617
        %v7235 = vpop.f32.mrb[0].mxu0
        %v7236 = vadd.f32 0.0, %v7235
        %v7237 = vpop.f32.mrb[0].mxu0
        %7238 = vmatprep.mubr.f32.mxu0 0.0
        %7239 = vmatmul.mubr.f32.gmra.mrb[0].mxu0 %v2620
        %v7240 = vpop.f32.mrb[0].mxu0
        %v7241 = vadd.f32 0.0, %v7240
        %v7242 = vpop.f32.mrb[0].mxu0
        %7243 = vmatprep.mubr.f32.mxu0 0.0
        %7244 = vmatmul.mubr.f32.gmra.mrb[0].mxu0 %v2623
        %v7245 = vpop.f32.mrb[0].mxu0
        %v7246 = vadd.f32 0.0, %v7245
        %v7247 = vpop.f32.mrb[0].mxu0
        %7248 = vmatprep.mubr.f32.mxu0 0.0
        %7249 = vmatmul.mubr.f32.gmra.mrb[0].mxu0 %v2626
        %v7250 = vpop.f32.mrb[0].mxu0
        %v7251 = vadd.f32 0.0, %v7250
        %v7252 = vpop.f32.mrb[0].mxu0
        %7253 = vdwg.mxu0
        %7254 = vmatprep.subr.mxu0 0.0
        %7255 = vmatpush1.msra.mxu0 %v5784
        %7256 = vmatprep.subr.mxu0 0.0
        %7257 = vmatpush1.msra.mxu0 %v5785
        %7258 = vmatprep.subr.mxu0 0.0
        %7259 = vmatpush1.msra.mxu0 %v5786
        %7260 = vmatprep.subr.mxu0 0.0
        %7261 = vmatpush1.msra.mxu0 %v5787
        %7262 = vmatprep.subr.mxu0 0.0
        %7263 = vmatpush1.msra.mxu0 %v5788
        %7264 = vmatprep.subr.mxu0 0.0
        %7265 = vmatpush1.msra.mxu0 %v5789
        %7266 = vmatprep.subr.mxu0 0.0
        %7267 = vmatpush1.msra.mxu0 %v5790
        %7268 = vmatprep.subr.mxu0 0.0
        %7269 = vmatpush1.msra.mxu0 %v5791
        %7270 = vmatprep.subr.mxu0 0.0
        %7271 = vmatpush1.msra.mxu0 %v5792
        %7272 = vmatprep.subr.mxu0 0.0
        %7273 = vmatpush1.msra.mxu0 %v5793
        %7274 = vmatprep.subr.mxu0 0.0
        %7275 = vmatpush1.msra.mxu0 %v5794
        %7276 = vmatprep.subr.mxu0 0.0
        %7277 = vmatpush1.msra.mxu0 %v5795
        %7278 = vmatprep.subr.mxu0 0.0
        %7279 = vmatpush1.msra.mxu0 %v5796
        %7280 = vmatprep.subr.mxu0 0.0
        %7281 = vmatpush1.msra.mxu0 %v5797
        %7282 = vmatprep.subr.mxu0 0.0
        %7283 = vmatpush1.msra.mxu0 %v5798
        %7284 = vmatprep.subr.mxu0 0.0
        %7285 = vmatpush1.msra.mxu0 %v5799
        %7286 = vmatprep.subr.mxu0 0.0
        %7287 = vmatpush1.msra.mxu0 0.0
        %7288 = vmatprep.subr.mxu0 0.0
        %7289 = vmatpush1.msra.mxu0 0.0
        %7290 = vmatprep.subr.mxu0 0.0
        %7291 = vmatpush1.msra.mxu0 0.0
        %7292 = vmatprep.subr.mxu0 0.0
        %7293 = vmatpush1.msra.mxu0 0.0
        %7294 = vmatprep.subr.mxu0 0.0
        %7295 = vmatpush1.msra.mxu0 0.0
        %7296 = vmatprep.subr.mxu0 0.0
        %7297 = vmatpush1.msra.mxu0 0.0
        %7298 = vmatprep.subr.mxu0 0.0
        %7299 = vmatpush1.msra.mxu0 0.0
        %7300 = vmatprep.subr.mxu0 0.0
        %7301 = vmatpush1.msra.mxu0 0.0
        %7302 = vmatprep.subr.mxu0 0.0
        %7303 = vmatpush1.msra.mxu0 0.0
        %7304 = vmatprep.subr.mxu0 0.0
        %7305 = vmatpush1.msra.mxu0 0.0
        %7306 = vmatprep.subr.mxu0 0.0
        %7307 = vmatpush1.msra.mxu0 0.0
        %7308 = vmatprep.subr.mxu0 0.0
        %7309 = vmatpush1.msra.mxu0 0.0
        %7310 = vmatprep.subr.mxu0 0.0
        %7311 = vmatpush1.msra.mxu0 0.0
        %7312 = vmatprep.subr.mxu0 0.0
        %7313 = vmatpush1.msra.mxu0 0.0
        %7314 = vmatprep.subr.mxu0 0.0
        %7315 = vmatpush1.msra.mxu0 0.0
        %7316 = vmatprep.subr.mxu0 0.0
        %7317 = vmatpush1.msra.mxu0 0.0
        %7318 = vmatprep.mubr.f32.mxu0 0.0
        %7319 = vmatmul.mubr.f32.gmra.mrb[0].mxu0 %v6081
        %v7320 = vpop.f32.mrb[0].mxu0
        %v7321 = vadd.f32 0.0, %v7320
        %v7322 = vpop.f32.mrb[0].mxu0
        %7323 = vmatprep.mubr.f32.mxu0 0.0
        %7324 = vmatmul.mubr.f32.gmra.mrb[0].mxu0 %v6086
        %v7325 = vpop.f32.mrb[0].mxu0
        %v7326 = vadd.f32 0.0, %v7325
        %v7327 = vpop.f32.mrb[0].mxu0
        %7328 = vmatprep.mubr.f32.mxu0 0.0
        %7329 = vmatmul.mubr.f32.gmra.mrb[0].mxu0 %v6091
        %v7330 = vpop.f32.mrb[0].mxu0
        %v7331 = vadd.f32 0.0, %v7330
        %v7332 = vpop.f32.mrb[0].mxu0
        %7333 = vmatprep.mubr.f32.mxu0 0.0
        %7334 = vmatmul.mubr.f32.gmra.mrb[0].mxu0 %v6096
        %v7335 = vpop.f32.mrb[0].mxu0
        %v7336 = vadd.f32 0.0, %v7335
        %v7337 = vpop.f32.mrb[0].mxu0
        %7338 = vmatprep.mubr.f32.mxu0 0.0
        %7339 = vmatmul.mubr.f32.gmra.mrb[0].mxu0 %v6101
        %v7340 = vpop.f32.mrb[0].mxu0
        %v7341 = vadd.f32 0.0, %v7340
        %v7342 = vpop.f32.mrb[0].mxu0
        %7343 = vmatprep.mubr.f32.mxu0 0.0
        %7344 = vmatmul.mubr.f32.gmra.mrb[0].mxu0 %v6106
        %v7345 = vpop.f32.mrb[0].mxu0
        %v7346 = vadd.f32 0.0, %v7345
        %v7347 = vpop.f32.mrb[0].mxu0
        %7348 = vmatprep.mubr.f32.mxu0 0.0
        %7349 = vmatmul.mubr.f32.gmra.mrb[0].mxu0 %v6111
        %v7350 = vpop.f32.mrb[0].mxu0
        %v7351 = vadd.f32 0.0, %v7350
        %v7352 = vpop.f32.mrb[0].mxu0
        %7353 = vmatprep.mubr.f32.mxu0 0.0
        %7354 = vmatmul.mubr.f32.gmra.mrb[0].mxu0 %v6116
        %v7355 = vpop.f32.mrb[0].mxu0
        %v7356 = vadd.f32 0.0, %v7355
        %v7357 = vpop.f32.mrb[0].mxu0
        %7358 = vmatprep.mubr.f32.mxu0 0.0
        %7359 = vmatmul.mubr.f32.gmra.mrb[0].mxu0 %v6121
        %v7360 = vpop.f32.mrb[0].mxu0
        %v7361 = vadd.f32 0.0, %v7360
        %v7362 = vpop.f32.mrb[0].mxu0
        %7363 = vmatprep.mubr.f32.mxu0 0.0
        %7364 = vmatmul.mubr.f32.gmra.mrb[0].mxu0 %v6126
        %v7365 = vpop.f32.mrb[0].mxu0
        %v7366 = vadd.f32 0.0, %v7365
        %v7367 = vpop.f32.mrb[0].mxu0
        %7368 = vmatprep.mubr.f32.mxu0 0.0
        %7369 = vmatmul.mubr.f32.gmra.mrb[0].mxu0 %v6131
        %v7370 = vpop.f32.mrb[0].mxu0
        %v7371 = vadd.f32 0.0, %v7370
        %v7372 = vpop.f32.mrb[0].mxu0
        %7373 = vmatprep.mubr.f32.mxu0 0.0
        %7374 = vmatmul.mubr.f32.gmra.mrb[0].mxu0 %v6136
        %v7375 = vpop.f32.mrb[0].mxu0
        %v7376 = vadd.f32 0.0, %v7375
        %v7377 = vpop.f32.mrb[0].mxu0
        %7378 = vmatprep.mubr.f32.mxu0 0.0
        %7379 = vmatmul.mubr.f32.gmra.mrb[0].mxu0 %v6141
        %v7380 = vpop.f32.mrb[0].mxu0
        %v7381 = vadd.f32 0.0, %v7380
        %v7382 = vpop.f32.mrb[0].mxu0
        %7383 = vmatprep.mubr.f32.mxu0 0.0
        %7384 = vmatmul.mubr.f32.gmra.mrb[0].mxu0 %v6146
        %v7385 = vpop.f32.mrb[0].mxu0
        %v7386 = vadd.f32 0.0, %v7385
        %v7387 = vpop.f32.mrb[0].mxu0
        %7388 = vmatprep.mubr.f32.mxu0 0.0
        %7389 = vmatmul.mubr.f32.gmra.mrb[0].mxu0 %v6151
        %v7390 = vpop.f32.mrb[0].mxu0
        %v7391 = vadd.f32 0.0, %v7390
        %v7392 = vpop.f32.mrb[0].mxu0
        %7393 = vmatprep.mubr.f32.mxu0 0.0
        %7394 = vmatmul.mubr.f32.gmra.mrb[0].mxu0 %v6156
        %v7395 = vpop.f32.mrb[0].mxu0
        %v7396 = vadd.f32 0.0, %v7395
        %v7397 = vpop.f32.mrb[0].mxu0
        %7398 = vdwg.mxu0
        %v7399 = vmul.f32 %v7176, %v7321
        %v7400 = vmul.f32 %v7181, %v7326
        %v7401 = vmul.f32 %v7186, %v7331
        %v7402 = vmul.f32 %v7191, %v7336
        %v7403 = vmul.f32 %v7196, %v7341
        %v7404 = vmul.f32 %v7201, %v7346
        %v7405 = vmul.f32 %v7206, %v7351
        %v7406 = vmul.f32 %v7211, %v7356
        %v7407 = vmul.f32 %v7216, %v7361
        %v7408 = vmul.f32 %v7221, %v7366
        %v7409 = vmul.f32 %v7226, %v7371
        %v7410 = vmul.f32 %v7231, %v7376
        %v7411 = vmul.f32 %v7236, %v7381
        %v7412 = vmul.f32 %v7241, %v7386
        %v7413 = vmul.f32 %v7246, %v7391
        %v7414 = vmul.f32 %v7251, %v7396
        %v7415 = vadd.f32 %v7093, %v7399
        %v7416 = vadd.f32 %v7094, %v7400
        %v7417 = vadd.f32 %v7095, %v7401
        %v7418 = vadd.f32 %v7096, %v7402
        %v7419 = vadd.f32 %v7097, %v7403
        %v7420 = vadd.f32 %v7098, %v7404
        %v7421 = vadd.f32 %v7099, %v7405
        %v7422 = vadd.f32 %v7100, %v7406
        %v7423 = vadd.f32 %v7101, %v7407
        %v7424 = vadd.f32 %v7102, %v7408
        %v7425 = vadd.f32 %v7103, %v7409
        %v7426 = vadd.f32 %v7104, %v7410
        %v7427 = vadd.f32 %v7105, %v7411
        %v7428 = vadd.f32 %v7106, %v7412
        %v7429 = vadd.f32 %v7107, %v7413
        %v7430 = vadd.f32 %v7108, %v7414
        %v7431 = vmax.f32 %v7415, 0.0
        %v7432 = vmax.f32 %v7416, 0.0
        %v7433 = vmax.f32 %v7417, 0.0
        %v7434 = vmax.f32 %v7418, 0.0
        %v7435 = vmax.f32 %v7419, 0.0
        %v7436 = vmax.f32 %v7420, 0.0
        %v7437 = vmax.f32 %v7421, 0.0
        %v7438 = vmax.f32 %v7422, 0.0
        %v7439 = vmax.f32 %v7423, 0.0
        %v7440 = vmax.f32 %v7424, 0.0
        %v7441 = vmax.f32 %v7425, 0.0
        %v7442 = vmax.f32 %v7426, 0.0
        %v7443 = vmax.f32 %v7427, 0.0
        %v7444 = vmax.f32 %v7428, 0.0
        %v7445 = vmax.f32 %v7429, 0.0
        %v7446 = vmax.f32 %v7430, 0.0
        %v7447 = vld [vmem:[#allocation2 + $0x290] sm:$0xff]
        %v7448 = vld [vmem:[#allocation2 + $0x298] sm:$0xff]
        %v7449 = vld [vmem:[#allocation2 + $0x2a0] sm:$0xff]
        %v7450 = vld [vmem:[#allocation2 + $0x2a8] sm:$0xff]
        %v7451 = vld [vmem:[#allocation2 + $0x2b0] sm:$0xff]
        %v7452 = vld [vmem:[#allocation2 + $0x2b8] sm:$0xff]
        %v7453 = vld [vmem:[#allocation2 + $0x2c0] sm:$0xff]
        %v7454 = vld [vmem:[#allocation2 + $0x2c8] sm:$0xff]
        %v7455 = vld [vmem:[#allocation2 + $0x2d0] sm:$0xff]
        %v7456 = vld [vmem:[#allocation2 + $0x2d8] sm:$0xff]
        %v7457 = vld [vmem:[#allocation2 + $0x2e0] sm:$0xff]
        %v7458 = vld [vmem:[#allocation2 + $0x2e8] sm:$0xff]
        %v7459 = vld [vmem:[#allocation2 + $0x2f0] sm:$0xff]
        %v7460 = vld [vmem:[#allocation2 + $0x2f8] sm:$0xff]
        %v7461 = vld [vmem:[#allocation2 + $0x300] sm:$0xff]
        %v7462 = vld [vmem:[#allocation2 + $0x308] sm:$0xff]
        %v7463 = vld [vmem:[#allocation2 + $0x310] sm:$0x1]
        %v7464 = vlaneseq
        %v7465 = vshrl.u32 %v7464, 7
        %v7466 = vsub.s32 0, %v7465
        %v7467 = vrot.slane %v7463, %v7466
        %7468 = vmatprep.subr.mxu0 0.0
        %7469 = vmatpush1.msra.mxu0 %v7447
        %7470 = vmatprep.subr.mxu0 0.0
        %7471 = vmatpush1.msra.mxu0 %v7448
        %7472 = vmatprep.subr.mxu0 0.0
        %7473 = vmatpush1.msra.mxu0 %v7449
        %7474 = vmatprep.subr.mxu0 0.0
        %7475 = vmatpush1.msra.mxu0 %v7450
        %7476 = vmatprep.subr.mxu0 0.0
        %7477 = vmatpush1.msra.mxu0 %v7451
        %7478 = vmatprep.subr.mxu0 0.0
        %7479 = vmatpush1.msra.mxu0 %v7452
        %7480 = vmatprep.subr.mxu0 0.0
        %7481 = vmatpush1.msra.mxu0 %v7453
        %7482 = vmatprep.subr.mxu0 0.0
        %7483 = vmatpush1.msra.mxu0 %v7454
        %7484 = vmatprep.subr.mxu0 0.0
        %7485 = vmatpush1.msra.mxu0 %v7455
        %7486 = vmatprep.subr.mxu0 0.0
        %7487 = vmatpush1.msra.mxu0 %v7456
        %7488 = vmatprep.subr.mxu0 0.0
        %7489 = vmatpush1.msra.mxu0 %v7457
        %7490 = vmatprep.subr.mxu0 0.0
        %7491 = vmatpush1.msra.mxu0 %v7458
        %7492 = vmatprep.subr.mxu0 0.0
        %7493 = vmatpush1.msra.mxu0 %v7459
        %7494 = vmatprep.subr.mxu0 0.0
        %7495 = vmatpush1.msra.mxu0 %v7460
        %7496 = vmatprep.subr.mxu0 0.0
        %7497 = vmatpush1.msra.mxu0 %v7461
        %7498 = vmatprep.subr.mxu0 0.0
        %7499 = vmatpush1.msra.mxu0 %v7462
        %7500 = vmatprep.subr.mxu0 0.0
        %7501 = vmatpush1.msra.mxu0 0.0
        %7502 = vmatprep.subr.mxu0 0.0
        %7503 = vmatpush1.msra.mxu0 0.0
        %7504 = vmatprep.subr.mxu0 0.0
        %7505 = vmatpush1.msra.mxu0 0.0
        %7506 = vmatprep.subr.mxu0 0.0
        %7507 = vmatpush1.msra.mxu0 0.0
        %7508 = vmatprep.subr.mxu0 0.0
        %7509 = vmatpush1.msra.mxu0 0.0
        %7510 = vmatprep.subr.mxu0 0.0
        %7511 = vmatpush1.msra.mxu0 0.0
        %7512 = vmatprep.subr.mxu0 0.0
        %7513 = vmatpush1.msra.mxu0 0.0
        %7514 = vmatprep.subr.mxu0 0.0
        %7515 = vmatpush1.msra.mxu0 0.0
        %7516 = vmatprep.subr.mxu0 0.0
        %7517 = vmatpush1.msra.mxu0 0.0
        %7518 = vmatprep.subr.mxu0 0.0
        %7519 = vmatpush1.msra.mxu0 0.0
        %7520 = vmatprep.subr.mxu0 0.0
        %7521 = vmatpush1.msra.mxu0 0.0
        %7522 = vmatprep.subr.mxu0 0.0
        %7523 = vmatpush1.msra.mxu0 0.0
        %7524 = vmatprep.subr.mxu0 0.0
        %7525 = vmatpush1.msra.mxu0 0.0
        %7526 = vmatprep.subr.mxu0 0.0
        %7527 = vmatpush1.msra.mxu0 0.0
        %7528 = vmatprep.subr.mxu0 0.0
        %7529 = vmatpush1.msra.mxu0 0.0
        %7530 = vmatprep.subr.mxu0 0.0
        %7531 = vmatpush1.msra.mxu0 0.0
        %7532 = vmatprep.mubr.f32.mxu0 0.0
        %7533 = vmatmul.mubr.f32.gmra.mrb[0].mxu0 %v7431
        %v7534 = vpop.f32.mrb[0].mxu0
        %v7535 = vadd.f32 %v7467, %v7534
        %v7536 = vpop.f32.mrb[0].mxu0
        %7537 = vmatprep.mubr.f32.mxu0 0.0
        %7538 = vmatmul.mubr.f32.gmra.mrb[0].mxu0 %v7432
        %v7539 = vpop.f32.mrb[0].mxu0
        %v7540 = vadd.f32 %v7467, %v7539
        %v7541 = vpop.f32.mrb[0].mxu0
        %7542 = vmatprep.mubr.f32.mxu0 0.0
        %7543 = vmatmul.mubr.f32.gmra.mrb[0].mxu0 %v7433
        %v7544 = vpop.f32.mrb[0].mxu0
        %v7545 = vadd.f32 %v7467, %v7544
        %v7546 = vpop.f32.mrb[0].mxu0
        %7547 = vmatprep.mubr.f32.mxu0 0.0
        %7548 = vmatmul.mubr.f32.gmra.mrb[0].mxu0 %v7434
        %v7549 = vpop.f32.mrb[0].mxu0
        %v7550 = vadd.f32 %v7467, %v7549
        %v7551 = vpop.f32.mrb[0].mxu0
        %7552 = vmatprep.mubr.f32.mxu0 0.0
        %7553 = vmatmul.mubr.f32.gmra.mrb[0].mxu0 %v7435
        %v7554 = vpop.f32.mrb[0].mxu0
        %v7555 = vadd.f32 %v7467, %v7554
        %v7556 = vpop.f32.mrb[0].mxu0
        %7557 = vmatprep.mubr.f32.mxu0 0.0
        %7558 = vmatmul.mubr.f32.gmra.mrb[0].mxu0 %v7436
        %v7559 = vpop.f32.mrb[0].mxu0
        %v7560 = vadd.f32 %v7467, %v7559
        %v7561 = vpop.f32.mrb[0].mxu0
        %7562 = vmatprep.mubr.f32.mxu0 0.0
        %7563 = vmatmul.mubr.f32.gmra.mrb[0].mxu0 %v7437
        %v7564 = vpop.f32.mrb[0].mxu0
        %v7565 = vadd.f32 %v7467, %v7564
        %v7566 = vpop.f32.mrb[0].mxu0
        %7567 = vmatprep.mubr.f32.mxu0 0.0
        %7568 = vmatmul.mubr.f32.gmra.mrb[0].mxu0 %v7438
        %v7569 = vpop.f32.mrb[0].mxu0
        %v7570 = vadd.f32 %v7467, %v7569
        %v7571 = vpop.f32.mrb[0].mxu0
        %7572 = vmatprep.mubr.f32.mxu0 0.0
        %7573 = vmatmul.mubr.f32.gmra.mrb[0].mxu0 %v7439
        %v7574 = vpop.f32.mrb[0].mxu0
        %v7575 = vadd.f32 %v7467, %v7574
        %v7576 = vpop.f32.mrb[0].mxu0
        %7577 = vmatprep.mubr.f32.mxu0 0.0
        %7578 = vmatmul.mubr.f32.gmra.mrb[0].mxu0 %v7440
        %v7579 = vpop.f32.mrb[0].mxu0
        %v7580 = vadd.f32 %v7467, %v7579
        %v7581 = vpop.f32.mrb[0].mxu0
        %7582 = vmatprep.mubr.f32.mxu0 0.0
        %7583 = vmatmul.mubr.f32.gmra.mrb[0].mxu0 %v7441
        %v7584 = vpop.f32.mrb[0].mxu0
        %v7585 = vadd.f32 %v7467, %v7584
        %v7586 = vpop.f32.mrb[0].mxu0
        %7587 = vmatprep.mubr.f32.mxu0 0.0
        %7588 = vmatmul.mubr.f32.gmra.mrb[0].mxu0 %v7442
        %v7589 = vpop.f32.mrb[0].mxu0
        %v7590 = vadd.f32 %v7467, %v7589
        %v7591 = vpop.f32.mrb[0].mxu0
        %7592 = vmatprep.mubr.f32.mxu0 0.0
        %7593 = vmatmul.mubr.f32.gmra.mrb[0].mxu0 %v7443
        %v7594 = vpop.f32.mrb[0].mxu0
        %v7595 = vadd.f32 %v7467, %v7594
        %v7596 = vpop.f32.mrb[0].mxu0
        %7597 = vmatprep.mubr.f32.mxu0 0.0
        %7598 = vmatmul.mubr.f32.gmra.mrb[0].mxu0 %v7444
        %v7599 = vpop.f32.mrb[0].mxu0
        %v7600 = vadd.f32 %v7467, %v7599
        %v7601 = vpop.f32.mrb[0].mxu0
        %7602 = vmatprep.mubr.f32.mxu0 0.0
        %7603 = vmatmul.mubr.f32.gmra.mrb[0].mxu0 %v7445
        %v7604 = vpop.f32.mrb[0].mxu0
        %v7605 = vadd.f32 %v7467, %v7604
        %v7606 = vpop.f32.mrb[0].mxu0
        %7607 = vmatprep.mubr.f32.mxu0 0.0
        %7608 = vmatmul.mubr.f32.gmra.mrb[0].mxu0 %v7446
        %v7609 = vpop.f32.mrb[0].mxu0
        %v7610 = vadd.f32 %v7467, %v7609
        %v7611 = vpop.f32.mrb[0].mxu0
        %7612 = vdwg.mxu0
        %7613 = vmatprep.subr.mxu0 0.0
        %7614 = vmatpush1.msra.mxu0 %v4633
        %7615 = vmatprep.subr.mxu0 0.0
        %7616 = vmatpush1.msra.mxu0 %v4634
        %7617 = vmatprep.subr.mxu0 0.0
        %7618 = vmatpush1.msra.mxu0 0.0
        %7619 = vmatprep.subr.mxu0 0.0
        %7620 = vmatpush1.msra.mxu0 0.0
        %7621 = vmatprep.subr.mxu0 0.0
        %7622 = vmatpush1.msra.mxu0 0.0
        %7623 = vmatprep.subr.mxu0 0.0
        %7624 = vmatpush1.msra.mxu0 0.0
        %7625 = vmatprep.subr.mxu0 0.0
        %7626 = vmatpush1.msra.mxu0 0.0
        %7627 = vmatprep.subr.mxu0 0.0
        %7628 = vmatpush1.msra.mxu0 0.0
        %7629 = vmatprep.subr.mxu0 0.0
        %7630 = vmatpush1.msra.mxu0 0.0
        %7631 = vmatprep.subr.mxu0 0.0
        %7632 = vmatpush1.msra.mxu0 0.0
        %7633 = vmatprep.subr.mxu0 0.0
        %7634 = vmatpush1.msra.mxu0 0.0
        %7635 = vmatprep.subr.mxu0 0.0
        %7636 = vmatpush1.msra.mxu0 0.0
        %7637 = vmatprep.subr.mxu0 0.0
        %7638 = vmatpush1.msra.mxu0 0.0
        %7639 = vmatprep.subr.mxu0 0.0
        %7640 = vmatpush1.msra.mxu0 0.0
        %7641 = vmatprep.subr.mxu0 0.0
        %7642 = vmatpush1.msra.mxu0 0.0
        %7643 = vmatprep.subr.mxu0 0.0
        %7644 = vmatpush1.msra.mxu0 0.0
        %7645 = vmatprep.subr.mxu0 0.0
        %7646 = vmatpush1.msra.mxu0 0.0
        %7647 = vmatprep.subr.mxu0 0.0
        %7648 = vmatpush1.msra.mxu0 0.0
        %7649 = vmatprep.subr.mxu0 0.0
        %7650 = vmatpush1.msra.mxu0 0.0
        %7651 = vmatprep.subr.mxu0 0.0
        %7652 = vmatpush1.msra.mxu0 0.0
        %7653 = vmatprep.subr.mxu0 0.0
        %7654 = vmatpush1.msra.mxu0 0.0
        %7655 = vmatprep.subr.mxu0 0.0
        %7656 = vmatpush1.msra.mxu0 0.0
        %7657 = vmatprep.subr.mxu0 0.0
        %7658 = vmatpush1.msra.mxu0 0.0
        %7659 = vmatprep.subr.mxu0 0.0
        %7660 = vmatpush1.msra.mxu0 0.0
        %7661 = vmatprep.subr.mxu0 0.0
        %7662 = vmatpush1.msra.mxu0 0.0
        %7663 = vmatprep.subr.mxu0 0.0
        %7664 = vmatpush1.msra.mxu0 0.0
        %7665 = vmatprep.subr.mxu0 0.0
        %7666 = vmatpush1.msra.mxu0 0.0
        %7667 = vmatprep.subr.mxu0 0.0
        %7668 = vmatpush1.msra.mxu0 0.0
        %7669 = vmatprep.subr.mxu0 0.0
        %7670 = vmatpush1.msra.mxu0 0.0
        %7671 = vmatprep.subr.mxu0 0.0
        %7672 = vmatpush1.msra.mxu0 0.0
        %7673 = vmatprep.subr.mxu0 0.0
        %7674 = vmatpush1.msra.mxu0 0.0
        %7675 = vmatprep.subr.mxu0 0.0
        %7676 = vmatpush1.msra.mxu0 0.0
        %7677 = vmatprep.mubr.f32.mxu0 0.0
        %7678 = vmatmul.mubr.f32.gmra.mrb[0].mxu0 %v3791
        %v7679 = vpop.f32.mrb[0].mxu0
        %v7680 = vadd.f32 0.0, %v7679
        %v7681 = vpop.f32.mrb[0].mxu0
        %7682 = vmatprep.mubr.f32.mxu0 0.0
        %7683 = vmatmul.mubr.f32.gmra.mrb[0].mxu0 %v3794
        %v7684 = vpop.f32.mrb[0].mxu0
        %v7685 = vadd.f32 0.0, %v7684
        %v7686 = vpop.f32.mrb[0].mxu0
        %7687 = vmatprep.mubr.f32.mxu0 0.0
        %7688 = vmatmul.mubr.f32.gmra.mrb[0].mxu0 %v3797
        %v7689 = vpop.f32.mrb[0].mxu0
        %v7690 = vadd.f32 0.0, %v7689
        %v7691 = vpop.f32.mrb[0].mxu0
        %7692 = vmatprep.mubr.f32.mxu0 0.0
        %7693 = vmatmul.mubr.f32.gmra.mrb[0].mxu0 %v3800
        %v7694 = vpop.f32.mrb[0].mxu0
        %v7695 = vadd.f32 0.0, %v7694
        %v7696 = vpop.f32.mrb[0].mxu0
        %7697 = vmatprep.mubr.f32.mxu0 0.0
        %7698 = vmatmul.mubr.f32.gmra.mrb[0].mxu0 %v3803
        %v7699 = vpop.f32.mrb[0].mxu0
        %v7700 = vadd.f32 0.0, %v7699
        %v7701 = vpop.f32.mrb[0].mxu0
        %7702 = vmatprep.mubr.f32.mxu0 0.0
        %7703 = vmatmul.mubr.f32.gmra.mrb[0].mxu0 %v3806
        %v7704 = vpop.f32.mrb[0].mxu0
        %v7705 = vadd.f32 0.0, %v7704
        %v7706 = vpop.f32.mrb[0].mxu0
        %7707 = vmatprep.mubr.f32.mxu0 0.0
        %7708 = vmatmul.mubr.f32.gmra.mrb[0].mxu0 %v3809
        %v7709 = vpop.f32.mrb[0].mxu0
        %v7710 = vadd.f32 0.0, %v7709
        %v7711 = vpop.f32.mrb[0].mxu0
        %7712 = vmatprep.mubr.f32.mxu0 0.0
        %7713 = vmatmul.mubr.f32.gmra.mrb[0].mxu0 %v3812
        %v7714 = vpop.f32.mrb[0].mxu0
        %v7715 = vadd.f32 0.0, %v7714
        %v7716 = vpop.f32.mrb[0].mxu0
        %7717 = vmatprep.mubr.f32.mxu0 0.0
        %7718 = vmatmul.mubr.f32.gmra.mrb[0].mxu0 %v3815
        %v7719 = vpop.f32.mrb[0].mxu0
        %v7720 = vadd.f32 0.0, %v7719
        %v7721 = vpop.f32.mrb[0].mxu0
        %7722 = vmatprep.mubr.f32.mxu0 0.0
        %7723 = vmatmul.mubr.f32.gmra.mrb[0].mxu0 %v3818
        %v7724 = vpop.f32.mrb[0].mxu0
        %v7725 = vadd.f32 0.0, %v7724
        %v7726 = vpop.f32.mrb[0].mxu0
        %7727 = vmatprep.mubr.f32.mxu0 0.0
        %7728 = vmatmul.mubr.f32.gmra.mrb[0].mxu0 %v3821
        %v7729 = vpop.f32.mrb[0].mxu0
        %v7730 = vadd.f32 0.0, %v7729
        %v7731 = vpop.f32.mrb[0].mxu0
        %7732 = vmatprep.mubr.f32.mxu0 0.0
        %7733 = vmatmul.mubr.f32.gmra.mrb[0].mxu0 %v3824
        %v7734 = vpop.f32.mrb[0].mxu0
        %v7735 = vadd.f32 0.0, %v7734
        %v7736 = vpop.f32.mrb[0].mxu0
        %7737 = vmatprep.mubr.f32.mxu0 0.0
        %7738 = vmatmul.mubr.f32.gmra.mrb[0].mxu0 %v3827
        %v7739 = vpop.f32.mrb[0].mxu0
        %v7740 = vadd.f32 0.0, %v7739
        %v7741 = vpop.f32.mrb[0].mxu0
        %7742 = vmatprep.mubr.f32.mxu0 0.0
        %7743 = vmatmul.mubr.f32.gmra.mrb[0].mxu0 %v3830
        %v7744 = vpop.f32.mrb[0].mxu0
        %v7745 = vadd.f32 0.0, %v7744
        %v7746 = vpop.f32.mrb[0].mxu0
        %7747 = vmatprep.mubr.f32.mxu0 0.0
        %7748 = vmatmul.mubr.f32.gmra.mrb[0].mxu0 %v3833
        %v7749 = vpop.f32.mrb[0].mxu0
        %v7750 = vadd.f32 0.0, %v7749
        %v7751 = vpop.f32.mrb[0].mxu0
        %7752 = vmatprep.mubr.f32.mxu0 0.0
        %7753 = vmatmul.mubr.f32.gmra.mrb[0].mxu0 %v3836
        %v7754 = vpop.f32.mrb[0].mxu0
        %v7755 = vadd.f32 0.0, %v7754
        %v7756 = vpop.f32.mrb[0].mxu0
        %7757 = vdwg.mxu0
        %7758 = vmatprep.subr.mxu0 0.0
        %7759 = vmatpush1.msra.mxu0 %v4780
        %7760 = vmatprep.subr.mxu0 0.0
        %7761 = vmatpush1.msra.mxu0 %v4781
        %7762 = vmatprep.subr.mxu0 0.0
        %7763 = vmatpush1.msra.mxu0 %v4782
        %7764 = vmatprep.subr.mxu0 0.0
        %7765 = vmatpush1.msra.mxu0 %v4783
        %7766 = vmatprep.subr.mxu0 0.0
        %7767 = vmatpush1.msra.mxu0 %v4784
        %7768 = vmatprep.subr.mxu0 0.0
        %7769 = vmatpush1.msra.mxu0 %v4785
        %7770 = vmatprep.subr.mxu0 0.0
        %7771 = vmatpush1.msra.mxu0 %v4786
        %7772 = vmatprep.subr.mxu0 0.0
        %7773 = vmatpush1.msra.mxu0 %v4787
        %7774 = vmatprep.subr.mxu0 0.0
        %7775 = vmatpush1.msra.mxu0 %v4788
        %7776 = vmatprep.subr.mxu0 0.0
        %7777 = vmatpush1.msra.mxu0 %v4789
        %7778 = vmatprep.subr.mxu0 0.0
        %7779 = vmatpush1.msra.mxu0 %v4790
        %7780 = vmatprep.subr.mxu0 0.0
        %7781 = vmatpush1.msra.mxu0 %v4791
        %7782 = vmatprep.subr.mxu0 0.0
        %7783 = vmatpush1.msra.mxu0 %v4792
        %7784 = vmatprep.subr.mxu0 0.0
        %7785 = vmatpush1.msra.mxu0 %v4793
        %7786 = vmatprep.subr.mxu0 0.0
        %7787 = vmatpush1.msra.mxu0 %v4794
        %7788 = vmatprep.subr.mxu0 0.0
        %7789 = vmatpush1.msra.mxu0 %v4795
        %7790 = vmatprep.subr.mxu0 0.0
        %7791 = vmatpush1.msra.mxu0 0.0
        %7792 = vmatprep.subr.mxu0 0.0
        %7793 = vmatpush1.msra.mxu0 0.0
        %7794 = vmatprep.subr.mxu0 0.0
        %7795 = vmatpush1.msra.mxu0 0.0
        %7796 = vmatprep.subr.mxu0 0.0
        %7797 = vmatpush1.msra.mxu0 0.0
        %7798 = vmatprep.subr.mxu0 0.0
        %7799 = vmatpush1.msra.mxu0 0.0
        %7800 = vmatprep.subr.mxu0 0.0
        %7801 = vmatpush1.msra.mxu0 0.0
        %7802 = vmatprep.subr.mxu0 0.0
        %7803 = vmatpush1.msra.mxu0 0.0
        %7804 = vmatprep.subr.mxu0 0.0
        %7805 = vmatpush1.msra.mxu0 0.0
        %7806 = vmatprep.subr.mxu0 0.0
        %7807 = vmatpush1.msra.mxu0 0.0
        %7808 = vmatprep.subr.mxu0 0.0
        %7809 = vmatpush1.msra.mxu0 0.0
        %7810 = vmatprep.subr.mxu0 0.0
        %7811 = vmatpush1.msra.mxu0 0.0
        %7812 = vmatprep.subr.mxu0 0.0
        %7813 = vmatpush1.msra.mxu0 0.0
        %7814 = vmatprep.subr.mxu0 0.0
        %7815 = vmatpush1.msra.mxu0 0.0
        %7816 = vmatprep.subr.mxu0 0.0
        %7817 = vmatpush1.msra.mxu0 0.0
        %7818 = vmatprep.subr.mxu0 0.0
        %7819 = vmatpush1.msra.mxu0 0.0
        %7820 = vmatprep.subr.mxu0 0.0
        %7821 = vmatpush1.msra.mxu0 0.0
        %7822 = vmatprep.mubr.f32.mxu0 0.0
        %7823 = vmatmul.mubr.f32.gmra.mrb[0].mxu0 %v7535
        %v7824 = vpop.f32.mrb[0].mxu0
        %v7825 = vadd.f32 0.0, %v7824
        %v7826 = vpop.f32.mrb[0].mxu0
        %7827 = vmatprep.mubr.f32.mxu0 0.0
        %7828 = vmatmul.mubr.f32.gmra.mrb[0].mxu0 %v7540
        %v7829 = vpop.f32.mrb[0].mxu0
        %v7830 = vadd.f32 0.0, %v7829
        %v7831 = vpop.f32.mrb[0].mxu0
        %7832 = vmatprep.mubr.f32.mxu0 0.0
        %7833 = vmatmul.mubr.f32.gmra.mrb[0].mxu0 %v7545
        %v7834 = vpop.f32.mrb[0].mxu0
        %v7835 = vadd.f32 0.0, %v7834
        %v7836 = vpop.f32.mrb[0].mxu0
        %7837 = vmatprep.mubr.f32.mxu0 0.0
        %7838 = vmatmul.mubr.f32.gmra.mrb[0].mxu0 %v7550
        %v7839 = vpop.f32.mrb[0].mxu0
        %v7840 = vadd.f32 0.0, %v7839
        %v7841 = vpop.f32.mrb[0].mxu0
        %7842 = vmatprep.mubr.f32.mxu0 0.0
        %7843 = vmatmul.mubr.f32.gmra.mrb[0].mxu0 %v7555
        %v7844 = vpop.f32.mrb[0].mxu0
        %v7845 = vadd.f32 0.0, %v7844
        %v7846 = vpop.f32.mrb[0].mxu0
        %7847 = vmatprep.mubr.f32.mxu0 0.0
        %7848 = vmatmul.mubr.f32.gmra.mrb[0].mxu0 %v7560
        %v7849 = vpop.f32.mrb[0].mxu0
        %v7850 = vadd.f32 0.0, %v7849
        %v7851 = vpop.f32.mrb[0].mxu0
        %7852 = vmatprep.mubr.f32.mxu0 0.0
        %7853 = vmatmul.mubr.f32.gmra.mrb[0].mxu0 %v7565
        %v7854 = vpop.f32.mrb[0].mxu0
        %v7855 = vadd.f32 0.0, %v7854
        %v7856 = vpop.f32.mrb[0].mxu0
        %7857 = vmatprep.mubr.f32.mxu0 0.0
        %7858 = vmatmul.mubr.f32.gmra.mrb[0].mxu0 %v7570
        %v7859 = vpop.f32.mrb[0].mxu0
        %v7860 = vadd.f32 0.0, %v7859
        %v7861 = vpop.f32.mrb[0].mxu0
        %7862 = vmatprep.mubr.f32.mxu0 0.0
        %7863 = vmatmul.mubr.f32.gmra.mrb[0].mxu0 %v7575
        %v7864 = vpop.f32.mrb[0].mxu0
        %v7865 = vadd.f32 0.0, %v7864
        %v7866 = vpop.f32.mrb[0].mxu0
        %7867 = vmatprep.mubr.f32.mxu0 0.0
        %7868 = vmatmul.mubr.f32.gmra.mrb[0].mxu0 %v7580
        %v7869 = vpop.f32.mrb[0].mxu0
        %v7870 = vadd.f32 0.0, %v7869
        %v7871 = vpop.f32.mrb[0].mxu0
        %7872 = vmatprep.mubr.f32.mxu0 0.0
        %7873 = vmatmul.mubr.f32.gmra.mrb[0].mxu0 %v7585
        %v7874 = vpop.f32.mrb[0].mxu0
        %v7875 = vadd.f32 0.0, %v7874
        %v7876 = vpop.f32.mrb[0].mxu0
        %7877 = vmatprep.mubr.f32.mxu0 0.0
        %7878 = vmatmul.mubr.f32.gmra.mrb[0].mxu0 %v7590
        %v7879 = vpop.f32.mrb[0].mxu0
        %v7880 = vadd.f32 0.0, %v7879
        %v7881 = vpop.f32.mrb[0].mxu0
        %7882 = vmatprep.mubr.f32.mxu0 0.0
        %7883 = vmatmul.mubr.f32.gmra.mrb[0].mxu0 %v7595
        %v7884 = vpop.f32.mrb[0].mxu0
        %v7885 = vadd.f32 0.0, %v7884
        %v7886 = vpop.f32.mrb[0].mxu0
        %7887 = vmatprep.mubr.f32.mxu0 0.0
        %7888 = vmatmul.mubr.f32.gmra.mrb[0].mxu0 %v7600
        %v7889 = vpop.f32.mrb[0].mxu0
        %v7890 = vadd.f32 0.0, %v7889
        %v7891 = vpop.f32.mrb[0].mxu0
        %7892 = vmatprep.mubr.f32.mxu0 0.0
        %7893 = vmatmul.mubr.f32.gmra.mrb[0].mxu0 %v7605
        %v7894 = vpop.f32.mrb[0].mxu0
        %v7895 = vadd.f32 0.0, %v7894
        %v7896 = vpop.f32.mrb[0].mxu0
        %7897 = vmatprep.mubr.f32.mxu0 0.0
        %7898 = vmatmul.mubr.f32.gmra.mrb[0].mxu0 %v7610
        %v7899 = vpop.f32.mrb[0].mxu0
        %v7900 = vadd.f32 0.0, %v7899
        %v7901 = vpop.f32.mrb[0].mxu0
        %7902 = vdwg.mxu0
        %v7903 = vmul.f32 %v7680, %v7825
        %v7904 = vmul.f32 %v7685, %v7830
        %v7905 = vmul.f32 %v7690, %v7835
        %v7906 = vmul.f32 %v7695, %v7840
        %v7907 = vmul.f32 %v7700, %v7845
        %v7908 = vmul.f32 %v7705, %v7850
        %v7909 = vmul.f32 %v7710, %v7855
        %v7910 = vmul.f32 %v7715, %v7860
        %v7911 = vmul.f32 %v7720, %v7865
        %v7912 = vmul.f32 %v7725, %v7870
        %v7913 = vmul.f32 %v7730, %v7875
        %v7914 = vmul.f32 %v7735, %v7880
        %v7915 = vmul.f32 %v7740, %v7885
        %v7916 = vmul.f32 %v7745, %v7890
        %v7917 = vmul.f32 %v7750, %v7895
        %v7918 = vmul.f32 %v7755, %v7900
        %7919 = vmatprep.subr.mxu0 0.0
        %7920 = vmatpush1.msra.mxu0 %v4957
        %7921 = vmatprep.subr.mxu0 0.0
        %7922 = vmatpush1.msra.mxu0 %v4958
        %7923 = vmatprep.subr.mxu0 0.0
        %7924 = vmatpush1.msra.mxu0 0.0
        %7925 = vmatprep.subr.mxu0 0.0
        %7926 = vmatpush1.msra.mxu0 0.0
        %7927 = vmatprep.subr.mxu0 0.0
        %7928 = vmatpush1.msra.mxu0 0.0
        %7929 = vmatprep.subr.mxu0 0.0
        %7930 = vmatpush1.msra.mxu0 0.0
        %7931 = vmatprep.subr.mxu0 0.0
        %7932 = vmatpush1.msra.mxu0 0.0
        %7933 = vmatprep.subr.mxu0 0.0
        %7934 = vmatpush1.msra.mxu0 0.0
        %7935 = vmatprep.subr.mxu0 0.0
        %7936 = vmatpush1.msra.mxu0 0.0
        %7937 = vmatprep.subr.mxu0 0.0
        %7938 = vmatpush1.msra.mxu0 0.0
        %7939 = vmatprep.subr.mxu0 0.0
        %7940 = vmatpush1.msra.mxu0 0.0
        %7941 = vmatprep.subr.mxu0 0.0
        %7942 = vmatpush1.msra.mxu0 0.0
        %7943 = vmatprep.subr.mxu0 0.0
        %7944 = vmatpush1.msra.mxu0 0.0
        %7945 = vmatprep.subr.mxu0 0.0
        %7946 = vmatpush1.msra.mxu0 0.0
        %7947 = vmatprep.subr.mxu0 0.0
        %7948 = vmatpush1.msra.mxu0 0.0
        %7949 = vmatprep.subr.mxu0 0.0
        %7950 = vmatpush1.msra.mxu0 0.0
        %7951 = vmatprep.subr.mxu0 0.0
        %7952 = vmatpush1.msra.mxu0 0.0
        %7953 = vmatprep.subr.mxu0 0.0
        %7954 = vmatpush1.msra.mxu0 0.0
        %7955 = vmatprep.subr.mxu0 0.0
        %7956 = vmatpush1.msra.mxu0 0.0
        %7957 = vmatprep.subr.mxu0 0.0
        %7958 = vmatpush1.msra.mxu0 0.0
        %7959 = vmatprep.subr.mxu0 0.0
        %7960 = vmatpush1.msra.mxu0 0.0
        %7961 = vmatprep.subr.mxu0 0.0
        %7962 = vmatpush1.msra.mxu0 0.0
        %7963 = vmatprep.subr.mxu0 0.0
        %7964 = vmatpush1.msra.mxu0 0.0
        %7965 = vmatprep.subr.mxu0 0.0
        %7966 = vmatpush1.msra.mxu0 0.0
        %7967 = vmatprep.subr.mxu0 0.0
        %7968 = vmatpush1.msra.mxu0 0.0
        %7969 = vmatprep.subr.mxu0 0.0
        %7970 = vmatpush1.msra.mxu0 0.0
        %7971 = vmatprep.subr.mxu0 0.0
        %7972 = vmatpush1.msra.mxu0 0.0
        %7973 = vmatprep.subr.mxu0 0.0
        %7974 = vmatpush1.msra.mxu0 0.0
        %7975 = vmatprep.subr.mxu0 0.0
        %7976 = vmatpush1.msra.mxu0 0.0
        %7977 = vmatprep.subr.mxu0 0.0
        %7978 = vmatpush1.msra.mxu0 0.0
        %7979 = vmatprep.subr.mxu0 0.0
        %7980 = vmatpush1.msra.mxu0 0.0
        %7981 = vmatprep.subr.mxu0 0.0
        %7982 = vmatpush1.msra.mxu0 0.0
        %7983 = vmatprep.mubr.f32.mxu0 0.0
        %7984 = vmatmul.mubr.f32.gmra.mrb[0].mxu0 %v3791
        %v7985 = vpop.f32.mrb[0].mxu0
        %v7986 = vadd.f32 0.0, %v7985
        %v7987 = vpop.f32.mrb[0].mxu0
        %7988 = vmatprep.mubr.f32.mxu0 0.0
        %7989 = vmatmul.mubr.f32.gmra.mrb[0].mxu0 %v3794
        %v7990 = vpop.f32.mrb[0].mxu0
        %v7991 = vadd.f32 0.0, %v7990
        %v7992 = vpop.f32.mrb[0].mxu0
        %7993 = vmatprep.mubr.f32.mxu0 0.0
        %7994 = vmatmul.mubr.f32.gmra.mrb[0].mxu0 %v3797
        %v7995 = vpop.f32.mrb[0].mxu0
        %v7996 = vadd.f32 0.0, %v7995
        %v7997 = vpop.f32.mrb[0].mxu0
        %7998 = vmatprep.mubr.f32.mxu0 0.0
        %7999 = vmatmul.mubr.f32.gmra.mrb[0].mxu0 %v3800
        %v8000 = vpop.f32.mrb[0].mxu0
        %v8001 = vadd.f32 0.0, %v8000
        %v8002 = vpop.f32.mrb[0].mxu0
        %8003 = vmatprep.mubr.f32.mxu0 0.0
        %8004 = vmatmul.mubr.f32.gmra.mrb[0].mxu0 %v3803
        %v8005 = vpop.f32.mrb[0].mxu0
        %v8006 = vadd.f32 0.0, %v8005
        %v8007 = vpop.f32.mrb[0].mxu0
        %8008 = vmatprep.mubr.f32.mxu0 0.0
        %8009 = vmatmul.mubr.f32.gmra.mrb[0].mxu0 %v3806
        %v8010 = vpop.f32.mrb[0].mxu0
        %v8011 = vadd.f32 0.0, %v8010
        %v8012 = vpop.f32.mrb[0].mxu0
        %8013 = vmatprep.mubr.f32.mxu0 0.0
        %8014 = vmatmul.mubr.f32.gmra.mrb[0].mxu0 %v3809
        %v8015 = vpop.f32.mrb[0].mxu0
        %v8016 = vadd.f32 0.0, %v8015
        %v8017 = vpop.f32.mrb[0].mxu0
        %8018 = vmatprep.mubr.f32.mxu0 0.0
        %8019 = vmatmul.mubr.f32.gmra.mrb[0].mxu0 %v3812
        %v8020 = vpop.f32.mrb[0].mxu0
        %v8021 = vadd.f32 0.0, %v8020
        %v8022 = vpop.f32.mrb[0].mxu0
        %8023 = vmatprep.mubr.f32.mxu0 0.0
        %8024 = vmatmul.mubr.f32.gmra.mrb[0].mxu0 %v3815
        %v8025 = vpop.f32.mrb[0].mxu0
        %v8026 = vadd.f32 0.0, %v8025
        %v8027 = vpop.f32.mrb[0].mxu0
        %8028 = vmatprep.mubr.f32.mxu0 0.0
        %8029 = vmatmul.mubr.f32.gmra.mrb[0].mxu0 %v3818
        %v8030 = vpop.f32.mrb[0].mxu0
        %v8031 = vadd.f32 0.0, %v8030
        %v8032 = vpop.f32.mrb[0].mxu0
        %8033 = vmatprep.mubr.f32.mxu0 0.0
        %8034 = vmatmul.mubr.f32.gmra.mrb[0].mxu0 %v3821
        %v8035 = vpop.f32.mrb[0].mxu0
        %v8036 = vadd.f32 0.0, %v8035
        %v8037 = vpop.f32.mrb[0].mxu0
        %8038 = vmatprep.mubr.f32.mxu0 0.0
        %8039 = vmatmul.mubr.f32.gmra.mrb[0].mxu0 %v3824
        %v8040 = vpop.f32.mrb[0].mxu0
        %v8041 = vadd.f32 0.0, %v8040
        %v8042 = vpop.f32.mrb[0].mxu0
        %8043 = vmatprep.mubr.f32.mxu0 0.0
        %8044 = vmatmul.mubr.f32.gmra.mrb[0].mxu0 %v3827
        %v8045 = vpop.f32.mrb[0].mxu0
        %v8046 = vadd.f32 0.0, %v8045
        %v8047 = vpop.f32.mrb[0].mxu0
        %8048 = vmatprep.mubr.f32.mxu0 0.0
        %8049 = vmatmul.mubr.f32.gmra.mrb[0].mxu0 %v3830
        %v8050 = vpop.f32.mrb[0].mxu0
        %v8051 = vadd.f32 0.0, %v8050
        %v8052 = vpop.f32.mrb[0].mxu0
        %8053 = vmatprep.mubr.f32.mxu0 0.0
        %8054 = vmatmul.mubr.f32.gmra.mrb[0].mxu0 %v3833
        %v8055 = vpop.f32.mrb[0].mxu0
        %v8056 = vadd.f32 0.0, %v8055
        %v8057 = vpop.f32.mrb[0].mxu0
        %8058 = vmatprep.mubr.f32.mxu0 0.0
        %8059 = vmatmul.mubr.f32.gmra.mrb[0].mxu0 %v3836
        %v8060 = vpop.f32.mrb[0].mxu0
        %v8061 = vadd.f32 0.0, %v8060
        %v8062 = vpop.f32.mrb[0].mxu0
        %8063 = vdwg.mxu0
        %8064 = vmatprep.subr.mxu0 0.0
        %8065 = vmatpush1.msra.mxu0 %v5104
        %8066 = vmatprep.subr.mxu0 0.0
        %8067 = vmatpush1.msra.mxu0 %v5105
        %8068 = vmatprep.subr.mxu0 0.0
        %8069 = vmatpush1.msra.mxu0 %v5106
        %8070 = vmatprep.subr.mxu0 0.0
        %8071 = vmatpush1.msra.mxu0 %v5107
        %8072 = vmatprep.subr.mxu0 0.0
        %8073 = vmatpush1.msra.mxu0 %v5108
        %8074 = vmatprep.subr.mxu0 0.0
        %8075 = vmatpush1.msra.mxu0 %v5109
        %8076 = vmatprep.subr.mxu0 0.0
        %8077 = vmatpush1.msra.mxu0 %v5110
        %8078 = vmatprep.subr.mxu0 0.0
        %8079 = vmatpush1.msra.mxu0 %v5111
        %8080 = vmatprep.subr.mxu0 0.0
        %8081 = vmatpush1.msra.mxu0 %v5112
        %8082 = vmatprep.subr.mxu0 0.0
        %8083 = vmatpush1.msra.mxu0 %v5113
        %8084 = vmatprep.subr.mxu0 0.0
        %8085 = vmatpush1.msra.mxu0 %v5114
        %8086 = vmatprep.subr.mxu0 0.0
        %8087 = vmatpush1.msra.mxu0 %v5115
        %8088 = vmatprep.subr.mxu0 0.0
        %8089 = vmatpush1.msra.mxu0 %v5116
        %8090 = vmatprep.subr.mxu0 0.0
        %8091 = vmatpush1.msra.mxu0 %v5117
        %8092 = vmatprep.subr.mxu0 0.0
        %8093 = vmatpush1.msra.mxu0 %v5118
        %8094 = vmatprep.subr.mxu0 0.0
        %8095 = vmatpush1.msra.mxu0 %v5119
        %8096 = vmatprep.subr.mxu0 0.0
        %8097 = vmatpush1.msra.mxu0 0.0
        %8098 = vmatprep.subr.mxu0 0.0
        %8099 = vmatpush1.msra.mxu0 0.0
        %8100 = vmatprep.subr.mxu0 0.0
        %8101 = vmatpush1.msra.mxu0 0.0
        %8102 = vmatprep.subr.mxu0 0.0
        %8103 = vmatpush1.msra.mxu0 0.0
        %8104 = vmatprep.subr.mxu0 0.0
        %8105 = vmatpush1.msra.mxu0 0.0
        %8106 = vmatprep.subr.mxu0 0.0
        %8107 = vmatpush1.msra.mxu0 0.0
        %8108 = vmatprep.subr.mxu0 0.0
        %8109 = vmatpush1.msra.mxu0 0.0
        %8110 = vmatprep.subr.mxu0 0.0
        %8111 = vmatpush1.msra.mxu0 0.0
        %8112 = vmatprep.subr.mxu0 0.0
        %8113 = vmatpush1.msra.mxu0 0.0
        %8114 = vmatprep.subr.mxu0 0.0
        %8115 = vmatpush1.msra.mxu0 0.0
        %8116 = vmatprep.subr.mxu0 0.0
        %8117 = vmatpush1.msra.mxu0 0.0
        %8118 = vmatprep.subr.mxu0 0.0
        %8119 = vmatpush1.msra.mxu0 0.0
        %8120 = vmatprep.subr.mxu0 0.0
        %8121 = vmatpush1.msra.mxu0 0.0
        %8122 = vmatprep.subr.mxu0 0.0
        %8123 = vmatpush1.msra.mxu0 0.0
        %8124 = vmatprep.subr.mxu0 0.0
        %8125 = vmatpush1.msra.mxu0 0.0
        %8126 = vmatprep.subr.mxu0 0.0
        %8127 = vmatpush1.msra.mxu0 0.0
        %8128 = vmatprep.mubr.f32.mxu0 0.0
        %8129 = vmatmul.mubr.f32.gmra.mrb[0].mxu0 %v7535
        %v8130 = vpop.f32.mrb[0].mxu0
        %v8131 = vadd.f32 0.0, %v8130
        %v8132 = vpop.f32.mrb[0].mxu0
        %8133 = vmatprep.mubr.f32.mxu0 0.0
        %8134 = vmatmul.mubr.f32.gmra.mrb[0].mxu0 %v7540
        %v8135 = vpop.f32.mrb[0].mxu0
        %v8136 = vadd.f32 0.0, %v8135
        %v8137 = vpop.f32.mrb[0].mxu0
        %8138 = vmatprep.mubr.f32.mxu0 0.0
        %8139 = vmatmul.mubr.f32.gmra.mrb[0].mxu0 %v7545
        %v8140 = vpop.f32.mrb[0].mxu0
        %v8141 = vadd.f32 0.0, %v8140
        %v8142 = vpop.f32.mrb[0].mxu0
        %8143 = vmatprep.mubr.f32.mxu0 0.0
        %8144 = vmatmul.mubr.f32.gmra.mrb[0].mxu0 %v7550
        %v8145 = vpop.f32.mrb[0].mxu0
        %v8146 = vadd.f32 0.0, %v8145
        %v8147 = vpop.f32.mrb[0].mxu0
        %8148 = vmatprep.mubr.f32.mxu0 0.0
        %8149 = vmatmul.mubr.f32.gmra.mrb[0].mxu0 %v7555
        %v8150 = vpop.f32.mrb[0].mxu0
        %v8151 = vadd.f32 0.0, %v8150
        %v8152 = vpop.f32.mrb[0].mxu0
        %8153 = vmatprep.mubr.f32.mxu0 0.0
        %8154 = vmatmul.mubr.f32.gmra.mrb[0].mxu0 %v7560
        %v8155 = vpop.f32.mrb[0].mxu0
        %v8156 = vadd.f32 0.0, %v8155
        %v8157 = vpop.f32.mrb[0].mxu0
        %8158 = vmatprep.mubr.f32.mxu0 0.0
        %8159 = vmatmul.mubr.f32.gmra.mrb[0].mxu0 %v7565
        %v8160 = vpop.f32.mrb[0].mxu0
        %v8161 = vadd.f32 0.0, %v8160
        %v8162 = vpop.f32.mrb[0].mxu0
        %8163 = vmatprep.mubr.f32.mxu0 0.0
        %8164 = vmatmul.mubr.f32.gmra.mrb[0].mxu0 %v7570
        %v8165 = vpop.f32.mrb[0].mxu0
        %v8166 = vadd.f32 0.0, %v8165
        %v8167 = vpop.f32.mrb[0].mxu0
        %8168 = vmatprep.mubr.f32.mxu0 0.0
        %8169 = vmatmul.mubr.f32.gmra.mrb[0].mxu0 %v7575
        %v8170 = vpop.f32.mrb[0].mxu0
        %v8171 = vadd.f32 0.0, %v8170
        %v8172 = vpop.f32.mrb[0].mxu0
        %8173 = vmatprep.mubr.f32.mxu0 0.0
        %8174 = vmatmul.mubr.f32.gmra.mrb[0].mxu0 %v7580
        %v8175 = vpop.f32.mrb[0].mxu0
        %v8176 = vadd.f32 0.0, %v8175
        %v8177 = vpop.f32.mrb[0].mxu0
        %8178 = vmatprep.mubr.f32.mxu0 0.0
        %8179 = vmatmul.mubr.f32.gmra.mrb[0].mxu0 %v7585
        %v8180 = vpop.f32.mrb[0].mxu0
        %v8181 = vadd.f32 0.0, %v8180
        %v8182 = vpop.f32.mrb[0].mxu0
        %8183 = vmatprep.mubr.f32.mxu0 0.0
        %8184 = vmatmul.mubr.f32.gmra.mrb[0].mxu0 %v7590
        %v8185 = vpop.f32.mrb[0].mxu0
        %v8186 = vadd.f32 0.0, %v8185
        %v8187 = vpop.f32.mrb[0].mxu0
        %8188 = vmatprep.mubr.f32.mxu0 0.0
        %8189 = vmatmul.mubr.f32.gmra.mrb[0].mxu0 %v7595
        %v8190 = vpop.f32.mrb[0].mxu0
        %v8191 = vadd.f32 0.0, %v8190
        %v8192 = vpop.f32.mrb[0].mxu0
        %8193 = vmatprep.mubr.f32.mxu0 0.0
        %8194 = vmatmul.mubr.f32.gmra.mrb[0].mxu0 %v7600
        %v8195 = vpop.f32.mrb[0].mxu0
        %v8196 = vadd.f32 0.0, %v8195
        %v8197 = vpop.f32.mrb[0].mxu0
        %8198 = vmatprep.mubr.f32.mxu0 0.0
        %8199 = vmatmul.mubr.f32.gmra.mrb[0].mxu0 %v7605
        %v8200 = vpop.f32.mrb[0].mxu0
        %v8201 = vadd.f32 0.0, %v8200
        %v8202 = vpop.f32.mrb[0].mxu0
        %8203 = vmatprep.mubr.f32.mxu0 0.0
        %8204 = vmatmul.mubr.f32.gmra.mrb[0].mxu0 %v7610
        %v8205 = vpop.f32.mrb[0].mxu0
        %v8206 = vadd.f32 0.0, %v8205
        %v8207 = vpop.f32.mrb[0].mxu0
        %8208 = vdwg.mxu0
        %v8209 = vmul.f32 %v7986, %v8131
        %v8210 = vmul.f32 %v7991, %v8136
        %v8211 = vmul.f32 %v7996, %v8141
        %v8212 = vmul.f32 %v8001, %v8146
        %v8213 = vmul.f32 %v8006, %v8151
        %v8214 = vmul.f32 %v8011, %v8156
        %v8215 = vmul.f32 %v8016, %v8161
        %v8216 = vmul.f32 %v8021, %v8166
        %v8217 = vmul.f32 %v8026, %v8171
        %v8218 = vmul.f32 %v8031, %v8176
        %v8219 = vmul.f32 %v8036, %v8181
        %v8220 = vmul.f32 %v8041, %v8186
        %v8221 = vmul.f32 %v8046, %v8191
        %v8222 = vmul.f32 %v8051, %v8196
        %v8223 = vmul.f32 %v8056, %v8201
        %v8224 = vmul.f32 %v8061, %v8206
        %v8225 = vadd.f32 %v7903, %v8209
        %v8226 = vadd.f32 %v7904, %v8210
        %v8227 = vadd.f32 %v7905, %v8211
        %v8228 = vadd.f32 %v7906, %v8212
        %v8229 = vadd.f32 %v7907, %v8213
        %v8230 = vadd.f32 %v7908, %v8214
        %v8231 = vadd.f32 %v7909, %v8215
        %v8232 = vadd.f32 %v7910, %v8216
        %v8233 = vadd.f32 %v7911, %v8217
        %v8234 = vadd.f32 %v7912, %v8218
        %v8235 = vadd.f32 %v7913, %v8219
        %v8236 = vadd.f32 %v7914, %v8220
        %v8237 = vadd.f32 %v7915, %v8221
        %v8238 = vadd.f32 %v7916, %v8222
        %v8239 = vadd.f32 %v7917, %v8223
        %v8240 = vadd.f32 %v7918, %v8224
        %8241 = vmatprep.subr.mxu0 0.0
        %8242 = vmatpush1.msra.mxu0 %v5297
        %8243 = vmatprep.subr.mxu0 0.0
        %8244 = vmatpush1.msra.mxu0 %v5298
        %8245 = vmatprep.subr.mxu0 0.0
        %8246 = vmatpush1.msra.mxu0 0.0
        %8247 = vmatprep.subr.mxu0 0.0
        %8248 = vmatpush1.msra.mxu0 0.0
        %8249 = vmatprep.subr.mxu0 0.0
        %8250 = vmatpush1.msra.mxu0 0.0
        %8251 = vmatprep.subr.mxu0 0.0
        %8252 = vmatpush1.msra.mxu0 0.0
        %8253 = vmatprep.subr.mxu0 0.0
        %8254 = vmatpush1.msra.mxu0 0.0
        %8255 = vmatprep.subr.mxu0 0.0
        %8256 = vmatpush1.msra.mxu0 0.0
        %8257 = vmatprep.subr.mxu0 0.0
        %8258 = vmatpush1.msra.mxu0 0.0
        %8259 = vmatprep.subr.mxu0 0.0
        %8260 = vmatpush1.msra.mxu0 0.0
        %8261 = vmatprep.subr.mxu0 0.0
        %8262 = vmatpush1.msra.mxu0 0.0
        %8263 = vmatprep.subr.mxu0 0.0
        %8264 = vmatpush1.msra.mxu0 0.0
        %8265 = vmatprep.subr.mxu0 0.0
        %8266 = vmatpush1.msra.mxu0 0.0
        %8267 = vmatprep.subr.mxu0 0.0
        %8268 = vmatpush1.msra.mxu0 0.0
        %8269 = vmatprep.subr.mxu0 0.0
        %8270 = vmatpush1.msra.mxu0 0.0
        %8271 = vmatprep.subr.mxu0 0.0
        %8272 = vmatpush1.msra.mxu0 0.0
        %8273 = vmatprep.subr.mxu0 0.0
        %8274 = vmatpush1.msra.mxu0 0.0
        %8275 = vmatprep.subr.mxu0 0.0
        %8276 = vmatpush1.msra.mxu0 0.0
        %8277 = vmatprep.subr.mxu0 0.0
        %8278 = vmatpush1.msra.mxu0 0.0
        %8279 = vmatprep.subr.mxu0 0.0
        %8280 = vmatpush1.msra.mxu0 0.0
        %8281 = vmatprep.subr.mxu0 0.0
        %8282 = vmatpush1.msra.mxu0 0.0
        %8283 = vmatprep.subr.mxu0 0.0
        %8284 = vmatpush1.msra.mxu0 0.0
        %8285 = vmatprep.subr.mxu0 0.0
        %8286 = vmatpush1.msra.mxu0 0.0
        %8287 = vmatprep.subr.mxu0 0.0
        %8288 = vmatpush1.msra.mxu0 0.0
        %8289 = vmatprep.subr.mxu0 0.0
        %8290 = vmatpush1.msra.mxu0 0.0
        %8291 = vmatprep.subr.mxu0 0.0
        %8292 = vmatpush1.msra.mxu0 0.0
        %8293 = vmatprep.subr.mxu0 0.0
        %8294 = vmatpush1.msra.mxu0 0.0
        %8295 = vmatprep.subr.mxu0 0.0
        %8296 = vmatpush1.msra.mxu0 0.0
        %8297 = vmatprep.subr.mxu0 0.0
        %8298 = vmatpush1.msra.mxu0 0.0
        %8299 = vmatprep.subr.mxu0 0.0
        %8300 = vmatpush1.msra.mxu0 0.0
        %8301 = vmatprep.subr.mxu0 0.0
        %8302 = vmatpush1.msra.mxu0 0.0
        %8303 = vmatprep.subr.mxu0 0.0
        %8304 = vmatpush1.msra.mxu0 0.0
        %8305 = vmatprep.mubr.f32.mxu0 0.0
        %8306 = vmatmul.mubr.f32.gmra.mrb[0].mxu0 %v3791
        %v8307 = vpop.f32.mrb[0].mxu0
        %v8308 = vadd.f32 0.0, %v8307
        %v8309 = vpop.f32.mrb[0].mxu0
        %8310 = vmatprep.mubr.f32.mxu0 0.0
        %8311 = vmatmul.mubr.f32.gmra.mrb[0].mxu0 %v3794
        %v8312 = vpop.f32.mrb[0].mxu0
        %v8313 = vadd.f32 0.0, %v8312
        %v8314 = vpop.f32.mrb[0].mxu0
        %8315 = vmatprep.mubr.f32.mxu0 0.0
        %8316 = vmatmul.mubr.f32.gmra.mrb[0].mxu0 %v3797
        %v8317 = vpop.f32.mrb[0].mxu0
        %v8318 = vadd.f32 0.0, %v8317
        %v8319 = vpop.f32.mrb[0].mxu0
        %8320 = vmatprep.mubr.f32.mxu0 0.0
        %8321 = vmatmul.mubr.f32.gmra.mrb[0].mxu0 %v3800
        %v8322 = vpop.f32.mrb[0].mxu0
        %v8323 = vadd.f32 0.0, %v8322
        %v8324 = vpop.f32.mrb[0].mxu0
        %8325 = vmatprep.mubr.f32.mxu0 0.0
        %8326 = vmatmul.mubr.f32.gmra.mrb[0].mxu0 %v3803
        %v8327 = vpop.f32.mrb[0].mxu0
        %v8328 = vadd.f32 0.0, %v8327
        %v8329 = vpop.f32.mrb[0].mxu0
        %8330 = vmatprep.mubr.f32.mxu0 0.0
        %8331 = vmatmul.mubr.f32.gmra.mrb[0].mxu0 %v3806
        %v8332 = vpop.f32.mrb[0].mxu0
        %v8333 = vadd.f32 0.0, %v8332
        %v8334 = vpop.f32.mrb[0].mxu0
        %8335 = vmatprep.mubr.f32.mxu0 0.0
        %8336 = vmatmul.mubr.f32.gmra.mrb[0].mxu0 %v3809
        %v8337 = vpop.f32.mrb[0].mxu0
        %v8338 = vadd.f32 0.0, %v8337
        %v8339 = vpop.f32.mrb[0].mxu0
        %8340 = vmatprep.mubr.f32.mxu0 0.0
        %8341 = vmatmul.mubr.f32.gmra.mrb[0].mxu0 %v3812
        %v8342 = vpop.f32.mrb[0].mxu0
        %v8343 = vadd.f32 0.0, %v8342
        %v8344 = vpop.f32.mrb[0].mxu0
        %8345 = vmatprep.mubr.f32.mxu0 0.0
        %8346 = vmatmul.mubr.f32.gmra.mrb[0].mxu0 %v3815
        %v8347 = vpop.f32.mrb[0].mxu0
        %v8348 = vadd.f32 0.0, %v8347
        %v8349 = vpop.f32.mrb[0].mxu0
        %8350 = vmatprep.mubr.f32.mxu0 0.0
        %8351 = vmatmul.mubr.f32.gmra.mrb[0].mxu0 %v3818
        %v8352 = vpop.f32.mrb[0].mxu0
        %v8353 = vadd.f32 0.0, %v8352
        %v8354 = vpop.f32.mrb[0].mxu0
        %8355 = vmatprep.mubr.f32.mxu0 0.0
        %8356 = vmatmul.mubr.f32.gmra.mrb[0].mxu0 %v3821
        %v8357 = vpop.f32.mrb[0].mxu0
        %v8358 = vadd.f32 0.0, %v8357
        %v8359 = vpop.f32.mrb[0].mxu0
        %8360 = vmatprep.mubr.f32.mxu0 0.0
        %8361 = vmatmul.mubr.f32.gmra.mrb[0].mxu0 %v3824
        %v8362 = vpop.f32.mrb[0].mxu0
        %v8363 = vadd.f32 0.0, %v8362
        %v8364 = vpop.f32.mrb[0].mxu0
        %8365 = vmatprep.mubr.f32.mxu0 0.0
        %8366 = vmatmul.mubr.f32.gmra.mrb[0].mxu0 %v3827
        %v8367 = vpop.f32.mrb[0].mxu0
        %v8368 = vadd.f32 0.0, %v8367
        %v8369 = vpop.f32.mrb[0].mxu0
        %8370 = vmatprep.mubr.f32.mxu0 0.0
        %8371 = vmatmul.mubr.f32.gmra.mrb[0].mxu0 %v3830
        %v8372 = vpop.f32.mrb[0].mxu0
        %v8373 = vadd.f32 0.0, %v8372
        %v8374 = vpop.f32.mrb[0].mxu0
        %8375 = vmatprep.mubr.f32.mxu0 0.0
        %8376 = vmatmul.mubr.f32.gmra.mrb[0].mxu0 %v3833
        %v8377 = vpop.f32.mrb[0].mxu0
        %v8378 = vadd.f32 0.0, %v8377
        %v8379 = vpop.f32.mrb[0].mxu0
        %8380 = vmatprep.mubr.f32.mxu0 0.0
        %8381 = vmatmul.mubr.f32.gmra.mrb[0].mxu0 %v3836
        %v8382 = vpop.f32.mrb[0].mxu0
        %v8383 = vadd.f32 0.0, %v8382
        %v8384 = vpop.f32.mrb[0].mxu0
        %8385 = vdwg.mxu0
        %8386 = vmatprep.subr.mxu0 0.0
        %8387 = vmatpush1.msra.mxu0 %v5444
        %8388 = vmatprep.subr.mxu0 0.0
        %8389 = vmatpush1.msra.mxu0 %v5445
        %8390 = vmatprep.subr.mxu0 0.0
        %8391 = vmatpush1.msra.mxu0 %v5446
        %8392 = vmatprep.subr.mxu0 0.0
        %8393 = vmatpush1.msra.mxu0 %v5447
        %8394 = vmatprep.subr.mxu0 0.0
        %8395 = vmatpush1.msra.mxu0 %v5448
        %8396 = vmatprep.subr.mxu0 0.0
        %8397 = vmatpush1.msra.mxu0 %v5449
        %8398 = vmatprep.subr.mxu0 0.0
        %8399 = vmatpush1.msra.mxu0 %v5450
        %8400 = vmatprep.subr.mxu0 0.0
        %8401 = vmatpush1.msra.mxu0 %v5451
        %8402 = vmatprep.subr.mxu0 0.0
        %8403 = vmatpush1.msra.mxu0 %v5452
        %8404 = vmatprep.subr.mxu0 0.0
        %8405 = vmatpush1.msra.mxu0 %v5453
        %8406 = vmatprep.subr.mxu0 0.0
        %8407 = vmatpush1.msra.mxu0 %v5454
        %8408 = vmatprep.subr.mxu0 0.0
        %8409 = vmatpush1.msra.mxu0 %v5455
        %8410 = vmatprep.subr.mxu0 0.0
        %8411 = vmatpush1.msra.mxu0 %v5456
        %8412 = vmatprep.subr.mxu0 0.0
        %8413 = vmatpush1.msra.mxu0 %v5457
        %8414 = vmatprep.subr.mxu0 0.0
        %8415 = vmatpush1.msra.mxu0 %v5458
        %8416 = vmatprep.subr.mxu0 0.0
        %8417 = vmatpush1.msra.mxu0 %v5459
        %8418 = vmatprep.subr.mxu0 0.0
        %8419 = vmatpush1.msra.mxu0 0.0
        %8420 = vmatprep.subr.mxu0 0.0
        %8421 = vmatpush1.msra.mxu0 0.0
        %8422 = vmatprep.subr.mxu0 0.0
        %8423 = vmatpush1.msra.mxu0 0.0
        %8424 = vmatprep.subr.mxu0 0.0
        %8425 = vmatpush1.msra.mxu0 0.0
        %8426 = vmatprep.subr.mxu0 0.0
        %8427 = vmatpush1.msra.mxu0 0.0
        %8428 = vmatprep.subr.mxu0 0.0
        %8429 = vmatpush1.msra.mxu0 0.0
        %8430 = vmatprep.subr.mxu0 0.0
        %8431 = vmatpush1.msra.mxu0 0.0
        %8432 = vmatprep.subr.mxu0 0.0
        %8433 = vmatpush1.msra.mxu0 0.0
        %8434 = vmatprep.subr.mxu0 0.0
        %8435 = vmatpush1.msra.mxu0 0.0
        %8436 = vmatprep.subr.mxu0 0.0
        %8437 = vmatpush1.msra.mxu0 0.0
        %8438 = vmatprep.subr.mxu0 0.0
        %8439 = vmatpush1.msra.mxu0 0.0
        %8440 = vmatprep.subr.mxu0 0.0
        %8441 = vmatpush1.msra.mxu0 0.0
        %8442 = vmatprep.subr.mxu0 0.0
        %8443 = vmatpush1.msra.mxu0 0.0
        %8444 = vmatprep.subr.mxu0 0.0
        %8445 = vmatpush1.msra.mxu0 0.0
        %8446 = vmatprep.subr.mxu0 0.0
        %8447 = vmatpush1.msra.mxu0 0.0
        %8448 = vmatprep.subr.mxu0 0.0
        %8449 = vmatpush1.msra.mxu0 0.0
        %8450 = vmatprep.mubr.f32.mxu0 0.0
        %8451 = vmatmul.mubr.f32.gmra.mrb[0].mxu0 %v7535
        %v8452 = vpop.f32.mrb[0].mxu0
        %v8453 = vadd.f32 0.0, %v8452
        %v8454 = vpop.f32.mrb[0].mxu0
        %8455 = vmatprep.mubr.f32.mxu0 0.0
        %8456 = vmatmul.mubr.f32.gmra.mrb[0].mxu0 %v7540
        %v8457 = vpop.f32.mrb[0].mxu0
        %v8458 = vadd.f32 0.0, %v8457
        %v8459 = vpop.f32.mrb[0].mxu0
        %8460 = vmatprep.mubr.f32.mxu0 0.0
        %8461 = vmatmul.mubr.f32.gmra.mrb[0].mxu0 %v7545
        %v8462 = vpop.f32.mrb[0].mxu0
        %v8463 = vadd.f32 0.0, %v8462
        %v8464 = vpop.f32.mrb[0].mxu0
        %8465 = vmatprep.mubr.f32.mxu0 0.0
        %8466 = vmatmul.mubr.f32.gmra.mrb[0].mxu0 %v7550
        %v8467 = vpop.f32.mrb[0].mxu0
        %v8468 = vadd.f32 0.0, %v8467
        %v8469 = vpop.f32.mrb[0].mxu0
        %8470 = vmatprep.mubr.f32.mxu0 0.0
        %8471 = vmatmul.mubr.f32.gmra.mrb[0].mxu0 %v7555
        %v8472 = vpop.f32.mrb[0].mxu0
        %v8473 = vadd.f32 0.0, %v8472
        %v8474 = vpop.f32.mrb[0].mxu0
        %8475 = vmatprep.mubr.f32.mxu0 0.0
        %8476 = vmatmul.mubr.f32.gmra.mrb[0].mxu0 %v7560
        %v8477 = vpop.f32.mrb[0].mxu0
        %v8478 = vadd.f32 0.0, %v8477
        %v8479 = vpop.f32.mrb[0].mxu0
        %8480 = vmatprep.mubr.f32.mxu0 0.0
        %8481 = vmatmul.mubr.f32.gmra.mrb[0].mxu0 %v7565
        %v8482 = vpop.f32.mrb[0].mxu0
        %v8483 = vadd.f32 0.0, %v8482
        %v8484 = vpop.f32.mrb[0].mxu0
        %8485 = vmatprep.mubr.f32.mxu0 0.0
        %8486 = vmatmul.mubr.f32.gmra.mrb[0].mxu0 %v7570
        %v8487 = vpop.f32.mrb[0].mxu0
        %v8488 = vadd.f32 0.0, %v8487
        %v8489 = vpop.f32.mrb[0].mxu0
        %8490 = vmatprep.mubr.f32.mxu0 0.0
        %8491 = vmatmul.mubr.f32.gmra.mrb[0].mxu0 %v7575
        %v8492 = vpop.f32.mrb[0].mxu0
        %v8493 = vadd.f32 0.0, %v8492
        %v8494 = vpop.f32.mrb[0].mxu0
        %8495 = vmatprep.mubr.f32.mxu0 0.0
        %8496 = vmatmul.mubr.f32.gmra.mrb[0].mxu0 %v7580
        %v8497 = vpop.f32.mrb[0].mxu0
        %v8498 = vadd.f32 0.0, %v8497
        %v8499 = vpop.f32.mrb[0].mxu0
        %8500 = vmatprep.mubr.f32.mxu0 0.0
        %8501 = vmatmul.mubr.f32.gmra.mrb[0].mxu0 %v7585
        %v8502 = vpop.f32.mrb[0].mxu0
        %v8503 = vadd.f32 0.0, %v8502
        %v8504 = vpop.f32.mrb[0].mxu0
        %8505 = vmatprep.mubr.f32.mxu0 0.0
        %8506 = vmatmul.mubr.f32.gmra.mrb[0].mxu0 %v7590
        %v8507 = vpop.f32.mrb[0].mxu0
        %v8508 = vadd.f32 0.0, %v8507
        %v8509 = vpop.f32.mrb[0].mxu0
        %8510 = vmatprep.mubr.f32.mxu0 0.0
        %8511 = vmatmul.mubr.f32.gmra.mrb[0].mxu0 %v7595
        %v8512 = vpop.f32.mrb[0].mxu0
        %v8513 = vadd.f32 0.0, %v8512
        %v8514 = vpop.f32.mrb[0].mxu0
        %8515 = vmatprep.mubr.f32.mxu0 0.0
        %8516 = vmatmul.mubr.f32.gmra.mrb[0].mxu0 %v7600
        %v8517 = vpop.f32.mrb[0].mxu0
        %v8518 = vadd.f32 0.0, %v8517
        %v8519 = vpop.f32.mrb[0].mxu0
        %8520 = vmatprep.mubr.f32.mxu0 0.0
        %8521 = vmatmul.mubr.f32.gmra.mrb[0].mxu0 %v7605
        %v8522 = vpop.f32.mrb[0].mxu0
        %v8523 = vadd.f32 0.0, %v8522
        %v8524 = vpop.f32.mrb[0].mxu0
        %8525 = vmatprep.mubr.f32.mxu0 0.0
        %8526 = vmatmul.mubr.f32.gmra.mrb[0].mxu0 %v7610
        %v8527 = vpop.f32.mrb[0].mxu0
        %v8528 = vadd.f32 0.0, %v8527
        %v8529 = vpop.f32.mrb[0].mxu0
        %8530 = vdwg.mxu0
        %v8531 = vmul.f32 %v8308, %v8453
        %v8532 = vmul.f32 %v8313, %v8458
        %v8533 = vmul.f32 %v8318, %v8463
        %v8534 = vmul.f32 %v8323, %v8468
        %v8535 = vmul.f32 %v8328, %v8473
        %v8536 = vmul.f32 %v8333, %v8478
        %v8537 = vmul.f32 %v8338, %v8483
        %v8538 = vmul.f32 %v8343, %v8488
        %v8539 = vmul.f32 %v8348, %v8493
        %v8540 = vmul.f32 %v8353, %v8498
        %v8541 = vmul.f32 %v8358, %v8503
        %v8542 = vmul.f32 %v8363, %v8508
        %v8543 = vmul.f32 %v8368, %v8513
        %v8544 = vmul.f32 %v8373, %v8518
        %v8545 = vmul.f32 %v8378, %v8523
        %v8546 = vmul.f32 %v8383, %v8528
        %v8547 = vadd.f32 %v8225, %v8531
        %v8548 = vadd.f32 %v8226, %v8532
        %v8549 = vadd.f32 %v8227, %v8533
        %v8550 = vadd.f32 %v8228, %v8534
        %v8551 = vadd.f32 %v8229, %v8535
        %v8552 = vadd.f32 %v8230, %v8536
        %v8553 = vadd.f32 %v8231, %v8537
        %v8554 = vadd.f32 %v8232, %v8538
        %v8555 = vadd.f32 %v8233, %v8539
        %v8556 = vadd.f32 %v8234, %v8540
        %v8557 = vadd.f32 %v8235, %v8541
        %v8558 = vadd.f32 %v8236, %v8542
        %v8559 = vadd.f32 %v8237, %v8543
        %v8560 = vadd.f32 %v8238, %v8544
        %v8561 = vadd.f32 %v8239, %v8545
        %v8562 = vadd.f32 %v8240, %v8546
        %8563 = vmatprep.subr.mxu0 0.0
        %8564 = vmatpush1.msra.mxu0 %v5637
        %8565 = vmatprep.subr.mxu0 0.0
        %8566 = vmatpush1.msra.mxu0 %v5638
        %8567 = vmatprep.subr.mxu0 0.0
        %8568 = vmatpush1.msra.mxu0 0.0
        %8569 = vmatprep.subr.mxu0 0.0
        %8570 = vmatpush1.msra.mxu0 0.0
        %8571 = vmatprep.subr.mxu0 0.0
        %8572 = vmatpush1.msra.mxu0 0.0
        %8573 = vmatprep.subr.mxu0 0.0
        %8574 = vmatpush1.msra.mxu0 0.0
        %8575 = vmatprep.subr.mxu0 0.0
        %8576 = vmatpush1.msra.mxu0 0.0
        %8577 = vmatprep.subr.mxu0 0.0
        %8578 = vmatpush1.msra.mxu0 0.0
        %8579 = vmatprep.subr.mxu0 0.0
        %8580 = vmatpush1.msra.mxu0 0.0
        %8581 = vmatprep.subr.mxu0 0.0
        %8582 = vmatpush1.msra.mxu0 0.0
        %8583 = vmatprep.subr.mxu0 0.0
        %8584 = vmatpush1.msra.mxu0 0.0
        %8585 = vmatprep.subr.mxu0 0.0
        %8586 = vmatpush1.msra.mxu0 0.0
        %8587 = vmatprep.subr.mxu0 0.0
        %8588 = vmatpush1.msra.mxu0 0.0
        %8589 = vmatprep.subr.mxu0 0.0
        %8590 = vmatpush1.msra.mxu0 0.0
        %8591 = vmatprep.subr.mxu0 0.0
        %8592 = vmatpush1.msra.mxu0 0.0
        %8593 = vmatprep.subr.mxu0 0.0
        %8594 = vmatpush1.msra.mxu0 0.0
        %8595 = vmatprep.subr.mxu0 0.0
        %8596 = vmatpush1.msra.mxu0 0.0
        %8597 = vmatprep.subr.mxu0 0.0
        %8598 = vmatpush1.msra.mxu0 0.0
        %8599 = vmatprep.subr.mxu0 0.0
        %8600 = vmatpush1.msra.mxu0 0.0
        %8601 = vmatprep.subr.mxu0 0.0
        %8602 = vmatpush1.msra.mxu0 0.0
        %8603 = vmatprep.subr.mxu0 0.0
        %8604 = vmatpush1.msra.mxu0 0.0
        %8605 = vmatprep.subr.mxu0 0.0
        %8606 = vmatpush1.msra.mxu0 0.0
        %8607 = vmatprep.subr.mxu0 0.0
        %8608 = vmatpush1.msra.mxu0 0.0
        %8609 = vmatprep.subr.mxu0 0.0
        %8610 = vmatpush1.msra.mxu0 0.0
        %8611 = vmatprep.subr.mxu0 0.0
        %8612 = vmatpush1.msra.mxu0 0.0
        %8613 = vmatprep.subr.mxu0 0.0
        %8614 = vmatpush1.msra.mxu0 0.0
        %8615 = vmatprep.subr.mxu0 0.0
        %8616 = vmatpush1.msra.mxu0 0.0
        %8617 = vmatprep.subr.mxu0 0.0
        %8618 = vmatpush1.msra.mxu0 0.0
        %8619 = vmatprep.subr.mxu0 0.0
        %8620 = vmatpush1.msra.mxu0 0.0
        %8621 = vmatprep.subr.mxu0 0.0
        %8622 = vmatpush1.msra.mxu0 0.0
        %8623 = vmatprep.subr.mxu0 0.0
        %8624 = vmatpush1.msra.mxu0 0.0
        %8625 = vmatprep.subr.mxu0 0.0
        %8626 = vmatpush1.msra.mxu0 0.0
        %8627 = vmatprep.mubr.f32.mxu0 0.0
        %8628 = vmatmul.mubr.f32.gmra.mrb[0].mxu0 %v3791
        %v8629 = vpop.f32.mrb[0].mxu0
        %v8630 = vadd.f32 0.0, %v8629
        %v8631 = vpop.f32.mrb[0].mxu0
        %8632 = vmatprep.mubr.f32.mxu0 0.0
        %8633 = vmatmul.mubr.f32.gmra.mrb[0].mxu0 %v3794
        %v8634 = vpop.f32.mrb[0].mxu0
        %v8635 = vadd.f32 0.0, %v8634
        %v8636 = vpop.f32.mrb[0].mxu0
        %8637 = vmatprep.mubr.f32.mxu0 0.0
        %8638 = vmatmul.mubr.f32.gmra.mrb[0].mxu0 %v3797
        %v8639 = vpop.f32.mrb[0].mxu0
        %v8640 = vadd.f32 0.0, %v8639
        %v8641 = vpop.f32.mrb[0].mxu0
        %8642 = vmatprep.mubr.f32.mxu0 0.0
        %8643 = vmatmul.mubr.f32.gmra.mrb[0].mxu0 %v3800
        %v8644 = vpop.f32.mrb[0].mxu0
        %v8645 = vadd.f32 0.0, %v8644
        %v8646 = vpop.f32.mrb[0].mxu0
        %8647 = vmatprep.mubr.f32.mxu0 0.0
        %8648 = vmatmul.mubr.f32.gmra.mrb[0].mxu0 %v3803
        %v8649 = vpop.f32.mrb[0].mxu0
        %v8650 = vadd.f32 0.0, %v8649
        %v8651 = vpop.f32.mrb[0].mxu0
        %8652 = vmatprep.mubr.f32.mxu0 0.0
        %8653 = vmatmul.mubr.f32.gmra.mrb[0].mxu0 %v3806
        %v8654 = vpop.f32.mrb[0].mxu0
        %v8655 = vadd.f32 0.0, %v8654
        %v8656 = vpop.f32.mrb[0].mxu0
        %8657 = vmatprep.mubr.f32.mxu0 0.0
        %8658 = vmatmul.mubr.f32.gmra.mrb[0].mxu0 %v3809
        %v8659 = vpop.f32.mrb[0].mxu0
        %v8660 = vadd.f32 0.0, %v8659
        %v8661 = vpop.f32.mrb[0].mxu0
        %8662 = vmatprep.mubr.f32.mxu0 0.0
        %8663 = vmatmul.mubr.f32.gmra.mrb[0].mxu0 %v3812
        %v8664 = vpop.f32.mrb[0].mxu0
        %v8665 = vadd.f32 0.0, %v8664
        %v8666 = vpop.f32.mrb[0].mxu0
        %8667 = vmatprep.mubr.f32.mxu0 0.0
        %8668 = vmatmul.mubr.f32.gmra.mrb[0].mxu0 %v3815
        %v8669 = vpop.f32.mrb[0].mxu0
        %v8670 = vadd.f32 0.0, %v8669
        %v8671 = vpop.f32.mrb[0].mxu0
        %8672 = vmatprep.mubr.f32.mxu0 0.0
        %8673 = vmatmul.mubr.f32.gmra.mrb[0].mxu0 %v3818
        %v8674 = vpop.f32.mrb[0].mxu0
        %v8675 = vadd.f32 0.0, %v8674
        %v8676 = vpop.f32.mrb[0].mxu0
        %8677 = vmatprep.mubr.f32.mxu0 0.0
        %8678 = vmatmul.mubr.f32.gmra.mrb[0].mxu0 %v3821
        %v8679 = vpop.f32.mrb[0].mxu0
        %v8680 = vadd.f32 0.0, %v8679
        %v8681 = vpop.f32.mrb[0].mxu0
        %8682 = vmatprep.mubr.f32.mxu0 0.0
        %8683 = vmatmul.mubr.f32.gmra.mrb[0].mxu0 %v3824
        %v8684 = vpop.f32.mrb[0].mxu0
        %v8685 = vadd.f32 0.0, %v8684
        %v8686 = vpop.f32.mrb[0].mxu0
        %8687 = vmatprep.mubr.f32.mxu0 0.0
        %8688 = vmatmul.mubr.f32.gmra.mrb[0].mxu0 %v3827
        %v8689 = vpop.f32.mrb[0].mxu0
        %v8690 = vadd.f32 0.0, %v8689
        %v8691 = vpop.f32.mrb[0].mxu0
        %8692 = vmatprep.mubr.f32.mxu0 0.0
        %8693 = vmatmul.mubr.f32.gmra.mrb[0].mxu0 %v3830
        %v8694 = vpop.f32.mrb[0].mxu0
        %v8695 = vadd.f32 0.0, %v8694
        %v8696 = vpop.f32.mrb[0].mxu0
        %8697 = vmatprep.mubr.f32.mxu0 0.0
        %8698 = vmatmul.mubr.f32.gmra.mrb[0].mxu0 %v3833
        %v8699 = vpop.f32.mrb[0].mxu0
        %v8700 = vadd.f32 0.0, %v8699
        %v8701 = vpop.f32.mrb[0].mxu0
        %8702 = vmatprep.mubr.f32.mxu0 0.0
        %8703 = vmatmul.mubr.f32.gmra.mrb[0].mxu0 %v3836
        %v8704 = vpop.f32.mrb[0].mxu0
        %v8705 = vadd.f32 0.0, %v8704
        %v8706 = vpop.f32.mrb[0].mxu0
        %8707 = vdwg.mxu0
        %8708 = vmatprep.subr.mxu0 0.0
        %8709 = vmatpush1.msra.mxu0 %v5784
        %8710 = vmatprep.subr.mxu0 0.0
        %8711 = vmatpush1.msra.mxu0 %v5785
        %8712 = vmatprep.subr.mxu0 0.0
        %8713 = vmatpush1.msra.mxu0 %v5786
        %8714 = vmatprep.subr.mxu0 0.0
        %8715 = vmatpush1.msra.mxu0 %v5787
        %8716 = vmatprep.subr.mxu0 0.0
        %8717 = vmatpush1.msra.mxu0 %v5788
        %8718 = vmatprep.subr.mxu0 0.0
        %8719 = vmatpush1.msra.mxu0 %v5789
        %8720 = vmatprep.subr.mxu0 0.0
        %8721 = vmatpush1.msra.mxu0 %v5790
        %8722 = vmatprep.subr.mxu0 0.0
        %8723 = vmatpush1.msra.mxu0 %v5791
        %8724 = vmatprep.subr.mxu0 0.0
        %8725 = vmatpush1.msra.mxu0 %v5792
        %8726 = vmatprep.subr.mxu0 0.0
        %8727 = vmatpush1.msra.mxu0 %v5793
        %8728 = vmatprep.subr.mxu0 0.0
        %8729 = vmatpush1.msra.mxu0 %v5794
        %8730 = vmatprep.subr.mxu0 0.0
        %8731 = vmatpush1.msra.mxu0 %v5795
        %8732 = vmatprep.subr.mxu0 0.0
        %8733 = vmatpush1.msra.mxu0 %v5796
        %8734 = vmatprep.subr.mxu0 0.0
        %8735 = vmatpush1.msra.mxu0 %v5797
        %8736 = vmatprep.subr.mxu0 0.0
        %8737 = vmatpush1.msra.mxu0 %v5798
        %8738 = vmatprep.subr.mxu0 0.0
        %8739 = vmatpush1.msra.mxu0 %v5799
        %8740 = vmatprep.subr.mxu0 0.0
        %8741 = vmatpush1.msra.mxu0 0.0
        %8742 = vmatprep.subr.mxu0 0.0
        %8743 = vmatpush1.msra.mxu0 0.0
        %8744 = vmatprep.subr.mxu0 0.0
        %8745 = vmatpush1.msra.mxu0 0.0
        %8746 = vmatprep.subr.mxu0 0.0
        %8747 = vmatpush1.msra.mxu0 0.0
        %8748 = vmatprep.subr.mxu0 0.0
        %8749 = vmatpush1.msra.mxu0 0.0
        %8750 = vmatprep.subr.mxu0 0.0
        %8751 = vmatpush1.msra.mxu0 0.0
        %8752 = vmatprep.subr.mxu0 0.0
        %8753 = vmatpush1.msra.mxu0 0.0
        %8754 = vmatprep.subr.mxu0 0.0
        %8755 = vmatpush1.msra.mxu0 0.0
        %8756 = vmatprep.subr.mxu0 0.0
        %8757 = vmatpush1.msra.mxu0 0.0
        %8758 = vmatprep.subr.mxu0 0.0
        %8759 = vmatpush1.msra.mxu0 0.0
        %8760 = vmatprep.subr.mxu0 0.0
        %8761 = vmatpush1.msra.mxu0 0.0
        %8762 = vmatprep.subr.mxu0 0.0
        %8763 = vmatpush1.msra.mxu0 0.0
        %8764 = vmatprep.subr.mxu0 0.0
        %8765 = vmatpush1.msra.mxu0 0.0
        %8766 = vmatprep.subr.mxu0 0.0
        %8767 = vmatpush1.msra.mxu0 0.0
        %8768 = vmatprep.subr.mxu0 0.0
        %8769 = vmatpush1.msra.mxu0 0.0
        %8770 = vmatprep.subr.mxu0 0.0
        %8771 = vmatpush1.msra.mxu0 0.0
        %8772 = vmatprep.mubr.f32.mxu0 0.0
        %8773 = vmatmul.mubr.f32.gmra.mrb[0].mxu0 %v7535
        %v8774 = vpop.f32.mrb[0].mxu0
        %v8775 = vadd.f32 0.0, %v8774
        %v8776 = vpop.f32.mrb[0].mxu0
        %8777 = vmatprep.mubr.f32.mxu0 0.0
        %8778 = vmatmul.mubr.f32.gmra.mrb[0].mxu0 %v7540
        %v8779 = vpop.f32.mrb[0].mxu0
        %v8780 = vadd.f32 0.0, %v8779
        %v8781 = vpop.f32.mrb[0].mxu0
        %8782 = vmatprep.mubr.f32.mxu0 0.0
        %8783 = vmatmul.mubr.f32.gmra.mrb[0].mxu0 %v7545
        %v8784 = vpop.f32.mrb[0].mxu0
        %v8785 = vadd.f32 0.0, %v8784
        %v8786 = vpop.f32.mrb[0].mxu0
        %8787 = vmatprep.mubr.f32.mxu0 0.0
        %8788 = vmatmul.mubr.f32.gmra.mrb[0].mxu0 %v7550
        %v8789 = vpop.f32.mrb[0].mxu0
        %v8790 = vadd.f32 0.0, %v8789
        %v8791 = vpop.f32.mrb[0].mxu0
        %8792 = vmatprep.mubr.f32.mxu0 0.0
        %8793 = vmatmul.mubr.f32.gmra.mrb[0].mxu0 %v7555
        %v8794 = vpop.f32.mrb[0].mxu0
        %v8795 = vadd.f32 0.0, %v8794
        %v8796 = vpop.f32.mrb[0].mxu0
        %8797 = vmatprep.mubr.f32.mxu0 0.0
        %8798 = vmatmul.mubr.f32.gmra.mrb[0].mxu0 %v7560
        %v8799 = vpop.f32.mrb[0].mxu0
        %v8800 = vadd.f32 0.0, %v8799
        %v8801 = vpop.f32.mrb[0].mxu0
        %8802 = vmatprep.mubr.f32.mxu0 0.0
        %8803 = vmatmul.mubr.f32.gmra.mrb[0].mxu0 %v7565
        %v8804 = vpop.f32.mrb[0].mxu0
        %v8805 = vadd.f32 0.0, %v8804
        %v8806 = vpop.f32.mrb[0].mxu0
        %8807 = vmatprep.mubr.f32.mxu0 0.0
        %8808 = vmatmul.mubr.f32.gmra.mrb[0].mxu0 %v7570
        %v8809 = vpop.f32.mrb[0].mxu0
        %v8810 = vadd.f32 0.0, %v8809
        %v8811 = vpop.f32.mrb[0].mxu0
        %8812 = vmatprep.mubr.f32.mxu0 0.0
        %8813 = vmatmul.mubr.f32.gmra.mrb[0].mxu0 %v7575
        %v8814 = vpop.f32.mrb[0].mxu0
        %v8815 = vadd.f32 0.0, %v8814
        %v8816 = vpop.f32.mrb[0].mxu0
        %8817 = vmatprep.mubr.f32.mxu0 0.0
        %8818 = vmatmul.mubr.f32.gmra.mrb[0].mxu0 %v7580
        %v8819 = vpop.f32.mrb[0].mxu0
        %v8820 = vadd.f32 0.0, %v8819
        %v8821 = vpop.f32.mrb[0].mxu0
        %8822 = vmatprep.mubr.f32.mxu0 0.0
        %8823 = vmatmul.mubr.f32.gmra.mrb[0].mxu0 %v7585
        %v8824 = vpop.f32.mrb[0].mxu0
        %v8825 = vadd.f32 0.0, %v8824
        %v8826 = vpop.f32.mrb[0].mxu0
        %8827 = vmatprep.mubr.f32.mxu0 0.0
        %8828 = vmatmul.mubr.f32.gmra.mrb[0].mxu0 %v7590
        %v8829 = vpop.f32.mrb[0].mxu0
        %v8830 = vadd.f32 0.0, %v8829
        %v8831 = vpop.f32.mrb[0].mxu0
        %8832 = vmatprep.mubr.f32.mxu0 0.0
        %8833 = vmatmul.mubr.f32.gmra.mrb[0].mxu0 %v7595
        %v8834 = vpop.f32.mrb[0].mxu0
        %v8835 = vadd.f32 0.0, %v8834
        %v8836 = vpop.f32.mrb[0].mxu0
        %8837 = vmatprep.mubr.f32.mxu0 0.0
        %8838 = vmatmul.mubr.f32.gmra.mrb[0].mxu0 %v7600
        %v8839 = vpop.f32.mrb[0].mxu0
        %v8840 = vadd.f32 0.0, %v8839
        %v8841 = vpop.f32.mrb[0].mxu0
        %8842 = vmatprep.mubr.f32.mxu0 0.0
        %8843 = vmatmul.mubr.f32.gmra.mrb[0].mxu0 %v7605
        %v8844 = vpop.f32.mrb[0].mxu0
        %v8845 = vadd.f32 0.0, %v8844
        %v8846 = vpop.f32.mrb[0].mxu0
        %8847 = vmatprep.mubr.f32.mxu0 0.0
        %8848 = vmatmul.mubr.f32.gmra.mrb[0].mxu0 %v7610
        %v8849 = vpop.f32.mrb[0].mxu0
        %v8850 = vadd.f32 0.0, %v8849
        %v8851 = vpop.f32.mrb[0].mxu0
        %8852 = vdwg.mxu0
        %v8853 = vmul.f32 %v8630, %v8775
        %v8854 = vmul.f32 %v8635, %v8780
        %v8855 = vmul.f32 %v8640, %v8785
        %v8856 = vmul.f32 %v8645, %v8790
        %v8857 = vmul.f32 %v8650, %v8795
        %v8858 = vmul.f32 %v8655, %v8800
        %v8859 = vmul.f32 %v8660, %v8805
        %v8860 = vmul.f32 %v8665, %v8810
        %v8861 = vmul.f32 %v8670, %v8815
        %v8862 = vmul.f32 %v8675, %v8820
        %v8863 = vmul.f32 %v8680, %v8825
        %v8864 = vmul.f32 %v8685, %v8830
        %v8865 = vmul.f32 %v8690, %v8835
        %v8866 = vmul.f32 %v8695, %v8840
        %v8867 = vmul.f32 %v8700, %v8845
        %v8868 = vmul.f32 %v8705, %v8850
        %v8869 = vadd.f32 %v8547, %v8853
        %v8870 = vadd.f32 %v8548, %v8854
        %v8871 = vadd.f32 %v8549, %v8855
        %v8872 = vadd.f32 %v8550, %v8856
        %v8873 = vadd.f32 %v8551, %v8857
        %v8874 = vadd.f32 %v8552, %v8858
        %v8875 = vadd.f32 %v8553, %v8859
        %v8876 = vadd.f32 %v8554, %v8860
        %v8877 = vadd.f32 %v8555, %v8861
        %v8878 = vadd.f32 %v8556, %v8862
        %v8879 = vadd.f32 %v8557, %v8863
        %v8880 = vadd.f32 %v8558, %v8864
        %v8881 = vadd.f32 %v8559, %v8865
        %v8882 = vadd.f32 %v8560, %v8866
        %v8883 = vadd.f32 %v8561, %v8867
        %v8884 = vadd.f32 %v8562, %v8868
        %v8885 = vmax.f32 %v8869, 0.0
        %v8886 = vmax.f32 %v8870, 0.0
        %v8887 = vmax.f32 %v8871, 0.0
        %v8888 = vmax.f32 %v8872, 0.0
        %v8889 = vmax.f32 %v8873, 0.0
        %v8890 = vmax.f32 %v8874, 0.0
        %v8891 = vmax.f32 %v8875, 0.0
        %v8892 = vmax.f32 %v8876, 0.0
        %v8893 = vmax.f32 %v8877, 0.0
        %v8894 = vmax.f32 %v8878, 0.0
        %v8895 = vmax.f32 %v8879, 0.0
        %v8896 = vmax.f32 %v8880, 0.0
        %v8897 = vmax.f32 %v8881, 0.0
        %v8898 = vmax.f32 %v8882, 0.0
        %v8899 = vmax.f32 %v8883, 0.0
        %v8900 = vmax.f32 %v8884, 0.0
        %v8901 = vld [vmem:[#allocation2 + $0x318] sm:$0xff]
        %v8902 = vld [vmem:[#allocation2 + $0x320] sm:$0xff]
        %v8903 = vld [vmem:[#allocation2 + $0x328] sm:$0xff]
        %v8904 = vld [vmem:[#allocation2 + $0x330] sm:$0xff]
        %v8905 = vld [vmem:[#allocation2 + $0x338] sm:$0xff]
        %v8906 = vld [vmem:[#allocation2 + $0x340] sm:$0xff]
        %v8907 = vld [vmem:[#allocation2 + $0x348] sm:$0xff]
        %v8908 = vld [vmem:[#allocation2 + $0x350] sm:$0xff]
        %v8909 = vld [vmem:[#allocation2 + $0x358] sm:$0xff]
        %v8910 = vld [vmem:[#allocation2 + $0x360] sm:$0xff]
        %v8911 = vld [vmem:[#allocation2 + $0x368] sm:$0xff]
        %v8912 = vld [vmem:[#allocation2 + $0x370] sm:$0xff]
        %v8913 = vld [vmem:[#allocation2 + $0x378] sm:$0xff]
        %v8914 = vld [vmem:[#allocation2 + $0x380] sm:$0xff]
        %v8915 = vld [vmem:[#allocation2 + $0x388] sm:$0xff]
        %v8916 = vld [vmem:[#allocation2 + $0x390] sm:$0xff]
        %v8917 = vld [vmem:[#allocation2 + $0x398] sm:$0x1]
        %v8918 = vlaneseq
        %v8919 = vshrl.u32 %v8918, 7
        %v8920 = vsub.s32 0, %v8919
        %v8921 = vrot.slane %v8917, %v8920
        %8922 = vmatprep.subr.mxu0 0.0
        %8923 = vmatpush1.msra.mxu0 %v8901
        %8924 = vmatprep.subr.mxu0 0.0
        %8925 = vmatpush1.msra.mxu0 %v8902
        %8926 = vmatprep.subr.mxu0 0.0
        %8927 = vmatpush1.msra.mxu0 %v8903
        %8928 = vmatprep.subr.mxu0 0.0
        %8929 = vmatpush1.msra.mxu0 %v8904
        %8930 = vmatprep.subr.mxu0 0.0
        %8931 = vmatpush1.msra.mxu0 %v8905
        %8932 = vmatprep.subr.mxu0 0.0
        %8933 = vmatpush1.msra.mxu0 %v8906
        %8934 = vmatprep.subr.mxu0 0.0
        %8935 = vmatpush1.msra.mxu0 %v8907
        %8936 = vmatprep.subr.mxu0 0.0
        %8937 = vmatpush1.msra.mxu0 %v8908
        %8938 = vmatprep.subr.mxu0 0.0
        %8939 = vmatpush1.msra.mxu0 %v8909
        %8940 = vmatprep.subr.mxu0 0.0
        %8941 = vmatpush1.msra.mxu0 %v8910
        %8942 = vmatprep.subr.mxu0 0.0
        %8943 = vmatpush1.msra.mxu0 %v8911
        %8944 = vmatprep.subr.mxu0 0.0
        %8945 = vmatpush1.msra.mxu0 %v8912
        %8946 = vmatprep.subr.mxu0 0.0
        %8947 = vmatpush1.msra.mxu0 %v8913
        %8948 = vmatprep.subr.mxu0 0.0
        %8949 = vmatpush1.msra.mxu0 %v8914
        %8950 = vmatprep.subr.mxu0 0.0
        %8951 = vmatpush1.msra.mxu0 %v8915
        %8952 = vmatprep.subr.mxu0 0.0
        %8953 = vmatpush1.msra.mxu0 %v8916
        %8954 = vmatprep.subr.mxu0 0.0
        %8955 = vmatpush1.msra.mxu0 0.0
        %8956 = vmatprep.subr.mxu0 0.0
        %8957 = vmatpush1.msra.mxu0 0.0
        %8958 = vmatprep.subr.mxu0 0.0
        %8959 = vmatpush1.msra.mxu0 0.0
        %8960 = vmatprep.subr.mxu0 0.0
        %8961 = vmatpush1.msra.mxu0 0.0
        %8962 = vmatprep.subr.mxu0 0.0
        %8963 = vmatpush1.msra.mxu0 0.0
        %8964 = vmatprep.subr.mxu0 0.0
        %8965 = vmatpush1.msra.mxu0 0.0
        %8966 = vmatprep.subr.mxu0 0.0
        %8967 = vmatpush1.msra.mxu0 0.0
        %8968 = vmatprep.subr.mxu0 0.0
        %8969 = vmatpush1.msra.mxu0 0.0
        %8970 = vmatprep.subr.mxu0 0.0
        %8971 = vmatpush1.msra.mxu0 0.0
        %8972 = vmatprep.subr.mxu0 0.0
        %8973 = vmatpush1.msra.mxu0 0.0
        %8974 = vmatprep.subr.mxu0 0.0
        %8975 = vmatpush1.msra.mxu0 0.0
        %8976 = vmatprep.subr.mxu0 0.0
        %8977 = vmatpush1.msra.mxu0 0.0
        %8978 = vmatprep.subr.mxu0 0.0
        %8979 = vmatpush1.msra.mxu0 0.0
        %8980 = vmatprep.subr.mxu0 0.0
        %8981 = vmatpush1.msra.mxu0 0.0
        %8982 = vmatprep.subr.mxu0 0.0
        %8983 = vmatpush1.msra.mxu0 0.0
        %8984 = vmatprep.subr.mxu0 0.0
        %8985 = vmatpush1.msra.mxu0 0.0
        %8986 = vmatprep.mubr.f32.mxu0 0.0
        %8987 = vmatmul.mubr.f32.gmra.mrb[0].mxu0 %v8885
        %v8988 = vpop.f32.mrb[0].mxu0
        %v8989 = vadd.f32 %v8921, %v8988
        %v8990 = vpop.f32.mrb[0].mxu0
        %8991 = vmatprep.mubr.f32.mxu0 0.0
        %8992 = vmatmul.mubr.f32.gmra.mrb[0].mxu0 %v8886
        %v8993 = vpop.f32.mrb[0].mxu0
        %v8994 = vadd.f32 %v8921, %v8993
        %v8995 = vpop.f32.mrb[0].mxu0
        %8996 = vmatprep.mubr.f32.mxu0 0.0
        %8997 = vmatmul.mubr.f32.gmra.mrb[0].mxu0 %v8887
        %v8998 = vpop.f32.mrb[0].mxu0
        %v8999 = vadd.f32 %v8921, %v8998
        %v9000 = vpop.f32.mrb[0].mxu0
        %9001 = vmatprep.mubr.f32.mxu0 0.0
        %9002 = vmatmul.mubr.f32.gmra.mrb[0].mxu0 %v8888
        %v9003 = vpop.f32.mrb[0].mxu0
        %v9004 = vadd.f32 %v8921, %v9003
        %v9005 = vpop.f32.mrb[0].mxu0
        %9006 = vmatprep.mubr.f32.mxu0 0.0
        %9007 = vmatmul.mubr.f32.gmra.mrb[0].mxu0 %v8889
        %v9008 = vpop.f32.mrb[0].mxu0
        %v9009 = vadd.f32 %v8921, %v9008
        %v9010 = vpop.f32.mrb[0].mxu0
        %9011 = vmatprep.mubr.f32.mxu0 0.0
        %9012 = vmatmul.mubr.f32.gmra.mrb[0].mxu0 %v8890
        %v9013 = vpop.f32.mrb[0].mxu0
        %v9014 = vadd.f32 %v8921, %v9013
        %v9015 = vpop.f32.mrb[0].mxu0
        %9016 = vmatprep.mubr.f32.mxu0 0.0
        %9017 = vmatmul.mubr.f32.gmra.mrb[0].mxu0 %v8891
        %v9018 = vpop.f32.mrb[0].mxu0
        %v9019 = vadd.f32 %v8921, %v9018
        %v9020 = vpop.f32.mrb[0].mxu0
        %9021 = vmatprep.mubr.f32.mxu0 0.0
        %9022 = vmatmul.mubr.f32.gmra.mrb[0].mxu0 %v8892
        %v9023 = vpop.f32.mrb[0].mxu0
        %v9024 = vadd.f32 %v8921, %v9023
        %v9025 = vpop.f32.mrb[0].mxu0
        %9026 = vmatprep.mubr.f32.mxu0 0.0
        %9027 = vmatmul.mubr.f32.gmra.mrb[0].mxu0 %v8893
        %v9028 = vpop.f32.mrb[0].mxu0
        %v9029 = vadd.f32 %v8921, %v9028
        %v9030 = vpop.f32.mrb[0].mxu0
        %9031 = vmatprep.mubr.f32.mxu0 0.0
        %9032 = vmatmul.mubr.f32.gmra.mrb[0].mxu0 %v8894
        %v9033 = vpop.f32.mrb[0].mxu0
        %v9034 = vadd.f32 %v8921, %v9033
        %v9035 = vpop.f32.mrb[0].mxu0
        %9036 = vmatprep.mubr.f32.mxu0 0.0
        %9037 = vmatmul.mubr.f32.gmra.mrb[0].mxu0 %v8895
        %v9038 = vpop.f32.mrb[0].mxu0
        %v9039 = vadd.f32 %v8921, %v9038
        %v9040 = vpop.f32.mrb[0].mxu0
        %9041 = vmatprep.mubr.f32.mxu0 0.0
        %9042 = vmatmul.mubr.f32.gmra.mrb[0].mxu0 %v8896
        %v9043 = vpop.f32.mrb[0].mxu0
        %v9044 = vadd.f32 %v8921, %v9043
        %v9045 = vpop.f32.mrb[0].mxu0
        %9046 = vmatprep.mubr.f32.mxu0 0.0
        %9047 = vmatmul.mubr.f32.gmra.mrb[0].mxu0 %v8897
        %v9048 = vpop.f32.mrb[0].mxu0
        %v9049 = vadd.f32 %v8921, %v9048
        %v9050 = vpop.f32.mrb[0].mxu0
        %9051 = vmatprep.mubr.f32.mxu0 0.0
        %9052 = vmatmul.mubr.f32.gmra.mrb[0].mxu0 %v8898
        %v9053 = vpop.f32.mrb[0].mxu0
        %v9054 = vadd.f32 %v8921, %v9053
        %v9055 = vpop.f32.mrb[0].mxu0
        %9056 = vmatprep.mubr.f32.mxu0 0.0
        %9057 = vmatmul.mubr.f32.gmra.mrb[0].mxu0 %v8899
        %v9058 = vpop.f32.mrb[0].mxu0
        %v9059 = vadd.f32 %v8921, %v9058
        %v9060 = vpop.f32.mrb[0].mxu0
        %9061 = vmatprep.mubr.f32.mxu0 0.0
        %9062 = vmatmul.mubr.f32.gmra.mrb[0].mxu0 %v8900
        %v9063 = vpop.f32.mrb[0].mxu0
        %v9064 = vadd.f32 %v8921, %v9063
        %v9065 = vpop.f32.mrb[0].mxu0
        %9066 = vdwg.mxu0
        %v9067 = vld [vmem:[#allocation2 + $0x5f0] sm:$0xf]
        %v9069 = vsel %vm4254, %v4415, 0
        %v9072 = vsel %vm4254, %v4416, 0
        %v9075 = vsel %vm4254, %v4417, 0
        %v9078 = vsel %vm4254, %v4418, 0
        %v9081 = vsel %vm4254, %v4419, 0
        %v9084 = vsel %vm4254, %v4420, 0
        %v9087 = vsel %vm4254, %v4421, 0
        %v9090 = vsel %vm4254, %v4422, 0
        %v9093 = vsel %vm4254, %v4423, 0
        %v9096 = vsel %vm4254, %v4424, 0
        %v9099 = vsel %vm4254, %v4425, 0
        %v9102 = vsel %vm4254, %v4426, 0
        %v9105 = vsel %vm4254, %v4427, 0
        %v9108 = vsel %vm4254, %v4428, 0
        %v9111 = vsel %vm4254, %v4429, 0
        %v9114 = vsel %vm4254, %v4430, 0
        %vm9116 = vcmask 1043456
        %v9118 = vsel %vm9116, %v9067, 0
        %9120 = vmatprep.subr.mxu0 0.0
        %9121 = vmatpush1.msra.mxu0 %v9118
        %9122 = vmatprep.subr.mxu0 0.0
        %9123 = vmatpush1.msra.mxu0 0.0
        %9124 = vmatprep.subr.mxu0 0.0
        %9125 = vmatpush1.msra.mxu0 0.0
        %9126 = vmatprep.subr.mxu0 0.0
        %9127 = vmatpush1.msra.mxu0 0.0
        %9128 = vmatprep.subr.mxu0 0.0
        %9129 = vmatpush1.msra.mxu0 0.0
        %9130 = vmatprep.subr.mxu0 0.0
        %9131 = vmatpush1.msra.mxu0 0.0
        %9132 = vmatprep.subr.mxu0 0.0
        %9133 = vmatpush1.msra.mxu0 0.0
        %9134 = vmatprep.subr.mxu0 0.0
        %9135 = vmatpush1.msra.mxu0 0.0
        %9136 = vmatprep.subr.mxu0 0.0
        %9137 = vmatpush1.msra.mxu0 0.0
        %9138 = vmatprep.subr.mxu0 0.0
        %9139 = vmatpush1.msra.mxu0 0.0
        %9140 = vmatprep.subr.mxu0 0.0
        %9141 = vmatpush1.msra.mxu0 0.0
        %9142 = vmatprep.subr.mxu0 0.0
        %9143 = vmatpush1.msra.mxu0 0.0
        %9144 = vmatprep.subr.mxu0 0.0
        %9145 = vmatpush1.msra.mxu0 0.0
        %9146 = vmatprep.subr.mxu0 0.0
        %9147 = vmatpush1.msra.mxu0 0.0
        %9148 = vmatprep.subr.mxu0 0.0
        %9149 = vmatpush1.msra.mxu0 0.0
        %9150 = vmatprep.subr.mxu0 0.0
        %9151 = vmatpush1.msra.mxu0 0.0
        %9152 = vmatprep.subr.mxu0 0.0
        %9153 = vmatpush1.msra.mxu0 0.0
        %9154 = vmatprep.subr.mxu0 0.0
        %9155 = vmatpush1.msra.mxu0 0.0
        %9156 = vmatprep.subr.mxu0 0.0
        %9157 = vmatpush1.msra.mxu0 0.0
        %9158 = vmatprep.subr.mxu0 0.0
        %9159 = vmatpush1.msra.mxu0 0.0
        %9160 = vmatprep.subr.mxu0 0.0
        %9161 = vmatpush1.msra.mxu0 0.0
        %9162 = vmatprep.subr.mxu0 0.0
        %9163 = vmatpush1.msra.mxu0 0.0
        %9164 = vmatprep.subr.mxu0 0.0
        %9165 = vmatpush1.msra.mxu0 0.0
        %9166 = vmatprep.subr.mxu0 0.0
        %9167 = vmatpush1.msra.mxu0 0.0
        %9168 = vmatprep.subr.mxu0 0.0
        %9169 = vmatpush1.msra.mxu0 0.0
        %9170 = vmatprep.subr.mxu0 0.0
        %9171 = vmatpush1.msra.mxu0 0.0
        %9172 = vmatprep.subr.mxu0 0.0
        %9173 = vmatpush1.msra.mxu0 0.0
        %9174 = vmatprep.subr.mxu0 0.0
        %9175 = vmatpush1.msra.mxu0 0.0
        %9176 = vmatprep.subr.mxu0 0.0
        %9177 = vmatpush1.msra.mxu0 0.0
        %9178 = vmatprep.subr.mxu0 0.0
        %9179 = vmatpush1.msra.mxu0 0.0
        %9180 = vmatprep.subr.mxu0 0.0
        %9181 = vmatpush1.msra.mxu0 0.0
        %9182 = vmatprep.subr.mxu0 0.0
        %9183 = vmatpush1.msra.mxu0 0.0
        %9184 = vmatprep.mubr.f32.mxu0 0.0
        %9185 = vmatmul.mubr.f32.gmra.mrb[0].mxu0 %v9069
        %v9186 = vpop.f32.mrb[0].mxu0
        %v9187 = vadd.f32 0.0, %v9186
        %v9188 = vpop.f32.mrb[0].mxu0
        %9189 = vmatprep.mubr.f32.mxu0 0.0
        %9190 = vmatmul.mubr.f32.gmra.mrb[0].mxu0 %v9072
        %v9191 = vpop.f32.mrb[0].mxu0
        %v9192 = vadd.f32 0.0, %v9191
        %v9193 = vpop.f32.mrb[0].mxu0
        %9194 = vmatprep.mubr.f32.mxu0 0.0
        %9195 = vmatmul.mubr.f32.gmra.mrb[0].mxu0 %v9075
        %v9196 = vpop.f32.mrb[0].mxu0
        %v9197 = vadd.f32 0.0, %v9196
        %v9198 = vpop.f32.mrb[0].mxu0
        %9199 = vmatprep.mubr.f32.mxu0 0.0
        %9200 = vmatmul.mubr.f32.gmra.mrb[0].mxu0 %v9078
        %v9201 = vpop.f32.mrb[0].mxu0
        %v9202 = vadd.f32 0.0, %v9201
        %v9203 = vpop.f32.mrb[0].mxu0
        %9204 = vmatprep.mubr.f32.mxu0 0.0
        %9205 = vmatmul.mubr.f32.gmra.mrb[0].mxu0 %v9081
        %v9206 = vpop.f32.mrb[0].mxu0
        %v9207 = vadd.f32 0.0, %v9206
        %v9208 = vpop.f32.mrb[0].mxu0
        %9209 = vmatprep.mubr.f32.mxu0 0.0
        %9210 = vmatmul.mubr.f32.gmra.mrb[0].mxu0 %v9084
        %v9211 = vpop.f32.mrb[0].mxu0
        %v9212 = vadd.f32 0.0, %v9211
        %v9213 = vpop.f32.mrb[0].mxu0
        %9214 = vmatprep.mubr.f32.mxu0 0.0
        %9215 = vmatmul.mubr.f32.gmra.mrb[0].mxu0 %v9087
        %v9216 = vpop.f32.mrb[0].mxu0
        %v9217 = vadd.f32 0.0, %v9216
        %v9218 = vpop.f32.mrb[0].mxu0
        %9219 = vmatprep.mubr.f32.mxu0 0.0
        %9220 = vmatmul.mubr.f32.gmra.mrb[0].mxu0 %v9090
        %v9221 = vpop.f32.mrb[0].mxu0
        %v9222 = vadd.f32 0.0, %v9221
        %v9223 = vpop.f32.mrb[0].mxu0
        %9224 = vmatprep.mubr.f32.mxu0 0.0
        %9225 = vmatmul.mubr.f32.gmra.mrb[0].mxu0 %v9093
        %v9226 = vpop.f32.mrb[0].mxu0
        %v9227 = vadd.f32 0.0, %v9226
        %v9228 = vpop.f32.mrb[0].mxu0
        %9229 = vmatprep.mubr.f32.mxu0 0.0
        %9230 = vmatmul.mubr.f32.gmra.mrb[0].mxu0 %v9096
        %v9231 = vpop.f32.mrb[0].mxu0
        %v9232 = vadd.f32 0.0, %v9231
        %v9233 = vpop.f32.mrb[0].mxu0
        %9234 = vmatprep.mubr.f32.mxu0 0.0
        %9235 = vmatmul.mubr.f32.gmra.mrb[0].mxu0 %v9099
        %v9236 = vpop.f32.mrb[0].mxu0
        %v9237 = vadd.f32 0.0, %v9236
        %v9238 = vpop.f32.mrb[0].mxu0
        %9239 = vmatprep.mubr.f32.mxu0 0.0
        %9240 = vmatmul.mubr.f32.gmra.mrb[0].mxu0 %v9102
        %v9241 = vpop.f32.mrb[0].mxu0
        %v9242 = vadd.f32 0.0, %v9241
        %v9243 = vpop.f32.mrb[0].mxu0
        %9244 = vmatprep.mubr.f32.mxu0 0.0
        %9245 = vmatmul.mubr.f32.gmra.mrb[0].mxu0 %v9105
        %v9246 = vpop.f32.mrb[0].mxu0
        %v9247 = vadd.f32 0.0, %v9246
        %v9248 = vpop.f32.mrb[0].mxu0
        %9249 = vmatprep.mubr.f32.mxu0 0.0
        %9250 = vmatmul.mubr.f32.gmra.mrb[0].mxu0 %v9108
        %v9251 = vpop.f32.mrb[0].mxu0
        %v9252 = vadd.f32 0.0, %v9251
        %v9253 = vpop.f32.mrb[0].mxu0
        %9254 = vmatprep.mubr.f32.mxu0 0.0
        %9255 = vmatmul.mubr.f32.gmra.mrb[0].mxu0 %v9111
        %v9256 = vpop.f32.mrb[0].mxu0
        %v9257 = vadd.f32 0.0, %v9256
        %v9258 = vpop.f32.mrb[0].mxu0
        %9259 = vmatprep.mubr.f32.mxu0 0.0
        %9260 = vmatmul.mubr.f32.gmra.mrb[0].mxu0 %v9114
        %v9261 = vpop.f32.mrb[0].mxu0
        %v9262 = vadd.f32 0.0, %v9261
        %v9263 = vpop.f32.mrb[0].mxu0
        %9264 = vdwg.mxu0
        %v9265 = vmul.f32 %v9187, %v8989
        %v9266 = vmul.f32 %v9192, %v8994
        %v9267 = vmul.f32 %v9197, %v8999
        %v9268 = vmul.f32 %v9202, %v9004
        %v9269 = vmul.f32 %v9207, %v9009
        %v9270 = vmul.f32 %v9212, %v9014
        %v9271 = vmul.f32 %v9217, %v9019
        %v9272 = vmul.f32 %v9222, %v9024
        %v9273 = vmul.f32 %v9227, %v9029
        %v9274 = vmul.f32 %v9232, %v9034
        %v9275 = vmul.f32 %v9237, %v9039
        %v9276 = vmul.f32 %v9242, %v9044
        %v9277 = vmul.f32 %v9247, %v9049
        %v9278 = vmul.f32 %v9252, %v9054
        %v9279 = vmul.f32 %v9257, %v9059
        %v9280 = vmul.f32 %v9262, %v9064
        %v9281 = vld [vmem:[#allocation2 + $0x5f8] sm:$0xff]
        %v9282 = vld [vmem:[#allocation2 + $0x600] sm:$0xff]
        %v9283 = vld [vmem:[#allocation2 + $0x608] sm:$0xff]
        %v9284 = vld [vmem:[#allocation2 + $0x610] sm:$0xff]
        %v9285 = vld [vmem:[#allocation2 + $0x618] sm:$0xff]
        %v9286 = vld [vmem:[#allocation2 + $0x620] sm:$0xff]
        %v9287 = vld [vmem:[#allocation2 + $0x628] sm:$0xff]
        %v9288 = vld [vmem:[#allocation2 + $0x630] sm:$0xff]
        %v9289 = vld [vmem:[#allocation2 + $0x638] sm:$0xff]
        %v9290 = vld [vmem:[#allocation2 + $0x640] sm:$0xff]
        %v9291 = vld [vmem:[#allocation2 + $0x648] sm:$0xff]
        %v9292 = vld [vmem:[#allocation2 + $0x650] sm:$0xff]
        %v9293 = vld [vmem:[#allocation2 + $0x658] sm:$0xff]
        %v9294 = vld [vmem:[#allocation2 + $0x660] sm:$0xff]
        %v9295 = vld [vmem:[#allocation2 + $0x668] sm:$0xff]
        %v9296 = vld [vmem:[#allocation2 + $0x670] sm:$0xff]
        %9297 = vmatprep.subr.mxu0 0.0
        %9298 = vmatpush1.msra.mxu0 %v9281
        %9299 = vmatprep.subr.mxu0 0.0
        %9300 = vmatpush1.msra.mxu0 %v9282
        %9301 = vmatprep.subr.mxu0 0.0
        %9302 = vmatpush1.msra.mxu0 %v9283
        %9303 = vmatprep.subr.mxu0 0.0
        %9304 = vmatpush1.msra.mxu0 %v9284
        %9305 = vmatprep.subr.mxu0 0.0
        %9306 = vmatpush1.msra.mxu0 %v9285
        %9307 = vmatprep.subr.mxu0 0.0
        %9308 = vmatpush1.msra.mxu0 %v9286
        %9309 = vmatprep.subr.mxu0 0.0
        %9310 = vmatpush1.msra.mxu0 %v9287
        %9311 = vmatprep.subr.mxu0 0.0
        %9312 = vmatpush1.msra.mxu0 %v9288
        %9313 = vmatprep.subr.mxu0 0.0
        %9314 = vmatpush1.msra.mxu0 %v9289
        %9315 = vmatprep.subr.mxu0 0.0
        %9316 = vmatpush1.msra.mxu0 %v9290
        %9317 = vmatprep.subr.mxu0 0.0
        %9318 = vmatpush1.msra.mxu0 %v9291
        %9319 = vmatprep.subr.mxu0 0.0
        %9320 = vmatpush1.msra.mxu0 %v9292
        %9321 = vmatprep.subr.mxu0 0.0
        %9322 = vmatpush1.msra.mxu0 %v9293
        %9323 = vmatprep.subr.mxu0 0.0
        %9324 = vmatpush1.msra.mxu0 %v9294
        %9325 = vmatprep.subr.mxu0 0.0
        %9326 = vmatpush1.msra.mxu0 %v9295
        %9327 = vmatprep.subr.mxu0 0.0
        %9328 = vmatpush1.msra.mxu0 %v9296
        %9329 = vmatprep.subr.mxu0 0.0
        %9330 = vmatpush1.msra.mxu0 0.0
        %9331 = vmatprep.subr.mxu0 0.0
        %9332 = vmatpush1.msra.mxu0 0.0
        %9333 = vmatprep.subr.mxu0 0.0
        %9334 = vmatpush1.msra.mxu0 0.0
        %9335 = vmatprep.subr.mxu0 0.0
        %9336 = vmatpush1.msra.mxu0 0.0
        %9337 = vmatprep.subr.mxu0 0.0
        %9338 = vmatpush1.msra.mxu0 0.0
        %9339 = vmatprep.subr.mxu0 0.0
        %9340 = vmatpush1.msra.mxu0 0.0
        %9341 = vmatprep.subr.mxu0 0.0
        %9342 = vmatpush1.msra.mxu0 0.0
        %9343 = vmatprep.subr.mxu0 0.0
        %9344 = vmatpush1.msra.mxu0 0.0
        %9345 = vmatprep.subr.mxu0 0.0
        %9346 = vmatpush1.msra.mxu0 0.0
        %9347 = vmatprep.subr.mxu0 0.0
        %9348 = vmatpush1.msra.mxu0 0.0
        %9349 = vmatprep.subr.mxu0 0.0
        %9350 = vmatpush1.msra.mxu0 0.0
        %9351 = vmatprep.subr.mxu0 0.0
        %9352 = vmatpush1.msra.mxu0 0.0
        %9353 = vmatprep.subr.mxu0 0.0
        %9354 = vmatpush1.msra.mxu0 0.0
        %9355 = vmatprep.subr.mxu0 0.0
        %9356 = vmatpush1.msra.mxu0 0.0
        %9357 = vmatprep.subr.mxu0 0.0
        %9358 = vmatpush1.msra.mxu0 0.0
        %9359 = vmatprep.subr.mxu0 0.0
        %9360 = vmatpush1.msra.mxu0 0.0
        %9361 = vmatprep.mubr.f32.mxu0 0.0
        %9362 = vmatmul.mubr.f32.gmra.mrb[0].mxu0 %v9265
        %v9363 = vpop.f32.mrb[0].mxu0
        %v9364 = vadd.f32 0.0, %v9363
        %v9365 = vpop.f32.mrb[0].mxu0
        %9366 = vmatprep.mubr.f32.mxu0 0.0
        %9367 = vmatmul.mubr.f32.gmra.mrb[0].mxu0 %v9266
        %v9368 = vpop.f32.mrb[0].mxu0
        %v9369 = vadd.f32 0.0, %v9368
        %v9370 = vpop.f32.mrb[0].mxu0
        %9371 = vmatprep.mubr.f32.mxu0 0.0
        %9372 = vmatmul.mubr.f32.gmra.mrb[0].mxu0 %v9267
        %v9373 = vpop.f32.mrb[0].mxu0
        %v9374 = vadd.f32 0.0, %v9373
        %v9375 = vpop.f32.mrb[0].mxu0
        %9376 = vmatprep.mubr.f32.mxu0 0.0
        %9377 = vmatmul.mubr.f32.gmra.mrb[0].mxu0 %v9268
        %v9378 = vpop.f32.mrb[0].mxu0
        %v9379 = vadd.f32 0.0, %v9378
        %v9380 = vpop.f32.mrb[0].mxu0
        %9381 = vmatprep.mubr.f32.mxu0 0.0
        %9382 = vmatmul.mubr.f32.gmra.mrb[0].mxu0 %v9269
        %v9383 = vpop.f32.mrb[0].mxu0
        %v9384 = vadd.f32 0.0, %v9383
        %v9385 = vpop.f32.mrb[0].mxu0
        %9386 = vmatprep.mubr.f32.mxu0 0.0
        %9387 = vmatmul.mubr.f32.gmra.mrb[0].mxu0 %v9270
        %v9388 = vpop.f32.mrb[0].mxu0
        %v9389 = vadd.f32 0.0, %v9388
        %v9390 = vpop.f32.mrb[0].mxu0
        %9391 = vmatprep.mubr.f32.mxu0 0.0
        %9392 = vmatmul.mubr.f32.gmra.mrb[0].mxu0 %v9271
        %v9393 = vpop.f32.mrb[0].mxu0
        %v9394 = vadd.f32 0.0, %v9393
        %v9395 = vpop.f32.mrb[0].mxu0
        %9396 = vmatprep.mubr.f32.mxu0 0.0
        %9397 = vmatmul.mubr.f32.gmra.mrb[0].mxu0 %v9272
        %v9398 = vpop.f32.mrb[0].mxu0
        %v9399 = vadd.f32 0.0, %v9398
        %v9400 = vpop.f32.mrb[0].mxu0
        %9401 = vmatprep.mubr.f32.mxu0 0.0
        %9402 = vmatmul.mubr.f32.gmra.mrb[0].mxu0 %v9273
        %v9403 = vpop.f32.mrb[0].mxu0
        %v9404 = vadd.f32 0.0, %v9403
        %v9405 = vpop.f32.mrb[0].mxu0
        %9406 = vmatprep.mubr.f32.mxu0 0.0
        %9407 = vmatmul.mubr.f32.gmra.mrb[0].mxu0 %v9274
        %v9408 = vpop.f32.mrb[0].mxu0
        %v9409 = vadd.f32 0.0, %v9408
        %v9410 = vpop.f32.mrb[0].mxu0
        %9411 = vmatprep.mubr.f32.mxu0 0.0
        %9412 = vmatmul.mubr.f32.gmra.mrb[0].mxu0 %v9275
        %v9413 = vpop.f32.mrb[0].mxu0
        %v9414 = vadd.f32 0.0, %v9413
        %v9415 = vpop.f32.mrb[0].mxu0
        %9416 = vmatprep.mubr.f32.mxu0 0.0
        %9417 = vmatmul.mubr.f32.gmra.mrb[0].mxu0 %v9276
        %v9418 = vpop.f32.mrb[0].mxu0
        %v9419 = vadd.f32 0.0, %v9418
        %v9420 = vpop.f32.mrb[0].mxu0
        %9421 = vmatprep.mubr.f32.mxu0 0.0
        %9422 = vmatmul.mubr.f32.gmra.mrb[0].mxu0 %v9277
        %v9423 = vpop.f32.mrb[0].mxu0
        %v9424 = vadd.f32 0.0, %v9423
        %v9425 = vpop.f32.mrb[0].mxu0
        %9426 = vmatprep.mubr.f32.mxu0 0.0
        %9427 = vmatmul.mubr.f32.gmra.mrb[0].mxu0 %v9278
        %v9428 = vpop.f32.mrb[0].mxu0
        %v9429 = vadd.f32 0.0, %v9428
        %v9430 = vpop.f32.mrb[0].mxu0
        %9431 = vmatprep.mubr.f32.mxu0 0.0
        %9432 = vmatmul.mubr.f32.gmra.mrb[0].mxu0 %v9279
        %v9433 = vpop.f32.mrb[0].mxu0
        %v9434 = vadd.f32 0.0, %v9433
        %v9435 = vpop.f32.mrb[0].mxu0
        %9436 = vmatprep.mubr.f32.mxu0 0.0
        %9437 = vmatmul.mubr.f32.gmra.mrb[0].mxu0 %v9280
        %v9438 = vpop.f32.mrb[0].mxu0
        %v9439 = vadd.f32 0.0, %v9438
        %v9440 = vpop.f32.mrb[0].mxu0
        %9441 = vdwg.mxu0
        %v9442 = vmax.f32 %v9364, 0.0
        %v9443 = vmax.f32 %v9369, 0.0
        %v9444 = vmax.f32 %v9374, 0.0
        %v9445 = vmax.f32 %v9379, 0.0
        %v9446 = vmax.f32 %v9384, 0.0
        %v9447 = vmax.f32 %v9389, 0.0
        %v9448 = vmax.f32 %v9394, 0.0
        %v9449 = vmax.f32 %v9399, 0.0
        %v9450 = vmax.f32 %v9404, 0.0
        %v9451 = vmax.f32 %v9409, 0.0
        %v9452 = vmax.f32 %v9414, 0.0
        %v9453 = vmax.f32 %v9419, 0.0
        %v9454 = vmax.f32 %v9424, 0.0
        %v9455 = vmax.f32 %v9429, 0.0
        %v9456 = vmax.f32 %v9434, 0.0
        %v9457 = vmax.f32 %v9439, 0.0
        %v9458 = vld [vmem:[#allocation2 + $0x1b8] sm:$0xff]
        %v9459 = vld [vmem:[#allocation2 + $0x1c0] sm:$0xff]
        %v9460 = vld [vmem:[#allocation2 + $0x1c8] sm:$0xff]
        %v9461 = vld [vmem:[#allocation2 + $0x1d0] sm:$0xff]
        %v9462 = vld [vmem:[#allocation2 + $0x1d8] sm:$0x1]
        %v9463 = vlaneseq
        %v9464 = vshrl.u32 %v9463, 7
        %v9465 = vsub.s32 0, %v9464
        %v9466 = vrot.slane %v9462, %v9465
        %v9468 = vsel %vm402, %v9442, 0
        %v9471 = vsel %vm402, %v9443, 0
        %v9474 = vsel %vm402, %v9444, 0
        %v9477 = vsel %vm402, %v9445, 0
        %v9480 = vsel %vm402, %v9446, 0
        %v9483 = vsel %vm402, %v9447, 0
        %v9486 = vsel %vm402, %v9448, 0
        %v9489 = vsel %vm402, %v9449, 0
        %v9492 = vsel %vm402, %v9450, 0
        %v9495 = vsel %vm402, %v9451, 0
        %v9498 = vsel %vm402, %v9452, 0
        %v9501 = vsel %vm402, %v9453, 0
        %v9504 = vsel %vm402, %v9454, 0
        %v9507 = vsel %vm402, %v9455, 0
        %v9510 = vsel %vm402, %v9456, 0
        %v9513 = vsel %vm402, %v9457, 0
        %9515 = vmatprep.subr.mxu0 0.0
        %9516 = vmatpush1.msra.mxu0 %v9458
        %9517 = vmatprep.subr.mxu0 0.0
        %9518 = vmatpush1.msra.mxu0 %v9459
        %9519 = vmatprep.subr.mxu0 0.0
        %9520 = vmatpush1.msra.mxu0 %v9460
        %9521 = vmatprep.subr.mxu0 0.0
        %9522 = vmatpush1.msra.mxu0 %v9461
        %9523 = vmatprep.subr.mxu0 0.0
        %9524 = vmatpush1.msra.mxu0 0.0
        %9525 = vmatprep.subr.mxu0 0.0
        %9526 = vmatpush1.msra.mxu0 0.0
        %9527 = vmatprep.subr.mxu0 0.0
        %9528 = vmatpush1.msra.mxu0 0.0
        %9529 = vmatprep.subr.mxu0 0.0
        %9530 = vmatpush1.msra.mxu0 0.0
        %9531 = vmatprep.subr.mxu0 0.0
        %9532 = vmatpush1.msra.mxu0 0.0
        %9533 = vmatprep.subr.mxu0 0.0
        %9534 = vmatpush1.msra.mxu0 0.0
        %9535 = vmatprep.subr.mxu0 0.0
        %9536 = vmatpush1.msra.mxu0 0.0
        %9537 = vmatprep.subr.mxu0 0.0
        %9538 = vmatpush1.msra.mxu0 0.0
        %9539 = vmatprep.subr.mxu0 0.0
        %9540 = vmatpush1.msra.mxu0 0.0
        %9541 = vmatprep.subr.mxu0 0.0
        %9542 = vmatpush1.msra.mxu0 0.0
        %9543 = vmatprep.subr.mxu0 0.0
        %9544 = vmatpush1.msra.mxu0 0.0
        %9545 = vmatprep.subr.mxu0 0.0
        %9546 = vmatpush1.msra.mxu0 0.0
        %9547 = vmatprep.subr.mxu0 0.0
        %9548 = vmatpush1.msra.mxu0 0.0
        %9549 = vmatprep.subr.mxu0 0.0
        %9550 = vmatpush1.msra.mxu0 0.0
        %9551 = vmatprep.subr.mxu0 0.0
        %9552 = vmatpush1.msra.mxu0 0.0
        %9553 = vmatprep.subr.mxu0 0.0
        %9554 = vmatpush1.msra.mxu0 0.0
        %9555 = vmatprep.subr.mxu0 0.0
        %9556 = vmatpush1.msra.mxu0 0.0
        %9557 = vmatprep.subr.mxu0 0.0
        %9558 = vmatpush1.msra.mxu0 0.0
        %9559 = vmatprep.subr.mxu0 0.0
        %9560 = vmatpush1.msra.mxu0 0.0
        %9561 = vmatprep.subr.mxu0 0.0
        %9562 = vmatpush1.msra.mxu0 0.0
        %9563 = vmatprep.subr.mxu0 0.0
        %9564 = vmatpush1.msra.mxu0 0.0
        %9565 = vmatprep.subr.mxu0 0.0
        %9566 = vmatpush1.msra.mxu0 0.0
        %9567 = vmatprep.subr.mxu0 0.0
        %9568 = vmatpush1.msra.mxu0 0.0
        %9569 = vmatprep.subr.mxu0 0.0
        %9570 = vmatpush1.msra.mxu0 0.0
        %9571 = vmatprep.subr.mxu0 0.0
        %9572 = vmatpush1.msra.mxu0 0.0
        %9573 = vmatprep.subr.mxu0 0.0
        %9574 = vmatpush1.msra.mxu0 0.0
        %9575 = vmatprep.subr.mxu0 0.0
        %9576 = vmatpush1.msra.mxu0 0.0
        %9577 = vmatprep.subr.mxu0 0.0
        %9578 = vmatpush1.msra.mxu0 0.0
        %9579 = vmatprep.mubr.f32.mxu0 0.0
        %9580 = vmatmul.mubr.f32.gmra.mrb[0].mxu0 %v9468
        %v9581 = vpop.f32.mrb[0].mxu0
        %v9582 = vadd.f32 %v9466, %v9581
        %v9583 = vpop.f32.mrb[0].mxu0
        %9584 = vmatprep.mubr.f32.mxu0 0.0
        %9585 = vmatmul.mubr.f32.gmra.mrb[0].mxu0 %v9471
        %v9586 = vpop.f32.mrb[0].mxu0
        %v9587 = vadd.f32 %v9466, %v9586
        %v9588 = vpop.f32.mrb[0].mxu0
        %9589 = vmatprep.mubr.f32.mxu0 0.0
        %9590 = vmatmul.mubr.f32.gmra.mrb[0].mxu0 %v9474
        %v9591 = vpop.f32.mrb[0].mxu0
        %v9592 = vadd.f32 %v9466, %v9591
        %v9593 = vpop.f32.mrb[0].mxu0
        %9594 = vmatprep.mubr.f32.mxu0 0.0
        %9595 = vmatmul.mubr.f32.gmra.mrb[0].mxu0 %v9477
        %v9596 = vpop.f32.mrb[0].mxu0
        %v9597 = vadd.f32 %v9466, %v9596
        %v9598 = vpop.f32.mrb[0].mxu0
        %9599 = vmatprep.mubr.f32.mxu0 0.0
        %9600 = vmatmul.mubr.f32.gmra.mrb[0].mxu0 %v9480
        %v9601 = vpop.f32.mrb[0].mxu0
        %v9602 = vadd.f32 %v9466, %v9601
        %v9603 = vpop.f32.mrb[0].mxu0
        %9604 = vmatprep.mubr.f32.mxu0 0.0
        %9605 = vmatmul.mubr.f32.gmra.mrb[0].mxu0 %v9483
        %v9606 = vpop.f32.mrb[0].mxu0
        %v9607 = vadd.f32 %v9466, %v9606
        %v9608 = vpop.f32.mrb[0].mxu0
        %9609 = vmatprep.mubr.f32.mxu0 0.0
        %9610 = vmatmul.mubr.f32.gmra.mrb[0].mxu0 %v9486
        %v9611 = vpop.f32.mrb[0].mxu0
        %v9612 = vadd.f32 %v9466, %v9611
        %v9613 = vpop.f32.mrb[0].mxu0
        %9614 = vmatprep.mubr.f32.mxu0 0.0
        %9615 = vmatmul.mubr.f32.gmra.mrb[0].mxu0 %v9489
        %v9616 = vpop.f32.mrb[0].mxu0
        %v9617 = vadd.f32 %v9466, %v9616
        %v9618 = vpop.f32.mrb[0].mxu0
        %9619 = vmatprep.mubr.f32.mxu0 0.0
        %9620 = vmatmul.mubr.f32.gmra.mrb[0].mxu0 %v9492
        %v9621 = vpop.f32.mrb[0].mxu0
        %v9622 = vadd.f32 %v9466, %v9621
        %v9623 = vpop.f32.mrb[0].mxu0
        %9624 = vmatprep.mubr.f32.mxu0 0.0
        %9625 = vmatmul.mubr.f32.gmra.mrb[0].mxu0 %v9495
        %v9626 = vpop.f32.mrb[0].mxu0
        %v9627 = vadd.f32 %v9466, %v9626
        %v9628 = vpop.f32.mrb[0].mxu0
        %9629 = vmatprep.mubr.f32.mxu0 0.0
        %9630 = vmatmul.mubr.f32.gmra.mrb[0].mxu0 %v9498
        %v9631 = vpop.f32.mrb[0].mxu0
        %v9632 = vadd.f32 %v9466, %v9631
        %v9633 = vpop.f32.mrb[0].mxu0
        %9634 = vmatprep.mubr.f32.mxu0 0.0
        %9635 = vmatmul.mubr.f32.gmra.mrb[0].mxu0 %v9501
        %v9636 = vpop.f32.mrb[0].mxu0
        %v9637 = vadd.f32 %v9466, %v9636
        %v9638 = vpop.f32.mrb[0].mxu0
        %9639 = vmatprep.mubr.f32.mxu0 0.0
        %9640 = vmatmul.mubr.f32.gmra.mrb[0].mxu0 %v9504
        %v9641 = vpop.f32.mrb[0].mxu0
        %v9642 = vadd.f32 %v9466, %v9641
        %v9643 = vpop.f32.mrb[0].mxu0
        %9644 = vmatprep.mubr.f32.mxu0 0.0
        %9645 = vmatmul.mubr.f32.gmra.mrb[0].mxu0 %v9507
        %v9646 = vpop.f32.mrb[0].mxu0
        %v9647 = vadd.f32 %v9466, %v9646
        %v9648 = vpop.f32.mrb[0].mxu0
        %9649 = vmatprep.mubr.f32.mxu0 0.0
        %9650 = vmatmul.mubr.f32.gmra.mrb[0].mxu0 %v9510
        %v9651 = vpop.f32.mrb[0].mxu0
        %v9652 = vadd.f32 %v9466, %v9651
        %v9653 = vpop.f32.mrb[0].mxu0
        %9654 = vmatprep.mubr.f32.mxu0 0.0
        %9655 = vmatmul.mubr.f32.gmra.mrb[0].mxu0 %v9513
        %v9656 = vpop.f32.mrb[0].mxu0
        %v9657 = vadd.f32 %v9466, %v9656
        %v9658 = vpop.f32.mrb[0].mxu0
        %9659 = vdwg.mxu0
        %9660 = vst [vmem:[%s152] sm:$0xff] %v9582
        %9661 = vst [vmem:[%s152 + $0x8] sm:$0xff] %v9587
        %9662 = vst [vmem:[%s152 + $0x10] sm:$0xff] %v9592
        %9663 = vst [vmem:[%s152 + $0x18] sm:$0xff] %v9597
        %9664 = vst [vmem:[%s152 + $0x20] sm:$0xff] %v9602
        %9665 = vst [vmem:[%s152 + $0x28] sm:$0xff] %v9607
        %9666 = vst [vmem:[%s152 + $0x30] sm:$0xff] %v9612
        %9667 = vst [vmem:[%s152 + $0x38] sm:$0xff] %v9617
        %9668 = vst [vmem:[%s152 + $0x40] sm:$0xff] %v9622
        %9669 = vst [vmem:[%s152 + $0x48] sm:$0xff] %v9627
        %9670 = vst [vmem:[%s152 + $0x50] sm:$0xff] %v9632
        %9671 = vst [vmem:[%s152 + $0x58] sm:$0xff] %v9637
        %9672 = vst [vmem:[%s152 + $0x60] sm:$0xff] %v9642
        %9673 = vst [vmem:[%s152 + $0x68] sm:$0xff] %v9647
        %9674 = vst [vmem:[%s152 + $0x70] sm:$0xff] %v9652
        %9675 = vst [vmem:[%s152 + $0x78] sm:$0xff] %v9657
        %s9676 = sand.u32 %s72, 1
        %s9677 = scalar_lea.sflag [#allocation4], %s9676
        %s9678 = sand.u32 %s72, 1
        %s9679 = smul.addr %s9678, 128
        %s9680 = scalar_lea.vmem [#allocation5], %s9679
        // Predicated region
        $region33: #{_soft_module_call.1} parent=27 // pred_check
          %p9681 = pneg %p82
        $region34: #{_soft_module_call.1} parent=27 // pred_check_branch
          %9683 = sbr.rel (%p9681) target = $region36
        $region35: #{_soft_module_call.1} parent=27 // pred_region
          %s9684 = smul.u32 16, %s17
          %s9686 = ssub.s32 2048, 2048
          %9687 = vsyncadd %s9677, %s9686
          %s9688 = smul.addr %s9684, 128
          %s9689 = scalar_lea.hbm %s2, %s9688
          %s9690 = sshll.u32 %s9680, 4
          %s9691 = int_to_ptr.vmem [resolvable:$true] %s9690
          %9696 = dma.vmem_to_hbm [thread:$0]  %s9691, 2048, %s9689, %s9677, 128, 128, 8
        $region36: #{_soft_module_call.1} parent=27 // pred_fallthru
          _
      $region28: #{_soft_module_call.1} parent=5 // pred_fallthru
        _
      %p9697 = scmp.le.s32.totalorder 2, %s12
      // Predicated region
      $region37: #{_soft_module_call.1} parent=5 // pred_check
        %p9698 = pneg %p9697
      $region38: #{_soft_module_call.1} parent=5 // pred_check_branch
        %9700 = sbr.rel (%p9698) target = $region40
      $region39: #{_soft_module_call.1} parent=5 // pred_region
        %s9701 = ssub.s32 %s12, 2
        // Predicated region
        $region41: #{_soft_module_call.1} parent=39 // pred_check
          %p9702 = pneg %p88
        $region42: #{_soft_module_call.1} parent=39 // pred_check_branch
          %9704 = sbr.rel (%p9702) target = $region44
        $region43: #{_soft_module_call.1} parent=39 // pred_region
          %s9705 = sand.u32 %s73, 1
          %s9706 = scalar_lea.sflag [#allocation4], %s9705
          %s9707 = sand.u32 %s73, 1
          %s9708 = smul.addr %s9707, 128
          %s9709 = scalar_lea.vmem [#allocation5], %s9708
          %9710 = dma.done %s9706, 2048
        $region44: #{_soft_module_call.1} parent=39 // pred_fallthru
          _
      $region40: #{_soft_module_call.1} parent=5 // pred_fallthru
        _
    $region6: #{_soft_module_call.1} parent=1 // loop_footer
      %s16 = sadd.s32 1, %s12
    $region7: #{_soft_module_call.1} parent=1 // loop_footer_branch
      %11 = sbr.rel target = $region3
    $region8: #{_soft_module_call.1} parent=1 // loop_exit
      _
    %9711 = vsyncpa [#allocation3], 1
    %s9712 = scalar_lea.sflag [#allocation3], 1
    %9713 = vsyncpa %s9712, 1
    %9714 = vsyncpa [#allocation4], 1
    %s9715 = scalar_lea.sflag [#allocation4], 1
    %9716 = vsyncpa %s9715, 1

</llo_original>
